<compile_context>
chip_gen: v6e
topology: v6e:2x2x1
jax: 0.10.0
libtpu: 0.0.40
codegen_flags: <defaults>
</compile_context>

<pallas_src>
import jax
import jax.numpy as jnp
from jax.experimental import pallas as pl
from jax.experimental.pallas import tpu as pltpu

BN_EPS = 1e-5
KSIZE = 3
POOL = 3


def _round_up(x, m):
    return (x + m - 1) // m * m


def _vmem_specs(n):
    return [pl.BlockSpec(memory_space=pltpu.MemorySpace.VMEM) for _ in range(n)]


# ------------------------- in-kernel compute helpers ------------------------ #

def _conv_bn_relu_pool(p, w, g, beta, count, slab, n_phase):
    """Conv (matmul vs. pre-built patches) + BatchNorm(training) + ReLU + MaxPool(3).

    p:    (K, Wtot) bf16 patches.  Columns = `n_phase` pool-phase slabs of width
          `slab` (128-aligned, each ordered (n, hp, wp), zero-padded), then optional
          edge columns that feed BN statistics only.  No conv bias: zero columns give
          y == 0 exactly, so dividing the raw sums by `count` is exact.
    w:    (Cout, K) bf16.   g, beta: (Cout, 1) f32.
    Returns pooled (Cout, slab) f32; valid columns [0, N*Hp*Wp), order (n, hp, wp).
    """
    y = jnp.dot(w, p, preferred_element_type=jnp.float32)          # (Cout, Wtot)
    inv = 1.0 / float(count)
    s1 = jnp.sum(y, axis=1, keepdims=True)
    s2 = jnp.sum(y * y, axis=1, keepdims=True)
    mean = s1 * inv
    var = s2 * inv - mean * mean                                   # biased variance
    scale = g * jax.lax.rsqrt(var + BN_EPS)
    shift = beta - mean * scale
    # Folded affine + ReLU on the pooled-region slabs only, then the 9-phase max.
    pooled = None
    for t in range(n_phase):
        z = jnp.maximum(y[:, t * slab:(t + 1) * slab] * scale + shift, 0.0)
        pooled = z if pooled is None else jnp.maximum(pooled, z)
    return pooled


def make_conv_stage_kernel(count, slab, n_valid, n_phase=POOL * POOL):
    """Stage 1: conv + BN + ReLU + MaxPool(3); padded output lanes are zeroed."""

    def kernel(p_ref, w_ref, g_ref, beta_ref, o_ref):
        pooled = _conv_bn_relu_pool(p_ref[...], w_ref[...], g_ref[...], beta_ref[...],
                                    count, slab, n_phase)
        col = jax.lax.broadcasted_iota(jnp.int32, pooled.shape, 1)
        o_ref[...] = jnp.where(col < n_valid, pooled, 0.0)

    return kernel


def make_conv_fc_kernel(count, slab, n_batch, feat_hw, cout, n_phase=POOL * POOL):
    """Stage 2 fused: conv2 + BN2 + ReLU + MaxPool(3) + fc3 + ReLU + fc4."""

    def kernel(p_ref, w_ref, g_ref, beta_ref, a3_ref, b3_ref, w4_ref, b4_ref, o_ref):
        pooled = _conv_bn_relu_pool(p_ref[...], w_ref[...], g_ref[...], beta_ref[...],
                                    count, slab, n_phase)          # (cout, slab)
        # PyTorch flatten order is (c, h, w).  Instead of an in-kernel reshape, the
        # 720-feature contraction is done per (sample, channel):
        #   h_n = bias3 + sum_c pooled[c, n-block(36)] @ fc3_w.reshape(20,36,100)[c]
        for n in range(n_batch):
            block = pooled[:, n * feat_hw:(n + 1) * feat_hw]       # (cout, feat_hw) f32
            acc = b3_ref[...]                                      # (1, 100) f32
            for c in range(cout):
                lhs = block[c:c + 1, :].astype(jnp.bfloat16)       # (1, feat_hw)
                acc = acc + jnp.dot(lhs, a3_ref[c],
                                    preferred_element_type=jnp.float32)
            h = jnp.maximum(acc, 0.0)                              # (1, 100)
            out = jnp.dot(h, w4_ref[...],
                          preferred_element_type=jnp.float32) + b4_ref[...]
            o_ref[pl.ds(n, 1), :] = out                            # (1, 15)

    return kernel


# ----------------------------- pallas_call wrappers ------------------------- #

def conv_stage(p, w2d, gamma, beta, count, slab, n_valid):
    cout = w2d.shape[0]
    return pl.pallas_call(
        make_conv_stage_kernel(count, slab, n_valid),
        out_shape=jax.ShapeDtypeStruct((cout, slab), jnp.float32),
        in_specs=_vmem_specs(4),
        out_specs=pl.BlockSpec(memory_space=pltpu.MemorySpace.VMEM),
    )(p, w2d, gamma.reshape(cout, 1), beta.reshape(cout, 1))


def conv_fc_stage(p, w2d, gamma, beta, a3, b3, w4, b4, count, slab, n_batch, feat_hw):
    cout = w2d.shape[0]
    return pl.pallas_call(
        make_conv_fc_kernel(count, slab, n_batch, feat_hw, cout),
        out_shape=jax.ShapeDtypeStruct((n_batch, w4.shape[1]), jnp.float32),
        in_specs=_vmem_specs(8),
        out_specs=pl.BlockSpec(memory_space=pltpu.MemorySpace.VMEM),
    )(p, w2d, gamma.reshape(cout, 1), beta.reshape(cout, 1),
      a3, b3.reshape(1, -1), w4, b4.reshape(1, -1))


# ------------------------------- XLA glue ----------------------------------- #

def build_conv_pool_patches(a, k=KSIZE, pool=POOL):
    """a: (Cin, N, H, W) f32 channel-major -> bf16 patches for the fused kernels.

    Columns: pool*pool phase slabs (width `slab`, 128-aligned, zero-padded), each
    ordered (n, hp, wp); then zero-padded edge columns (conv positions dropped by the
    pool, still needed for exact BN batch statistics).  Row (feature) order is
    (cin, ki, kj), matching torch_weight.reshape(Cout, Cin*k*k).
    """
    Cin, N, H, W = a.shape
    Ho, Wo = H - k + 1, W - k + 1
    Hp, Wp = Ho // pool, Wo // pool
    Hc, Wc = Hp * pool, Wp * pool
    K = Cin * k * k

    taps = jnp.stack([a[:, :, ki:ki + Ho, kj:kj + Wo]
                      for ki in range(k) for kj in range(k)], axis=1)  # (Cin,9,N,Ho,Wo)
    cols = taps.reshape(K, N, Ho, Wo)                                  # rows (cin,ki,kj)

    slab = _round_up(N * Hp * Wp, 128)
    pc = cols[:, :, :Hc, :Wc].reshape(K, N, Hp, pool, Wp, pool)
    pc = pc.transpose(0, 3, 5, 1, 2, 4).reshape(K, pool * pool, N * Hp * Wp)
    pc = jnp.pad(pc, ((0, 0), (0, 0), (0, slab - N * Hp * Wp)))
    patches = pc.reshape(K, pool * pool * slab)

    n_edge = N * (Ho * Wo - Hc * Wc)
    if n_edge:
        e1 = cols[:, :, Hc:, :].reshape(K, -1)
        e2 = cols[:, :, :Hc, Wc:].reshape(K, -1)
        edge = jnp.concatenate([e1, e2], axis=1)
        edge = jnp.pad(edge, ((0, 0), (0, _round_up(n_edge, 128) - n_edge)))
        patches = jnp.concatenate([patches, edge], axis=1)

    return patches.astype(jnp.bfloat16), N * Ho * Wo, slab, (Hp, Wp)


# --------------------------- parameters & forward --------------------------- #

def init_params(key):
    """Deterministic synthetic parameters (PyTorch default-like fan-in scaling).
    Linear weights stored as (in, out) = transpose of PyTorch's (out, in).
    Conv biases are kept for module parity but are mathematically inert under
    training-mode BatchNorm (absorbed into the batch mean) and unused."""
    ks = jax.random.split(key, 8)

    def u(k, shape, fan_in):
        bound = 1.0 / jnp.sqrt(jnp.float32(fan_in))
        return jax.random.uniform(k, shape, jnp.float32, -bound, bound)

    return {
        "conv1_w": u(ks[0], (10, 1, 3, 3), 9),
        "conv1_b": u(ks[1], (10,), 9),          # inert under training-mode BN
        "bn1_g": jnp.ones((10,), jnp.float32),
        "bn1_b": jnp.zeros((10,), jnp.float32),
        "conv2_w": u(ks[2], (20, 10, 3, 3), 90),
        "conv2_b": u(ks[3], (20,), 90),         # inert under training-mode BN
        "bn2_g": jnp.ones((20,), jnp.float32),
        "bn2_b": jnp.zeros((20,), jnp.float32),
        "fc3_w": u(ks[4], (720, 100), 720),
        "fc3_b": u(ks[5], (100,), 720),
        "fc4_w": u(ks[6], (100, 15), 100),
        "fc4_b": u(ks[7], (15,), 100),
    }


@jax.jit
def simple_net_forward(params, x):
    """x: (N, 1, 64, 64) NCHW -> raw scores (N, 15)."""
    N = x.shape[0]
    w1 = params["conv1_w"].reshape(10, -1).astype(jnp.bfloat16)   # (10, 9)
    w2 = params["conv2_w"].reshape(20, -1).astype(jnp.bfloat16)   # (20, 90)

    # Stage 1: conv1 + BN1 + ReLU + MaxPool2d(3)  -> channel-major (10, N, 20, 20)
    p1, cnt1, slab1, (hp1, wp1) = build_conv_pool_patches(jnp.transpose(x, (1, 0, 2, 3)))
    o1 = conv_stage(p1, w1, params["bn1_g"], params["bn1_b"], cnt1, slab1,
                    N * hp1 * wp1)                                 # (10, slab1)
    a1 = o1[:, :N * hp1 * wp1].reshape(10, N, hp1, wp1)            # no NCHW transpose

    # Stage 2 + FC in ONE pallas_call: conv2+BN2+ReLU+pool, then fc3 -> ReLU -> fc4.
    p2, cnt2, slab2, (hp2, wp2) = build_conv_pool_patches(a1)
    feat_hw = hp2 * wp2                                            # 36
    a3 = params["fc3_w"].reshape(20, feat_hw, 100).astype(jnp.bfloat16)
    return conv_fc_stage(p2, w2, params["bn2_g"], params["bn2_b"], a3,
                         params["fc3_b"], params["fc4_w"], params["fc4_b"],
                         cnt2, slab2, N, feat_hw)                  # (N, 15)


if __name__ == "__main__":
    key = jax.random.PRNGKey(0)
    k_x, k_p = jax.random.split(key)
    # 64x64 single-channel input so the flattened conv features are exactly 720.
    x = jax.random.normal(k_x, (2, 1, 64, 64), dtype=jnp.float32)
    params = init_params(k_p)

    out = simple_net_forward(params, x)
    out = jax.block_until_ready(out)
    assert out.shape == (2, 15) and out.dtype == jnp.float32
    print("KERNEL_OK")
</pallas_src>

<mosaic_0001>
module attributes {stable_mosaic.version = 11 : i64} {
  func.func @kernel(%arg0: memref<9x8576xbf16, #tpu.memory_space<vmem>>, %arg1: memref<10x9xbf16, #tpu.memory_space<vmem>>, %arg2: memref<10x1xf32, #tpu.memory_space<vmem>>, %arg3: memref<10x1xf32, #tpu.memory_space<vmem>>, %arg4: memref<10x896xf32, #tpu.memory_space<vmem>>) attributes {dimension_semantics = [], scalar_prefetch = 0 : i64, scratch_operands = 0 : i64, tpu.core_type = #tpu.core_type<tc>} {
    %c0 = arith.constant 0 : index
    %c0_0 = arith.constant 0 : index
    %0 = vector.load %arg0[%c0, %c0_0] : memref<9x8576xbf16, #tpu.memory_space<vmem>>, vector<9x8576xbf16>
    %c0_1 = arith.constant 0 : index
    %c0_2 = arith.constant 0 : index
    %1 = vector.load %arg1[%c0_1, %c0_2] : memref<10x9xbf16, #tpu.memory_space<vmem>>, vector<10x9xbf16>
    %c0_3 = arith.constant 0 : index
    %c0_4 = arith.constant 0 : index
    %2 = vector.load %arg2[%c0_3, %c0_4] : memref<10x1xf32, #tpu.memory_space<vmem>>, vector<10x1xf32>
    %c0_5 = arith.constant 0 : index
    %c0_6 = arith.constant 0 : index
    %3 = vector.load %arg3[%c0_5, %c0_6] : memref<10x1xf32, #tpu.memory_space<vmem>>, vector<10x1xf32>
    %cst = arith.constant dense<0.000000e+00> : vector<10x8576xf32>
    %4 = tpu.matmul %1, %0, %cst {dimension_numbers = #tpu.dot_dimension_numbers<[1], [0], [0], [1], [0, 0, 1, 1], [], []>} : vector<10x9xbf16>, vector<9x8576xbf16>, vector<10x8576xf32> -> vector<10x8576xf32>
    %cst_7 = arith.constant dense<0.000000e+00> : vector<10xf32>
    %5 = vector.multi_reduction <add>, %4, %cst_7 [1] : vector<10x8576xf32> to vector<10xf32>
    %6 = vector.shape_cast %5 : vector<10xf32> to vector<10x1xf32>
    %7 = arith.mulf %4, %4 : vector<10x8576xf32>
    %cst_8 = arith.constant dense<0.000000e+00> : vector<10xf32>
    %8 = vector.multi_reduction <add>, %7, %cst_8 [1] : vector<10x8576xf32> to vector<10xf32>
    %9 = vector.shape_cast %8 : vector<10xf32> to vector<10x1xf32>
    %cst_9 = arith.constant 1.30072847E-4 : f32
    %10 = vector.broadcast %cst_9 : f32 to vector<10x1xf32>
    %11 = arith.mulf %6, %10 : vector<10x1xf32>
    %cst_10 = arith.constant 1.30072847E-4 : f32
    %12 = vector.broadcast %cst_10 : f32 to vector<10x1xf32>
    %13 = arith.mulf %9, %12 : vector<10x1xf32>
    %14 = arith.mulf %11, %11 : vector<10x1xf32>
    %15 = arith.subf %13, %14 : vector<10x1xf32>
    %cst_11 = arith.constant 9.99999974E-6 : f32
    %16 = vector.broadcast %cst_11 : f32 to vector<10x1xf32>
    %17 = arith.addf %15, %16 : vector<10x1xf32>
    %18 = math.rsqrt %17 : vector<10x1xf32>
    %19 = arith.mulf %2, %18 : vector<10x1xf32>
    %20 = arith.mulf %11, %19 : vector<10x1xf32>
    %21 = arith.subf %3, %20 : vector<10x1xf32>
    %22 = vector.extract_strided_slice %4 {offsets = [0, 0], sizes = [10, 896], strides = [1, 1]} : vector<10x8576xf32> to vector<10x896xf32>
    %23 = vector.broadcast %19 : vector<10x1xf32> to vector<10x896xf32>
    %24 = arith.mulf %22, %23 : vector<10x896xf32>
    %25 = vector.broadcast %21 : vector<10x1xf32> to vector<10x896xf32>
    %26 = arith.addf %24, %25 : vector<10x896xf32>
    %cst_12 = arith.constant 0.000000e+00 : f32
    %27 = vector.broadcast %cst_12 : f32 to vector<10x896xf32>
    %28 = arith.maximumf %26, %27 : vector<10x896xf32>
    %29 = vector.extract_strided_slice %4 {offsets = [0, 896], sizes = [10, 896], strides = [1, 1]} : vector<10x8576xf32> to vector<10x896xf32>
    %30 = vector.broadcast %19 : vector<10x1xf32> to vector<10x896xf32>
    %31 = arith.mulf %29, %30 : vector<10x896xf32>
    %32 = vector.broadcast %21 : vector<10x1xf32> to vector<10x896xf32>
    %33 = arith.addf %31, %32 : vector<10x896xf32>
    %cst_13 = arith.constant 0.000000e+00 : f32
    %34 = vector.broadcast %cst_13 : f32 to vector<10x896xf32>
    %35 = arith.maximumf %33, %34 : vector<10x896xf32>
    %36 = arith.maximumf %28, %35 : vector<10x896xf32>
    %37 = vector.extract_strided_slice %4 {offsets = [0, 1792], sizes = [10, 896], strides = [1, 1]} : vector<10x8576xf32> to vector<10x896xf32>
    %38 = vector.broadcast %19 : vector<10x1xf32> to vector<10x896xf32>
    %39 = arith.mulf %37, %38 : vector<10x896xf32>
    %40 = vector.broadcast %21 : vector<10x1xf32> to vector<10x896xf32>
    %41 = arith.addf %39, %40 : vector<10x896xf32>
    %cst_14 = arith.constant 0.000000e+00 : f32
    %42 = vector.broadcast %cst_14 : f32 to vector<10x896xf32>
    %43 = arith.maximumf %41, %42 : vector<10x896xf32>
    %44 = arith.maximumf %36, %43 : vector<10x896xf32>
    %45 = vector.extract_strided_slice %4 {offsets = [0, 2688], sizes = [10, 896], strides = [1, 1]} : vector<10x8576xf32> to vector<10x896xf32>
    %46 = vector.broadcast %19 : vector<10x1xf32> to vector<10x896xf32>
    %47 = arith.mulf %45, %46 : vector<10x896xf32>
    %48 = vector.broadcast %21 : vector<10x1xf32> to vector<10x896xf32>
    %49 = arith.addf %47, %48 : vector<10x896xf32>
    %cst_15 = arith.constant 0.000000e+00 : f32
    %50 = vector.broadcast %cst_15 : f32 to vector<10x896xf32>
    %51 = arith.maximumf %49, %50 : vector<10x896xf32>
    %52 = arith.maximumf %44, %51 : vector<10x896xf32>
    %53 = vector.extract_strided_slice %4 {offsets = [0, 3584], sizes = [10, 896], strides = [1, 1]} : vector<10x8576xf32> to vector<10x896xf32>
    %54 = vector.broadcast %19 : vector<10x1xf32> to vector<10x896xf32>
    %55 = arith.mulf %53, %54 : vector<10x896xf32>
    %56 = vector.broadcast %21 : vector<10x1xf32> to vector<10x896xf32>
    %57 = arith.addf %55, %56 : vector<10x896xf32>
    %cst_16 = arith.constant 0.000000e+00 : f32
    %58 = vector.broadcast %cst_16 : f32 to vector<10x896xf32>
    %59 = arith.maximumf %57, %58 : vector<10x896xf32>
    %60 = arith.maximumf %52, %59 : vector<10x896xf32>
    %61 = vector.extract_strided_slice %4 {offsets = [0, 4480], sizes = [10, 896], strides = [1, 1]} : vector<10x8576xf32> to vector<10x896xf32>
    %62 = vector.broadcast %19 : vector<10x1xf32> to vector<10x896xf32>
    %63 = arith.mulf %61, %62 : vector<10x896xf32>
    %64 = vector.broadcast %21 : vector<10x1xf32> to vector<10x896xf32>
    %65 = arith.addf %63, %64 : vector<10x896xf32>
    %cst_17 = arith.constant 0.000000e+00 : f32
    %66 = vector.broadcast %cst_17 : f32 to vector<10x896xf32>
    %67 = arith.maximumf %65, %66 : vector<10x896xf32>
    %68 = arith.maximumf %60, %67 : vector<10x896xf32>
    %69 = vector.extract_strided_slice %4 {offsets = [0, 5376], sizes = [10, 896], strides = [1, 1]} : vector<10x8576xf32> to vector<10x896xf32>
    %70 = vector.broadcast %19 : vector<10x1xf32> to vector<10x896xf32>
    %71 = arith.mulf %69, %70 : vector<10x896xf32>
    %72 = vector.broadcast %21 : vector<10x1xf32> to vector<10x896xf32>
    %73 = arith.addf %71, %72 : vector<10x896xf32>
    %cst_18 = arith.constant 0.000000e+00 : f32
    %74 = vector.broadcast %cst_18 : f32 to vector<10x896xf32>
    %75 = arith.maximumf %73, %74 : vector<10x896xf32>
    %76 = arith.maximumf %68, %75 : vector<10x896xf32>
    %77 = vector.extract_strided_slice %4 {offsets = [0, 6272], sizes = [10, 896], strides = [1, 1]} : vector<10x8576xf32> to vector<10x896xf32>
    %78 = vector.broadcast %19 : vector<10x1xf32> to vector<10x896xf32>
    %79 = arith.mulf %77, %78 : vector<10x896xf32>
    %80 = vector.broadcast %21 : vector<10x1xf32> to vector<10x896xf32>
    %81 = arith.addf %79, %80 : vector<10x896xf32>
    %cst_19 = arith.constant 0.000000e+00 : f32
    %82 = vector.broadcast %cst_19 : f32 to vector<10x896xf32>
    %83 = arith.maximumf %81, %82 : vector<10x896xf32>
    %84 = arith.maximumf %76, %83 : vector<10x896xf32>
    %85 = vector.extract_strided_slice %4 {offsets = [0, 7168], sizes = [10, 896], strides = [1, 1]} : vector<10x8576xf32> to vector<10x896xf32>
    %86 = vector.broadcast %19 : vector<10x1xf32> to vector<10x896xf32>
    %87 = arith.mulf %85, %86 : vector<10x896xf32>
    %88 = vector.broadcast %21 : vector<10x1xf32> to vector<10x896xf32>
    %89 = arith.addf %87, %88 : vector<10x896xf32>
    %cst_20 = arith.constant 0.000000e+00 : f32
    %90 = vector.broadcast %cst_20 : f32 to vector<10x896xf32>
    %91 = arith.maximumf %89, %90 : vector<10x896xf32>
    %92 = arith.maximumf %84, %91 : vector<10x896xf32>
    %93 = tpu.iota {dimensions = array<i32: 1>} : vector<10x896xi32>
    %c800_i32 = arith.constant 800 : i32
    %94 = vector.broadcast %c800_i32 : i32 to vector<10x896xi32>
    %95 = arith.cmpi slt, %93, %94 : vector<10x896xi32>
    %cst_21 = arith.constant 0.000000e+00 : f32
    %96 = vector.broadcast %cst_21 : f32 to vector<10x896xf32>
    %97 = arith.select %95, %92, %96 : vector<10x896xi1>, vector<10x896xf32>
    %c0_22 = arith.constant 0 : index
    %c0_23 = arith.constant 0 : index
    %98 = vector.load %arg4[%c0_22, %c0_23] : memref<10x896xf32, #tpu.memory_space<vmem>>, vector<10x896xf32>
    tpu.vector_store %arg4[%c0_22, %c0_23], %97 {strides = array<i32>} : memref<10x896xf32, #tpu.memory_space<vmem>>, vector<10x896xf32>,
    return
  }
}

module attributes {stable_mosaic.version = 11 : i64} {
  func.func @kernel(%arg0: memref<90x1152xbf16, #tpu.memory_space<vmem>>, %arg1: memref<20x90xbf16, #tpu.memory_space<vmem>>, %arg2: memref<20x1xf32, #tpu.memory_space<vmem>>, %arg3: memref<20x1xf32, #tpu.memory_space<vmem>>, %arg4: memref<20x36x100xbf16, #tpu.memory_space<vmem>>, %arg5: memref<1x100xf32, #tpu.memory_space<vmem>>, %arg6: memref<100x15xf32, #tpu.memory_space<vmem>>, %arg7: memref<1x15xf32, #tpu.memory_space<vmem>>, %arg8: memref<2x15xf32, #tpu.memory_space<vmem>>) attributes {dimension_semantics = [], scalar_prefetch = 0 : i64, scratch_operands = 0 : i64, tpu.core_type = #tpu.core_type<tc>} {
    %c0 = arith.constant 0 : index
    %c0_0 = arith.constant 0 : index
    %0 = vector.load %arg0[%c0, %c0_0] : memref<90x1152xbf16, #tpu.memory_space<vmem>>, vector<90x1152xbf16>
    %c0_1 = arith.constant 0 : index
    %c0_2 = arith.constant 0 : index
    %1 = vector.load %arg1[%c0_1, %c0_2] : memref<20x90xbf16, #tpu.memory_space<vmem>>, vector<20x90xbf16>
    %c0_3 = arith.constant 0 : index
    %c0_4 = arith.constant 0 : index
    %2 = vector.load %arg2[%c0_3, %c0_4] : memref<20x1xf32, #tpu.memory_space<vmem>>, vector<20x1xf32>
    %c0_5 = arith.constant 0 : index
    %c0_6 = arith.constant 0 : index
    %3 = vector.load %arg3[%c0_5, %c0_6] : memref<20x1xf32, #tpu.memory_space<vmem>>, vector<20x1xf32>
    %cst = arith.constant dense<0.000000e+00> : vector<20x1152xf32>
    %4 = tpu.matmul %1, %0, %cst {dimension_numbers = #tpu.dot_dimension_numbers<[1], [0], [0], [1], [0, 0, 1, 1], [], []>} : vector<20x90xbf16>, vector<90x1152xbf16>, vector<20x1152xf32> -> vector<20x1152xf32>
    %cst_7 = arith.constant dense<0.000000e+00> : vector<20xf32>
    %5 = vector.multi_reduction <add>, %4, %cst_7 [1] : vector<20x1152xf32> to vector<20xf32>
    %6 = vector.shape_cast %5 : vector<20xf32> to vector<20x1xf32>
    %7 = arith.mulf %4, %4 : vector<20x1152xf32>
    %cst_8 = arith.constant dense<0.000000e+00> : vector<20xf32>
    %8 = vector.multi_reduction <add>, %7, %cst_8 [1] : vector<20x1152xf32> to vector<20xf32>
    %9 = vector.shape_cast %8 : vector<20xf32> to vector<20x1xf32>
    %cst_9 = arith.constant 0.00154320989 : f32
    %10 = vector.broadcast %cst_9 : f32 to vector<20x1xf32>
    %11 = arith.mulf %6, %10 : vector<20x1xf32>
    %cst_10 = arith.constant 0.00154320989 : f32
    %12 = vector.broadcast %cst_10 : f32 to vector<20x1xf32>
    %13 = arith.mulf %9, %12 : vector<20x1xf32>
    %14 = arith.mulf %11, %11 : vector<20x1xf32>
    %15 = arith.subf %13, %14 : vector<20x1xf32>
    %cst_11 = arith.constant 9.99999974E-6 : f32
    %16 = vector.broadcast %cst_11 : f32 to vector<20x1xf32>
    %17 = arith.addf %15, %16 : vector<20x1xf32>
    %18 = math.rsqrt %17 : vector<20x1xf32>
    %19 = arith.mulf %2, %18 : vector<20x1xf32>
    %20 = arith.mulf %11, %19 : vector<20x1xf32>
    %21 = arith.subf %3, %20 : vector<20x1xf32>
    %22 = vector.extract_strided_slice %4 {offsets = [0, 0], sizes = [20, 128], strides = [1, 1]} : vector<20x1152xf32> to vector<20x128xf32>
    %23 = vector.broadcast %19 : vector<20x1xf32> to vector<20x128xf32>
    %24 = arith.mulf %22, %23 : vector<20x128xf32>
    %25 = vector.broadcast %21 : vector<20x1xf32> to vector<20x128xf32>
    %26 = arith.addf %24, %25 : vector<20x128xf32>
    %cst_12 = arith.constant 0.000000e+00 : f32
    %27 = vector.broadcast %cst_12 : f32 to vector<20x128xf32>
    %28 = arith.maximumf %26, %27 : vector<20x128xf32>
    %29 = vector.extract_strided_slice %4 {offsets = [0, 128], sizes = [20, 128], strides = [1, 1]} : vector<20x1152xf32> to vector<20x128xf32>
    %30 = vector.broadcast %19 : vector<20x1xf32> to vector<20x128xf32>
    %31 = arith.mulf %29, %30 : vector<20x128xf32>
    %32 = vector.broadcast %21 : vector<20x1xf32> to vector<20x128xf32>
    %33 = arith.addf %31, %32 : vector<20x128xf32>
    %cst_13 = arith.constant 0.000000e+00 : f32
    %34 = vector.broadcast %cst_13 : f32 to vector<20x128xf32>
    %35 = arith.maximumf %33, %34 : vector<20x128xf32>
    %36 = arith.maximumf %28, %35 : vector<20x128xf32>
    %37 = vector.extract_strided_slice %4 {offsets = [0, 256], sizes = [20, 128], strides = [1, 1]} : vector<20x1152xf32> to vector<20x128xf32>
    %38 = vector.broadcast %19 : vector<20x1xf32> to vector<20x128xf32>
    %39 = arith.mulf %37, %38 : vector<20x128xf32>
    %40 = vector.broadcast %21 : vector<20x1xf32> to vector<20x128xf32>
    %41 = arith.addf %39, %40 : vector<20x128xf32>
    %cst_14 = arith.constant 0.000000e+00 : f32
    %42 = vector.broadcast %cst_14 : f32 to vector<20x128xf32>
    %43 = arith.maximumf %41, %42 : vector<20x128xf32>
    %44 = arith.maximumf %36, %43 : vector<20x128xf32>
    %45 = vector.extract_strided_slice %4 {offsets = [0, 384], sizes = [20, 128], strides = [1, 1]} : vector<20x1152xf32> to vector<20x128xf32>
    %46 = vector.broadcast %19 : vector<20x1xf32> to vector<20x128xf32>
    %47 = arith.mulf %45, %46 : vector<20x128xf32>
    %48 = vector.broadcast %21 : vector<20x1xf32> to vector<20x128xf32>
    %49 = arith.addf %47, %48 : vector<20x128xf32>
    %cst_15 = arith.constant 0.000000e+00 : f32
    %50 = vector.broadcast %cst_15 : f32 to vector<20x128xf32>
    %51 = arith.maximumf %49, %50 : vector<20x128xf32>
    %52 = arith.maximumf %44, %51 : vector<20x128xf32>
    %53 = vector.extract_strided_slice %4 {offsets = [0, 512], sizes = [20, 128], strides = [1, 1]} : vector<20x1152xf32> to vector<20x128xf32>
    %54 = vector.broadcast %19 : vector<20x1xf32> to vector<20x128xf32>
    %55 = arith.mulf %53, %54 : vector<20x128xf32>
    %56 = vector.broadcast %21 : vector<20x1xf32> to vector<20x128xf32>
    %57 = arith.addf %55, %56 : vector<20x128xf32>
    %cst_16 = arith.constant 0.000000e+00 : f32
    %58 = vector.broadcast %cst_16 : f32 to vector<20x128xf32>
    %59 = arith.maximumf %57, %58 : vector<20x128xf32>
    %60 = arith.maximumf %52, %59 : vector<20x128xf32>
    %61 = vector.extract_strided_slice %4 {offsets = [0, 640], sizes = [20, 128], strides = [1, 1]} : vector<20x1152xf32> to vector<20x128xf32>
    %62 = vector.broadcast %19 : vector<20x1xf32> to vector<20x128xf32>
    %63 = arith.mulf %61, %62 : vector<20x128xf32>
    %64 = vector.broadcast %21 : vector<20x1xf32> to vector<20x128xf32>
    %65 = arith.addf %63, %64 : vector<20x128xf32>
    %cst_17 = arith.constant 0.000000e+00 : f32
    %66 = vector.broadcast %cst_17 : f32 to vector<20x128xf32>
    %67 = arith.maximumf %65, %66 : vector<20x128xf32>
    %68 = arith.maximumf %60, %67 : vector<20x128xf32>
    %69 = vector.extract_strided_slice %4 {offsets = [0, 768], sizes = [20, 128], strides = [1, 1]} : vector<20x1152xf32> to vector<20x128xf32>
    %70 = vector.broadcast %19 : vector<20x1xf32> to vector<20x128xf32>
    %71 = arith.mulf %69, %70 : vector<20x128xf32>
    %72 = vector.broadcast %21 : vector<20x1xf32> to vector<20x128xf32>
    %73 = arith.addf %71, %72 : vector<20x128xf32>
    %cst_18 = arith.constant 0.000000e+00 : f32
    %74 = vector.broadcast %cst_18 : f32 to vector<20x128xf32>
    %75 = arith.maximumf %73, %74 : vector<20x128xf32>
    %76 = arith.maximumf %68, %75 : vector<20x128xf32>
    %77 = vector.extract_strided_slice %4 {offsets = [0, 896], sizes = [20, 128], strides = [1, 1]} : vector<20x1152xf32> to vector<20x128xf32>
    %78 = vector.broadcast %19 : vector<20x1xf32> to vector<20x128xf32>
    %79 = arith.mulf %77, %78 : vector<20x128xf32>
    %80 = vector.broadcast %21 : vector<20x1xf32> to vector<20x128xf32>
    %81 = arith.addf %79, %80 : vector<20x128xf32>
    %cst_19 = arith.constant 0.000000e+00 : f32
    %82 = vector.broadcast %cst_19 : f32 to vector<20x128xf32>
    %83 = arith.maximumf %81, %82 : vector<20x128xf32>
    %84 = arith.maximumf %76, %83 : vector<20x128xf32>
    %85 = vector.extract_strided_slice %4 {offsets = [0, 1024], sizes = [20, 128], strides = [1, 1]} : vector<20x1152xf32> to vector<20x128xf32>
    %86 = vector.broadcast %19 : vector<20x1xf32> to vector<20x128xf32>
    %87 = arith.mulf %85, %86 : vector<20x128xf32>
    %88 = vector.broadcast %21 : vector<20x1xf32> to vector<20x128xf32>
    %89 = arith.addf %87, %88 : vector<20x128xf32>
    %cst_20 = arith.constant 0.000000e+00 : f32
    %90 = vector.broadcast %cst_20 : f32 to vector<20x128xf32>
    %91 = arith.maximumf %89, %90 : vector<20x128xf32>
    %92 = arith.maximumf %84, %91 : vector<20x128xf32>
    %93 = vector.extract_strided_slice %92 {offsets = [0, 0], sizes = [20, 36], strides = [1, 1]} : vector<20x128xf32> to vector<20x36xf32>
    %c0_21 = arith.constant 0 : index
    %c0_22 = arith.constant 0 : index
    %94 = vector.load %arg5[%c0_21, %c0_22] : memref<1x100xf32, #tpu.memory_space<vmem>>, vector<1x100xf32>
    %95 = vector.extract_strided_slice %93 {offsets = [0, 0], sizes = [1, 36], strides = [1, 1]} : vector<20x36xf32> to vector<1x36xf32>
    %96 = arith.truncf %95 : vector<1x36xf32> to vector<1x36xbf16>
    %c0_23 = arith.constant 0 : index
    %c0_24 = arith.constant 0 : index
    %c0_25 = arith.constant 0 : index
    %97 = vector.load %arg4[%c0_23, %c0_24, %c0_25] : memref<20x36x100xbf16, #tpu.memory_space<vmem>>, vector<1x36x100xbf16>
    %98 = vector.shape_cast %97 : vector<1x36x100xbf16> to vector<36x100xbf16>
    %cst_26 = arith.constant dense<0.000000e+00> : vector<1x100xf32>
    %99 = tpu.matmul %96, %98, %cst_26 {dimension_numbers = #tpu.dot_dimension_numbers<[1], [0], [0], [1], [0, 0, 1, 1], [], []>} : vector<1x36xbf16>, vector<36x100xbf16>, vector<1x100xf32> -> vector<1x100xf32>
    %100 = arith.addf %94, %99 : vector<1x100xf32>
    %101 = vector.extract_strided_slice %93 {offsets = [1, 0], sizes = [1, 36], strides = [1, 1]} : vector<20x36xf32> to vector<1x36xf32>
    %102 = arith.truncf %101 : vector<1x36xf32> to vector<1x36xbf16>
    %c1 = arith.constant 1 : index
    %c0_27 = arith.constant 0 : index
    %c0_28 = arith.constant 0 : index
    %103 = vector.load %arg4[%c1, %c0_27, %c0_28] : memref<20x36x100xbf16, #tpu.memory_space<vmem>>, vector<1x36x100xbf16>
    %104 = vector.shape_cast %103 : vector<1x36x100xbf16> to vector<36x100xbf16>
    %cst_29 = arith.constant dense<0.000000e+00> : vector<1x100xf32>
    %105 = tpu.matmul %102, %104, %cst_29 {dimension_numbers = #tpu.dot_dimension_numbers<[1], [0], [0], [1], [0, 0, 1, 1], [], []>} : vector<1x36xbf16>, vector<36x100xbf16>, vector<1x100xf32> -> vector<1x100xf32>
    %106 = arith.addf %100, %105 : vector<1x100xf32>
    %107 = vector.extract_strided_slice %93 {offsets = [2, 0], sizes = [1, 36], strides = [1, 1]} : vector<20x36xf32> to vector<1x36xf32>
    %108 = arith.truncf %107 : vector<1x36xf32> to vector<1x36xbf16>
    %c2 = arith.constant 2 : index
    %c0_30 = arith.constant 0 : index
    %c0_31 = arith.constant 0 : index
    %109 = vector.load %arg4[%c2, %c0_30, %c0_31] : memref<20x36x100xbf16, #tpu.memory_space<vmem>>, vector<1x36x100xbf16>
    %110 = vector.shape_cast %109 : vector<1x36x100xbf16> to vector<36x100xbf16>
    %cst_32 = arith.constant dense<0.000000e+00> : vector<1x100xf32>
    %111 = tpu.matmul %108, %110, %cst_32 {dimension_numbers = #tpu.dot_dimension_numbers<[1], [0], [0], [1], [0, 0, 1, 1], [], []>} : vector<1x36xbf16>, vector<36x100xbf16>, vector<1x100xf32> -> vector<1x100xf32>
    %112 = arith.addf %106, %111 : vector<1x100xf32>
    %113 = vector.extract_strided_slice %93 {offsets = [3, 0], sizes = [1, 36], strides = [1, 1]} : vector<20x36xf32> to vector<1x36xf32>
    %114 = arith.truncf %113 : vector<1x36xf32> to vector<1x36xbf16>
    %c3 = arith.constant 3 : index
    %c0_33 = arith.constant 0 : index
    %c0_34 = arith.constant 0 : index
    %115 = vector.load %arg4[%c3, %c0_33, %c0_34] : memref<20x36x100xbf16, #tpu.memory_space<vmem>>, vector<1x36x100xbf16>
    %116 = vector.shape_cast %115 : vector<1x36x100xbf16> to vector<36x100xbf16>
    %cst_35 = arith.constant dense<0.000000e+00> : vector<1x100xf32>
    %117 = tpu.matmul %114, %116, %cst_35 {dimension_numbers = #tpu.dot_dimension_numbers<[1], [0], [0], [1], [0, 0, 1, 1], [], []>} : vector<1x36xbf16>, vector<36x100xbf16>, vector<1x100xf32> -> vector<1x100xf32>
    %118 = arith.addf %112, %117 : vector<1x100xf32>
    %119 = vector.extract_strided_slice %93 {offsets = [4, 0], sizes = [1, 36], strides = [1, 1]} : vector<20x36xf32> to vector<1x36xf32>
    %120 = arith.truncf %119 : vector<1x36xf32> to vector<1x36xbf16>
    %c4 = arith.constant 4 : index
    %c0_36 = arith.constant 0 : index
    %c0_37 = arith.constant 0 : index
    %121 = vector.load %arg4[%c4, %c0_36, %c0_37] : memref<20x36x100xbf16, #tpu.memory_space<vmem>>, vector<1x36x100xbf16>
    %122 = vector.shape_cast %121 : vector<1x36x100xbf16> to vector<36x100xbf16>
    %cst_38 = arith.constant dense<0.000000e+00> : vector<1x100xf32>
    %123 = tpu.matmul %120, %122, %cst_38 {dimension_numbers = #tpu.dot_dimension_numbers<[1], [0], [0], [1], [0, 0, 1, 1], [], []>} : vector<1x36xbf16>, vector<36x100xbf16>, vector<1x100xf32> -> vector<1x100xf32>
    %124 = arith.addf %118, %123 : vector<1x100xf32>
    %125 = vector.extract_strided_slice %93 {offsets = [5, 0], sizes = [1, 36], strides = [1, 1]} : vector<20x36xf32> to vector<1x36xf32>
    %126 = arith.truncf %125 : vector<1x36xf32> to vector<1x36xbf16>
    %c5 = arith.constant 5 : index
    %c0_39 = arith.constant 0 : index
    %c0_40 = arith.constant 0 : index
    %127 = vector.load %arg4[%c5, %c0_39, %c0_40] : memref<20x36x100xbf16, #tpu.memory_space<vmem>>, vector<1x36x100xbf16>
    %128 = vector.shape_cast %127 : vector<1x36x100xbf16> to vector<36x100xbf16>
    %cst_41 = arith.constant dense<0.000000e+00> : vector<1x100xf32>
    %129 = tpu.matmul %126, %128, %cst_41 {dimension_numbers = #tpu.dot_dimension_numbers<[1], [0], [0], [1], [0, 0, 1, 1], [], []>} : vector<1x36xbf16>, vector<36x100xbf16>, vector<1x100xf32> -> vector<1x100xf32>
    %130 = arith.addf %124, %129 : vector<1x100xf32>
    %131 = vector.extract_strided_slice %93 {offsets = [6, 0], sizes = [1, 36], strides = [1, 1]} : vector<20x36xf32> to vector<1x36xf32>
    %132 = arith.truncf %131 : vector<1x36xf32> to vector<1x36xbf16>
    %c6 = arith.constant 6 : index
    %c0_42 = arith.constant 0 : index
    %c0_43 = arith.constant 0 : index
    %133 = vector.load %arg4[%c6, %c0_42, %c0_43] : memref<20x36x100xbf16, #tpu.memory_space<vmem>>, vector<1x36x100xbf16>
    %134 = vector.shape_cast %133 : vector<1x36x100xbf16> to vector<36x100xbf16>
    %cst_44 = arith.constant dense<0.000000e+00> : vector<1x100xf32>
    %135 = tpu.matmul %132, %134, %cst_44 {dimension_numbers = #tpu.dot_dimension_numbers<[1], [0], [0], [1], [0, 0, 1, 1], [], []>} : vector<1x36xbf16>, vector<36x100xbf16>, vector<1x100xf32> -> vector<1x100xf32>
    %136 = arith.addf %130, %135 : vector<1x100xf32>
    %137 = vector.extract_strided_slice %93 {offsets = [7, 0], sizes = [1, 36], strides = [1, 1]} : vector<20x36xf32> to vector<1x36xf32>
    %138 = arith.truncf %137 : vector<1x36xf32> to vector<1x36xbf16>
    %c7 = arith.constant 7 : index
    %c0_45 = arith.constant 0 : index
    %c0_46 = arith.constant 0 : index
    %139 = vector.load %arg4[%c7, %c0_45, %c0_46] : memref<20x36x100xbf16, #tpu.memory_space<vmem>>, vector<1x36x100xbf16>
    %140 = vector.shape_cast %139 : vector<1x36x100xbf16> to vector<36x100xbf16>
    %cst_47 = arith.constant dense<0.000000e+00> : vector<1x100xf32>
    %141 = tpu.matmul %138, %140, %cst_47 {dimension_numbers = #tpu.dot_dimension_numbers<[1], [0], [0], [1], [0, 0, 1, 1], [], []>} : vector<1x36xbf16>, vector<36x100xbf16>, vector<1x100xf32> -> vector<1x100xf32>
    %142 = arith.addf %136, %141 : vector<1x100xf32>
    %143 = vector.extract_strided_slice %93 {offsets = [8, 0], sizes = [1, 36], strides = [1, 1]} : vector<20x36xf32> to vector<1x36xf32>
    %144 = arith.truncf %143 : vector<1x36xf32> to vector<1x36xbf16>
    %c8 = arith.constant 8 : index
    %c0_48 = arith.constant 0 : index
    %c0_49 = arith.constant 0 : index
    %145 = vector.load %arg4[%c8, %c0_48, %c0_49] : memref<20x36x100xbf16, #tpu.memory_space<vmem>>, vector<1x36x100xbf16>
    %146 = vector.shape_cast %145 : vector<1x36x100xbf16> to vector<36x100xbf16>
    %cst_50 = arith.constant dense<0.000000e+00> : vector<1x100xf32>
    %147 = tpu.matmul %144, %146, %cst_50 {dimension_numbers = #tpu.dot_dimension_numbers<[1], [0], [0], [1], [0, 0, 1, 1], [], []>} : vector<1x36xbf16>, vector<36x100xbf16>, vector<1x100xf32> -> vector<1x100xf32>
    %148 = arith.addf %142, %147 : vector<1x100xf32>
    %149 = vector.extract_strided_slice %93 {offsets = [9, 0], sizes = [1, 36], strides = [1, 1]} : vector<20x36xf32> to vector<1x36xf32>
    %150 = arith.truncf %149 : vector<1x36xf32> to vector<1x36xbf16>
    %c9 = arith.constant 9 : index
    %c0_51 = arith.constant 0 : index
    %c0_52 = arith.constant 0 : index
    %151 = vector.load %arg4[%c9, %c0_51, %c0_52] : memref<20x36x100xbf16, #tpu.memory_space<vmem>>, vector<1x36x100xbf16>
    %152 = vector.shape_cast %151 : vector<1x36x100xbf16> to vector<36x100xbf16>
    %cst_53 = arith.constant dense<0.000000e+00> : vector<1x100xf32>
    %153 = tpu.matmul %150, %152, %cst_53 {dimension_numbers = #tpu.dot_dimension_numbers<[1], [0], [0], [1], [0, 0, 1, 1], [], []>} : vector<1x36xbf16>, vector<36x100xbf16>, vector<1x100xf32> -> vector<1x100xf32>
    %154 = arith.addf %148, %153 : vector<1x100xf32>
    %155 = vector.extract_strided_slice %93 {offsets = [10, 0], sizes = [1, 36], strides = [1, 1]} : vector<20x36xf32> to vector<1x36xf32>
    %156 = arith.truncf %155 : vector<1x36xf32> to vector<1x36xbf16>
    %c10 = arith.constant 10 : index
    %c0_54 = arith.constant 0 : index
    %c0_55 = arith.constant 0 : index
    %157 = vector.load %arg4[%c10, %c0_54, %c0_55] : memref<20x36x100xbf16, #tpu.memory_space<vmem>>, vector<1x36x100xbf16>
    %158 = vector.shape_cast %157 : vector<1x36x100xbf16> to vector<36x100xbf16>
    %cst_56 = arith.constant dense<0.000000e+00> : vector<1x100xf32>
    %159 = tpu.matmul %156, %158, %cst_56 {dimension_numbers = #tpu.dot_dimension_numbers<[1], [0], [0], [1], [0, 0, 1, 1], [], []>} : vector<1x36xbf16>, vector<36x100xbf16>, vector<1x100xf32> -> vector<1x100xf32>
    %160 = arith.addf %154, %159 : vector<1x100xf32>
    %161 = vector.extract_strided_slice %93 {offsets = [11, 0], sizes = [1, 36], strides = [1, 1]} : vector<20x36xf32> to vector<1x36xf32>
    %162 = arith.truncf %161 : vector<1x36xf32> to vector<1x36xbf16>
    %c11 = arith.constant 11 : index
    %c0_57 = arith.constant 0 : index
    %c0_58 = arith.constant 0 : index
    %163 = vector.load %arg4[%c11, %c0_57, %c0_58] : memref<20x36x100xbf16, #tpu.memory_space<vmem>>, vector<1x36x100xbf16>
    %164 = vector.shape_cast %163 : vector<1x36x100xbf16> to vector<36x100xbf16>
    %cst_59 = arith.constant dense<0.000000e+00> : vector<1x100xf32>
    %165 = tpu.matmul %162, %164, %cst_59 {dimension_numbers = #tpu.dot_dimension_numbers<[1], [0], [0], [1], [0, 0, 1, 1], [], []>} : vector<1x36xbf16>, vector<36x100xbf16>, vector<1x100xf32> -> vector<1x100xf32>
    %166 = arith.addf %160, %165 : vector<1x100xf32>
    %167 = vector.extract_strided_slice %93 {offsets = [12, 0], sizes = [1, 36], strides = [1, 1]} : vector<20x36xf32> to vector<1x36xf32>
    %168 = arith.truncf %167 : vector<1x36xf32> to vector<1x36xbf16>
    %c12 = arith.constant 12 : index
    %c0_60 = arith.constant 0 : index
    %c0_61 = arith.constant 0 : index
    %169 = vector.load %arg4[%c12, %c0_60, %c0_61] : memref<20x36x100xbf16, #tpu.memory_space<vmem>>, vector<1x36x100xbf16>
    %170 = vector.shape_cast %169 : vector<1x36x100xbf16> to vector<36x100xbf16>
    %cst_62 = arith.constant dense<0.000000e+00> : vector<1x100xf32>
    %171 = tpu.matmul %168, %170, %cst_62 {dimension_numbers = #tpu.dot_dimension_numbers<[1], [0], [0], [1], [0, 0, 1, 1], [], []>} : vector<1x36xbf16>, vector<36x100xbf16>, vector<1x100xf32> -> vector<1x100xf32>
    %172 = arith.addf %166, %171 : vector<1x100xf32>
    %173 = vector.extract_strided_slice %93 {offsets = [13, 0], sizes = [1, 36], strides = [1, 1]} : vector<20x36xf32> to vector<1x36xf32>
    %174 = arith.truncf %173 : vector<1x36xf32> to vector<1x36xbf16>
    %c13 = arith.constant 13 : index
    %c0_63 = arith.constant 0 : index
    %c0_64 = arith.constant 0 : index
    %175 = vector.load %arg4[%c13, %c0_63, %c0_64] : memref<20x36x100xbf16, #tpu.memory_space<vmem>>, vector<1x36x100xbf16>
    %176 = vector.shape_cast %175 : vector<1x36x100xbf16> to vector<36x100xbf16>
    %cst_65 = arith.constant dense<0.000000e+00> : vector<1x100xf32>
    %177 = tpu.matmul %174, %176, %cst_65 {dimension_numbers = #tpu.dot_dimension_numbers<[1], [0], [0], [1], [0, 0, 1, 1], [], []>} : vector<1x36xbf16>, vector<36x100xbf16>, vector<1x100xf32> -> vector<1x100xf32>
    %178 = arith.addf %172, %177 : vector<1x100xf32>
    %179 = vector.extract_strided_slice %93 {offsets = [14, 0], sizes = [1, 36], strides = [1, 1]} : vector<20x36xf32> to vector<1x36xf32>
    %180 = arith.truncf %179 : vector<1x36xf32> to vector<1x36xbf16>
    %c14 = arith.constant 14 : index
    %c0_66 = arith.constant 0 : index
    %c0_67 = arith.constant 0 : index
    %181 = vector.load %arg4[%c14, %c0_66, %c0_67] : memref<20x36x100xbf16, #tpu.memory_space<vmem>>, vector<1x36x100xbf16>
    %182 = vector.shape_cast %181 : vector<1x36x100xbf16> to vector<36x100xbf16>
    %cst_68 = arith.constant dense<0.000000e+00> : vector<1x100xf32>
    %183 = tpu.matmul %180, %182, %cst_68 {dimension_numbers = #tpu.dot_dimension_numbers<[1], [0], [0], [1], [0, 0, 1, 1], [], []>} : vector<1x36xbf16>, vector<36x100xbf16>, vector<1x100xf32> -> vector<1x100xf32>
    %184 = arith.addf %178, %183 : vector<1x100xf32>
    %185 = vector.extract_strided_slice %93 {offsets = [15, 0], sizes = [1, 36], strides = [1, 1]} : vector<20x36xf32> to vector<1x36xf32>
    %186 = arith.truncf %185 : vector<1x36xf32> to vector<1x36xbf16>
    %c15 = arith.constant 15 : index
    %c0_69 = arith.constant 0 : index
    %c0_70 = arith.constant 0 : index
    %187 = vector.load %arg4[%c15, %c0_69, %c0_70] : memref<20x36x100xbf16, #tpu.memory_space<vmem>>, vector<1x36x100xbf16>
    %188 = vector.shape_cast %187 : vector<1x36x100xbf16> to vector<36x100xbf16>
    %cst_71 = arith.constant dense<0.000000e+00> : vector<1x100xf32>
    %189 = tpu.matmul %186, %188, %cst_71 {dimension_numbers = #tpu.dot_dimension_numbers<[1], [0], [0], [1], [0, 0, 1, 1], [], []>} : vector<1x36xbf16>, vector<36x100xbf16>, vector<1x100xf32> -> vector<1x100xf32>
    %190 = arith.addf %184, %189 : vector<1x100xf32>
    %191 = vector.extract_strided_slice %93 {offsets = [16, 0], sizes = [1, 36], strides = [1, 1]} : vector<20x36xf32> to vector<1x36xf32>
    %192 = arith.truncf %191 : vector<1x36xf32> to vector<1x36xbf16>
    %c16 = arith.constant 16 : index
    %c0_72 = arith.constant 0 : index
    %c0_73 = arith.constant 0 : index
    %193 = vector.load %arg4[%c16, %c0_72, %c0_73] : memref<20x36x100xbf16, #tpu.memory_space<vmem>>, vector<1x36x100xbf16>
    %194 = vector.shape_cast %193 : vector<1x36x100xbf16> to vector<36x100xbf16>
    %cst_74 = arith.constant dense<0.000000e+00> : vector<1x100xf32>
    %195 = tpu.matmul %192, %194, %cst_74 {dimension_numbers = #tpu.dot_dimension_numbers<[1], [0], [0], [1], [0, 0, 1, 1], [], []>} : vector<1x36xbf16>, vector<36x100xbf16>, vector<1x100xf32> -> vector<1x100xf32>
    %196 = arith.addf %190, %195 : vector<1x100xf32>
    %197 = vector.extract_strided_slice %93 {offsets = [17, 0], sizes = [1, 36], strides = [1, 1]} : vector<20x36xf32> to vector<1x36xf32>
    %198 = arith.truncf %197 : vector<1x36xf32> to vector<1x36xbf16>
    %c17 = arith.constant 17 : index
    %c0_75 = arith.constant 0 : index
    %c0_76 = arith.constant 0 : index
    %199 = vector.load %arg4[%c17, %c0_75, %c0_76] : memref<20x36x100xbf16, #tpu.memory_space<vmem>>, vector<1x36x100xbf16>
    %200 = vector.shape_cast %199 : vector<1x36x100xbf16> to vector<36x100xbf16>
    %cst_77 = arith.constant dense<0.000000e+00> : vector<1x100xf32>
    %201 = tpu.matmul %198, %200, %cst_77 {dimension_numbers = #tpu.dot_dimension_numbers<[1], [0], [0], [1], [0, 0, 1, 1], [], []>} : vector<1x36xbf16>, vector<36x100xbf16>, vector<1x100xf32> -> vector<1x100xf32>
    %202 = arith.addf %196, %201 : vector<1x100xf32>
    %203 = vector.extract_strided_slice %93 {offsets = [18, 0], sizes = [1, 36], strides = [1, 1]} : vector<20x36xf32> to vector<1x36xf32>
    %204 = arith.truncf %203 : vector<1x36xf32> to vector<1x36xbf16>
    %c18 = arith.constant 18 : index
    %c0_78 = arith.constant 0 : index
    %c0_79 = arith.constant 0 : index
    %205 = vector.load %arg4[%c18, %c0_78, %c0_79] : memref<20x36x100xbf16, #tpu.memory_space<vmem>>, vector<1x36x100xbf16>
    %206 = vector.shape_cast %205 : vector<1x36x100xbf16> to vector<36x100xbf16>
    %cst_80 = arith.constant dense<0.000000e+00> : vector<1x100xf32>
    %207 = tpu.matmul %204, %206, %cst_80 {dimension_numbers = #tpu.dot_dimension_numbers<[1], [0], [0], [1], [0, 0, 1, 1], [], []>} : vector<1x36xbf16>, vector<36x100xbf16>, vector<1x100xf32> -> vector<1x100xf32>
    %208 = arith.addf %202, %207 : vector<1x100xf32>
    %209 = vector.extract_strided_slice %93 {offsets = [19, 0], sizes = [1, 36], strides = [1, 1]} : vector<20x36xf32> to vector<1x36xf32>
    %210 = arith.truncf %209 : vector<1x36xf32> to vector<1x36xbf16>
    %c19 = arith.constant 19 : index
    %c0_81 = arith.constant 0 : index
    %c0_82 = arith.constant 0 : index
    %211 = vector.load %arg4[%c19, %c0_81, %c0_82] : memref<20x36x100xbf16, #tpu.memory_space<vmem>>, vector<1x36x100xbf16>
    %212 = vector.shape_cast %211 : vector<1x36x100xbf16> to vector<36x100xbf16>
    %cst_83 = arith.constant dense<0.000000e+00> : vector<1x100xf32>
    %213 = tpu.matmul %210, %212, %cst_83 {dimension_numbers = #tpu.dot_dimension_numbers<[1], [0], [0], [1], [0, 0, 1, 1], [], []>} : vector<1x36xbf16>, vector<36x100xbf16>, vector<1x100xf32> -> vector<1x100xf32>
    %214 = arith.addf %208, %213 : vector<1x100xf32>
    %cst_84 = arith.constant 0.000000e+00 : f32
    %215 = vector.broadcast %cst_84 : f32 to vector<1x100xf32>
    %216 = arith.maximumf %214, %215 : vector<1x100xf32>
    %c0_85 = arith.constant 0 : index
    %c0_86 = arith.constant 0 : index
    %217 = vector.load %arg6[%c0_85, %c0_86] : memref<100x15xf32, #tpu.memory_space<vmem>>, vector<100x15xf32>
    %cst_87 = arith.constant dense<0.000000e+00> : vector<1x15xf32>
    %218 = tpu.matmul %216, %217, %cst_87 {dimension_numbers = #tpu.dot_dimension_numbers<[1], [0], [0], [1], [0, 0, 1, 1], [], []>} : vector<1x100xf32>, vector<100x15xf32>, vector<1x15xf32> -> vector<1x15xf32>
    %c0_88 = arith.constant 0 : index
    %c0_89 = arith.constant 0 : index
    %219 = vector.load %arg7[%c0_88, %c0_89] : memref<1x15xf32, #tpu.memory_space<vmem>>, vector<1x15xf32>
    %220 = arith.addf %218, %219 : vector<1x15xf32>
    %c0_90 = arith.constant 0 : index
    %c0_91 = arith.constant 0 : index
    %221 = vector.load %arg8[%c0_90, %c0_91] : memref<2x15xf32, #tpu.memory_space<vmem>>, vector<1x15xf32>
    tpu.vector_store %arg8[%c0_90, %c0_91], %220 {strides = array<i32>} : memref<2x15xf32, #tpu.memory_space<vmem>>, vector<1x15xf32>,
    %222 = vector.extract_strided_slice %92 {offsets = [0, 36], sizes = [20, 36], strides = [1, 1]} : vector<20x128xf32> to vector<20x36xf32>
    %c0_92 = arith.constant 0 : index
    %c0_93 = arith.constant 0 : index
    %223 = vector.load %arg5[%c0_92, %c0_93] : memref<1x100xf32, #tpu.memory_space<vmem>>, vector<1x100xf32>
    %224 = vector.extract_strided_slice %222 {offsets = [0, 0], sizes = [1, 36], strides = [1, 1]} : vector<20x36xf32> to vector<1x36xf32>
    %225 = arith.truncf %224 : vector<1x36xf32> to vector<1x36xbf16>
    %c0_94 = arith.constant 0 : index
    %c0_95 = arith.constant 0 : index
    %c0_96 = arith.constant 0 : index
    %226 = vector.load %arg4[%c0_94, %c0_95, %c0_96] : memref<20x36x100xbf16, #tpu.memory_space<vmem>>, vector<1x36x100xbf16>
    %227 = vector.shape_cast %226 : vector<1x36x100xbf16> to vector<36x100xbf16>
    %cst_97 = arith.constant dense<0.000000e+00> : vector<1x100xf32>
    %228 = tpu.matmul %225, %227, %cst_97 {dimension_numbers = #tpu.dot_dimension_numbers<[1], [0], [0], [1], [0, 0, 1, 1], [], []>} : vector<1x36xbf16>, vector<36x100xbf16>, vector<1x100xf32> -> vector<1x100xf32>
    %229 = arith.addf %223, %228 : vector<1x100xf32>
    %230 = vector.extract_strided_slice %222 {offsets = [1, 0], sizes = [1, 36], strides = [1, 1]} : vector<20x36xf32> to vector<1x36xf32>
    %231 = arith.truncf %230 : vector<1x36xf32> to vector<1x36xbf16>
    %c1_98 = arith.constant 1 : index
    %c0_99 = arith.constant 0 : index
    %c0_100 = arith.constant 0 : index
    %232 = vector.load %arg4[%c1_98, %c0_99, %c0_100] : memref<20x36x100xbf16, #tpu.memory_space<vmem>>, vector<1x36x100xbf16>
    %233 = vector.shape_cast %232 : vector<1x36x100xbf16> to vector<36x100xbf16>
    %cst_101 = arith.constant dense<0.000000e+00> : vector<1x100xf32>
    %234 = tpu.matmul %231, %233, %cst_101 {dimension_numbers = #tpu.dot_dimension_numbers<[1], [0], [0], [1], [0, 0, 1, 1], [], []>} : vector<1x36xbf16>, vector<36x100xbf16>, vector<1x100xf32> -> vector<1x100xf32>
    %235 = arith.addf %229, %234 : vector<1x100xf32>
    %236 = vector.extract_strided_slice %222 {offsets = [2, 0], sizes = [1, 36], strides = [1, 1]} : vector<20x36xf32> to vector<1x36xf32>
    %237 = arith.truncf %236 : vector<1x36xf32> to vector<1x36xbf16>
    %c2_102 = arith.constant 2 : index
    %c0_103 = arith.constant 0 : index
    %c0_104 = arith.constant 0 : index
    %238 = vector.load %arg4[%c2_102, %c0_103, %c0_104] : memref<20x36x100xbf16, #tpu.memory_space<vmem>>, vector<1x36x100xbf16>
    %239 = vector.shape_cast %238 : vector<1x36x100xbf16> to vector<36x100xbf16>
    %cst_105 = arith.constant dense<0.000000e+00> : vector<1x100xf32>
    %240 = tpu.matmul %237, %239, %cst_105 {dimension_numbers = #tpu.dot_dimension_numbers<[1], [0], [0], [1], [0, 0, 1, 1], [], []>} : vector<1x36xbf16>, vector<36x100xbf16>, vector<1x100xf32> -> vector<1x100xf32>
    %241 = arith.addf %235, %240 : vector<1x100xf32>
    %242 = vector.extract_strided_slice %222 {offsets = [3, 0], sizes = [1, 36], strides = [1, 1]} : vector<20x36xf32> to vector<1x36xf32>
    %243 = arith.truncf %242 : vector<1x36xf32> to vector<1x36xbf16>
    %c3_106 = arith.constant 3 : index
    %c0_107 = arith.constant 0 : index
    %c0_108 = arith.constant 0 : index
    %244 = vector.load %arg4[%c3_106, %c0_107, %c0_108] : memref<20x36x100xbf16, #tpu.memory_space<vmem>>, vector<1x36x100xbf16>
    %245 = vector.shape_cast %244 : vector<1x36x100xbf16> to vector<36x100xbf16>
    %cst_109 = arith.constant dense<0.000000e+00> : vector<1x100xf32>
    %246 = tpu.matmul %243, %245, %cst_109 {dimension_numbers = #tpu.dot_dimension_numbers<[1], [0], [0], [1], [0, 0, 1, 1], [], []>} : vector<1x36xbf16>, vector<36x100xbf16>, vector<1x100xf32> -> vector<1x100xf32>
    %247 = arith.addf %241, %246 : vector<1x100xf32>
    %248 = vector.extract_strided_slice %222 {offsets = [4, 0], sizes = [1, 36], strides = [1, 1]} : vector<20x36xf32> to vector<1x36xf32>
    %249 = arith.truncf %248 : vector<1x36xf32> to vector<1x36xbf16>
    %c4_110 = arith.constant 4 : index
    %c0_111 = arith.constant 0 : index
    %c0_112 = arith.constant 0 : index
    %250 = vector.load %arg4[%c4_110, %c0_111, %c0_112] : memref<20x36x100xbf16, #tpu.memory_space<vmem>>, vector<1x36x100xbf16>
    %251 = vector.shape_cast %250 : vector<1x36x100xbf16> to vector<36x100xbf16>
    %cst_113 = arith.constant dense<0.000000e+00> : vector<1x100xf32>
    %252 = tpu.matmul %249, %251, %cst_113 {dimension_numbers = #tpu.dot_dimension_numbers<[1], [0], [0], [1], [0, 0, 1, 1], [], []>} : vector<1x36xbf16>, vector<36x100xbf16>, vector<1x100xf32> -> vector<1x100xf32>
    %253 = arith.addf %247, %252 : vector<1x100xf32>
    %254 = vector.extract_strided_slice %222 {offsets = [5, 0], sizes = [1, 36], strides = [1, 1]} : vector<20x36xf32> to vector<1x36xf32>
    %255 = arith.truncf %254 : vector<1x36xf32> to vector<1x36xbf16>
    %c5_114 = arith.constant 5 : index
    %c0_115 = arith.constant 0 : index
    %c0_116 = arith.constant 0 : index
    %256 = vector.load %arg4[%c5_114, %c0_115, %c0_116] : memref<20x36x100xbf16, #tpu.memory_space<vmem>>, vector<1x36x100xbf16>
    %257 = vector.shape_cast %256 : vector<1x36x100xbf16> to vector<36x100xbf16>
    %cst_117 = arith.constant dense<0.000000e+00> : vector<1x100xf32>
    %258 = tpu.matmul %255, %257, %cst_117 {dimension_numbers = #tpu.dot_dimension_numbers<[1], [0], [0], [1], [0, 0, 1, 1], [], []>} : vector<1x36xbf16>, vector<36x100xbf16>, vector<1x100xf32> -> vector<1x100xf32>
    %259 = arith.addf %253, %258 : vector<1x100xf32>
    %260 = vector.extract_strided_slice %222 {offsets = [6, 0], sizes = [1, 36], strides = [1, 1]} : vector<20x36xf32> to vector<1x36xf32>
    %261 = arith.truncf %260 : vector<1x36xf32> to vector<1x36xbf16>
    %c6_118 = arith.constant 6 : index
    %c0_119 = arith.constant 0 : index
    %c0_120 = arith.constant 0 : index
    %262 = vector.load %arg4[%c6_118, %c0_119, %c0_120] : memref<20x36x100xbf16, #tpu.memory_space<vmem>>, vector<1x36x100xbf16>
    %263 = vector.shape_cast %262 : vector<1x36x100xbf16> to vector<36x100xbf16>
    %cst_121 = arith.constant dense<0.000000e+00> : vector<1x100xf32>
    %264 = tpu.matmul %261, %263, %cst_121 {dimension_numbers = #tpu.dot_dimension_numbers<[1], [0], [0], [1], [0, 0, 1, 1], [], []>} : vector<1x36xbf16>, vector<36x100xbf16>, vector<1x100xf32> -> vector<1x100xf32>
    %265 = arith.addf %259, %264 : vector<1x100xf32>
    %266 = vector.extract_strided_slice %222 {offsets = [7, 0], sizes = [1, 36], strides = [1, 1]} : vector<20x36xf32> to vector<1x36xf32>
    %267 = arith.truncf %266 : vector<1x36xf32> to vector<1x36xbf16>
    %c7_122 = arith.constant 7 : index
    %c0_123 = arith.constant 0 : index
    %c0_124 = arith.constant 0 : index
    %268 = vector.load %arg4[%c7_122, %c0_123, %c0_124] : memref<20x36x100xbf16, #tpu.memory_space<vmem>>, vector<1x36x100xbf16>
    %269 = vector.shape_cast %268 : vector<1x36x100xbf16> to vector<36x100xbf16>
    %cst_125 = arith.constant dense<0.000000e+00> : vector<1x100xf32>
    %270 = tpu.matmul %267, %269, %cst_125 {dimension_numbers = #tpu.dot_dimension_numbers<[1], [0], [0], [1], [0, 0, 1, 1], [], []>} : vector<1x36xbf16>, vector<36x100xbf16>, vector<1x100xf32> -> vector<1x100xf32>
    %271 = arith.addf %265, %270 : vector<1x100xf32>
    %272 = vector.extract_strided_slice %222 {offsets = [8, 0], sizes = [1, 36], strides = [1, 1]} : vector<20x36xf32> to vector<1x36xf32>
    %273 = arith.truncf %272 : vector<1x36xf32> to vector<1x36xbf16>
    %c8_126 = arith.constant 8 : index
    %c0_127 = arith.constant 0 : index
    %c0_128 = arith.constant 0 : index
    %274 = vector.load %arg4[%c8_126, %c0_127, %c0_128] : memref<20x36x100xbf16, #tpu.memory_space<vmem>>, vector<1x36x100xbf16>
    %275 = vector.shape_cast %274 : vector<1x36x100xbf16> to vector<36x100xbf16>
    %cst_129 = arith.constant dense<0.000000e+00> : vector<1x100xf32>
    %276 = tpu.matmul %273, %275, %cst_129 {dimension_numbers = #tpu.dot_dimension_numbers<[1], [0], [0], [1], [0, 0, 1, 1], [], []>} : vector<1x36xbf16>, vector<36x100xbf16>, vector<1x100xf32> -> vector<1x100xf32>
    %277 = arith.addf %271, %276 : vector<1x100xf32>
    %278 = vector.extract_strided_slice %222 {offsets = [9, 0], sizes = [1, 36], strides = [1, 1]} : vector<20x36xf32> to vector<1x36xf32>
    %279 = arith.truncf %278 : vector<1x36xf32> to vector<1x36xbf16>
    %c9_130 = arith.constant 9 : index
    %c0_131 = arith.constant 0 : index
    %c0_132 = arith.constant 0 : index
    %280 = vector.load %arg4[%c9_130, %c0_131, %c0_132] : memref<20x36x100xbf16, #tpu.memory_space<vmem>>, vector<1x36x100xbf16>
    %281 = vector.shape_cast %280 : vector<1x36x100xbf16> to vector<36x100xbf16>
    %cst_133 = arith.constant dense<0.000000e+00> : vector<1x100xf32>
    %282 = tpu.matmul %279, %281, %cst_133 {dimension_numbers = #tpu.dot_dimension_numbers<[1], [0], [0], [1], [0, 0, 1, 1], [], []>} : vector<1x36xbf16>, vector<36x100xbf16>, vector<1x100xf32> -> vector<1x100xf32>
    %283 = arith.addf %277, %282 : vector<1x100xf32>
    %284 = vector.extract_strided_slice %222 {offsets = [10, 0], sizes = [1, 36], strides = [1, 1]} : vector<20x36xf32> to vector<1x36xf32>
    %285 = arith.truncf %284 : vector<1x36xf32> to vector<1x36xbf16>
    %c10_134 = arith.constant 10 : index
    %c0_135 = arith.constant 0 : index
    %c0_136 = arith.constant 0 : index
    %286 = vector.load %arg4[%c10_134, %c0_135, %c0_136] : memref<20x36x100xbf16, #tpu.memory_space<vmem>>, vector<1x36x100xbf16>
    %287 = vector.shape_cast %286 : vector<1x36x100xbf16> to vector<36x100xbf16>
    %cst_137 = arith.constant dense<0.000000e+00> : vector<1x100xf32>
    %288 = tpu.matmul %285, %287, %cst_137 {dimension_numbers = #tpu.dot_dimension_numbers<[1], [0], [0], [1], [0, 0, 1, 1], [], []>} : vector<1x36xbf16>, vector<36x100xbf16>, vector<1x100xf32> -> vector<1x100xf32>
    %289 = arith.addf %283, %288 : vector<1x100xf32>
    %290 = vector.extract_strided_slice %222 {offsets = [11, 0], sizes = [1, 36], strides = [1, 1]} : vector<20x36xf32> to vector<1x36xf32>
    %291 = arith.truncf %290 : vector<1x36xf32> to vector<1x36xbf16>
    %c11_138 = arith.constant 11 : index
    %c0_139 = arith.constant 0 : index
    %c0_140 = arith.constant 0 : index
    %292 = vector.load %arg4[%c11_138, %c0_139, %c0_140] : memref<20x36x100xbf16, #tpu.memory_space<vmem>>, vector<1x36x100xbf16>
    %293 = vector.shape_cast %292 : vector<1x36x100xbf16> to vector<36x100xbf16>
    %cst_141 = arith.constant dense<0.000000e+00> : vector<1x100xf32>
    %294 = tpu.matmul %291, %293, %cst_141 {dimension_numbers = #tpu.dot_dimension_numbers<[1], [0], [0], [1], [0, 0, 1, 1], [], []>} : vector<1x36xbf16>, vector<36x100xbf16>, vector<1x100xf32> -> vector<1x100xf32>
    %295 = arith.addf %289, %294 : vector<1x100xf32>
    %296 = vector.extract_strided_slice %222 {offsets = [12, 0], sizes = [1, 36], strides = [1, 1]} : vector<20x36xf32> to vector<1x36xf32>
    %297 = arith.truncf %296 : vector<1x36xf32> to vector<1x36xbf16>
    %c12_142 = arith.constant 12 : index
    %c0_143 = arith.constant 0 : index
    %c0_144 = arith.constant 0 : index
    %298 = vector.load %arg4[%c12_142, %c0_143, %c0_144] : memref<20x36x100xbf16, #tpu.memory_space<vmem>>, vector<1x36x100xbf16>
    %299 = vector.shape_cast %298 : vector<1x36x100xbf16> to vector<36x100xbf16>
    %cst_145 = arith.constant dense<0.000000e+00> : vector<1x100xf32>
    %300 = tpu.matmul %297, %299, %cst_145 {dimension_numbers = #tpu.dot_dimension_numbers<[1], [0], [0], [1], [0, 0, 1, 1], [], []>} : vector<1x36xbf16>, vector<36x100xbf16>, vector<1x100xf32> -> vector<1x100xf32>
    %301 = arith.addf %295, %300 : vector<1x100xf32>
    %302 = vector.extract_strided_slice %222 {offsets = [13, 0], sizes = [1, 36], strides = [1, 1]} : vector<20x36xf32> to vector<1x36xf32>
    %303 = arith.truncf %302 : vector<1x36xf32> to vector<1x36xbf16>
    %c13_146 = arith.constant 13 : index
    %c0_147 = arith.constant 0 : index
    %c0_148 = arith.constant 0 : index
    %304 = vector.load %arg4[%c13_146, %c0_147, %c0_148] : memref<20x36x100xbf16, #tpu.memory_space<vmem>>, vector<1x36x100xbf16>
    %305 = vector.shape_cast %304 : vector<1x36x100xbf16> to vector<36x100xbf16>
    %cst_149 = arith.constant dense<0.000000e+00> : vector<1x100xf32>
    %306 = tpu.matmul %303, %305, %cst_149 {dimension_numbers = #tpu.dot_dimension_numbers<[1], [0], [0], [1], [0, 0, 1, 1], [], []>} : vector<1x36xbf16>, vector<36x100xbf16>, vector<1x100xf32> -> vector<1x100xf32>
    %307 = arith.addf %301, %306 : vector<1x100xf32>
    %308 = vector.extract_strided_slice %222 {offsets = [14, 0], sizes = [1, 36], strides = [1, 1]} : vector<20x36xf32> to vector<1x36xf32>
    %309 = arith.truncf %308 : vector<1x36xf32> to vector<1x36xbf16>
    %c14_150 = arith.constant 14 : index
    %c0_151 = arith.constant 0 : index
    %c0_152 = arith.constant 0 : index
    %310 = vector.load %arg4[%c14_150, %c0_151, %c0_152] : memref<20x36x100xbf16, #tpu.memory_space<vmem>>, vector<1x36x100xbf16>
    %311 = vector.shape_cast %310 : vector<1x36x100xbf16> to vector<36x100xbf16>
    %cst_153 = arith.constant dense<0.000000e+00> : vector<1x100xf32>
    %312 = tpu.matmul %309, %311, %cst_153 {dimension_numbers = #tpu.dot_dimension_numbers<[1], [0], [0], [1], [0, 0, 1, 1], [], []>} : vector<1x36xbf16>, vector<36x100xbf16>, vector<1x100xf32> -> vector<1x100xf32>
    %313 = arith.addf %307, %312 : vector<1x100xf32>
    %314 = vector.extract_strided_slice %222 {offsets = [15, 0], sizes = [1, 36], strides = [1, 1]} : vector<20x36xf32> to vector<1x36xf32>
    %315 = arith.truncf %314 : vector<1x36xf32> to vector<1x36xbf16>
    %c15_154 = arith.constant 15 : index
    %c0_155 = arith.constant 0 : index
    %c0_156 = arith.constant 0 : index
    %316 = vector.load %arg4[%c15_154, %c0_155, %c0_156] : memref<20x36x100xbf16, #tpu.memory_space<vmem>>, vector<1x36x100xbf16>
    %317 = vector.shape_cast %316 : vector<1x36x100xbf16> to vector<36x100xbf16>
    %cst_157 = arith.constant dense<0.000000e+00> : vector<1x100xf32>
    %318 = tpu.matmul %315, %317, %cst_157 {dimension_numbers = #tpu.dot_dimension_numbers<[1], [0], [0], [1], [0, 0, 1, 1], [], []>} : vector<1x36xbf16>, vector<36x100xbf16>, vector<1x100xf32> -> vector<1x100xf32>
    %319 = arith.addf %313, %318 : vector<1x100xf32>
    %320 = vector.extract_strided_slice %222 {offsets = [16, 0], sizes = [1, 36], strides = [1, 1]} : vector<20x36xf32> to vector<1x36xf32>
    %321 = arith.truncf %320 : vector<1x36xf32> to vector<1x36xbf16>
    %c16_158 = arith.constant 16 : index
    %c0_159 = arith.constant 0 : index
    %c0_160 = arith.constant 0 : index
    %322 = vector.load %arg4[%c16_158, %c0_159, %c0_160] : memref<20x36x100xbf16, #tpu.memory_space<vmem>>, vector<1x36x100xbf16>
    %323 = vector.shape_cast %322 : vector<1x36x100xbf16> to vector<36x100xbf16>
    %cst_161 = arith.constant dense<0.000000e+00> : vector<1x100xf32>
    %324 = tpu.matmul %321, %323, %cst_161 {dimension_numbers = #tpu.dot_dimension_numbers<[1], [0], [0], [1], [0, 0, 1, 1], [], []>} : vector<1x36xbf16>, vector<36x100xbf16>, vector<1x100xf32> -> vector<1x100xf32>
    %325 = arith.addf %319, %324 : vector<1x100xf32>
    %326 = vector.extract_strided_slice %222 {offsets = [17, 0], sizes = [1, 36], strides = [1, 1]} : vector<20x36xf32> to vector<1x36xf32>
    %327 = arith.truncf %326 : vector<1x36xf32> to vector<1x36xbf16>
    %c17_162 = arith.constant 17 : index
    %c0_163 = arith.constant 0 : index
    %c0_164 = arith.constant 0 : index
    %328 = vector.load %arg4[%c17_162, %c0_163, %c0_164] : memref<20x36x100xbf16, #tpu.memory_space<vmem>>, vector<1x36x100xbf16>
    %329 = vector.shape_cast %328 : vector<1x36x100xbf16> to vector<36x100xbf16>
    %cst_165 = arith.constant dense<0.000000e+00> : vector<1x100xf32>
    %330 = tpu.matmul %327, %329, %cst_165 {dimension_numbers = #tpu.dot_dimension_numbers<[1], [0], [0], [1], [0, 0, 1, 1], [], []>} : vector<1x36xbf16>, vector<36x100xbf16>, vector<1x100xf32> -> vector<1x100xf32>
    %331 = arith.addf %325, %330 : vector<1x100xf32>
    %332 = vector.extract_strided_slice %222 {offsets = [18, 0], sizes = [1, 36], strides = [1, 1]} : vector<20x36xf32> to vector<1x36xf32>
    %333 = arith.truncf %332 : vector<1x36xf32> to vector<1x36xbf16>
    %c18_166 = arith.constant 18 : index
    %c0_167 = arith.constant 0 : index
    %c0_168 = arith.constant 0 : index
    %334 = vector.load %arg4[%c18_166, %c0_167, %c0_168] : memref<20x36x100xbf16, #tpu.memory_space<vmem>>, vector<1x36x100xbf16>
    %335 = vector.shape_cast %334 : vector<1x36x100xbf16> to vector<36x100xbf16>
    %cst_169 = arith.constant dense<0.000000e+00> : vector<1x100xf32>
    %336 = tpu.matmul %333, %335, %cst_169 {dimension_numbers = #tpu.dot_dimension_numbers<[1], [0], [0], [1], [0, 0, 1, 1], [], []>} : vector<1x36xbf16>, vector<36x100xbf16>, vector<1x100xf32> -> vector<1x100xf32>
    %337 = arith.addf %331, %336 : vector<1x100xf32>
    %338 = vector.extract_strided_slice %222 {offsets = [19, 0], sizes = [1, 36], strides = [1, 1]} : vector<20x36xf32> to vector<1x36xf32>
    %339 = arith.truncf %338 : vector<1x36xf32> to vector<1x36xbf16>
    %c19_170 = arith.constant 19 : index
    %c0_171 = arith.constant 0 : index
    %c0_172 = arith.constant 0 : index
    %340 = vector.load %arg4[%c19_170, %c0_171, %c0_172] : memref<20x36x100xbf16, #tpu.memory_space<vmem>>, vector<1x36x100xbf16>
    %341 = vector.shape_cast %340 : vector<1x36x100xbf16> to vector<36x100xbf16>
    %cst_173 = arith.constant dense<0.000000e+00> : vector<1x100xf32>
    %342 = tpu.matmul %339, %341, %cst_173 {dimension_numbers = #tpu.dot_dimension_numbers<[1], [0], [0], [1], [0, 0, 1, 1], [], []>} : vector<1x36xbf16>, vector<36x100xbf16>, vector<1x100xf32> -> vector<1x100xf32>
    %343 = arith.addf %337, %342 : vector<1x100xf32>
    %cst_174 = arith.constant 0.000000e+00 : f32
    %344 = vector.broadcast %cst_174 : f32 to vector<1x100xf32>
    %345 = arith.maximumf %343, %344 : vector<1x100xf32>
    %c0_175 = arith.constant 0 : index
    %c0_176 = arith.constant 0 : index
    %346 = vector.load %arg6[%c0_175, %c0_176] : memref<100x15xf32, #tpu.memory_space<vmem>>, vector<100x15xf32>
    %cst_177 = arith.constant dense<0.000000e+00> : vector<1x15xf32>
    %347 = tpu.matmul %345, %346, %cst_177 {dimension_numbers = #tpu.dot_dimension_numbers<[1], [0], [0], [1], [0, 0, 1, 1], [], []>} : vector<1x100xf32>, vector<100x15xf32>, vector<1x15xf32> -> vector<1x15xf32>
    %c0_178 = arith.constant 0 : index
    %c0_179 = arith.constant 0 : index
    %348 = vector.load %arg7[%c0_178, %c0_179] : memref<1x15xf32, #tpu.memory_space<vmem>>, vector<1x15xf32>
    %349 = arith.addf %347, %348 : vector<1x15xf32>
    %c1_180 = arith.constant 1 : index
    %c0_181 = arith.constant 0 : index
    %350 = vector.load %arg8[%c1_180, %c0_181] : memref<2x15xf32, #tpu.memory_space<vmem>>, vector<1x15xf32>
    tpu.vector_store %arg8[%c1_180, %c0_181], %349 {strides = array<i32>} : memref<2x15xf32, #tpu.memory_space<vmem>>, vector<1x15xf32>,
    return
  }
}

</mosaic_0001>

<llo_original>
// kernel: simple_net_forward.2
$region0: #{simple_net_forward.2}
  #allocation0 [shape = 'u32[]', space=smem, size = 0x4, offset = 0x4, fixed_abs, tag = 'smem constant byte address 0x4 - core index']
  #allocation1 [shape = 'u32[144,128]{1,0:T(1,128)}', space=vmem, size = 0x12000, scoped, tag = 'internal scratch']
  %s0 = inlined_call_operand.vmem [shape: bf16[9,8576], index: 0, kind: input, shape index: {}]
  %s1 = inlined_call_operand.vmem [shape: bf16[10,9], index: 1, kind: input, shape index: {}]
  %s2 = inlined_call_operand.vmem [shape: f32[10,1], index: 2, kind: input, shape index: {}]
  %s3 = inlined_call_operand.vmem [shape: f32[10,1], index: 3, kind: input, shape index: {}]
  %s4 = inlined_call_operand.vmem [shape: f32[10,896], index: 4, kind: output, shape index: {}]
  %s5 = sld [smem:[#allocation0]]
  $region26: #{simple_net_forward.2} parent=0
    _
  %s7 = ssub.s32 1, %s5
  %s8 = scalar_select 0, %s7, %s5
  // Predicated region
  $region2: #{simple_net_forward.2} parent=0 // pred_check
    _
  $region3: #{simple_net_forward.2} parent=0 // pred_check_branch
    %10 = sbr.rel (0) target = $region5
  $region4: #{simple_net_forward.2} parent=0 // pred_region
    _
  $region5: #{simple_net_forward.2} parent=0 // pred_fallthru
    _
  // Predicated region
  $region6: #{simple_net_forward.2} parent=0 // pred_check
    _
  $region7: #{simple_net_forward.2} parent=0 // pred_check_branch
    %12 = sbr.rel (0) target = $region9
  $region8: #{simple_net_forward.2} parent=0 // pred_region
    _
  $region9: #{simple_net_forward.2} parent=0 // pred_fallthru
    _
  // Predicated region
  $region10: #{simple_net_forward.2} parent=0 // pred_check
    _
  $region11: #{simple_net_forward.2} parent=0 // pred_check_branch
    %14 = sbr.rel (0) target = $region13
  $region12: #{simple_net_forward.2} parent=0 // pred_region
    _
  $region13: #{simple_net_forward.2} parent=0 // pred_fallthru
    _
  // Predicated region
  $region14: #{simple_net_forward.2} parent=0 // pred_check
    _
  $region15: #{simple_net_forward.2} parent=0 // pred_check_branch
    %16 = sbr.rel (0) target = $region17
  $region16: #{simple_net_forward.2} parent=0 // pred_region
    _
  $region17: #{simple_net_forward.2} parent=0 // pred_fallthru
    _
  %v18 = vld [vmem:[%s0] sm:$0xff]
  %v19 = vld [vmem:[%s0 + $0x8] sm:$0xff]
  %v20 = vld [vmem:[%s0 + $0x10] sm:$0xff]
  %v21 = vld [vmem:[%s0 + $0x18] sm:$0xff]
  %v22 = vld [vmem:[%s0 + $0x20] sm:$0xff]
  %v23 = vld [vmem:[%s0 + $0x28] sm:$0xff]
  %v24 = vld [vmem:[%s0 + $0x30] sm:$0xff]
  %v25 = vld [vmem:[%s0 + $0x38] sm:$0xff]
  %v26 = vld [vmem:[%s0 + $0x40] sm:$0xff]
  %v27 = vld [vmem:[%s0 + $0x48] sm:$0xff]
  %v28 = vld [vmem:[%s0 + $0x50] sm:$0xff]
  %v29 = vld [vmem:[%s0 + $0x58] sm:$0xff]
  %v30 = vld [vmem:[%s0 + $0x60] sm:$0xff]
  %v31 = vld [vmem:[%s0 + $0x68] sm:$0xff]
  %v32 = vld [vmem:[%s0 + $0x70] sm:$0xff]
  %v33 = vld [vmem:[%s0 + $0x78] sm:$0xff]
  %v34 = vld [vmem:[%s0 + $0x80] sm:$0xff]
  %v35 = vld [vmem:[%s0 + $0x88] sm:$0xff]
  %v36 = vld [vmem:[%s0 + $0x90] sm:$0xff]
  %v37 = vld [vmem:[%s0 + $0x98] sm:$0xff]
  %v38 = vld [vmem:[%s0 + $0xa0] sm:$0xff]
  %v39 = vld [vmem:[%s0 + $0xa8] sm:$0xff]
  %v40 = vld [vmem:[%s0 + $0xb0] sm:$0xff]
  %v41 = vld [vmem:[%s0 + $0xb8] sm:$0xff]
  %v42 = vld [vmem:[%s0 + $0xc0] sm:$0xff]
  %v43 = vld [vmem:[%s0 + $0xc8] sm:$0xff]
  %v44 = vld [vmem:[%s0 + $0xd0] sm:$0xff]
  %v45 = vld [vmem:[%s0 + $0xd8] sm:$0xff]
  %v46 = vld [vmem:[%s0 + $0xe0] sm:$0xff]
  %v47 = vld [vmem:[%s0 + $0xe8] sm:$0xff]
  %v48 = vld [vmem:[%s0 + $0xf0] sm:$0xff]
  %v49 = vld [vmem:[%s0 + $0xf8] sm:$0xff]
  %v50 = vld [vmem:[%s0 + $0x100] sm:$0xff]
  %v51 = vld [vmem:[%s0 + $0x108] sm:$0xf]
  %v52 = vld [vmem:[%s0 + $0x10c] sm:$0x11]
  %v53 = vld [vmem:[%s0 + $0x114] sm:$0x11]
  %v54 = vld [vmem:[%s0 + $0x11c] sm:$0x11]
  %v55 = vld [vmem:[%s0 + $0x124] sm:$0x11]
  %v56 = vld [vmem:[%s0 + $0x12c] sm:$0x11]
  %v57 = vld [vmem:[%s0 + $0x134] sm:$0x11]
  %v58 = vld [vmem:[%s0 + $0x13c] sm:$0x11]
  %v59 = vld [vmem:[%s0 + $0x144] sm:$0x11]
  %v60 = vld [vmem:[%s0 + $0x14c] sm:$0x11]
  %v61 = vld [vmem:[%s0 + $0x154] sm:$0x11]
  %v62 = vld [vmem:[%s0 + $0x15c] sm:$0x11]
  %v63 = vld [vmem:[%s0 + $0x164] sm:$0x11]
  %v64 = vld [vmem:[%s0 + $0x16c] sm:$0x11]
  %v65 = vld [vmem:[%s0 + $0x174] sm:$0x11]
  %v66 = vld [vmem:[%s0 + $0x17c] sm:$0x11]
  %v67 = vld [vmem:[%s0 + $0x184] sm:$0x11]
  %v68 = vld [vmem:[%s0 + $0x18c] sm:$0x11]
  %v69 = vld [vmem:[%s0 + $0x194] sm:$0x11]
  %v70 = vld [vmem:[%s0 + $0x19c] sm:$0x11]
  %v71 = vld [vmem:[%s0 + $0x1a4] sm:$0x11]
  %v72 = vld [vmem:[%s0 + $0x1ac] sm:$0x11]
  %v73 = vld [vmem:[%s0 + $0x1b4] sm:$0x11]
  %v74 = vld [vmem:[%s0 + $0x1bc] sm:$0x11]
  %v75 = vld [vmem:[%s0 + $0x1c4] sm:$0x11]
  %v76 = vld [vmem:[%s0 + $0x1cc] sm:$0x11]
  %v77 = vld [vmem:[%s0 + $0x1d4] sm:$0x11]
  %v78 = vld [vmem:[%s0 + $0x1dc] sm:$0x11]
  %v79 = vld [vmem:[%s0 + $0x1e4] sm:$0x11]
  %v80 = vld [vmem:[%s0 + $0x1ec] sm:$0x11]
  %v81 = vld [vmem:[%s0 + $0x1f4] sm:$0x11]
  %v82 = vld [vmem:[%s0 + $0x1fc] sm:$0x11]
  %v83 = vld [vmem:[%s0 + $0x204] sm:$0x11]
  %v84 = vld [vmem:[%s0 + $0x20c] sm:$0x11]
  %v85 = vld [vmem:[%s0 + $0x214] sm:$0x1]
  %v86 = vld [vmem:[%s1] sm:$0xf]
  %v87 = vld [vmem:[%s1 + $0x4] sm:$0x1]
  %v88 = vld [vmem:[%s2] sm:$0xff]
  %v89 = vld [vmem:[%s2 + $0x8] sm:$0x3]
  %v90 = vld [vmem:[%s3] sm:$0xff]
  %v91 = vld [vmem:[%s3 + $0x8] sm:$0x3]
  %v94 = vunpack.c.l.b16 %v86
  %v95 = vunpack.c.l.b16 %v87
  %v96 = vpack.c.b16 %v95, %v94
  %v165 = vunpack.c.l.b16 %v18
  %v166 = vunpack.c.h.b16 %v18
  %v167 = vunpack.c.l.b16 %v19
  %v168 = vunpack.c.h.b16 %v19
  %v169 = vunpack.c.l.b16 %v20
  %v170 = vunpack.c.h.b16 %v20
  %v171 = vunpack.c.l.b16 %v21
  %v172 = vunpack.c.h.b16 %v21
  %v173 = vunpack.c.l.b16 %v22
  %v174 = vunpack.c.h.b16 %v22
  %v175 = vunpack.c.l.b16 %v23
  %v176 = vunpack.c.h.b16 %v23
  %v177 = vunpack.c.l.b16 %v24
  %v178 = vunpack.c.h.b16 %v24
  %v179 = vunpack.c.l.b16 %v25
  %v180 = vunpack.c.h.b16 %v25
  %v181 = vunpack.c.l.b16 %v26
  %v182 = vunpack.c.h.b16 %v26
  %v183 = vunpack.c.l.b16 %v27
  %v184 = vunpack.c.h.b16 %v27
  %v185 = vunpack.c.l.b16 %v28
  %v186 = vunpack.c.h.b16 %v28
  %v187 = vunpack.c.l.b16 %v29
  %v188 = vunpack.c.h.b16 %v29
  %v189 = vunpack.c.l.b16 %v30
  %v190 = vunpack.c.h.b16 %v30
  %v191 = vunpack.c.l.b16 %v31
  %v192 = vunpack.c.h.b16 %v31
  %v193 = vunpack.c.l.b16 %v32
  %v194 = vunpack.c.h.b16 %v32
  %v195 = vunpack.c.l.b16 %v33
  %v196 = vunpack.c.h.b16 %v33
  %v197 = vunpack.c.l.b16 %v34
  %v198 = vunpack.c.h.b16 %v34
  %v199 = vunpack.c.l.b16 %v35
  %v200 = vunpack.c.h.b16 %v35
  %v201 = vunpack.c.l.b16 %v36
  %v202 = vunpack.c.h.b16 %v36
  %v203 = vunpack.c.l.b16 %v37
  %v204 = vunpack.c.h.b16 %v37
  %v205 = vunpack.c.l.b16 %v38
  %v206 = vunpack.c.h.b16 %v38
  %v207 = vunpack.c.l.b16 %v39
  %v208 = vunpack.c.h.b16 %v39
  %v209 = vunpack.c.l.b16 %v40
  %v210 = vunpack.c.h.b16 %v40
  %v211 = vunpack.c.l.b16 %v41
  %v212 = vunpack.c.h.b16 %v41
  %v213 = vunpack.c.l.b16 %v42
  %v214 = vunpack.c.h.b16 %v42
  %v215 = vunpack.c.l.b16 %v43
  %v216 = vunpack.c.h.b16 %v43
  %v217 = vunpack.c.l.b16 %v44
  %v218 = vunpack.c.h.b16 %v44
  %v219 = vunpack.c.l.b16 %v45
  %v220 = vunpack.c.h.b16 %v45
  %v221 = vunpack.c.l.b16 %v46
  %v222 = vunpack.c.h.b16 %v46
  %v223 = vunpack.c.l.b16 %v47
  %v224 = vunpack.c.h.b16 %v47
  %v225 = vunpack.c.l.b16 %v48
  %v226 = vunpack.c.h.b16 %v48
  %v227 = vunpack.c.l.b16 %v49
  %v228 = vunpack.c.h.b16 %v49
  %v229 = vunpack.c.l.b16 %v50
  %v230 = vunpack.c.h.b16 %v50
  %v231 = vunpack.c.l.b16 %v51
  %v232 = vunpack.c.l.b16 %v52
  %v233 = vunpack.c.h.b16 %v52
  %v234 = vunpack.c.l.b16 %v53
  %v235 = vunpack.c.h.b16 %v53
  %v236 = vunpack.c.l.b16 %v54
  %v237 = vunpack.c.h.b16 %v54
  %v238 = vunpack.c.l.b16 %v55
  %v239 = vunpack.c.h.b16 %v55
  %v240 = vunpack.c.l.b16 %v56
  %v241 = vunpack.c.h.b16 %v56
  %v242 = vunpack.c.l.b16 %v57
  %v243 = vunpack.c.h.b16 %v57
  %v244 = vunpack.c.l.b16 %v58
  %v245 = vunpack.c.h.b16 %v58
  %v246 = vunpack.c.l.b16 %v59
  %v247 = vunpack.c.h.b16 %v59
  %v248 = vunpack.c.l.b16 %v60
  %v249 = vunpack.c.h.b16 %v60
  %v250 = vunpack.c.l.b16 %v61
  %v251 = vunpack.c.h.b16 %v61
  %v252 = vunpack.c.l.b16 %v62
  %v253 = vunpack.c.h.b16 %v62
  %v254 = vunpack.c.l.b16 %v63
  %v255 = vunpack.c.h.b16 %v63
  %v256 = vunpack.c.l.b16 %v64
  %v257 = vunpack.c.h.b16 %v64
  %v258 = vunpack.c.l.b16 %v65
  %v259 = vunpack.c.h.b16 %v65
  %v260 = vunpack.c.l.b16 %v66
  %v261 = vunpack.c.h.b16 %v66
  %v262 = vunpack.c.l.b16 %v67
  %v263 = vunpack.c.h.b16 %v67
  %v264 = vunpack.c.l.b16 %v68
  %v265 = vunpack.c.h.b16 %v68
  %v266 = vunpack.c.l.b16 %v69
  %v267 = vunpack.c.h.b16 %v69
  %v268 = vunpack.c.l.b16 %v70
  %v269 = vunpack.c.h.b16 %v70
  %v270 = vunpack.c.l.b16 %v71
  %v271 = vunpack.c.h.b16 %v71
  %v272 = vunpack.c.l.b16 %v72
  %v273 = vunpack.c.h.b16 %v72
  %v274 = vunpack.c.l.b16 %v73
  %v275 = vunpack.c.h.b16 %v73
  %v276 = vunpack.c.l.b16 %v74
  %v277 = vunpack.c.h.b16 %v74
  %v278 = vunpack.c.l.b16 %v75
  %v279 = vunpack.c.h.b16 %v75
  %v280 = vunpack.c.l.b16 %v76
  %v281 = vunpack.c.h.b16 %v76
  %v282 = vunpack.c.l.b16 %v77
  %v283 = vunpack.c.h.b16 %v77
  %v284 = vunpack.c.l.b16 %v78
  %v285 = vunpack.c.h.b16 %v78
  %v286 = vunpack.c.l.b16 %v79
  %v287 = vunpack.c.h.b16 %v79
  %v288 = vunpack.c.l.b16 %v80
  %v289 = vunpack.c.h.b16 %v80
  %v290 = vunpack.c.l.b16 %v81
  %v291 = vunpack.c.h.b16 %v81
  %v292 = vunpack.c.l.b16 %v82
  %v293 = vunpack.c.h.b16 %v82
  %v294 = vunpack.c.l.b16 %v83
  %v295 = vunpack.c.h.b16 %v83
  %v296 = vunpack.c.l.b16 %v84
  %v297 = vunpack.c.h.b16 %v84
  %v298 = vunpack.c.l.b16 %v85
  %v299 = vpack.c.b16 %v232, %v165
  %v300 = vpack.c.b16 %v233, %v166
  %v301 = vpack.c.b16 %v234, %v167
  %v302 = vpack.c.b16 %v235, %v168
  %v303 = vpack.c.b16 %v236, %v169
  %v304 = vpack.c.b16 %v237, %v170
  %v305 = vpack.c.b16 %v238, %v171
  %v306 = vpack.c.b16 %v239, %v172
  %v307 = vpack.c.b16 %v240, %v173
  %v308 = vpack.c.b16 %v241, %v174
  %v309 = vpack.c.b16 %v242, %v175
  %v310 = vpack.c.b16 %v243, %v176
  %v311 = vpack.c.b16 %v244, %v177
  %v312 = vpack.c.b16 %v245, %v178
  %v313 = vpack.c.b16 %v246, %v179
  %v314 = vpack.c.b16 %v247, %v180
  %v315 = vpack.c.b16 %v248, %v181
  %v316 = vpack.c.b16 %v249, %v182
  %v317 = vpack.c.b16 %v250, %v183
  %v318 = vpack.c.b16 %v251, %v184
  %v319 = vpack.c.b16 %v252, %v185
  %v320 = vpack.c.b16 %v253, %v186
  %v321 = vpack.c.b16 %v254, %v187
  %v322 = vpack.c.b16 %v255, %v188
  %v323 = vpack.c.b16 %v256, %v189
  %v324 = vpack.c.b16 %v257, %v190
  %v325 = vpack.c.b16 %v258, %v191
  %v326 = vpack.c.b16 %v259, %v192
  %v327 = vpack.c.b16 %v260, %v193
  %v328 = vpack.c.b16 %v261, %v194
  %v329 = vpack.c.b16 %v262, %v195
  %v330 = vpack.c.b16 %v263, %v196
  %v331 = vpack.c.b16 %v264, %v197
  %v332 = vpack.c.b16 %v265, %v198
  %v333 = vpack.c.b16 %v266, %v199
  %v334 = vpack.c.b16 %v267, %v200
  %v335 = vpack.c.b16 %v268, %v201
  %v336 = vpack.c.b16 %v269, %v202
  %v337 = vpack.c.b16 %v270, %v203
  %v338 = vpack.c.b16 %v271, %v204
  %v339 = vpack.c.b16 %v272, %v205
  %v340 = vpack.c.b16 %v273, %v206
  %v341 = vpack.c.b16 %v274, %v207
  %v342 = vpack.c.b16 %v275, %v208
  %v343 = vpack.c.b16 %v276, %v209
  %v344 = vpack.c.b16 %v277, %v210
  %v345 = vpack.c.b16 %v278, %v211
  %v346 = vpack.c.b16 %v279, %v212
  %v347 = vpack.c.b16 %v280, %v213
  %v348 = vpack.c.b16 %v281, %v214
  %v349 = vpack.c.b16 %v282, %v215
  %v350 = vpack.c.b16 %v283, %v216
  %v351 = vpack.c.b16 %v284, %v217
  %v352 = vpack.c.b16 %v285, %v218
  %v353 = vpack.c.b16 %v286, %v219
  %v354 = vpack.c.b16 %v287, %v220
  %v355 = vpack.c.b16 %v288, %v221
  %v356 = vpack.c.b16 %v289, %v222
  %v357 = vpack.c.b16 %v290, %v223
  %v358 = vpack.c.b16 %v291, %v224
  %v359 = vpack.c.b16 %v292, %v225
  %v360 = vpack.c.b16 %v293, %v226
  %v361 = vpack.c.b16 %v294, %v227
  %v362 = vpack.c.b16 %v295, %v228
  %v363 = vpack.c.b16 %v296, %v229
  %v364 = vpack.c.b16 %v297, %v230
  %v365 = vpack.c.b16 %v298, %v231
  %vm366 = vcmask 72704
  %v368 = vsel %vm366, %v96, 0
  %vm370 = vcmask 1043456
  %vm371 = vcmask 1044480
  %v372 = vsel %vm370, 4294967295, 65535
  %v373 = vsel %vm371, %v372, 0
  %v375 = vand.u32 %v299, %v373
  %v378 = vand.u32 %v300, %v373
  %v381 = vand.u32 %v301, %v373
  %v384 = vand.u32 %v302, %v373
  %v387 = vand.u32 %v303, %v373
  %v390 = vand.u32 %v304, %v373
  %v393 = vand.u32 %v305, %v373
  %v396 = vand.u32 %v306, %v373
  %v399 = vand.u32 %v307, %v373
  %v402 = vand.u32 %v308, %v373
  %v405 = vand.u32 %v309, %v373
  %v408 = vand.u32 %v310, %v373
  %v411 = vand.u32 %v311, %v373
  %v414 = vand.u32 %v312, %v373
  %v417 = vand.u32 %v313, %v373
  %v420 = vand.u32 %v314, %v373
  %v423 = vand.u32 %v315, %v373
  %v426 = vand.u32 %v316, %v373
  %v429 = vand.u32 %v317, %v373
  %v432 = vand.u32 %v318, %v373
  %v435 = vand.u32 %v319, %v373
  %v438 = vand.u32 %v320, %v373
  %v441 = vand.u32 %v321, %v373
  %v444 = vand.u32 %v322, %v373
  %v447 = vand.u32 %v323, %v373
  %v450 = vand.u32 %v324, %v373
  %v453 = vand.u32 %v325, %v373
  %v456 = vand.u32 %v326, %v373
  %v459 = vand.u32 %v327, %v373
  %v462 = vand.u32 %v328, %v373
  %v465 = vand.u32 %v329, %v373
  %v468 = vand.u32 %v330, %v373
  %v471 = vand.u32 %v331, %v373
  %v474 = vand.u32 %v332, %v373
  %v477 = vand.u32 %v333, %v373
  %v480 = vand.u32 %v334, %v373
  %v483 = vand.u32 %v335, %v373
  %v486 = vand.u32 %v336, %v373
  %v489 = vand.u32 %v337, %v373
  %v492 = vand.u32 %v338, %v373
  %v495 = vand.u32 %v339, %v373
  %v498 = vand.u32 %v340, %v373
  %v501 = vand.u32 %v341, %v373
  %v504 = vand.u32 %v342, %v373
  %v507 = vand.u32 %v343, %v373
  %v510 = vand.u32 %v344, %v373
  %v513 = vand.u32 %v345, %v373
  %v516 = vand.u32 %v346, %v373
  %v519 = vand.u32 %v347, %v373
  %v522 = vand.u32 %v348, %v373
  %v525 = vand.u32 %v349, %v373
  %v528 = vand.u32 %v350, %v373
  %v531 = vand.u32 %v351, %v373
  %v534 = vand.u32 %v352, %v373
  %v537 = vand.u32 %v353, %v373
  %v540 = vand.u32 %v354, %v373
  %v543 = vand.u32 %v355, %v373
  %v546 = vand.u32 %v356, %v373
  %v549 = vand.u32 %v357, %v373
  %v552 = vand.u32 %v358, %v373
  %v555 = vand.u32 %v359, %v373
  %v558 = vand.u32 %v360, %v373
  %v561 = vand.u32 %v361, %v373
  %v564 = vand.u32 %v362, %v373
  %v567 = vand.u32 %v363, %v373
  %v570 = vand.u32 %v364, %v373
  %v573 = vand.u32 %v365, %v373
  %575 = vmatprep.subr.bf16.mxu0 0
  %576 = vmatpush1.bf16.msra.mxu0 0
  %577 = vmatprep.subr.bf16.mxu0 0
  %578 = vmatpush1.bf16.msra.mxu0 0
  %579 = vmatprep.subr.bf16.mxu0 0
  %580 = vmatpush1.bf16.msra.mxu0 0
  %581 = vmatprep.subr.bf16.mxu0 0
  %582 = vmatpush1.bf16.msra.mxu0 0
  %583 = vmatprep.subr.bf16.mxu0 0
  %584 = vmatpush1.bf16.msra.mxu0 0
  %585 = vmatprep.subr.bf16.mxu0 0
  %586 = vmatpush1.bf16.msra.mxu0 0
  %587 = vmatprep.subr.bf16.mxu0 0
  %588 = vmatpush1.bf16.msra.mxu0 0
  %589 = vmatprep.subr.bf16.mxu0 %v378
  %590 = vmatpush1.bf16.msra.mxu0 %v375
  %591 = vmatprep.subr.bf16.mxu0 0
  %592 = vmatpush2.bf16.msra.mxu0 0
  %593 = vmatprep.subr.bf16.mxu0 0
  %594 = vmatpush2.bf16.msra.mxu0 0
  %595 = vmatprep.subr.bf16.mxu0 0
  %596 = vmatpush2.bf16.msra.mxu0 0
  %597 = vmatprep.subr.bf16.mxu0 0
  %598 = vmatpush2.bf16.msra.mxu0 0
  %599 = vmatprep.subr.bf16.mxu0 0
  %600 = vmatpush2.bf16.msra.mxu0 0
  %601 = vmatprep.subr.bf16.mxu0 0
  %602 = vmatpush2.bf16.msra.mxu0 0
  %603 = vmatprep.subr.bf16.mxu0 0
  %604 = vmatpush2.bf16.msra.mxu0 0
  %605 = vmatprep.subr.bf16.mxu0 0
  %606 = vmatpush2.bf16.msra.mxu0 0
  %607 = vmatprep.mubr.bf16.mxu0 0
  %608 = vmatmul.mubr.bf16.gmra.mxu0 %v368
  %v609 = vpop.f32.mrf.mxu0
  %v610 = vadd.f32 0.0, %v609
  %v611 = vpop.f32.mrf.mxu0
  %v612 = vadd.f32 0.0, %v611
  %v613 = vpop.f32.mrf.mxu0
  %v614 = vadd.f32 0.0, %v613
  %v615 = vpop.f32.mrf.mxu0
  %v616 = vadd.f32 0.0, %v615
  %617 = vdwg.mxu0
  %618 = vmatprep.subr.bf16.mxu0 0
  %619 = vmatpush1.bf16.msra.mxu0 0
  %620 = vmatprep.subr.bf16.mxu0 0
  %621 = vmatpush1.bf16.msra.mxu0 0
  %622 = vmatprep.subr.bf16.mxu0 0
  %623 = vmatpush1.bf16.msra.mxu0 0
  %624 = vmatprep.subr.bf16.mxu0 0
  %625 = vmatpush1.bf16.msra.mxu0 0
  %626 = vmatprep.subr.bf16.mxu0 0
  %627 = vmatpush1.bf16.msra.mxu0 0
  %628 = vmatprep.subr.bf16.mxu0 0
  %629 = vmatpush1.bf16.msra.mxu0 0
  %630 = vmatprep.subr.bf16.mxu0 0
  %631 = vmatpush1.bf16.msra.mxu0 0
  %632 = vmatprep.subr.bf16.mxu0 %v384
  %633 = vmatpush1.bf16.msra.mxu0 %v381
  %634 = vmatprep.subr.bf16.mxu0 0
  %635 = vmatpush2.bf16.msra.mxu0 0
  %636 = vmatprep.subr.bf16.mxu0 0
  %637 = vmatpush2.bf16.msra.mxu0 0
  %638 = vmatprep.subr.bf16.mxu0 0
  %639 = vmatpush2.bf16.msra.mxu0 0
  %640 = vmatprep.subr.bf16.mxu0 0
  %641 = vmatpush2.bf16.msra.mxu0 0
  %642 = vmatprep.subr.bf16.mxu0 0
  %643 = vmatpush2.bf16.msra.mxu0 0
  %644 = vmatprep.subr.bf16.mxu0 0
  %645 = vmatpush2.bf16.msra.mxu0 0
  %646 = vmatprep.subr.bf16.mxu0 0
  %647 = vmatpush2.bf16.msra.mxu0 0
  %648 = vmatprep.subr.bf16.mxu0 0
  %649 = vmatpush2.bf16.msra.mxu0 0
  %650 = vmatprep.mubr.bf16.mxu0 0
  %651 = vmatmul.mubr.bf16.gmra.mxu0 %v368
  %v652 = vpop.f32.mrf.mxu0
  %v653 = vadd.f32 0.0, %v652
  %v654 = vpop.f32.mrf.mxu0
  %v655 = vadd.f32 0.0, %v654
  %v656 = vpop.f32.mrf.mxu0
  %v657 = vadd.f32 0.0, %v656
  %v658 = vpop.f32.mrf.mxu0
  %v659 = vadd.f32 0.0, %v658
  %660 = vdwg.mxu0
  %661 = vmatprep.subr.bf16.mxu0 0
  %662 = vmatpush1.bf16.msra.mxu0 0
  %663 = vmatprep.subr.bf16.mxu0 0
  %664 = vmatpush1.bf16.msra.mxu0 0
  %665 = vmatprep.subr.bf16.mxu0 0
  %666 = vmatpush1.bf16.msra.mxu0 0
  %667 = vmatprep.subr.bf16.mxu0 0
  %668 = vmatpush1.bf16.msra.mxu0 0
  %669 = vmatprep.subr.bf16.mxu0 0
  %670 = vmatpush1.bf16.msra.mxu0 0
  %671 = vmatprep.subr.bf16.mxu0 0
  %672 = vmatpush1.bf16.msra.mxu0 0
  %673 = vmatprep.subr.bf16.mxu0 0
  %674 = vmatpush1.bf16.msra.mxu0 0
  %675 = vmatprep.subr.bf16.mxu0 %v390
  %676 = vmatpush1.bf16.msra.mxu0 %v387
  %677 = vmatprep.subr.bf16.mxu0 0
  %678 = vmatpush2.bf16.msra.mxu0 0
  %679 = vmatprep.subr.bf16.mxu0 0
  %680 = vmatpush2.bf16.msra.mxu0 0
  %681 = vmatprep.subr.bf16.mxu0 0
  %682 = vmatpush2.bf16.msra.mxu0 0
  %683 = vmatprep.subr.bf16.mxu0 0
  %684 = vmatpush2.bf16.msra.mxu0 0
  %685 = vmatprep.subr.bf16.mxu0 0
  %686 = vmatpush2.bf16.msra.mxu0 0
  %687 = vmatprep.subr.bf16.mxu0 0
  %688 = vmatpush2.bf16.msra.mxu0 0
  %689 = vmatprep.subr.bf16.mxu0 0
  %690 = vmatpush2.bf16.msra.mxu0 0
  %691 = vmatprep.subr.bf16.mxu0 0
  %692 = vmatpush2.bf16.msra.mxu0 0
  %693 = vmatprep.mubr.bf16.mxu0 0
  %694 = vmatmul.mubr.bf16.gmra.mxu0 %v368
  %v695 = vpop.f32.mrf.mxu0
  %v696 = vadd.f32 0.0, %v695
  %v697 = vpop.f32.mrf.mxu0
  %v698 = vadd.f32 0.0, %v697
  %v699 = vpop.f32.mrf.mxu0
  %v700 = vadd.f32 0.0, %v699
  %v701 = vpop.f32.mrf.mxu0
  %v702 = vadd.f32 0.0, %v701
  %703 = vdwg.mxu0
  %704 = vmatprep.subr.bf16.mxu0 0
  %705 = vmatpush1.bf16.msra.mxu0 0
  %706 = vmatprep.subr.bf16.mxu0 0
  %707 = vmatpush1.bf16.msra.mxu0 0
  %708 = vmatprep.subr.bf16.mxu0 0
  %709 = vmatpush1.bf16.msra.mxu0 0
  %710 = vmatprep.subr.bf16.mxu0 0
  %711 = vmatpush1.bf16.msra.mxu0 0
  %712 = vmatprep.subr.bf16.mxu0 0
  %713 = vmatpush1.bf16.msra.mxu0 0
  %714 = vmatprep.subr.bf16.mxu0 0
  %715 = vmatpush1.bf16.msra.mxu0 0
  %716 = vmatprep.subr.bf16.mxu0 0
  %717 = vmatpush1.bf16.msra.mxu0 0
  %718 = vmatprep.subr.bf16.mxu0 %v396
  %719 = vmatpush1.bf16.msra.mxu0 %v393
  %720 = vmatprep.subr.bf16.mxu0 0
  %721 = vmatpush2.bf16.msra.mxu0 0
  %722 = vmatprep.subr.bf16.mxu0 0
  %723 = vmatpush2.bf16.msra.mxu0 0
  %724 = vmatprep.subr.bf16.mxu0 0
  %725 = vmatpush2.bf16.msra.mxu0 0
  %726 = vmatprep.subr.bf16.mxu0 0
  %727 = vmatpush2.bf16.msra.mxu0 0
  %728 = vmatprep.subr.bf16.mxu0 0
  %729 = vmatpush2.bf16.msra.mxu0 0
  %730 = vmatprep.subr.bf16.mxu0 0
  %731 = vmatpush2.bf16.msra.mxu0 0
  %732 = vmatprep.subr.bf16.mxu0 0
  %733 = vmatpush2.bf16.msra.mxu0 0
  %734 = vmatprep.subr.bf16.mxu0 0
  %735 = vmatpush2.bf16.msra.mxu0 0
  %736 = vmatprep.mubr.bf16.mxu0 0
  %737 = vmatmul.mubr.bf16.gmra.mxu0 %v368
  %v738 = vpop.f32.mrf.mxu0
  %v739 = vadd.f32 0.0, %v738
  %v740 = vpop.f32.mrf.mxu0
  %v741 = vadd.f32 0.0, %v740
  %v742 = vpop.f32.mrf.mxu0
  %v743 = vadd.f32 0.0, %v742
  %v744 = vpop.f32.mrf.mxu0
  %v745 = vadd.f32 0.0, %v744
  %746 = vdwg.mxu0
  %747 = vmatprep.subr.bf16.mxu0 0
  %748 = vmatpush1.bf16.msra.mxu0 0
  %749 = vmatprep.subr.bf16.mxu0 0
  %750 = vmatpush1.bf16.msra.mxu0 0
  %751 = vmatprep.subr.bf16.mxu0 0
  %752 = vmatpush1.bf16.msra.mxu0 0
  %753 = vmatprep.subr.bf16.mxu0 0
  %754 = vmatpush1.bf16.msra.mxu0 0
  %755 = vmatprep.subr.bf16.mxu0 0
  %756 = vmatpush1.bf16.msra.mxu0 0
  %757 = vmatprep.subr.bf16.mxu0 0
  %758 = vmatpush1.bf16.msra.mxu0 0
  %759 = vmatprep.subr.bf16.mxu0 0
  %760 = vmatpush1.bf16.msra.mxu0 0
  %761 = vmatprep.subr.bf16.mxu0 %v402
  %762 = vmatpush1.bf16.msra.mxu0 %v399
  %763 = vmatprep.subr.bf16.mxu0 0
  %764 = vmatpush2.bf16.msra.mxu0 0
  %765 = vmatprep.subr.bf16.mxu0 0
  %766 = vmatpush2.bf16.msra.mxu0 0
  %767 = vmatprep.subr.bf16.mxu0 0
  %768 = vmatpush2.bf16.msra.mxu0 0
  %769 = vmatprep.subr.bf16.mxu0 0
  %770 = vmatpush2.bf16.msra.mxu0 0
  %771 = vmatprep.subr.bf16.mxu0 0
  %772 = vmatpush2.bf16.msra.mxu0 0
  %773 = vmatprep.subr.bf16.mxu0 0
  %774 = vmatpush2.bf16.msra.mxu0 0
  %775 = vmatprep.subr.bf16.mxu0 0
  %776 = vmatpush2.bf16.msra.mxu0 0
  %777 = vmatprep.subr.bf16.mxu0 0
  %778 = vmatpush2.bf16.msra.mxu0 0
  %779 = vmatprep.mubr.bf16.mxu0 0
  %780 = vmatmul.mubr.bf16.gmra.mxu0 %v368
  %v781 = vpop.f32.mrf.mxu0
  %v782 = vadd.f32 0.0, %v781
  %v783 = vpop.f32.mrf.mxu0
  %v784 = vadd.f32 0.0, %v783
  %v785 = vpop.f32.mrf.mxu0
  %v786 = vadd.f32 0.0, %v785
  %v787 = vpop.f32.mrf.mxu0
  %v788 = vadd.f32 0.0, %v787
  %789 = vdwg.mxu0
  %790 = vmatprep.subr.bf16.mxu0 0
  %791 = vmatpush1.bf16.msra.mxu0 0
  %792 = vmatprep.subr.bf16.mxu0 0
  %793 = vmatpush1.bf16.msra.mxu0 0
  %794 = vmatprep.subr.bf16.mxu0 0
  %795 = vmatpush1.bf16.msra.mxu0 0
  %796 = vmatprep.subr.bf16.mxu0 0
  %797 = vmatpush1.bf16.msra.mxu0 0
  %798 = vmatprep.subr.bf16.mxu0 0
  %799 = vmatpush1.bf16.msra.mxu0 0
  %800 = vmatprep.subr.bf16.mxu0 0
  %801 = vmatpush1.bf16.msra.mxu0 0
  %802 = vmatprep.subr.bf16.mxu0 0
  %803 = vmatpush1.bf16.msra.mxu0 0
  %804 = vmatprep.subr.bf16.mxu0 %v408
  %805 = vmatpush1.bf16.msra.mxu0 %v405
  %806 = vmatprep.subr.bf16.mxu0 0
  %807 = vmatpush2.bf16.msra.mxu0 0
  %808 = vmatprep.subr.bf16.mxu0 0
  %809 = vmatpush2.bf16.msra.mxu0 0
  %810 = vmatprep.subr.bf16.mxu0 0
  %811 = vmatpush2.bf16.msra.mxu0 0
  %812 = vmatprep.subr.bf16.mxu0 0
  %813 = vmatpush2.bf16.msra.mxu0 0
  %814 = vmatprep.subr.bf16.mxu0 0
  %815 = vmatpush2.bf16.msra.mxu0 0
  %816 = vmatprep.subr.bf16.mxu0 0
  %817 = vmatpush2.bf16.msra.mxu0 0
  %818 = vmatprep.subr.bf16.mxu0 0
  %819 = vmatpush2.bf16.msra.mxu0 0
  %820 = vmatprep.subr.bf16.mxu0 0
  %821 = vmatpush2.bf16.msra.mxu0 0
  %822 = vmatprep.mubr.bf16.mxu0 0
  %823 = vmatmul.mubr.bf16.gmra.mxu0 %v368
  %v824 = vpop.f32.mrf.mxu0
  %v825 = vadd.f32 0.0, %v824
  %v826 = vpop.f32.mrf.mxu0
  %v827 = vadd.f32 0.0, %v826
  %v828 = vpop.f32.mrf.mxu0
  %v829 = vadd.f32 0.0, %v828
  %v830 = vpop.f32.mrf.mxu0
  %v831 = vadd.f32 0.0, %v830
  %832 = vdwg.mxu0
  %833 = vmatprep.subr.bf16.mxu0 0
  %834 = vmatpush1.bf16.msra.mxu0 0
  %835 = vmatprep.subr.bf16.mxu0 0
  %836 = vmatpush1.bf16.msra.mxu0 0
  %837 = vmatprep.subr.bf16.mxu0 0
  %838 = vmatpush1.bf16.msra.mxu0 0
  %839 = vmatprep.subr.bf16.mxu0 0
  %840 = vmatpush1.bf16.msra.mxu0 0
  %841 = vmatprep.subr.bf16.mxu0 0
  %842 = vmatpush1.bf16.msra.mxu0 0
  %843 = vmatprep.subr.bf16.mxu0 0
  %844 = vmatpush1.bf16.msra.mxu0 0
  %845 = vmatprep.subr.bf16.mxu0 0
  %846 = vmatpush1.bf16.msra.mxu0 0
  %847 = vmatprep.subr.bf16.mxu0 %v414
  %848 = vmatpush1.bf16.msra.mxu0 %v411
  %849 = vmatprep.subr.bf16.mxu0 0
  %850 = vmatpush2.bf16.msra.mxu0 0
  %851 = vmatprep.subr.bf16.mxu0 0
  %852 = vmatpush2.bf16.msra.mxu0 0
  %853 = vmatprep.subr.bf16.mxu0 0
  %854 = vmatpush2.bf16.msra.mxu0 0
  %855 = vmatprep.subr.bf16.mxu0 0
  %856 = vmatpush2.bf16.msra.mxu0 0
  %857 = vmatprep.subr.bf16.mxu0 0
  %858 = vmatpush2.bf16.msra.mxu0 0
  %859 = vmatprep.subr.bf16.mxu0 0
  %860 = vmatpush2.bf16.msra.mxu0 0
  %861 = vmatprep.subr.bf16.mxu0 0
  %862 = vmatpush2.bf16.msra.mxu0 0
  %863 = vmatprep.subr.bf16.mxu0 0
  %864 = vmatpush2.bf16.msra.mxu0 0
  %865 = vmatprep.mubr.bf16.mxu0 0
  %866 = vmatmul.mubr.bf16.gmra.mxu0 %v368
  %v867 = vpop.f32.mrf.mxu0
  %v868 = vadd.f32 0.0, %v867
  %v869 = vpop.f32.mrf.mxu0
  %v870 = vadd.f32 0.0, %v869
  %v871 = vpop.f32.mrf.mxu0
  %v872 = vadd.f32 0.0, %v871
  %v873 = vpop.f32.mrf.mxu0
  %v874 = vadd.f32 0.0, %v873
  %875 = vdwg.mxu0
  %876 = vmatprep.subr.bf16.mxu0 0
  %877 = vmatpush1.bf16.msra.mxu0 0
  %878 = vmatprep.subr.bf16.mxu0 0
  %879 = vmatpush1.bf16.msra.mxu0 0
  %880 = vmatprep.subr.bf16.mxu0 0
  %881 = vmatpush1.bf16.msra.mxu0 0
  %882 = vmatprep.subr.bf16.mxu0 0
  %883 = vmatpush1.bf16.msra.mxu0 0
  %884 = vmatprep.subr.bf16.mxu0 0
  %885 = vmatpush1.bf16.msra.mxu0 0
  %886 = vmatprep.subr.bf16.mxu0 0
  %887 = vmatpush1.bf16.msra.mxu0 0
  %888 = vmatprep.subr.bf16.mxu0 0
  %889 = vmatpush1.bf16.msra.mxu0 0
  %890 = vmatprep.subr.bf16.mxu0 %v420
  %891 = vmatpush1.bf16.msra.mxu0 %v417
  %892 = vmatprep.subr.bf16.mxu0 0
  %893 = vmatpush2.bf16.msra.mxu0 0
  %894 = vmatprep.subr.bf16.mxu0 0
  %895 = vmatpush2.bf16.msra.mxu0 0
  %896 = vmatprep.subr.bf16.mxu0 0
  %897 = vmatpush2.bf16.msra.mxu0 0
  %898 = vmatprep.subr.bf16.mxu0 0
  %899 = vmatpush2.bf16.msra.mxu0 0
  %900 = vmatprep.subr.bf16.mxu0 0
  %901 = vmatpush2.bf16.msra.mxu0 0
  %902 = vmatprep.subr.bf16.mxu0 0
  %903 = vmatpush2.bf16.msra.mxu0 0
  %904 = vmatprep.subr.bf16.mxu0 0
  %905 = vmatpush2.bf16.msra.mxu0 0
  %906 = vmatprep.subr.bf16.mxu0 0
  %907 = vmatpush2.bf16.msra.mxu0 0
  %908 = vmatprep.mubr.bf16.mxu0 0
  %909 = vmatmul.mubr.bf16.gmra.mxu0 %v368
  %v910 = vpop.f32.mrf.mxu0
  %v911 = vadd.f32 0.0, %v910
  %v912 = vpop.f32.mrf.mxu0
  %v913 = vadd.f32 0.0, %v912
  %v914 = vpop.f32.mrf.mxu0
  %v915 = vadd.f32 0.0, %v914
  %v916 = vpop.f32.mrf.mxu0
  %v917 = vadd.f32 0.0, %v916
  %918 = vdwg.mxu0
  %919 = vmatprep.subr.bf16.mxu0 0
  %920 = vmatpush1.bf16.msra.mxu0 0
  %921 = vmatprep.subr.bf16.mxu0 0
  %922 = vmatpush1.bf16.msra.mxu0 0
  %923 = vmatprep.subr.bf16.mxu0 0
  %924 = vmatpush1.bf16.msra.mxu0 0
  %925 = vmatprep.subr.bf16.mxu0 0
  %926 = vmatpush1.bf16.msra.mxu0 0
  %927 = vmatprep.subr.bf16.mxu0 0
  %928 = vmatpush1.bf16.msra.mxu0 0
  %929 = vmatprep.subr.bf16.mxu0 0
  %930 = vmatpush1.bf16.msra.mxu0 0
  %931 = vmatprep.subr.bf16.mxu0 0
  %932 = vmatpush1.bf16.msra.mxu0 0
  %933 = vmatprep.subr.bf16.mxu0 %v426
  %934 = vmatpush1.bf16.msra.mxu0 %v423
  %935 = vmatprep.subr.bf16.mxu0 0
  %936 = vmatpush2.bf16.msra.mxu0 0
  %937 = vmatprep.subr.bf16.mxu0 0
  %938 = vmatpush2.bf16.msra.mxu0 0
  %939 = vmatprep.subr.bf16.mxu0 0
  %940 = vmatpush2.bf16.msra.mxu0 0
  %941 = vmatprep.subr.bf16.mxu0 0
  %942 = vmatpush2.bf16.msra.mxu0 0
  %943 = vmatprep.subr.bf16.mxu0 0
  %944 = vmatpush2.bf16.msra.mxu0 0
  %945 = vmatprep.subr.bf16.mxu0 0
  %946 = vmatpush2.bf16.msra.mxu0 0
  %947 = vmatprep.subr.bf16.mxu0 0
  %948 = vmatpush2.bf16.msra.mxu0 0
  %949 = vmatprep.subr.bf16.mxu0 0
  %950 = vmatpush2.bf16.msra.mxu0 0
  %951 = vmatprep.mubr.bf16.mxu0 0
  %952 = vmatmul.mubr.bf16.gmra.mxu0 %v368
  %v953 = vpop.f32.mrf.mxu0
  %v954 = vadd.f32 0.0, %v953
  %v955 = vpop.f32.mrf.mxu0
  %v956 = vadd.f32 0.0, %v955
  %v957 = vpop.f32.mrf.mxu0
  %v958 = vadd.f32 0.0, %v957
  %v959 = vpop.f32.mrf.mxu0
  %v960 = vadd.f32 0.0, %v959
  %961 = vdwg.mxu0
  %962 = vmatprep.subr.bf16.mxu0 0
  %963 = vmatpush1.bf16.msra.mxu0 0
  %964 = vmatprep.subr.bf16.mxu0 0
  %965 = vmatpush1.bf16.msra.mxu0 0
  %966 = vmatprep.subr.bf16.mxu0 0
  %967 = vmatpush1.bf16.msra.mxu0 0
  %968 = vmatprep.subr.bf16.mxu0 0
  %969 = vmatpush1.bf16.msra.mxu0 0
  %970 = vmatprep.subr.bf16.mxu0 0
  %971 = vmatpush1.bf16.msra.mxu0 0
  %972 = vmatprep.subr.bf16.mxu0 0
  %973 = vmatpush1.bf16.msra.mxu0 0
  %974 = vmatprep.subr.bf16.mxu0 0
  %975 = vmatpush1.bf16.msra.mxu0 0
  %976 = vmatprep.subr.bf16.mxu0 %v432
  %977 = vmatpush1.bf16.msra.mxu0 %v429
  %978 = vmatprep.subr.bf16.mxu0 0
  %979 = vmatpush2.bf16.msra.mxu0 0
  %980 = vmatprep.subr.bf16.mxu0 0
  %981 = vmatpush2.bf16.msra.mxu0 0
  %982 = vmatprep.subr.bf16.mxu0 0
  %983 = vmatpush2.bf16.msra.mxu0 0
  %984 = vmatprep.subr.bf16.mxu0 0
  %985 = vmatpush2.bf16.msra.mxu0 0
  %986 = vmatprep.subr.bf16.mxu0 0
  %987 = vmatpush2.bf16.msra.mxu0 0
  %988 = vmatprep.subr.bf16.mxu0 0
  %989 = vmatpush2.bf16.msra.mxu0 0
  %990 = vmatprep.subr.bf16.mxu0 0
  %991 = vmatpush2.bf16.msra.mxu0 0
  %992 = vmatprep.subr.bf16.mxu0 0
  %993 = vmatpush2.bf16.msra.mxu0 0
  %994 = vmatprep.mubr.bf16.mxu0 0
  %995 = vmatmul.mubr.bf16.gmra.mxu0 %v368
  %v996 = vpop.f32.mrf.mxu0
  %v997 = vadd.f32 0.0, %v996
  %v998 = vpop.f32.mrf.mxu0
  %v999 = vadd.f32 0.0, %v998
  %v1000 = vpop.f32.mrf.mxu0
  %v1001 = vadd.f32 0.0, %v1000
  %v1002 = vpop.f32.mrf.mxu0
  %v1003 = vadd.f32 0.0, %v1002
  %1004 = vdwg.mxu0
  %1005 = vmatprep.subr.bf16.mxu0 0
  %1006 = vmatpush1.bf16.msra.mxu0 0
  %1007 = vmatprep.subr.bf16.mxu0 0
  %1008 = vmatpush1.bf16.msra.mxu0 0
  %1009 = vmatprep.subr.bf16.mxu0 0
  %1010 = vmatpush1.bf16.msra.mxu0 0
  %1011 = vmatprep.subr.bf16.mxu0 0
  %1012 = vmatpush1.bf16.msra.mxu0 0
  %1013 = vmatprep.subr.bf16.mxu0 0
  %1014 = vmatpush1.bf16.msra.mxu0 0
  %1015 = vmatprep.subr.bf16.mxu0 0
  %1016 = vmatpush1.bf16.msra.mxu0 0
  %1017 = vmatprep.subr.bf16.mxu0 0
  %1018 = vmatpush1.bf16.msra.mxu0 0
  %1019 = vmatprep.subr.bf16.mxu0 %v438
  %1020 = vmatpush1.bf16.msra.mxu0 %v435
  %1021 = vmatprep.subr.bf16.mxu0 0
  %1022 = vmatpush2.bf16.msra.mxu0 0
  %1023 = vmatprep.subr.bf16.mxu0 0
  %1024 = vmatpush2.bf16.msra.mxu0 0
  %1025 = vmatprep.subr.bf16.mxu0 0
  %1026 = vmatpush2.bf16.msra.mxu0 0
  %1027 = vmatprep.subr.bf16.mxu0 0
  %1028 = vmatpush2.bf16.msra.mxu0 0
  %1029 = vmatprep.subr.bf16.mxu0 0
  %1030 = vmatpush2.bf16.msra.mxu0 0
  %1031 = vmatprep.subr.bf16.mxu0 0
  %1032 = vmatpush2.bf16.msra.mxu0 0
  %1033 = vmatprep.subr.bf16.mxu0 0
  %1034 = vmatpush2.bf16.msra.mxu0 0
  %1035 = vmatprep.subr.bf16.mxu0 0
  %1036 = vmatpush2.bf16.msra.mxu0 0
  %1037 = vmatprep.mubr.bf16.mxu0 0
  %1038 = vmatmul.mubr.bf16.gmra.mxu0 %v368
  %v1039 = vpop.f32.mrf.mxu0
  %v1040 = vadd.f32 0.0, %v1039
  %v1041 = vpop.f32.mrf.mxu0
  %v1042 = vadd.f32 0.0, %v1041
  %v1043 = vpop.f32.mrf.mxu0
  %v1044 = vadd.f32 0.0, %v1043
  %v1045 = vpop.f32.mrf.mxu0
  %v1046 = vadd.f32 0.0, %v1045
  %1047 = vdwg.mxu0
  %1048 = vmatprep.subr.bf16.mxu0 0
  %1049 = vmatpush1.bf16.msra.mxu0 0
  %1050 = vmatprep.subr.bf16.mxu0 0
  %1051 = vmatpush1.bf16.msra.mxu0 0
  %1052 = vmatprep.subr.bf16.mxu0 0
  %1053 = vmatpush1.bf16.msra.mxu0 0
  %1054 = vmatprep.subr.bf16.mxu0 0
  %1055 = vmatpush1.bf16.msra.mxu0 0
  %1056 = vmatprep.subr.bf16.mxu0 0
  %1057 = vmatpush1.bf16.msra.mxu0 0
  %1058 = vmatprep.subr.bf16.mxu0 0
  %1059 = vmatpush1.bf16.msra.mxu0 0
  %1060 = vmatprep.subr.bf16.mxu0 0
  %1061 = vmatpush1.bf16.msra.mxu0 0
  %1062 = vmatprep.subr.bf16.mxu0 %v444
  %1063 = vmatpush1.bf16.msra.mxu0 %v441
  %1064 = vmatprep.subr.bf16.mxu0 0
  %1065 = vmatpush2.bf16.msra.mxu0 0
  %1066 = vmatprep.subr.bf16.mxu0 0
  %1067 = vmatpush2.bf16.msra.mxu0 0
  %1068 = vmatprep.subr.bf16.mxu0 0
  %1069 = vmatpush2.bf16.msra.mxu0 0
  %1070 = vmatprep.subr.bf16.mxu0 0
  %1071 = vmatpush2.bf16.msra.mxu0 0
  %1072 = vmatprep.subr.bf16.mxu0 0
  %1073 = vmatpush2.bf16.msra.mxu0 0
  %1074 = vmatprep.subr.bf16.mxu0 0
  %1075 = vmatpush2.bf16.msra.mxu0 0
  %1076 = vmatprep.subr.bf16.mxu0 0
  %1077 = vmatpush2.bf16.msra.mxu0 0
  %1078 = vmatprep.subr.bf16.mxu0 0
  %1079 = vmatpush2.bf16.msra.mxu0 0
  %1080 = vmatprep.mubr.bf16.mxu0 0
  %1081 = vmatmul.mubr.bf16.gmra.mxu0 %v368
  %v1082 = vpop.f32.mrf.mxu0
  %v1083 = vadd.f32 0.0, %v1082
  %v1084 = vpop.f32.mrf.mxu0
  %v1085 = vadd.f32 0.0, %v1084
  %v1086 = vpop.f32.mrf.mxu0
  %v1087 = vadd.f32 0.0, %v1086
  %v1088 = vpop.f32.mrf.mxu0
  %v1089 = vadd.f32 0.0, %v1088
  %1090 = vdwg.mxu0
  %1091 = vmatprep.subr.bf16.mxu0 0
  %1092 = vmatpush1.bf16.msra.mxu0 0
  %1093 = vmatprep.subr.bf16.mxu0 0
  %1094 = vmatpush1.bf16.msra.mxu0 0
  %1095 = vmatprep.subr.bf16.mxu0 0
  %1096 = vmatpush1.bf16.msra.mxu0 0
  %1097 = vmatprep.subr.bf16.mxu0 0
  %1098 = vmatpush1.bf16.msra.mxu0 0
  %1099 = vmatprep.subr.bf16.mxu0 0
  %1100 = vmatpush1.bf16.msra.mxu0 0
  %1101 = vmatprep.subr.bf16.mxu0 0
  %1102 = vmatpush1.bf16.msra.mxu0 0
  %1103 = vmatprep.subr.bf16.mxu0 0
  %1104 = vmatpush1.bf16.msra.mxu0 0
  %1105 = vmatprep.subr.bf16.mxu0 %v450
  %1106 = vmatpush1.bf16.msra.mxu0 %v447
  %1107 = vmatprep.subr.bf16.mxu0 0
  %1108 = vmatpush2.bf16.msra.mxu0 0
  %1109 = vmatprep.subr.bf16.mxu0 0
  %1110 = vmatpush2.bf16.msra.mxu0 0
  %1111 = vmatprep.subr.bf16.mxu0 0
  %1112 = vmatpush2.bf16.msra.mxu0 0
  %1113 = vmatprep.subr.bf16.mxu0 0
  %1114 = vmatpush2.bf16.msra.mxu0 0
  %1115 = vmatprep.subr.bf16.mxu0 0
  %1116 = vmatpush2.bf16.msra.mxu0 0
  %1117 = vmatprep.subr.bf16.mxu0 0
  %1118 = vmatpush2.bf16.msra.mxu0 0
  %1119 = vmatprep.subr.bf16.mxu0 0
  %1120 = vmatpush2.bf16.msra.mxu0 0
  %1121 = vmatprep.subr.bf16.mxu0 0
  %1122 = vmatpush2.bf16.msra.mxu0 0
  %1123 = vmatprep.mubr.bf16.mxu0 0
  %1124 = vmatmul.mubr.bf16.gmra.mxu0 %v368
  %v1125 = vpop.f32.mrf.mxu0
  %v1126 = vadd.f32 0.0, %v1125
  %v1127 = vpop.f32.mrf.mxu0
  %v1128 = vadd.f32 0.0, %v1127
  %v1129 = vpop.f32.mrf.mxu0
  %v1130 = vadd.f32 0.0, %v1129
  %v1131 = vpop.f32.mrf.mxu0
  %v1132 = vadd.f32 0.0, %v1131
  %1133 = vdwg.mxu0
  %1134 = vmatprep.subr.bf16.mxu0 0
  %1135 = vmatpush1.bf16.msra.mxu0 0
  %1136 = vmatprep.subr.bf16.mxu0 0
  %1137 = vmatpush1.bf16.msra.mxu0 0
  %1138 = vmatprep.subr.bf16.mxu0 0
  %1139 = vmatpush1.bf16.msra.mxu0 0
  %1140 = vmatprep.subr.bf16.mxu0 0
  %1141 = vmatpush1.bf16.msra.mxu0 0
  %1142 = vmatprep.subr.bf16.mxu0 0
  %1143 = vmatpush1.bf16.msra.mxu0 0
  %1144 = vmatprep.subr.bf16.mxu0 0
  %1145 = vmatpush1.bf16.msra.mxu0 0
  %1146 = vmatprep.subr.bf16.mxu0 0
  %1147 = vmatpush1.bf16.msra.mxu0 0
  %1148 = vmatprep.subr.bf16.mxu0 %v456
  %1149 = vmatpush1.bf16.msra.mxu0 %v453
  %1150 = vmatprep.subr.bf16.mxu0 0
  %1151 = vmatpush2.bf16.msra.mxu0 0
  %1152 = vmatprep.subr.bf16.mxu0 0
  %1153 = vmatpush2.bf16.msra.mxu0 0
  %1154 = vmatprep.subr.bf16.mxu0 0
  %1155 = vmatpush2.bf16.msra.mxu0 0
  %1156 = vmatprep.subr.bf16.mxu0 0
  %1157 = vmatpush2.bf16.msra.mxu0 0
  %1158 = vmatprep.subr.bf16.mxu0 0
  %1159 = vmatpush2.bf16.msra.mxu0 0
  %1160 = vmatprep.subr.bf16.mxu0 0
  %1161 = vmatpush2.bf16.msra.mxu0 0
  %1162 = vmatprep.subr.bf16.mxu0 0
  %1163 = vmatpush2.bf16.msra.mxu0 0
  %1164 = vmatprep.subr.bf16.mxu0 0
  %1165 = vmatpush2.bf16.msra.mxu0 0
  %1166 = vmatprep.mubr.bf16.mxu0 0
  %1167 = vmatmul.mubr.bf16.gmra.mxu0 %v368
  %v1168 = vpop.f32.mrf.mxu0
  %v1169 = vadd.f32 0.0, %v1168
  %v1170 = vpop.f32.mrf.mxu0
  %v1171 = vadd.f32 0.0, %v1170
  %v1172 = vpop.f32.mrf.mxu0
  %v1173 = vadd.f32 0.0, %v1172
  %v1174 = vpop.f32.mrf.mxu0
  %v1175 = vadd.f32 0.0, %v1174
  %1176 = vdwg.mxu0
  %1177 = vmatprep.subr.bf16.mxu0 0
  %1178 = vmatpush1.bf16.msra.mxu0 0
  %1179 = vmatprep.subr.bf16.mxu0 0
  %1180 = vmatpush1.bf16.msra.mxu0 0
  %1181 = vmatprep.subr.bf16.mxu0 0
  %1182 = vmatpush1.bf16.msra.mxu0 0
  %1183 = vmatprep.subr.bf16.mxu0 0
  %1184 = vmatpush1.bf16.msra.mxu0 0
  %1185 = vmatprep.subr.bf16.mxu0 0
  %1186 = vmatpush1.bf16.msra.mxu0 0
  %1187 = vmatprep.subr.bf16.mxu0 0
  %1188 = vmatpush1.bf16.msra.mxu0 0
  %1189 = vmatprep.subr.bf16.mxu0 0
  %1190 = vmatpush1.bf16.msra.mxu0 0
  %1191 = vmatprep.subr.bf16.mxu0 %v462
  %1192 = vmatpush1.bf16.msra.mxu0 %v459
  %1193 = vmatprep.subr.bf16.mxu0 0
  %1194 = vmatpush2.bf16.msra.mxu0 0
  %1195 = vmatprep.subr.bf16.mxu0 0
  %1196 = vmatpush2.bf16.msra.mxu0 0
  %1197 = vmatprep.subr.bf16.mxu0 0
  %1198 = vmatpush2.bf16.msra.mxu0 0
  %1199 = vmatprep.subr.bf16.mxu0 0
  %1200 = vmatpush2.bf16.msra.mxu0 0
  %1201 = vmatprep.subr.bf16.mxu0 0
  %1202 = vmatpush2.bf16.msra.mxu0 0
  %1203 = vmatprep.subr.bf16.mxu0 0
  %1204 = vmatpush2.bf16.msra.mxu0 0
  %1205 = vmatprep.subr.bf16.mxu0 0
  %1206 = vmatpush2.bf16.msra.mxu0 0
  %1207 = vmatprep.subr.bf16.mxu0 0
  %1208 = vmatpush2.bf16.msra.mxu0 0
  %1209 = vmatprep.mubr.bf16.mxu0 0
  %1210 = vmatmul.mubr.bf16.gmra.mxu0 %v368
  %v1211 = vpop.f32.mrf.mxu0
  %v1212 = vadd.f32 0.0, %v1211
  %v1213 = vpop.f32.mrf.mxu0
  %v1214 = vadd.f32 0.0, %v1213
  %v1215 = vpop.f32.mrf.mxu0
  %v1216 = vadd.f32 0.0, %v1215
  %v1217 = vpop.f32.mrf.mxu0
  %v1218 = vadd.f32 0.0, %v1217
  %1219 = vdwg.mxu0
  %1220 = vmatprep.subr.bf16.mxu0 0
  %1221 = vmatpush1.bf16.msra.mxu0 0
  %1222 = vmatprep.subr.bf16.mxu0 0
  %1223 = vmatpush1.bf16.msra.mxu0 0
  %1224 = vmatprep.subr.bf16.mxu0 0
  %1225 = vmatpush1.bf16.msra.mxu0 0
  %1226 = vmatprep.subr.bf16.mxu0 0
  %1227 = vmatpush1.bf16.msra.mxu0 0
  %1228 = vmatprep.subr.bf16.mxu0 0
  %1229 = vmatpush1.bf16.msra.mxu0 0
  %1230 = vmatprep.subr.bf16.mxu0 0
  %1231 = vmatpush1.bf16.msra.mxu0 0
  %1232 = vmatprep.subr.bf16.mxu0 0
  %1233 = vmatpush1.bf16.msra.mxu0 0
  %1234 = vmatprep.subr.bf16.mxu0 %v468
  %1235 = vmatpush1.bf16.msra.mxu0 %v465
  %1236 = vmatprep.subr.bf16.mxu0 0
  %1237 = vmatpush2.bf16.msra.mxu0 0
  %1238 = vmatprep.subr.bf16.mxu0 0
  %1239 = vmatpush2.bf16.msra.mxu0 0
  %1240 = vmatprep.subr.bf16.mxu0 0
  %1241 = vmatpush2.bf16.msra.mxu0 0
  %1242 = vmatprep.subr.bf16.mxu0 0
  %1243 = vmatpush2.bf16.msra.mxu0 0
  %1244 = vmatprep.subr.bf16.mxu0 0
  %1245 = vmatpush2.bf16.msra.mxu0 0
  %1246 = vmatprep.subr.bf16.mxu0 0
  %1247 = vmatpush2.bf16.msra.mxu0 0
  %1248 = vmatprep.subr.bf16.mxu0 0
  %1249 = vmatpush2.bf16.msra.mxu0 0
  %1250 = vmatprep.subr.bf16.mxu0 0
  %1251 = vmatpush2.bf16.msra.mxu0 0
  %1252 = vmatprep.mubr.bf16.mxu0 0
  %1253 = vmatmul.mubr.bf16.gmra.mxu0 %v368
  %v1254 = vpop.f32.mrf.mxu0
  %v1255 = vadd.f32 0.0, %v1254
  %v1256 = vpop.f32.mrf.mxu0
  %v1257 = vadd.f32 0.0, %v1256
  %v1258 = vpop.f32.mrf.mxu0
  %v1259 = vadd.f32 0.0, %v1258
  %v1260 = vpop.f32.mrf.mxu0
  %v1261 = vadd.f32 0.0, %v1260
  %1262 = vdwg.mxu0
  %1263 = vmatprep.subr.bf16.mxu0 0
  %1264 = vmatpush1.bf16.msra.mxu0 0
  %1265 = vmatprep.subr.bf16.mxu0 0
  %1266 = vmatpush1.bf16.msra.mxu0 0
  %1267 = vmatprep.subr.bf16.mxu0 0
  %1268 = vmatpush1.bf16.msra.mxu0 0
  %1269 = vmatprep.subr.bf16.mxu0 0
  %1270 = vmatpush1.bf16.msra.mxu0 0
  %1271 = vmatprep.subr.bf16.mxu0 0
  %1272 = vmatpush1.bf16.msra.mxu0 0
  %1273 = vmatprep.subr.bf16.mxu0 0
  %1274 = vmatpush1.bf16.msra.mxu0 0
  %1275 = vmatprep.subr.bf16.mxu0 0
  %1276 = vmatpush1.bf16.msra.mxu0 0
  %1277 = vmatprep.subr.bf16.mxu0 %v474
  %1278 = vmatpush1.bf16.msra.mxu0 %v471
  %1279 = vmatprep.subr.bf16.mxu0 0
  %1280 = vmatpush2.bf16.msra.mxu0 0
  %1281 = vmatprep.subr.bf16.mxu0 0
  %1282 = vmatpush2.bf16.msra.mxu0 0
  %1283 = vmatprep.subr.bf16.mxu0 0
  %1284 = vmatpush2.bf16.msra.mxu0 0
  %1285 = vmatprep.subr.bf16.mxu0 0
  %1286 = vmatpush2.bf16.msra.mxu0 0
  %1287 = vmatprep.subr.bf16.mxu0 0
  %1288 = vmatpush2.bf16.msra.mxu0 0
  %1289 = vmatprep.subr.bf16.mxu0 0
  %1290 = vmatpush2.bf16.msra.mxu0 0
  %1291 = vmatprep.subr.bf16.mxu0 0
  %1292 = vmatpush2.bf16.msra.mxu0 0
  %1293 = vmatprep.subr.bf16.mxu0 0
  %1294 = vmatpush2.bf16.msra.mxu0 0
  %1295 = vmatprep.mubr.bf16.mxu0 0
  %1296 = vmatmul.mubr.bf16.gmra.mxu0 %v368
  %v1297 = vpop.f32.mrf.mxu0
  %v1298 = vadd.f32 0.0, %v1297
  %v1299 = vpop.f32.mrf.mxu0
  %v1300 = vadd.f32 0.0, %v1299
  %v1301 = vpop.f32.mrf.mxu0
  %v1302 = vadd.f32 0.0, %v1301
  %v1303 = vpop.f32.mrf.mxu0
  %v1304 = vadd.f32 0.0, %v1303
  %1305 = vdwg.mxu0
  %1306 = vmatprep.subr.bf16.mxu0 0
  %1307 = vmatpush1.bf16.msra.mxu0 0
  %1308 = vmatprep.subr.bf16.mxu0 0
  %1309 = vmatpush1.bf16.msra.mxu0 0
  %1310 = vmatprep.subr.bf16.mxu0 0
  %1311 = vmatpush1.bf16.msra.mxu0 0
  %1312 = vmatprep.subr.bf16.mxu0 0
  %1313 = vmatpush1.bf16.msra.mxu0 0
  %1314 = vmatprep.subr.bf16.mxu0 0
  %1315 = vmatpush1.bf16.msra.mxu0 0
  %1316 = vmatprep.subr.bf16.mxu0 0
  %1317 = vmatpush1.bf16.msra.mxu0 0
  %1318 = vmatprep.subr.bf16.mxu0 0
  %1319 = vmatpush1.bf16.msra.mxu0 0
  %1320 = vmatprep.subr.bf16.mxu0 %v480
  %1321 = vmatpush1.bf16.msra.mxu0 %v477
  %1322 = vmatprep.subr.bf16.mxu0 0
  %1323 = vmatpush2.bf16.msra.mxu0 0
  %1324 = vmatprep.subr.bf16.mxu0 0
  %1325 = vmatpush2.bf16.msra.mxu0 0
  %1326 = vmatprep.subr.bf16.mxu0 0
  %1327 = vmatpush2.bf16.msra.mxu0 0
  %1328 = vmatprep.subr.bf16.mxu0 0
  %1329 = vmatpush2.bf16.msra.mxu0 0
  %1330 = vmatprep.subr.bf16.mxu0 0
  %1331 = vmatpush2.bf16.msra.mxu0 0
  %1332 = vmatprep.subr.bf16.mxu0 0
  %1333 = vmatpush2.bf16.msra.mxu0 0
  %1334 = vmatprep.subr.bf16.mxu0 0
  %1335 = vmatpush2.bf16.msra.mxu0 0
  %1336 = vmatprep.subr.bf16.mxu0 0
  %1337 = vmatpush2.bf16.msra.mxu0 0
  %1338 = vmatprep.mubr.bf16.mxu0 0
  %1339 = vmatmul.mubr.bf16.gmra.mxu0 %v368
  %v1340 = vpop.f32.mrf.mxu0
  %v1341 = vadd.f32 0.0, %v1340
  %v1342 = vpop.f32.mrf.mxu0
  %v1343 = vadd.f32 0.0, %v1342
  %v1344 = vpop.f32.mrf.mxu0
  %v1345 = vadd.f32 0.0, %v1344
  %v1346 = vpop.f32.mrf.mxu0
  %v1347 = vadd.f32 0.0, %v1346
  %1348 = vdwg.mxu0
  %1349 = vmatprep.subr.bf16.mxu0 0
  %1350 = vmatpush1.bf16.msra.mxu0 0
  %1351 = vmatprep.subr.bf16.mxu0 0
  %1352 = vmatpush1.bf16.msra.mxu0 0
  %1353 = vmatprep.subr.bf16.mxu0 0
  %1354 = vmatpush1.bf16.msra.mxu0 0
  %1355 = vmatprep.subr.bf16.mxu0 0
  %1356 = vmatpush1.bf16.msra.mxu0 0
  %1357 = vmatprep.subr.bf16.mxu0 0
  %1358 = vmatpush1.bf16.msra.mxu0 0
  %1359 = vmatprep.subr.bf16.mxu0 0
  %1360 = vmatpush1.bf16.msra.mxu0 0
  %1361 = vmatprep.subr.bf16.mxu0 0
  %1362 = vmatpush1.bf16.msra.mxu0 0
  %1363 = vmatprep.subr.bf16.mxu0 %v486
  %1364 = vmatpush1.bf16.msra.mxu0 %v483
  %1365 = vmatprep.subr.bf16.mxu0 0
  %1366 = vmatpush2.bf16.msra.mxu0 0
  %1367 = vmatprep.subr.bf16.mxu0 0
  %1368 = vmatpush2.bf16.msra.mxu0 0
  %1369 = vmatprep.subr.bf16.mxu0 0
  %1370 = vmatpush2.bf16.msra.mxu0 0
  %1371 = vmatprep.subr.bf16.mxu0 0
  %1372 = vmatpush2.bf16.msra.mxu0 0
  %1373 = vmatprep.subr.bf16.mxu0 0
  %1374 = vmatpush2.bf16.msra.mxu0 0
  %1375 = vmatprep.subr.bf16.mxu0 0
  %1376 = vmatpush2.bf16.msra.mxu0 0
  %1377 = vmatprep.subr.bf16.mxu0 0
  %1378 = vmatpush2.bf16.msra.mxu0 0
  %1379 = vmatprep.subr.bf16.mxu0 0
  %1380 = vmatpush2.bf16.msra.mxu0 0
  %1381 = vmatprep.mubr.bf16.mxu0 0
  %1382 = vmatmul.mubr.bf16.gmra.mxu0 %v368
  %v1383 = vpop.f32.mrf.mxu0
  %v1384 = vadd.f32 0.0, %v1383
  %v1385 = vpop.f32.mrf.mxu0
  %v1386 = vadd.f32 0.0, %v1385
  %v1387 = vpop.f32.mrf.mxu0
  %v1388 = vadd.f32 0.0, %v1387
  %v1389 = vpop.f32.mrf.mxu0
  %v1390 = vadd.f32 0.0, %v1389
  %1391 = vdwg.mxu0
  %1392 = vmatprep.subr.bf16.mxu0 0
  %1393 = vmatpush1.bf16.msra.mxu0 0
  %1394 = vmatprep.subr.bf16.mxu0 0
  %1395 = vmatpush1.bf16.msra.mxu0 0
  %1396 = vmatprep.subr.bf16.mxu0 0
  %1397 = vmatpush1.bf16.msra.mxu0 0
  %1398 = vmatprep.subr.bf16.mxu0 0
  %1399 = vmatpush1.bf16.msra.mxu0 0
  %1400 = vmatprep.subr.bf16.mxu0 0
  %1401 = vmatpush1.bf16.msra.mxu0 0
  %1402 = vmatprep.subr.bf16.mxu0 0
  %1403 = vmatpush1.bf16.msra.mxu0 0
  %1404 = vmatprep.subr.bf16.mxu0 0
  %1405 = vmatpush1.bf16.msra.mxu0 0
  %1406 = vmatprep.subr.bf16.mxu0 %v492
  %1407 = vmatpush1.bf16.msra.mxu0 %v489
  %1408 = vmatprep.subr.bf16.mxu0 0
  %1409 = vmatpush2.bf16.msra.mxu0 0
  %1410 = vmatprep.subr.bf16.mxu0 0
  %1411 = vmatpush2.bf16.msra.mxu0 0
  %1412 = vmatprep.subr.bf16.mxu0 0
  %1413 = vmatpush2.bf16.msra.mxu0 0
  %1414 = vmatprep.subr.bf16.mxu0 0
  %1415 = vmatpush2.bf16.msra.mxu0 0
  %1416 = vmatprep.subr.bf16.mxu0 0
  %1417 = vmatpush2.bf16.msra.mxu0 0
  %1418 = vmatprep.subr.bf16.mxu0 0
  %1419 = vmatpush2.bf16.msra.mxu0 0
  %1420 = vmatprep.subr.bf16.mxu0 0
  %1421 = vmatpush2.bf16.msra.mxu0 0
  %1422 = vmatprep.subr.bf16.mxu0 0
  %1423 = vmatpush2.bf16.msra.mxu0 0
  %1424 = vmatprep.mubr.bf16.mxu0 0
  %1425 = vmatmul.mubr.bf16.gmra.mxu0 %v368
  %v1426 = vpop.f32.mrf.mxu0
  %v1427 = vadd.f32 0.0, %v1426
  %v1428 = vpop.f32.mrf.mxu0
  %v1429 = vadd.f32 0.0, %v1428
  %v1430 = vpop.f32.mrf.mxu0
  %v1431 = vadd.f32 0.0, %v1430
  %v1432 = vpop.f32.mrf.mxu0
  %v1433 = vadd.f32 0.0, %v1432
  %1434 = vdwg.mxu0
  %1435 = vmatprep.subr.bf16.mxu0 0
  %1436 = vmatpush1.bf16.msra.mxu0 0
  %1437 = vmatprep.subr.bf16.mxu0 0
  %1438 = vmatpush1.bf16.msra.mxu0 0
  %1439 = vmatprep.subr.bf16.mxu0 0
  %1440 = vmatpush1.bf16.msra.mxu0 0
  %1441 = vmatprep.subr.bf16.mxu0 0
  %1442 = vmatpush1.bf16.msra.mxu0 0
  %1443 = vmatprep.subr.bf16.mxu0 0
  %1444 = vmatpush1.bf16.msra.mxu0 0
  %1445 = vmatprep.subr.bf16.mxu0 0
  %1446 = vmatpush1.bf16.msra.mxu0 0
  %1447 = vmatprep.subr.bf16.mxu0 0
  %1448 = vmatpush1.bf16.msra.mxu0 0
  %1449 = vmatprep.subr.bf16.mxu0 %v498
  %1450 = vmatpush1.bf16.msra.mxu0 %v495
  %1451 = vmatprep.subr.bf16.mxu0 0
  %1452 = vmatpush2.bf16.msra.mxu0 0
  %1453 = vmatprep.subr.bf16.mxu0 0
  %1454 = vmatpush2.bf16.msra.mxu0 0
  %1455 = vmatprep.subr.bf16.mxu0 0
  %1456 = vmatpush2.bf16.msra.mxu0 0
  %1457 = vmatprep.subr.bf16.mxu0 0
  %1458 = vmatpush2.bf16.msra.mxu0 0
  %1459 = vmatprep.subr.bf16.mxu0 0
  %1460 = vmatpush2.bf16.msra.mxu0 0
  %1461 = vmatprep.subr.bf16.mxu0 0
  %1462 = vmatpush2.bf16.msra.mxu0 0
  %1463 = vmatprep.subr.bf16.mxu0 0
  %1464 = vmatpush2.bf16.msra.mxu0 0
  %1465 = vmatprep.subr.bf16.mxu0 0
  %1466 = vmatpush2.bf16.msra.mxu0 0
  %1467 = vmatprep.mubr.bf16.mxu0 0
  %1468 = vmatmul.mubr.bf16.gmra.mxu0 %v368
  %v1469 = vpop.f32.mrf.mxu0
  %v1470 = vadd.f32 0.0, %v1469
  %v1471 = vpop.f32.mrf.mxu0
  %v1472 = vadd.f32 0.0, %v1471
  %v1473 = vpop.f32.mrf.mxu0
  %v1474 = vadd.f32 0.0, %v1473
  %v1475 = vpop.f32.mrf.mxu0
  %v1476 = vadd.f32 0.0, %v1475
  %1477 = vdwg.mxu0
  %1478 = vmatprep.subr.bf16.mxu0 0
  %1479 = vmatpush1.bf16.msra.mxu0 0
  %1480 = vmatprep.subr.bf16.mxu0 0
  %1481 = vmatpush1.bf16.msra.mxu0 0
  %1482 = vmatprep.subr.bf16.mxu0 0
  %1483 = vmatpush1.bf16.msra.mxu0 0
  %1484 = vmatprep.subr.bf16.mxu0 0
  %1485 = vmatpush1.bf16.msra.mxu0 0
  %1486 = vmatprep.subr.bf16.mxu0 0
  %1487 = vmatpush1.bf16.msra.mxu0 0
  %1488 = vmatprep.subr.bf16.mxu0 0
  %1489 = vmatpush1.bf16.msra.mxu0 0
  %1490 = vmatprep.subr.bf16.mxu0 0
  %1491 = vmatpush1.bf16.msra.mxu0 0
  %1492 = vmatprep.subr.bf16.mxu0 %v504
  %1493 = vmatpush1.bf16.msra.mxu0 %v501
  %1494 = vmatprep.subr.bf16.mxu0 0
  %1495 = vmatpush2.bf16.msra.mxu0 0
  %1496 = vmatprep.subr.bf16.mxu0 0
  %1497 = vmatpush2.bf16.msra.mxu0 0
  %1498 = vmatprep.subr.bf16.mxu0 0
  %1499 = vmatpush2.bf16.msra.mxu0 0
  %1500 = vmatprep.subr.bf16.mxu0 0
  %1501 = vmatpush2.bf16.msra.mxu0 0
  %1502 = vmatprep.subr.bf16.mxu0 0
  %1503 = vmatpush2.bf16.msra.mxu0 0
  %1504 = vmatprep.subr.bf16.mxu0 0
  %1505 = vmatpush2.bf16.msra.mxu0 0
  %1506 = vmatprep.subr.bf16.mxu0 0
  %1507 = vmatpush2.bf16.msra.mxu0 0
  %1508 = vmatprep.subr.bf16.mxu0 0
  %1509 = vmatpush2.bf16.msra.mxu0 0
  %1510 = vmatprep.mubr.bf16.mxu0 0
  %1511 = vmatmul.mubr.bf16.gmra.mxu0 %v368
  %v1512 = vpop.f32.mrf.mxu0
  %v1513 = vadd.f32 0.0, %v1512
  %v1514 = vpop.f32.mrf.mxu0
  %v1515 = vadd.f32 0.0, %v1514
  %v1516 = vpop.f32.mrf.mxu0
  %v1517 = vadd.f32 0.0, %v1516
  %v1518 = vpop.f32.mrf.mxu0
  %v1519 = vadd.f32 0.0, %v1518
  %1520 = vdwg.mxu0
  %1521 = vmatprep.subr.bf16.mxu0 0
  %1522 = vmatpush1.bf16.msra.mxu0 0
  %1523 = vmatprep.subr.bf16.mxu0 0
  %1524 = vmatpush1.bf16.msra.mxu0 0
  %1525 = vmatprep.subr.bf16.mxu0 0
  %1526 = vmatpush1.bf16.msra.mxu0 0
  %1527 = vmatprep.subr.bf16.mxu0 0
  %1528 = vmatpush1.bf16.msra.mxu0 0
  %1529 = vmatprep.subr.bf16.mxu0 0
  %1530 = vmatpush1.bf16.msra.mxu0 0
  %1531 = vmatprep.subr.bf16.mxu0 0
  %1532 = vmatpush1.bf16.msra.mxu0 0
  %1533 = vmatprep.subr.bf16.mxu0 0
  %1534 = vmatpush1.bf16.msra.mxu0 0
  %1535 = vmatprep.subr.bf16.mxu0 %v510
  %1536 = vmatpush1.bf16.msra.mxu0 %v507
  %1537 = vmatprep.subr.bf16.mxu0 0
  %1538 = vmatpush2.bf16.msra.mxu0 0
  %1539 = vmatprep.subr.bf16.mxu0 0
  %1540 = vmatpush2.bf16.msra.mxu0 0
  %1541 = vmatprep.subr.bf16.mxu0 0
  %1542 = vmatpush2.bf16.msra.mxu0 0
  %1543 = vmatprep.subr.bf16.mxu0 0
  %1544 = vmatpush2.bf16.msra.mxu0 0
  %1545 = vmatprep.subr.bf16.mxu0 0
  %1546 = vmatpush2.bf16.msra.mxu0 0
  %1547 = vmatprep.subr.bf16.mxu0 0
  %1548 = vmatpush2.bf16.msra.mxu0 0
  %1549 = vmatprep.subr.bf16.mxu0 0
  %1550 = vmatpush2.bf16.msra.mxu0 0
  %1551 = vmatprep.subr.bf16.mxu0 0
  %1552 = vmatpush2.bf16.msra.mxu0 0
  %1553 = vmatprep.mubr.bf16.mxu0 0
  %1554 = vmatmul.mubr.bf16.gmra.mxu0 %v368
  %v1555 = vpop.f32.mrf.mxu0
  %v1556 = vadd.f32 0.0, %v1555
  %v1557 = vpop.f32.mrf.mxu0
  %v1558 = vadd.f32 0.0, %v1557
  %v1559 = vpop.f32.mrf.mxu0
  %v1560 = vadd.f32 0.0, %v1559
  %v1561 = vpop.f32.mrf.mxu0
  %v1562 = vadd.f32 0.0, %v1561
  %1563 = vdwg.mxu0
  %1564 = vmatprep.subr.bf16.mxu0 0
  %1565 = vmatpush1.bf16.msra.mxu0 0
  %1566 = vmatprep.subr.bf16.mxu0 0
  %1567 = vmatpush1.bf16.msra.mxu0 0
  %1568 = vmatprep.subr.bf16.mxu0 0
  %1569 = vmatpush1.bf16.msra.mxu0 0
  %1570 = vmatprep.subr.bf16.mxu0 0
  %1571 = vmatpush1.bf16.msra.mxu0 0
  %1572 = vmatprep.subr.bf16.mxu0 0
  %1573 = vmatpush1.bf16.msra.mxu0 0
  %1574 = vmatprep.subr.bf16.mxu0 0
  %1575 = vmatpush1.bf16.msra.mxu0 0
  %1576 = vmatprep.subr.bf16.mxu0 0
  %1577 = vmatpush1.bf16.msra.mxu0 0
  %1578 = vmatprep.subr.bf16.mxu0 %v516
  %1579 = vmatpush1.bf16.msra.mxu0 %v513
  %1580 = vmatprep.subr.bf16.mxu0 0
  %1581 = vmatpush2.bf16.msra.mxu0 0
  %1582 = vmatprep.subr.bf16.mxu0 0
  %1583 = vmatpush2.bf16.msra.mxu0 0
  %1584 = vmatprep.subr.bf16.mxu0 0
  %1585 = vmatpush2.bf16.msra.mxu0 0
  %1586 = vmatprep.subr.bf16.mxu0 0
  %1587 = vmatpush2.bf16.msra.mxu0 0
  %1588 = vmatprep.subr.bf16.mxu0 0
  %1589 = vmatpush2.bf16.msra.mxu0 0
  %1590 = vmatprep.subr.bf16.mxu0 0
  %1591 = vmatpush2.bf16.msra.mxu0 0
  %1592 = vmatprep.subr.bf16.mxu0 0
  %1593 = vmatpush2.bf16.msra.mxu0 0
  %1594 = vmatprep.subr.bf16.mxu0 0
  %1595 = vmatpush2.bf16.msra.mxu0 0
  %1596 = vmatprep.mubr.bf16.mxu0 0
  %1597 = vmatmul.mubr.bf16.gmra.mxu0 %v368
  %v1598 = vpop.f32.mrf.mxu0
  %v1599 = vadd.f32 0.0, %v1598
  %v1600 = vpop.f32.mrf.mxu0
  %v1601 = vadd.f32 0.0, %v1600
  %v1602 = vpop.f32.mrf.mxu0
  %v1603 = vadd.f32 0.0, %v1602
  %v1604 = vpop.f32.mrf.mxu0
  %v1605 = vadd.f32 0.0, %v1604
  %1606 = vdwg.mxu0
  %1607 = vmatprep.subr.bf16.mxu0 0
  %1608 = vmatpush1.bf16.msra.mxu0 0
  %1609 = vmatprep.subr.bf16.mxu0 0
  %1610 = vmatpush1.bf16.msra.mxu0 0
  %1611 = vmatprep.subr.bf16.mxu0 0
  %1612 = vmatpush1.bf16.msra.mxu0 0
  %1613 = vmatprep.subr.bf16.mxu0 0
  %1614 = vmatpush1.bf16.msra.mxu0 0
  %1615 = vmatprep.subr.bf16.mxu0 0
  %1616 = vmatpush1.bf16.msra.mxu0 0
  %1617 = vmatprep.subr.bf16.mxu0 0
  %1618 = vmatpush1.bf16.msra.mxu0 0
  %1619 = vmatprep.subr.bf16.mxu0 0
  %1620 = vmatpush1.bf16.msra.mxu0 0
  %1621 = vmatprep.subr.bf16.mxu0 %v522
  %1622 = vmatpush1.bf16.msra.mxu0 %v519
  %1623 = vmatprep.subr.bf16.mxu0 0
  %1624 = vmatpush2.bf16.msra.mxu0 0
  %1625 = vmatprep.subr.bf16.mxu0 0
  %1626 = vmatpush2.bf16.msra.mxu0 0
  %1627 = vmatprep.subr.bf16.mxu0 0
  %1628 = vmatpush2.bf16.msra.mxu0 0
  %1629 = vmatprep.subr.bf16.mxu0 0
  %1630 = vmatpush2.bf16.msra.mxu0 0
  %1631 = vmatprep.subr.bf16.mxu0 0
  %1632 = vmatpush2.bf16.msra.mxu0 0
  %1633 = vmatprep.subr.bf16.mxu0 0
  %1634 = vmatpush2.bf16.msra.mxu0 0
  %1635 = vmatprep.subr.bf16.mxu0 0
  %1636 = vmatpush2.bf16.msra.mxu0 0
  %1637 = vmatprep.subr.bf16.mxu0 0
  %1638 = vmatpush2.bf16.msra.mxu0 0
  %1639 = vmatprep.mubr.bf16.mxu0 0
  %1640 = vmatmul.mubr.bf16.gmra.mxu0 %v368
  %v1641 = vpop.f32.mrf.mxu0
  %v1642 = vadd.f32 0.0, %v1641
  %v1643 = vpop.f32.mrf.mxu0
  %v1644 = vadd.f32 0.0, %v1643
  %v1645 = vpop.f32.mrf.mxu0
  %v1646 = vadd.f32 0.0, %v1645
  %v1647 = vpop.f32.mrf.mxu0
  %v1648 = vadd.f32 0.0, %v1647
  %1649 = vdwg.mxu0
  %1650 = vmatprep.subr.bf16.mxu0 0
  %1651 = vmatpush1.bf16.msra.mxu0 0
  %1652 = vmatprep.subr.bf16.mxu0 0
  %1653 = vmatpush1.bf16.msra.mxu0 0
  %1654 = vmatprep.subr.bf16.mxu0 0
  %1655 = vmatpush1.bf16.msra.mxu0 0
  %1656 = vmatprep.subr.bf16.mxu0 0
  %1657 = vmatpush1.bf16.msra.mxu0 0
  %1658 = vmatprep.subr.bf16.mxu0 0
  %1659 = vmatpush1.bf16.msra.mxu0 0
  %1660 = vmatprep.subr.bf16.mxu0 0
  %1661 = vmatpush1.bf16.msra.mxu0 0
  %1662 = vmatprep.subr.bf16.mxu0 0
  %1663 = vmatpush1.bf16.msra.mxu0 0
  %1664 = vmatprep.subr.bf16.mxu0 %v528
  %1665 = vmatpush1.bf16.msra.mxu0 %v525
  %1666 = vmatprep.subr.bf16.mxu0 0
  %1667 = vmatpush2.bf16.msra.mxu0 0
  %1668 = vmatprep.subr.bf16.mxu0 0
  %1669 = vmatpush2.bf16.msra.mxu0 0
  %1670 = vmatprep.subr.bf16.mxu0 0
  %1671 = vmatpush2.bf16.msra.mxu0 0
  %1672 = vmatprep.subr.bf16.mxu0 0
  %1673 = vmatpush2.bf16.msra.mxu0 0
  %1674 = vmatprep.subr.bf16.mxu0 0
  %1675 = vmatpush2.bf16.msra.mxu0 0
  %1676 = vmatprep.subr.bf16.mxu0 0
  %1677 = vmatpush2.bf16.msra.mxu0 0
  %1678 = vmatprep.subr.bf16.mxu0 0
  %1679 = vmatpush2.bf16.msra.mxu0 0
  %1680 = vmatprep.subr.bf16.mxu0 0
  %1681 = vmatpush2.bf16.msra.mxu0 0
  %1682 = vmatprep.mubr.bf16.mxu0 0
  %1683 = vmatmul.mubr.bf16.gmra.mxu0 %v368
  %v1684 = vpop.f32.mrf.mxu0
  %v1685 = vadd.f32 0.0, %v1684
  %v1686 = vpop.f32.mrf.mxu0
  %v1687 = vadd.f32 0.0, %v1686
  %v1688 = vpop.f32.mrf.mxu0
  %v1689 = vadd.f32 0.0, %v1688
  %v1690 = vpop.f32.mrf.mxu0
  %v1691 = vadd.f32 0.0, %v1690
  %1692 = vdwg.mxu0
  %1693 = vmatprep.subr.bf16.mxu0 0
  %1694 = vmatpush1.bf16.msra.mxu0 0
  %1695 = vmatprep.subr.bf16.mxu0 0
  %1696 = vmatpush1.bf16.msra.mxu0 0
  %1697 = vmatprep.subr.bf16.mxu0 0
  %1698 = vmatpush1.bf16.msra.mxu0 0
  %1699 = vmatprep.subr.bf16.mxu0 0
  %1700 = vmatpush1.bf16.msra.mxu0 0
  %1701 = vmatprep.subr.bf16.mxu0 0
  %1702 = vmatpush1.bf16.msra.mxu0 0
  %1703 = vmatprep.subr.bf16.mxu0 0
  %1704 = vmatpush1.bf16.msra.mxu0 0
  %1705 = vmatprep.subr.bf16.mxu0 0
  %1706 = vmatpush1.bf16.msra.mxu0 0
  %1707 = vmatprep.subr.bf16.mxu0 %v534
  %1708 = vmatpush1.bf16.msra.mxu0 %v531
  %1709 = vmatprep.subr.bf16.mxu0 0
  %1710 = vmatpush2.bf16.msra.mxu0 0
  %1711 = vmatprep.subr.bf16.mxu0 0
  %1712 = vmatpush2.bf16.msra.mxu0 0
  %1713 = vmatprep.subr.bf16.mxu0 0
  %1714 = vmatpush2.bf16.msra.mxu0 0
  %1715 = vmatprep.subr.bf16.mxu0 0
  %1716 = vmatpush2.bf16.msra.mxu0 0
  %1717 = vmatprep.subr.bf16.mxu0 0
  %1718 = vmatpush2.bf16.msra.mxu0 0
  %1719 = vmatprep.subr.bf16.mxu0 0
  %1720 = vmatpush2.bf16.msra.mxu0 0
  %1721 = vmatprep.subr.bf16.mxu0 0
  %1722 = vmatpush2.bf16.msra.mxu0 0
  %1723 = vmatprep.subr.bf16.mxu0 0
  %1724 = vmatpush2.bf16.msra.mxu0 0
  %1725 = vmatprep.mubr.bf16.mxu0 0
  %1726 = vmatmul.mubr.bf16.gmra.mxu0 %v368
  %v1727 = vpop.f32.mrf.mxu0
  %v1728 = vadd.f32 0.0, %v1727
  %v1729 = vpop.f32.mrf.mxu0
  %v1730 = vadd.f32 0.0, %v1729
  %v1731 = vpop.f32.mrf.mxu0
  %v1732 = vadd.f32 0.0, %v1731
  %v1733 = vpop.f32.mrf.mxu0
  %v1734 = vadd.f32 0.0, %v1733
  %1735 = vdwg.mxu0
  %1736 = vmatprep.subr.bf16.mxu0 0
  %1737 = vmatpush1.bf16.msra.mxu0 0
  %1738 = vmatprep.subr.bf16.mxu0 0
  %1739 = vmatpush1.bf16.msra.mxu0 0
  %1740 = vmatprep.subr.bf16.mxu0 0
  %1741 = vmatpush1.bf16.msra.mxu0 0
  %1742 = vmatprep.subr.bf16.mxu0 0
  %1743 = vmatpush1.bf16.msra.mxu0 0
  %1744 = vmatprep.subr.bf16.mxu0 0
  %1745 = vmatpush1.bf16.msra.mxu0 0
  %1746 = vmatprep.subr.bf16.mxu0 0
  %1747 = vmatpush1.bf16.msra.mxu0 0
  %1748 = vmatprep.subr.bf16.mxu0 0
  %1749 = vmatpush1.bf16.msra.mxu0 0
  %1750 = vmatprep.subr.bf16.mxu0 %v540
  %1751 = vmatpush1.bf16.msra.mxu0 %v537
  %1752 = vmatprep.subr.bf16.mxu0 0
  %1753 = vmatpush2.bf16.msra.mxu0 0
  %1754 = vmatprep.subr.bf16.mxu0 0
  %1755 = vmatpush2.bf16.msra.mxu0 0
  %1756 = vmatprep.subr.bf16.mxu0 0
  %1757 = vmatpush2.bf16.msra.mxu0 0
  %1758 = vmatprep.subr.bf16.mxu0 0
  %1759 = vmatpush2.bf16.msra.mxu0 0
  %1760 = vmatprep.subr.bf16.mxu0 0
  %1761 = vmatpush2.bf16.msra.mxu0 0
  %1762 = vmatprep.subr.bf16.mxu0 0
  %1763 = vmatpush2.bf16.msra.mxu0 0
  %1764 = vmatprep.subr.bf16.mxu0 0
  %1765 = vmatpush2.bf16.msra.mxu0 0
  %1766 = vmatprep.subr.bf16.mxu0 0
  %1767 = vmatpush2.bf16.msra.mxu0 0
  %1768 = vmatprep.mubr.bf16.mxu0 0
  %1769 = vmatmul.mubr.bf16.gmra.mxu0 %v368
  %v1770 = vpop.f32.mrf.mxu0
  %v1771 = vadd.f32 0.0, %v1770
  %v1772 = vpop.f32.mrf.mxu0
  %v1773 = vadd.f32 0.0, %v1772
  %v1774 = vpop.f32.mrf.mxu0
  %v1775 = vadd.f32 0.0, %v1774
  %v1776 = vpop.f32.mrf.mxu0
  %v1777 = vadd.f32 0.0, %v1776
  %1778 = vdwg.mxu0
  %1779 = vmatprep.subr.bf16.mxu0 0
  %1780 = vmatpush1.bf16.msra.mxu0 0
  %1781 = vmatprep.subr.bf16.mxu0 0
  %1782 = vmatpush1.bf16.msra.mxu0 0
  %1783 = vmatprep.subr.bf16.mxu0 0
  %1784 = vmatpush1.bf16.msra.mxu0 0
  %1785 = vmatprep.subr.bf16.mxu0 0
  %1786 = vmatpush1.bf16.msra.mxu0 0
  %1787 = vmatprep.subr.bf16.mxu0 0
  %1788 = vmatpush1.bf16.msra.mxu0 0
  %1789 = vmatprep.subr.bf16.mxu0 0
  %1790 = vmatpush1.bf16.msra.mxu0 0
  %1791 = vmatprep.subr.bf16.mxu0 0
  %1792 = vmatpush1.bf16.msra.mxu0 0
  %1793 = vmatprep.subr.bf16.mxu0 %v546
  %1794 = vmatpush1.bf16.msra.mxu0 %v543
  %1795 = vmatprep.subr.bf16.mxu0 0
  %1796 = vmatpush2.bf16.msra.mxu0 0
  %1797 = vmatprep.subr.bf16.mxu0 0
  %1798 = vmatpush2.bf16.msra.mxu0 0
  %1799 = vmatprep.subr.bf16.mxu0 0
  %1800 = vmatpush2.bf16.msra.mxu0 0
  %1801 = vmatprep.subr.bf16.mxu0 0
  %1802 = vmatpush2.bf16.msra.mxu0 0
  %1803 = vmatprep.subr.bf16.mxu0 0
  %1804 = vmatpush2.bf16.msra.mxu0 0
  %1805 = vmatprep.subr.bf16.mxu0 0
  %1806 = vmatpush2.bf16.msra.mxu0 0
  %1807 = vmatprep.subr.bf16.mxu0 0
  %1808 = vmatpush2.bf16.msra.mxu0 0
  %1809 = vmatprep.subr.bf16.mxu0 0
  %1810 = vmatpush2.bf16.msra.mxu0 0
  %1811 = vmatprep.mubr.bf16.mxu0 0
  %1812 = vmatmul.mubr.bf16.gmra.mxu0 %v368
  %v1813 = vpop.f32.mrf.mxu0
  %v1814 = vadd.f32 0.0, %v1813
  %v1815 = vpop.f32.mrf.mxu0
  %v1816 = vadd.f32 0.0, %v1815
  %v1817 = vpop.f32.mrf.mxu0
  %v1818 = vadd.f32 0.0, %v1817
  %v1819 = vpop.f32.mrf.mxu0
  %v1820 = vadd.f32 0.0, %v1819
  %1821 = vdwg.mxu0
  %1822 = vmatprep.subr.bf16.mxu0 0
  %1823 = vmatpush1.bf16.msra.mxu0 0
  %1824 = vmatprep.subr.bf16.mxu0 0
  %1825 = vmatpush1.bf16.msra.mxu0 0
  %1826 = vmatprep.subr.bf16.mxu0 0
  %1827 = vmatpush1.bf16.msra.mxu0 0
  %1828 = vmatprep.subr.bf16.mxu0 0
  %1829 = vmatpush1.bf16.msra.mxu0 0
  %1830 = vmatprep.subr.bf16.mxu0 0
  %1831 = vmatpush1.bf16.msra.mxu0 0
  %1832 = vmatprep.subr.bf16.mxu0 0
  %1833 = vmatpush1.bf16.msra.mxu0 0
  %1834 = vmatprep.subr.bf16.mxu0 0
  %1835 = vmatpush1.bf16.msra.mxu0 0
  %1836 = vmatprep.subr.bf16.mxu0 %v552
  %1837 = vmatpush1.bf16.msra.mxu0 %v549
  %1838 = vmatprep.subr.bf16.mxu0 0
  %1839 = vmatpush2.bf16.msra.mxu0 0
  %1840 = vmatprep.subr.bf16.mxu0 0
  %1841 = vmatpush2.bf16.msra.mxu0 0
  %1842 = vmatprep.subr.bf16.mxu0 0
  %1843 = vmatpush2.bf16.msra.mxu0 0
  %1844 = vmatprep.subr.bf16.mxu0 0
  %1845 = vmatpush2.bf16.msra.mxu0 0
  %1846 = vmatprep.subr.bf16.mxu0 0
  %1847 = vmatpush2.bf16.msra.mxu0 0
  %1848 = vmatprep.subr.bf16.mxu0 0
  %1849 = vmatpush2.bf16.msra.mxu0 0
  %1850 = vmatprep.subr.bf16.mxu0 0
  %1851 = vmatpush2.bf16.msra.mxu0 0
  %1852 = vmatprep.subr.bf16.mxu0 0
  %1853 = vmatpush2.bf16.msra.mxu0 0
  %1854 = vmatprep.mubr.bf16.mxu0 0
  %1855 = vmatmul.mubr.bf16.gmra.mxu0 %v368
  %v1856 = vpop.f32.mrf.mxu0
  %v1857 = vadd.f32 0.0, %v1856
  %v1858 = vpop.f32.mrf.mxu0
  %v1859 = vadd.f32 0.0, %v1858
  %v1860 = vpop.f32.mrf.mxu0
  %v1861 = vadd.f32 0.0, %v1860
  %v1862 = vpop.f32.mrf.mxu0
  %v1863 = vadd.f32 0.0, %v1862
  %1864 = vdwg.mxu0
  %1865 = vmatprep.subr.bf16.mxu0 0
  %1866 = vmatpush1.bf16.msra.mxu0 0
  %1867 = vmatprep.subr.bf16.mxu0 0
  %1868 = vmatpush1.bf16.msra.mxu0 0
  %1869 = vmatprep.subr.bf16.mxu0 0
  %1870 = vmatpush1.bf16.msra.mxu0 0
  %1871 = vmatprep.subr.bf16.mxu0 0
  %1872 = vmatpush1.bf16.msra.mxu0 0
  %1873 = vmatprep.subr.bf16.mxu0 0
  %1874 = vmatpush1.bf16.msra.mxu0 0
  %1875 = vmatprep.subr.bf16.mxu0 0
  %1876 = vmatpush1.bf16.msra.mxu0 0
  %1877 = vmatprep.subr.bf16.mxu0 0
  %1878 = vmatpush1.bf16.msra.mxu0 0
  %1879 = vmatprep.subr.bf16.mxu0 %v558
  %1880 = vmatpush1.bf16.msra.mxu0 %v555
  %1881 = vmatprep.subr.bf16.mxu0 0
  %1882 = vmatpush2.bf16.msra.mxu0 0
  %1883 = vmatprep.subr.bf16.mxu0 0
  %1884 = vmatpush2.bf16.msra.mxu0 0
  %1885 = vmatprep.subr.bf16.mxu0 0
  %1886 = vmatpush2.bf16.msra.mxu0 0
  %1887 = vmatprep.subr.bf16.mxu0 0
  %1888 = vmatpush2.bf16.msra.mxu0 0
  %1889 = vmatprep.subr.bf16.mxu0 0
  %1890 = vmatpush2.bf16.msra.mxu0 0
  %1891 = vmatprep.subr.bf16.mxu0 0
  %1892 = vmatpush2.bf16.msra.mxu0 0
  %1893 = vmatprep.subr.bf16.mxu0 0
  %1894 = vmatpush2.bf16.msra.mxu0 0
  %1895 = vmatprep.subr.bf16.mxu0 0
  %1896 = vmatpush2.bf16.msra.mxu0 0
  %1897 = vmatprep.mubr.bf16.mxu0 0
  %1898 = vmatmul.mubr.bf16.gmra.mxu0 %v368
  %v1899 = vpop.f32.mrf.mxu0
  %v1900 = vadd.f32 0.0, %v1899
  %v1901 = vpop.f32.mrf.mxu0
  %v1902 = vadd.f32 0.0, %v1901
  %v1903 = vpop.f32.mrf.mxu0
  %v1904 = vadd.f32 0.0, %v1903
  %v1905 = vpop.f32.mrf.mxu0
  %v1906 = vadd.f32 0.0, %v1905
  %1907 = vdwg.mxu0
  %1908 = vmatprep.subr.bf16.mxu0 0
  %1909 = vmatpush1.bf16.msra.mxu0 0
  %1910 = vmatprep.subr.bf16.mxu0 0
  %1911 = vmatpush1.bf16.msra.mxu0 0
  %1912 = vmatprep.subr.bf16.mxu0 0
  %1913 = vmatpush1.bf16.msra.mxu0 0
  %1914 = vmatprep.subr.bf16.mxu0 0
  %1915 = vmatpush1.bf16.msra.mxu0 0
  %1916 = vmatprep.subr.bf16.mxu0 0
  %1917 = vmatpush1.bf16.msra.mxu0 0
  %1918 = vmatprep.subr.bf16.mxu0 0
  %1919 = vmatpush1.bf16.msra.mxu0 0
  %1920 = vmatprep.subr.bf16.mxu0 0
  %1921 = vmatpush1.bf16.msra.mxu0 0
  %1922 = vmatprep.subr.bf16.mxu0 %v564
  %1923 = vmatpush1.bf16.msra.mxu0 %v561
  %1924 = vmatprep.subr.bf16.mxu0 0
  %1925 = vmatpush2.bf16.msra.mxu0 0
  %1926 = vmatprep.subr.bf16.mxu0 0
  %1927 = vmatpush2.bf16.msra.mxu0 0
  %1928 = vmatprep.subr.bf16.mxu0 0
  %1929 = vmatpush2.bf16.msra.mxu0 0
  %1930 = vmatprep.subr.bf16.mxu0 0
  %1931 = vmatpush2.bf16.msra.mxu0 0
  %1932 = vmatprep.subr.bf16.mxu0 0
  %1933 = vmatpush2.bf16.msra.mxu0 0
  %1934 = vmatprep.subr.bf16.mxu0 0
  %1935 = vmatpush2.bf16.msra.mxu0 0
  %1936 = vmatprep.subr.bf16.mxu0 0
  %1937 = vmatpush2.bf16.msra.mxu0 0
  %1938 = vmatprep.subr.bf16.mxu0 0
  %1939 = vmatpush2.bf16.msra.mxu0 0
  %1940 = vmatprep.mubr.bf16.mxu0 0
  %1941 = vmatmul.mubr.bf16.gmra.mxu0 %v368
  %v1942 = vpop.f32.mrf.mxu0
  %v1943 = vadd.f32 0.0, %v1942
  %v1944 = vpop.f32.mrf.mxu0
  %v1945 = vadd.f32 0.0, %v1944
  %v1946 = vpop.f32.mrf.mxu0
  %v1947 = vadd.f32 0.0, %v1946
  %v1948 = vpop.f32.mrf.mxu0
  %v1949 = vadd.f32 0.0, %v1948
  %1950 = vdwg.mxu0
  %1951 = vmatprep.subr.bf16.mxu0 0
  %1952 = vmatpush1.bf16.msra.mxu0 0
  %1953 = vmatprep.subr.bf16.mxu0 0
  %1954 = vmatpush1.bf16.msra.mxu0 0
  %1955 = vmatprep.subr.bf16.mxu0 0
  %1956 = vmatpush1.bf16.msra.mxu0 0
  %1957 = vmatprep.subr.bf16.mxu0 0
  %1958 = vmatpush1.bf16.msra.mxu0 0
  %1959 = vmatprep.subr.bf16.mxu0 0
  %1960 = vmatpush1.bf16.msra.mxu0 0
  %1961 = vmatprep.subr.bf16.mxu0 0
  %1962 = vmatpush1.bf16.msra.mxu0 0
  %1963 = vmatprep.subr.bf16.mxu0 0
  %1964 = vmatpush1.bf16.msra.mxu0 0
  %1965 = vmatprep.subr.bf16.mxu0 %v570
  %1966 = vmatpush1.bf16.msra.mxu0 %v567
  %1967 = vmatprep.subr.bf16.mxu0 0
  %1968 = vmatpush2.bf16.msra.mxu0 0
  %1969 = vmatprep.subr.bf16.mxu0 0
  %1970 = vmatpush2.bf16.msra.mxu0 0
  %1971 = vmatprep.subr.bf16.mxu0 0
  %1972 = vmatpush2.bf16.msra.mxu0 0
  %1973 = vmatprep.subr.bf16.mxu0 0
  %1974 = vmatpush2.bf16.msra.mxu0 0
  %1975 = vmatprep.subr.bf16.mxu0 0
  %1976 = vmatpush2.bf16.msra.mxu0 0
  %1977 = vmatprep.subr.bf16.mxu0 0
  %1978 = vmatpush2.bf16.msra.mxu0 0
  %1979 = vmatprep.subr.bf16.mxu0 0
  %1980 = vmatpush2.bf16.msra.mxu0 0
  %1981 = vmatprep.subr.bf16.mxu0 0
  %1982 = vmatpush2.bf16.msra.mxu0 0
  %1983 = vmatprep.mubr.bf16.mxu0 0
  %1984 = vmatmul.mubr.bf16.gmra.mxu0 %v368
  %v1985 = vpop.f32.mrf.mxu0
  %v1986 = vadd.f32 0.0, %v1985
  %v1987 = vpop.f32.mrf.mxu0
  %v1988 = vadd.f32 0.0, %v1987
  %v1989 = vpop.f32.mrf.mxu0
  %v1990 = vadd.f32 0.0, %v1989
  %v1991 = vpop.f32.mrf.mxu0
  %v1992 = vadd.f32 0.0, %v1991
  %1993 = vdwg.mxu0
  %1994 = vmatprep.subr.bf16.mxu0 0
  %1995 = vmatpush1.bf16.msra.mxu0 0
  %1996 = vmatprep.subr.bf16.mxu0 0
  %1997 = vmatpush1.bf16.msra.mxu0 0
  %1998 = vmatprep.subr.bf16.mxu0 0
  %1999 = vmatpush1.bf16.msra.mxu0 0
  %2000 = vmatprep.subr.bf16.mxu0 0
  %2001 = vmatpush1.bf16.msra.mxu0 0
  %2002 = vmatprep.subr.bf16.mxu0 0
  %2003 = vmatpush1.bf16.msra.mxu0 0
  %2004 = vmatprep.subr.bf16.mxu0 0
  %2005 = vmatpush1.bf16.msra.mxu0 0
  %2006 = vmatprep.subr.bf16.mxu0 0
  %2007 = vmatpush1.bf16.msra.mxu0 0
  %2008 = vmatprep.subr.bf16.mxu0 0
  %2009 = vmatpush1.bf16.msra.mxu0 %v573
  %2010 = vmatprep.subr.bf16.mxu0 0
  %2011 = vmatpush2.bf16.msra.mxu0 0
  %2012 = vmatprep.subr.bf16.mxu0 0
  %2013 = vmatpush2.bf16.msra.mxu0 0
  %2014 = vmatprep.subr.bf16.mxu0 0
  %2015 = vmatpush2.bf16.msra.mxu0 0
  %2016 = vmatprep.subr.bf16.mxu0 0
  %2017 = vmatpush2.bf16.msra.mxu0 0
  %2018 = vmatprep.subr.bf16.mxu0 0
  %2019 = vmatpush2.bf16.msra.mxu0 0
  %2020 = vmatprep.subr.bf16.mxu0 0
  %2021 = vmatpush2.bf16.msra.mxu0 0
  %2022 = vmatprep.subr.bf16.mxu0 0
  %2023 = vmatpush2.bf16.msra.mxu0 0
  %2024 = vmatprep.subr.bf16.mxu0 0
  %2025 = vmatpush2.bf16.msra.mxu0 0
  %2026 = vmatprep.mubr.bf16.mxu0 0
  %2027 = vmatmul.mubr.bf16.gmra.mxu0 %v368
  %v2028 = vpop.f32.mrf.mxu0
  %v2029 = vadd.f32 0.0, %v2028
  %v2030 = vpop.f32.mrf.mxu0
  %v2031 = vpop.f32.mrf.mxu0
  %v2032 = vadd.f32 0.0, %v2031
  %v2033 = vpop.f32.mrf.mxu0
  %2034 = vdwg.mxu0
  %v2035 = vadd.f32 %v610, %v612
  %v2036 = vadd.f32 %v2035, %v653
  %v2037 = vadd.f32 %v2036, %v655
  %v2038 = vadd.f32 %v2037, %v696
  %v2039 = vadd.f32 %v2038, %v698
  %v2040 = vadd.f32 %v2039, %v739
  %v2041 = vadd.f32 %v2040, %v741
  %v2042 = vadd.f32 %v2041, %v782
  %v2043 = vadd.f32 %v2042, %v784
  %v2044 = vadd.f32 %v2043, %v825
  %v2045 = vadd.f32 %v2044, %v827
  %v2046 = vadd.f32 %v2045, %v868
  %v2047 = vadd.f32 %v2046, %v870
  %v2048 = vadd.f32 %v2047, %v911
  %v2049 = vadd.f32 %v2048, %v913
  %v2050 = vadd.f32 %v2049, %v954
  %v2051 = vadd.f32 %v2050, %v956
  %v2052 = vadd.f32 %v2051, %v997
  %v2053 = vadd.f32 %v2052, %v999
  %v2054 = vadd.f32 %v2053, %v1040
  %v2055 = vadd.f32 %v2054, %v1042
  %v2056 = vadd.f32 %v2055, %v1083
  %v2057 = vadd.f32 %v2056, %v1085
  %v2058 = vadd.f32 %v2057, %v1126
  %v2059 = vadd.f32 %v2058, %v1128
  %v2060 = vadd.f32 %v2059, %v1169
  %v2061 = vadd.f32 %v2060, %v1171
  %v2062 = vadd.f32 %v2061, %v1212
  %v2063 = vadd.f32 %v2062, %v1214
  %v2064 = vadd.f32 %v2063, %v1255
  %v2065 = vadd.f32 %v2064, %v1257
  %v2066 = vadd.f32 %v2065, %v1298
  %v2067 = vadd.f32 %v2066, %v1300
  %v2068 = vadd.f32 %v2067, %v1341
  %v2069 = vadd.f32 %v2068, %v1343
  %v2070 = vadd.f32 %v2069, %v1384
  %v2071 = vadd.f32 %v2070, %v1386
  %v2072 = vadd.f32 %v2071, %v1427
  %v2073 = vadd.f32 %v2072, %v1429
  %v2074 = vadd.f32 %v2073, %v1470
  %v2075 = vadd.f32 %v2074, %v1472
  %v2076 = vadd.f32 %v2075, %v1513
  %v2077 = vadd.f32 %v2076, %v1515
  %v2078 = vadd.f32 %v2077, %v1556
  %v2079 = vadd.f32 %v2078, %v1558
  %v2080 = vadd.f32 %v2079, %v1599
  %v2081 = vadd.f32 %v2080, %v1601
  %v2082 = vadd.f32 %v2081, %v1642
  %v2083 = vadd.f32 %v2082, %v1644
  %v2084 = vadd.f32 %v2083, %v1685
  %v2085 = vadd.f32 %v2084, %v1687
  %v2086 = vadd.f32 %v2085, %v1728
  %v2087 = vadd.f32 %v2086, %v1730
  %v2088 = vadd.f32 %v2087, %v1771
  %v2089 = vadd.f32 %v2088, %v1773
  %v2090 = vadd.f32 %v2089, %v1814
  %v2091 = vadd.f32 %v2090, %v1816
  %v2092 = vadd.f32 %v2091, %v1857
  %v2093 = vadd.f32 %v2092, %v1859
  %v2094 = vadd.f32 %v2093, %v1900
  %v2095 = vadd.f32 %v2094, %v1902
  %v2096 = vadd.f32 %v2095, %v1943
  %v2097 = vadd.f32 %v2096, %v1945
  %v2098 = vadd.f32 %v2097, %v1986
  %v2099 = vadd.f32 %v2098, %v1988
  %v2100 = vadd.f32 %v2099, %v2029
  %2101 = vadd.xlane.f32.xlu0 %v2100
  %v2102 = vpop.xlane.xlu0 %2101
  %vm2103 = vcmask 1041408
  %v2104 = vsel %vm2103, %v614, 0.0
  %v2105 = vsel %vm2103, %v616, 0.0
  %v2106 = vadd.f32 %v2104, %v2105
  %v2107 = vsel %vm2103, %v657, 0.0
  %v2108 = vadd.f32 %v2106, %v2107
  %v2109 = vsel %vm2103, %v659, 0.0
  %v2110 = vadd.f32 %v2108, %v2109
  %v2111 = vsel %vm2103, %v700, 0.0
  %v2112 = vadd.f32 %v2110, %v2111
  %v2113 = vsel %vm2103, %v702, 0.0
  %v2114 = vadd.f32 %v2112, %v2113
  %v2115 = vsel %vm2103, %v743, 0.0
  %v2116 = vadd.f32 %v2114, %v2115
  %v2117 = vsel %vm2103, %v745, 0.0
  %v2118 = vadd.f32 %v2116, %v2117
  %v2119 = vsel %vm2103, %v786, 0.0
  %v2120 = vadd.f32 %v2118, %v2119
  %v2121 = vsel %vm2103, %v788, 0.0
  %v2122 = vadd.f32 %v2120, %v2121
  %v2123 = vsel %vm2103, %v829, 0.0
  %v2124 = vadd.f32 %v2122, %v2123
  %v2125 = vsel %vm2103, %v831, 0.0
  %v2126 = vadd.f32 %v2124, %v2125
  %v2127 = vsel %vm2103, %v872, 0.0
  %v2128 = vadd.f32 %v2126, %v2127
  %v2129 = vsel %vm2103, %v874, 0.0
  %v2130 = vadd.f32 %v2128, %v2129
  %v2131 = vsel %vm2103, %v915, 0.0
  %v2132 = vadd.f32 %v2130, %v2131
  %v2133 = vsel %vm2103, %v917, 0.0
  %v2134 = vadd.f32 %v2132, %v2133
  %v2135 = vsel %vm2103, %v958, 0.0
  %v2136 = vadd.f32 %v2134, %v2135
  %v2137 = vsel %vm2103, %v960, 0.0
  %v2138 = vadd.f32 %v2136, %v2137
  %v2139 = vsel %vm2103, %v1001, 0.0
  %v2140 = vadd.f32 %v2138, %v2139
  %v2141 = vsel %vm2103, %v1003, 0.0
  %v2142 = vadd.f32 %v2140, %v2141
  %v2143 = vsel %vm2103, %v1044, 0.0
  %v2144 = vadd.f32 %v2142, %v2143
  %v2145 = vsel %vm2103, %v1046, 0.0
  %v2146 = vadd.f32 %v2144, %v2145
  %v2147 = vsel %vm2103, %v1087, 0.0
  %v2148 = vadd.f32 %v2146, %v2147
  %v2149 = vsel %vm2103, %v1089, 0.0
  %v2150 = vadd.f32 %v2148, %v2149
  %v2151 = vsel %vm2103, %v1130, 0.0
  %v2152 = vadd.f32 %v2150, %v2151
  %v2153 = vsel %vm2103, %v1132, 0.0
  %v2154 = vadd.f32 %v2152, %v2153
  %v2155 = vsel %vm2103, %v1173, 0.0
  %v2156 = vadd.f32 %v2154, %v2155
  %v2157 = vsel %vm2103, %v1175, 0.0
  %v2158 = vadd.f32 %v2156, %v2157
  %v2159 = vsel %vm2103, %v1216, 0.0
  %v2160 = vadd.f32 %v2158, %v2159
  %v2161 = vsel %vm2103, %v1218, 0.0
  %v2162 = vadd.f32 %v2160, %v2161
  %v2163 = vsel %vm2103, %v1259, 0.0
  %v2164 = vadd.f32 %v2162, %v2163
  %v2165 = vsel %vm2103, %v1261, 0.0
  %v2166 = vadd.f32 %v2164, %v2165
  %v2167 = vsel %vm2103, %v1302, 0.0
  %v2168 = vadd.f32 %v2166, %v2167
  %v2169 = vsel %vm2103, %v1304, 0.0
  %v2170 = vadd.f32 %v2168, %v2169
  %v2171 = vsel %vm2103, %v1345, 0.0
  %v2172 = vadd.f32 %v2170, %v2171
  %v2173 = vsel %vm2103, %v1347, 0.0
  %v2174 = vadd.f32 %v2172, %v2173
  %v2175 = vsel %vm2103, %v1388, 0.0
  %v2176 = vadd.f32 %v2174, %v2175
  %v2177 = vsel %vm2103, %v1390, 0.0
  %v2178 = vadd.f32 %v2176, %v2177
  %v2179 = vsel %vm2103, %v1431, 0.0
  %v2180 = vadd.f32 %v2178, %v2179
  %v2181 = vsel %vm2103, %v1433, 0.0
  %v2182 = vadd.f32 %v2180, %v2181
  %v2183 = vsel %vm2103, %v1474, 0.0
  %v2184 = vadd.f32 %v2182, %v2183
  %v2185 = vsel %vm2103, %v1476, 0.0
  %v2186 = vadd.f32 %v2184, %v2185
  %v2187 = vsel %vm2103, %v1517, 0.0
  %v2188 = vadd.f32 %v2186, %v2187
  %v2189 = vsel %vm2103, %v1519, 0.0
  %v2190 = vadd.f32 %v2188, %v2189
  %v2191 = vsel %vm2103, %v1560, 0.0
  %v2192 = vadd.f32 %v2190, %v2191
  %v2193 = vsel %vm2103, %v1562, 0.0
  %v2194 = vadd.f32 %v2192, %v2193
  %v2195 = vsel %vm2103, %v1603, 0.0
  %v2196 = vadd.f32 %v2194, %v2195
  %v2197 = vsel %vm2103, %v1605, 0.0
  %v2198 = vadd.f32 %v2196, %v2197
  %v2199 = vsel %vm2103, %v1646, 0.0
  %v2200 = vadd.f32 %v2198, %v2199
  %v2201 = vsel %vm2103, %v1648, 0.0
  %v2202 = vadd.f32 %v2200, %v2201
  %v2203 = vsel %vm2103, %v1689, 0.0
  %v2204 = vadd.f32 %v2202, %v2203
  %v2205 = vsel %vm2103, %v1691, 0.0
  %v2206 = vadd.f32 %v2204, %v2205
  %v2207 = vsel %vm2103, %v1732, 0.0
  %v2208 = vadd.f32 %v2206, %v2207
  %v2209 = vsel %vm2103, %v1734, 0.0
  %v2210 = vadd.f32 %v2208, %v2209
  %v2211 = vsel %vm2103, %v1775, 0.0
  %v2212 = vadd.f32 %v2210, %v2211
  %v2213 = vsel %vm2103, %v1777, 0.0
  %v2214 = vadd.f32 %v2212, %v2213
  %v2215 = vsel %vm2103, %v1818, 0.0
  %v2216 = vadd.f32 %v2214, %v2215
  %v2217 = vsel %vm2103, %v1820, 0.0
  %v2218 = vadd.f32 %v2216, %v2217
  %v2219 = vsel %vm2103, %v1861, 0.0
  %v2220 = vadd.f32 %v2218, %v2219
  %v2221 = vsel %vm2103, %v1863, 0.0
  %v2222 = vadd.f32 %v2220, %v2221
  %v2223 = vsel %vm2103, %v1904, 0.0
  %v2224 = vadd.f32 %v2222, %v2223
  %v2225 = vsel %vm2103, %v1906, 0.0
  %v2226 = vadd.f32 %v2224, %v2225
  %v2227 = vsel %vm2103, %v1947, 0.0
  %v2228 = vadd.f32 %v2226, %v2227
  %v2229 = vsel %vm2103, %v1949, 0.0
  %v2230 = vadd.f32 %v2228, %v2229
  %v2231 = vsel %vm2103, %v1990, 0.0
  %v2232 = vadd.f32 %v2230, %v2231
  %v2233 = vsel %vm2103, %v1992, 0.0
  %v2234 = vadd.f32 %v2232, %v2233
  %v2235 = vsel %vm2103, %v2032, 0.0
  %v2236 = vadd.f32 %v2234, %v2235
  %2237 = vadd.xlane.f32.xlu0 %v2236
  %v2238 = vpop.xlane.xlu0 %2237
  %v2239 = vmul.f32 %v610, %v610
  %v2240 = vmul.f32 %v612, %v612
  %v2241 = vmul.f32 %v653, %v653
  %v2242 = vmul.f32 %v655, %v655
  %v2243 = vmul.f32 %v696, %v696
  %v2244 = vmul.f32 %v698, %v698
  %v2245 = vmul.f32 %v739, %v739
  %v2246 = vmul.f32 %v741, %v741
  %v2247 = vmul.f32 %v782, %v782
  %v2248 = vmul.f32 %v784, %v784
  %v2249 = vmul.f32 %v825, %v825
  %v2250 = vmul.f32 %v827, %v827
  %v2251 = vmul.f32 %v868, %v868
  %v2252 = vmul.f32 %v870, %v870
  %v2253 = vmul.f32 %v911, %v911
  %v2254 = vmul.f32 %v913, %v913
  %v2255 = vmul.f32 %v954, %v954
  %v2256 = vmul.f32 %v956, %v956
  %v2257 = vmul.f32 %v997, %v997
  %v2258 = vmul.f32 %v999, %v999
  %v2259 = vmul.f32 %v1040, %v1040
  %v2260 = vmul.f32 %v1042, %v1042
  %v2261 = vmul.f32 %v1083, %v1083
  %v2262 = vmul.f32 %v1085, %v1085
  %v2263 = vmul.f32 %v1126, %v1126
  %v2264 = vmul.f32 %v1128, %v1128
  %v2265 = vmul.f32 %v1169, %v1169
  %v2266 = vmul.f32 %v1171, %v1171
  %v2267 = vmul.f32 %v1212, %v1212
  %v2268 = vmul.f32 %v1214, %v1214
  %v2269 = vmul.f32 %v1255, %v1255
  %v2270 = vmul.f32 %v1257, %v1257
  %v2271 = vmul.f32 %v1298, %v1298
  %v2272 = vmul.f32 %v1300, %v1300
  %v2273 = vmul.f32 %v1341, %v1341
  %v2274 = vmul.f32 %v1343, %v1343
  %v2275 = vmul.f32 %v1384, %v1384
  %v2276 = vmul.f32 %v1386, %v1386
  %v2277 = vmul.f32 %v1427, %v1427
  %v2278 = vmul.f32 %v1429, %v1429
  %v2279 = vmul.f32 %v1470, %v1470
  %v2280 = vmul.f32 %v1472, %v1472
  %v2281 = vmul.f32 %v1513, %v1513
  %v2282 = vmul.f32 %v1515, %v1515
  %v2283 = vmul.f32 %v1556, %v1556
  %v2284 = vmul.f32 %v1558, %v1558
  %v2285 = vmul.f32 %v1599, %v1599
  %v2286 = vmul.f32 %v1601, %v1601
  %v2287 = vmul.f32 %v1642, %v1642
  %v2288 = vmul.f32 %v1644, %v1644
  %v2289 = vmul.f32 %v1685, %v1685
  %v2290 = vmul.f32 %v1687, %v1687
  %v2291 = vmul.f32 %v1728, %v1728
  %v2292 = vmul.f32 %v1730, %v1730
  %v2293 = vmul.f32 %v1771, %v1771
  %v2294 = vmul.f32 %v1773, %v1773
  %v2295 = vmul.f32 %v1814, %v1814
  %v2296 = vmul.f32 %v1816, %v1816
  %v2297 = vmul.f32 %v1857, %v1857
  %v2298 = vmul.f32 %v1859, %v1859
  %v2299 = vmul.f32 %v1900, %v1900
  %v2300 = vmul.f32 %v1902, %v1902
  %v2301 = vmul.f32 %v1943, %v1943
  %v2302 = vmul.f32 %v1945, %v1945
  %v2303 = vmul.f32 %v1986, %v1986
  %v2304 = vmul.f32 %v1988, %v1988
  %v2305 = vmul.f32 %v2029, %v2029
  %v2306 = vmul.f32 %v614, %v614
  %v2307 = vmul.f32 %v616, %v616
  %v2308 = vmul.f32 %v657, %v657
  %v2309 = vmul.f32 %v659, %v659
  %v2310 = vmul.f32 %v700, %v700
  %v2311 = vmul.f32 %v702, %v702
  %v2312 = vmul.f32 %v743, %v743
  %v2313 = vmul.f32 %v745, %v745
  %v2314 = vmul.f32 %v786, %v786
  %v2315 = vmul.f32 %v788, %v788
  %v2316 = vmul.f32 %v829, %v829
  %v2317 = vmul.f32 %v831, %v831
  %v2318 = vmul.f32 %v872, %v872
  %v2319 = vmul.f32 %v874, %v874
  %v2320 = vmul.f32 %v915, %v915
  %v2321 = vmul.f32 %v917, %v917
  %v2322 = vmul.f32 %v958, %v958
  %v2323 = vmul.f32 %v960, %v960
  %v2324 = vmul.f32 %v1001, %v1001
  %v2325 = vmul.f32 %v1003, %v1003
  %v2326 = vmul.f32 %v1044, %v1044
  %v2327 = vmul.f32 %v1046, %v1046
  %v2328 = vmul.f32 %v1087, %v1087
  %v2329 = vmul.f32 %v1089, %v1089
  %v2330 = vmul.f32 %v1130, %v1130
  %v2331 = vmul.f32 %v1132, %v1132
  %v2332 = vmul.f32 %v1173, %v1173
  %v2333 = vmul.f32 %v1175, %v1175
  %v2334 = vmul.f32 %v1216, %v1216
  %v2335 = vmul.f32 %v1218, %v1218
  %v2336 = vmul.f32 %v1259, %v1259
  %v2337 = vmul.f32 %v1261, %v1261
  %v2338 = vmul.f32 %v1302, %v1302
  %v2339 = vmul.f32 %v1304, %v1304
  %v2340 = vmul.f32 %v1345, %v1345
  %v2341 = vmul.f32 %v1347, %v1347
  %v2342 = vmul.f32 %v1388, %v1388
  %v2343 = vmul.f32 %v1390, %v1390
  %v2344 = vmul.f32 %v1431, %v1431
  %v2345 = vmul.f32 %v1433, %v1433
  %v2346 = vmul.f32 %v1474, %v1474
  %v2347 = vmul.f32 %v1476, %v1476
  %v2348 = vmul.f32 %v1517, %v1517
  %v2349 = vmul.f32 %v1519, %v1519
  %v2350 = vmul.f32 %v1560, %v1560
  %v2351 = vmul.f32 %v1562, %v1562
  %v2352 = vmul.f32 %v1603, %v1603
  %v2353 = vmul.f32 %v1605, %v1605
  %v2354 = vmul.f32 %v1646, %v1646
  %v2355 = vmul.f32 %v1648, %v1648
  %v2356 = vmul.f32 %v1689, %v1689
  %v2357 = vmul.f32 %v1691, %v1691
  %v2358 = vmul.f32 %v1732, %v1732
  %v2359 = vmul.f32 %v1734, %v1734
  %v2360 = vmul.f32 %v1775, %v1775
  %v2361 = vmul.f32 %v1777, %v1777
  %v2362 = vmul.f32 %v1818, %v1818
  %v2363 = vmul.f32 %v1820, %v1820
  %v2364 = vmul.f32 %v1861, %v1861
  %v2365 = vmul.f32 %v1863, %v1863
  %v2366 = vmul.f32 %v1904, %v1904
  %v2367 = vmul.f32 %v1906, %v1906
  %v2368 = vmul.f32 %v1947, %v1947
  %v2369 = vmul.f32 %v1949, %v1949
  %v2370 = vmul.f32 %v1990, %v1990
  %v2371 = vmul.f32 %v1992, %v1992
  %v2372 = vmul.f32 %v2032, %v2032
  %v2373 = vadd.f32 %v2239, %v2240
  %v2374 = vadd.f32 %v2373, %v2241
  %v2375 = vadd.f32 %v2374, %v2242
  %v2376 = vadd.f32 %v2375, %v2243
  %v2377 = vadd.f32 %v2376, %v2244
  %v2378 = vadd.f32 %v2377, %v2245
  %v2379 = vadd.f32 %v2378, %v2246
  %v2380 = vadd.f32 %v2379, %v2247
  %v2381 = vadd.f32 %v2380, %v2248
  %v2382 = vadd.f32 %v2381, %v2249
  %v2383 = vadd.f32 %v2382, %v2250
  %v2384 = vadd.f32 %v2383, %v2251
  %v2385 = vadd.f32 %v2384, %v2252
  %v2386 = vadd.f32 %v2385, %v2253
  %v2387 = vadd.f32 %v2386, %v2254
  %v2388 = vadd.f32 %v2387, %v2255
  %v2389 = vadd.f32 %v2388, %v2256
  %v2390 = vadd.f32 %v2389, %v2257
  %v2391 = vadd.f32 %v2390, %v2258
  %v2392 = vadd.f32 %v2391, %v2259
  %v2393 = vadd.f32 %v2392, %v2260
  %v2394 = vadd.f32 %v2393, %v2261
  %v2395 = vadd.f32 %v2394, %v2262
  %v2396 = vadd.f32 %v2395, %v2263
  %v2397 = vadd.f32 %v2396, %v2264
  %v2398 = vadd.f32 %v2397, %v2265
  %v2399 = vadd.f32 %v2398, %v2266
  %v2400 = vadd.f32 %v2399, %v2267
  %v2401 = vadd.f32 %v2400, %v2268
  %v2402 = vadd.f32 %v2401, %v2269
  %v2403 = vadd.f32 %v2402, %v2270
  %v2404 = vadd.f32 %v2403, %v2271
  %v2405 = vadd.f32 %v2404, %v2272
  %v2406 = vadd.f32 %v2405, %v2273
  %v2407 = vadd.f32 %v2406, %v2274
  %v2408 = vadd.f32 %v2407, %v2275
  %v2409 = vadd.f32 %v2408, %v2276
  %v2410 = vadd.f32 %v2409, %v2277
  %v2411 = vadd.f32 %v2410, %v2278
  %v2412 = vadd.f32 %v2411, %v2279
  %v2413 = vadd.f32 %v2412, %v2280
  %v2414 = vadd.f32 %v2413, %v2281
  %v2415 = vadd.f32 %v2414, %v2282
  %v2416 = vadd.f32 %v2415, %v2283
  %v2417 = vadd.f32 %v2416, %v2284
  %v2418 = vadd.f32 %v2417, %v2285
  %v2419 = vadd.f32 %v2418, %v2286
  %v2420 = vadd.f32 %v2419, %v2287
  %v2421 = vadd.f32 %v2420, %v2288
  %v2422 = vadd.f32 %v2421, %v2289
  %v2423 = vadd.f32 %v2422, %v2290
  %v2424 = vadd.f32 %v2423, %v2291
  %v2425 = vadd.f32 %v2424, %v2292
  %v2426 = vadd.f32 %v2425, %v2293
  %v2427 = vadd.f32 %v2426, %v2294
  %v2428 = vadd.f32 %v2427, %v2295
  %v2429 = vadd.f32 %v2428, %v2296
  %v2430 = vadd.f32 %v2429, %v2297
  %v2431 = vadd.f32 %v2430, %v2298
  %v2432 = vadd.f32 %v2431, %v2299
  %v2433 = vadd.f32 %v2432, %v2300
  %v2434 = vadd.f32 %v2433, %v2301
  %v2435 = vadd.f32 %v2434, %v2302
  %v2436 = vadd.f32 %v2435, %v2303
  %v2437 = vadd.f32 %v2436, %v2304
  %v2438 = vadd.f32 %v2437, %v2305
  %2439 = vadd.xlane.f32.xlu0 %v2438
  %v2440 = vpop.xlane.xlu0 %2439
  %v2441 = vsel %vm2103, %v2306, 0.0
  %v2442 = vsel %vm2103, %v2307, 0.0
  %v2443 = vadd.f32 %v2441, %v2442
  %v2444 = vsel %vm2103, %v2308, 0.0
  %v2445 = vadd.f32 %v2443, %v2444
  %v2446 = vsel %vm2103, %v2309, 0.0
  %v2447 = vadd.f32 %v2445, %v2446
  %v2448 = vsel %vm2103, %v2310, 0.0
  %v2449 = vadd.f32 %v2447, %v2448
  %v2450 = vsel %vm2103, %v2311, 0.0
  %v2451 = vadd.f32 %v2449, %v2450
  %v2452 = vsel %vm2103, %v2312, 0.0
  %v2453 = vadd.f32 %v2451, %v2452
  %v2454 = vsel %vm2103, %v2313, 0.0
  %v2455 = vadd.f32 %v2453, %v2454
  %v2456 = vsel %vm2103, %v2314, 0.0
  %v2457 = vadd.f32 %v2455, %v2456
  %v2458 = vsel %vm2103, %v2315, 0.0
  %v2459 = vadd.f32 %v2457, %v2458
  %v2460 = vsel %vm2103, %v2316, 0.0
  %v2461 = vadd.f32 %v2459, %v2460
  %v2462 = vsel %vm2103, %v2317, 0.0
  %v2463 = vadd.f32 %v2461, %v2462
  %v2464 = vsel %vm2103, %v2318, 0.0
  %v2465 = vadd.f32 %v2463, %v2464
  %v2466 = vsel %vm2103, %v2319, 0.0
  %v2467 = vadd.f32 %v2465, %v2466
  %v2468 = vsel %vm2103, %v2320, 0.0
  %v2469 = vadd.f32 %v2467, %v2468
  %v2470 = vsel %vm2103, %v2321, 0.0
  %v2471 = vadd.f32 %v2469, %v2470
  %v2472 = vsel %vm2103, %v2322, 0.0
  %v2473 = vadd.f32 %v2471, %v2472
  %v2474 = vsel %vm2103, %v2323, 0.0
  %v2475 = vadd.f32 %v2473, %v2474
  %v2476 = vsel %vm2103, %v2324, 0.0
  %v2477 = vadd.f32 %v2475, %v2476
  %v2478 = vsel %vm2103, %v2325, 0.0
  %v2479 = vadd.f32 %v2477, %v2478
  %v2480 = vsel %vm2103, %v2326, 0.0
  %v2481 = vadd.f32 %v2479, %v2480
  %v2482 = vsel %vm2103, %v2327, 0.0
  %v2483 = vadd.f32 %v2481, %v2482
  %v2484 = vsel %vm2103, %v2328, 0.0
  %v2485 = vadd.f32 %v2483, %v2484
  %v2486 = vsel %vm2103, %v2329, 0.0
  %v2487 = vadd.f32 %v2485, %v2486
  %v2488 = vsel %vm2103, %v2330, 0.0
  %v2489 = vadd.f32 %v2487, %v2488
  %v2490 = vsel %vm2103, %v2331, 0.0
  %v2491 = vadd.f32 %v2489, %v2490
  %v2492 = vsel %vm2103, %v2332, 0.0
  %v2493 = vadd.f32 %v2491, %v2492
  %v2494 = vsel %vm2103, %v2333, 0.0
  %v2495 = vadd.f32 %v2493, %v2494
  %v2496 = vsel %vm2103, %v2334, 0.0
  %v2497 = vadd.f32 %v2495, %v2496
  %v2498 = vsel %vm2103, %v2335, 0.0
  %v2499 = vadd.f32 %v2497, %v2498
  %v2500 = vsel %vm2103, %v2336, 0.0
  %v2501 = vadd.f32 %v2499, %v2500
  %v2502 = vsel %vm2103, %v2337, 0.0
  %v2503 = vadd.f32 %v2501, %v2502
  %v2504 = vsel %vm2103, %v2338, 0.0
  %v2505 = vadd.f32 %v2503, %v2504
  %v2506 = vsel %vm2103, %v2339, 0.0
  %v2507 = vadd.f32 %v2505, %v2506
  %v2508 = vsel %vm2103, %v2340, 0.0
  %v2509 = vadd.f32 %v2507, %v2508
  %v2510 = vsel %vm2103, %v2341, 0.0
  %v2511 = vadd.f32 %v2509, %v2510
  %v2512 = vsel %vm2103, %v2342, 0.0
  %v2513 = vadd.f32 %v2511, %v2512
  %v2514 = vsel %vm2103, %v2343, 0.0
  %v2515 = vadd.f32 %v2513, %v2514
  %v2516 = vsel %vm2103, %v2344, 0.0
  %v2517 = vadd.f32 %v2515, %v2516
  %v2518 = vsel %vm2103, %v2345, 0.0
  %v2519 = vadd.f32 %v2517, %v2518
  %v2520 = vsel %vm2103, %v2346, 0.0
  %v2521 = vadd.f32 %v2519, %v2520
  %v2522 = vsel %vm2103, %v2347, 0.0
  %v2523 = vadd.f32 %v2521, %v2522
  %v2524 = vsel %vm2103, %v2348, 0.0
  %v2525 = vadd.f32 %v2523, %v2524
  %v2526 = vsel %vm2103, %v2349, 0.0
  %v2527 = vadd.f32 %v2525, %v2526
  %v2528 = vsel %vm2103, %v2350, 0.0
  %v2529 = vadd.f32 %v2527, %v2528
  %v2530 = vsel %vm2103, %v2351, 0.0
  %v2531 = vadd.f32 %v2529, %v2530
  %v2532 = vsel %vm2103, %v2352, 0.0
  %v2533 = vadd.f32 %v2531, %v2532
  %v2534 = vsel %vm2103, %v2353, 0.0
  %v2535 = vadd.f32 %v2533, %v2534
  %v2536 = vsel %vm2103, %v2354, 0.0
  %v2537 = vadd.f32 %v2535, %v2536
  %v2538 = vsel %vm2103, %v2355, 0.0
  %v2539 = vadd.f32 %v2537, %v2538
  %v2540 = vsel %vm2103, %v2356, 0.0
  %v2541 = vadd.f32 %v2539, %v2540
  %v2542 = vsel %vm2103, %v2357, 0.0
  %v2543 = vadd.f32 %v2541, %v2542
  %v2544 = vsel %vm2103, %v2358, 0.0
  %v2545 = vadd.f32 %v2543, %v2544
  %v2546 = vsel %vm2103, %v2359, 0.0
  %v2547 = vadd.f32 %v2545, %v2546
  %v2548 = vsel %vm2103, %v2360, 0.0
  %v2549 = vadd.f32 %v2547, %v2548
  %v2550 = vsel %vm2103, %v2361, 0.0
  %v2551 = vadd.f32 %v2549, %v2550
  %v2552 = vsel %vm2103, %v2362, 0.0
  %v2553 = vadd.f32 %v2551, %v2552
  %v2554 = vsel %vm2103, %v2363, 0.0
  %v2555 = vadd.f32 %v2553, %v2554
  %v2556 = vsel %vm2103, %v2364, 0.0
  %v2557 = vadd.f32 %v2555, %v2556
  %v2558 = vsel %vm2103, %v2365, 0.0
  %v2559 = vadd.f32 %v2557, %v2558
  %v2560 = vsel %vm2103, %v2366, 0.0
  %v2561 = vadd.f32 %v2559, %v2560
  %v2562 = vsel %vm2103, %v2367, 0.0
  %v2563 = vadd.f32 %v2561, %v2562
  %v2564 = vsel %vm2103, %v2368, 0.0
  %v2565 = vadd.f32 %v2563, %v2564
  %v2566 = vsel %vm2103, %v2369, 0.0
  %v2567 = vadd.f32 %v2565, %v2566
  %v2568 = vsel %vm2103, %v2370, 0.0
  %v2569 = vadd.f32 %v2567, %v2568
  %v2570 = vsel %vm2103, %v2371, 0.0
  %v2571 = vadd.f32 %v2569, %v2570
  %v2572 = vsel %vm2103, %v2372, 0.0
  %v2573 = vadd.f32 %v2571, %v2572
  %2574 = vadd.xlane.f32.xlu0 %v2573
  %v2575 = vpop.xlane.xlu0 %2574
  %v2576 = vmul.f32 %v2102, 0.00013007285
  %v2577 = vmul.f32 %v2238, 0.00013007285
  %v2578 = vmul.f32 %v2440, 0.00013007285
  %v2579 = vmul.f32 %v2575, 0.00013007285
  %v2580 = vmul.f32 %v2576, %v2576
  %v2581 = vmul.f32 %v2577, %v2577
  %v2582 = vsub.f32 %v2578, %v2580
  %v2583 = vsub.f32 %v2579, %v2581
  %v2584 = vadd.f32 %v2582, 1e-05
  %v2585 = vadd.f32 %v2583, 1e-05
  %v2586 = vrsqrt.pop %v2584
  %v2587 = vrsqrt.pop %v2585
  %v2588 = vmul.f32 %v88, %v2586
  %v2589 = vmul.f32 %v89, %v2587
  %v2590 = vmul.f32 %v2576, %v2588
  %v2591 = vmul.f32 %v2577, %v2589
  %v2592 = vsub.f32 %v90, %v2590
  %v2593 = vsub.f32 %v91, %v2591
  %2595 = vset.pattern.permute.xlu0 0
  %2596 = vperm.xlu0 %2595, %v2588
  %v2597 = vpop.permute.xlu0 %2596
  %2600 = vset.pattern.permute.xlu0 0
  %2601 = vperm.xlu0 %2600, %v2589
  %v2602 = vpop.permute.xlu0 %2601
  %v2604 = vmul.f32 %v610, %v2597
  %v2605 = vmul.f32 %v612, %v2597
  %v2606 = vmul.f32 %v653, %v2597
  %v2607 = vmul.f32 %v655, %v2597
  %v2608 = vmul.f32 %v696, %v2597
  %v2609 = vmul.f32 %v698, %v2597
  %v2610 = vmul.f32 %v739, %v2597
  %v2611 = vmul.f32 %v614, %v2602
  %v2612 = vmul.f32 %v616, %v2602
  %v2613 = vmul.f32 %v657, %v2602
  %v2614 = vmul.f32 %v659, %v2602
  %v2615 = vmul.f32 %v700, %v2602
  %v2616 = vmul.f32 %v702, %v2602
  %v2617 = vmul.f32 %v743, %v2602
  %2619 = vset.pattern.permute.xlu0 0
  %2620 = vperm.xlu0 %2619, %v2592
  %v2621 = vpop.permute.xlu0 %2620
  %2624 = vset.pattern.permute.xlu0 0
  %2625 = vperm.xlu0 %2624, %v2593
  %v2626 = vpop.permute.xlu0 %2625
  %v2628 = vadd.f32 %v2604, %v2621
  %v2629 = vadd.f32 %v2605, %v2621
  %v2630 = vadd.f32 %v2606, %v2621
  %v2631 = vadd.f32 %v2607, %v2621
  %v2632 = vadd.f32 %v2608, %v2621
  %v2633 = vadd.f32 %v2609, %v2621
  %v2634 = vadd.f32 %v2610, %v2621
  %v2635 = vadd.f32 %v2611, %v2626
  %v2636 = vadd.f32 %v2612, %v2626
  %v2637 = vadd.f32 %v2613, %v2626
  %v2638 = vadd.f32 %v2614, %v2626
  %v2639 = vadd.f32 %v2615, %v2626
  %v2640 = vadd.f32 %v2616, %v2626
  %v2641 = vadd.f32 %v2617, %v2626
  %v2642 = vmax.f32 %v2628, 0.0
  %v2643 = vmax.f32 %v2629, 0.0
  %v2644 = vmax.f32 %v2630, 0.0
  %v2645 = vmax.f32 %v2631, 0.0
  %v2646 = vmax.f32 %v2632, 0.0
  %v2647 = vmax.f32 %v2633, 0.0
  %v2648 = vmax.f32 %v2634, 0.0
  %v2649 = vmax.f32 %v2635, 0.0
  %v2650 = vmax.f32 %v2636, 0.0
  %v2651 = vmax.f32 %v2637, 0.0
  %v2652 = vmax.f32 %v2638, 0.0
  %v2653 = vmax.f32 %v2639, 0.0
  %v2654 = vmax.f32 %v2640, 0.0
  %v2655 = vmax.f32 %v2641, 0.0
  %v2656 = vmul.f32 %v741, %v2597
  %v2657 = vmul.f32 %v782, %v2597
  %v2658 = vmul.f32 %v784, %v2597
  %v2659 = vmul.f32 %v825, %v2597
  %v2660 = vmul.f32 %v827, %v2597
  %v2661 = vmul.f32 %v868, %v2597
  %v2662 = vmul.f32 %v870, %v2597
  %v2663 = vmul.f32 %v745, %v2602
  %v2664 = vmul.f32 %v786, %v2602
  %v2665 = vmul.f32 %v788, %v2602
  %v2666 = vmul.f32 %v829, %v2602
  %v2667 = vmul.f32 %v831, %v2602
  %v2668 = vmul.f32 %v872, %v2602
  %v2669 = vmul.f32 %v874, %v2602
  %v2670 = vadd.f32 %v2656, %v2621
  %v2671 = vadd.f32 %v2657, %v2621
  %v2672 = vadd.f32 %v2658, %v2621
  %v2673 = vadd.f32 %v2659, %v2621
  %v2674 = vadd.f32 %v2660, %v2621
  %v2675 = vadd.f32 %v2661, %v2621
  %v2676 = vadd.f32 %v2662, %v2621
  %v2677 = vadd.f32 %v2663, %v2626
  %v2678 = vadd.f32 %v2664, %v2626
  %v2679 = vadd.f32 %v2665, %v2626
  %v2680 = vadd.f32 %v2666, %v2626
  %v2681 = vadd.f32 %v2667, %v2626
  %v2682 = vadd.f32 %v2668, %v2626
  %v2683 = vadd.f32 %v2669, %v2626
  %v2684 = vmax.f32 %v2670, 0.0
  %v2685 = vmax.f32 %v2671, 0.0
  %v2686 = vmax.f32 %v2672, 0.0
  %v2687 = vmax.f32 %v2673, 0.0
  %v2688 = vmax.f32 %v2674, 0.0
  %v2689 = vmax.f32 %v2675, 0.0
  %v2690 = vmax.f32 %v2676, 0.0
  %v2691 = vmax.f32 %v2677, 0.0
  %v2692 = vmax.f32 %v2678, 0.0
  %v2693 = vmax.f32 %v2679, 0.0
  %v2694 = vmax.f32 %v2680, 0.0
  %v2695 = vmax.f32 %v2681, 0.0
  %v2696 = vmax.f32 %v2682, 0.0
  %v2697 = vmax.f32 %v2683, 0.0
  %v2698 = vmax.f32 %v2642, %v2684
  %v2699 = vmax.f32 %v2643, %v2685
  %v2700 = vmax.f32 %v2644, %v2686
  %v2701 = vmax.f32 %v2645, %v2687
  %v2702 = vmax.f32 %v2646, %v2688
  %v2703 = vmax.f32 %v2647, %v2689
  %v2704 = vmax.f32 %v2648, %v2690
  %v2705 = vmax.f32 %v2649, %v2691
  %v2706 = vmax.f32 %v2650, %v2692
  %v2707 = vmax.f32 %v2651, %v2693
  %v2708 = vmax.f32 %v2652, %v2694
  %v2709 = vmax.f32 %v2653, %v2695
  %v2710 = vmax.f32 %v2654, %v2696
  %v2711 = vmax.f32 %v2655, %v2697
  %v2712 = vmul.f32 %v911, %v2597
  %v2713 = vmul.f32 %v913, %v2597
  %v2714 = vmul.f32 %v954, %v2597
  %v2715 = vmul.f32 %v956, %v2597
  %v2716 = vmul.f32 %v997, %v2597
  %v2717 = vmul.f32 %v999, %v2597
  %v2718 = vmul.f32 %v1040, %v2597
  %v2719 = vmul.f32 %v915, %v2602
  %v2720 = vmul.f32 %v917, %v2602
  %v2721 = vmul.f32 %v958, %v2602
  %v2722 = vmul.f32 %v960, %v2602
  %v2723 = vmul.f32 %v1001, %v2602
  %v2724 = vmul.f32 %v1003, %v2602
  %v2725 = vmul.f32 %v1044, %v2602
  %v2726 = vadd.f32 %v2712, %v2621
  %v2727 = vadd.f32 %v2713, %v2621
  %v2728 = vadd.f32 %v2714, %v2621
  %v2729 = vadd.f32 %v2715, %v2621
  %v2730 = vadd.f32 %v2716, %v2621
  %v2731 = vadd.f32 %v2717, %v2621
  %v2732 = vadd.f32 %v2718, %v2621
  %v2733 = vadd.f32 %v2719, %v2626
  %v2734 = vadd.f32 %v2720, %v2626
  %v2735 = vadd.f32 %v2721, %v2626
  %v2736 = vadd.f32 %v2722, %v2626
  %v2737 = vadd.f32 %v2723, %v2626
  %v2738 = vadd.f32 %v2724, %v2626
  %v2739 = vadd.f32 %v2725, %v2626
  %v2740 = vmax.f32 %v2726, 0.0
  %v2741 = vmax.f32 %v2727, 0.0
  %v2742 = vmax.f32 %v2728, 0.0
  %v2743 = vmax.f32 %v2729, 0.0
  %v2744 = vmax.f32 %v2730, 0.0
  %v2745 = vmax.f32 %v2731, 0.0
  %v2746 = vmax.f32 %v2732, 0.0
  %v2747 = vmax.f32 %v2733, 0.0
  %v2748 = vmax.f32 %v2734, 0.0
  %v2749 = vmax.f32 %v2735, 0.0
  %v2750 = vmax.f32 %v2736, 0.0
  %v2751 = vmax.f32 %v2737, 0.0
  %v2752 = vmax.f32 %v2738, 0.0
  %v2753 = vmax.f32 %v2739, 0.0
  %v2754 = vmax.f32 %v2698, %v2740
  %v2755 = vmax.f32 %v2699, %v2741
  %v2756 = vmax.f32 %v2700, %v2742
  %v2757 = vmax.f32 %v2701, %v2743
  %v2758 = vmax.f32 %v2702, %v2744
  %v2759 = vmax.f32 %v2703, %v2745
  %v2760 = vmax.f32 %v2704, %v2746
  %v2761 = vmax.f32 %v2705, %v2747
  %v2762 = vmax.f32 %v2706, %v2748
  %v2763 = vmax.f32 %v2707, %v2749
  %v2764 = vmax.f32 %v2708, %v2750
  %v2765 = vmax.f32 %v2709, %v2751
  %v2766 = vmax.f32 %v2710, %v2752
  %v2767 = vmax.f32 %v2711, %v2753
  %v2768 = vmul.f32 %v1042, %v2597
  %v2769 = vmul.f32 %v1083, %v2597
  %v2770 = vmul.f32 %v1085, %v2597
  %v2771 = vmul.f32 %v1126, %v2597
  %v2772 = vmul.f32 %v1128, %v2597
  %v2773 = vmul.f32 %v1169, %v2597
  %v2774 = vmul.f32 %v1171, %v2597
  %v2775 = vmul.f32 %v1046, %v2602
  %v2776 = vmul.f32 %v1087, %v2602
  %v2777 = vmul.f32 %v1089, %v2602
  %v2778 = vmul.f32 %v1130, %v2602
  %v2779 = vmul.f32 %v1132, %v2602
  %v2780 = vmul.f32 %v1173, %v2602
  %v2781 = vmul.f32 %v1175, %v2602
  %v2782 = vadd.f32 %v2768, %v2621
  %v2783 = vadd.f32 %v2769, %v2621
  %v2784 = vadd.f32 %v2770, %v2621
  %v2785 = vadd.f32 %v2771, %v2621
  %v2786 = vadd.f32 %v2772, %v2621
  %v2787 = vadd.f32 %v2773, %v2621
  %v2788 = vadd.f32 %v2774, %v2621
  %v2789 = vadd.f32 %v2775, %v2626
  %v2790 = vadd.f32 %v2776, %v2626
  %v2791 = vadd.f32 %v2777, %v2626
  %v2792 = vadd.f32 %v2778, %v2626
  %v2793 = vadd.f32 %v2779, %v2626
  %v2794 = vadd.f32 %v2780, %v2626
  %v2795 = vadd.f32 %v2781, %v2626
  %v2796 = vmax.f32 %v2782, 0.0
  %v2797 = vmax.f32 %v2783, 0.0
  %v2798 = vmax.f32 %v2784, 0.0
  %v2799 = vmax.f32 %v2785, 0.0
  %v2800 = vmax.f32 %v2786, 0.0
  %v2801 = vmax.f32 %v2787, 0.0
  %v2802 = vmax.f32 %v2788, 0.0
  %v2803 = vmax.f32 %v2789, 0.0
  %v2804 = vmax.f32 %v2790, 0.0
  %v2805 = vmax.f32 %v2791, 0.0
  %v2806 = vmax.f32 %v2792, 0.0
  %v2807 = vmax.f32 %v2793, 0.0
  %v2808 = vmax.f32 %v2794, 0.0
  %v2809 = vmax.f32 %v2795, 0.0
  %v2810 = vmax.f32 %v2754, %v2796
  %v2811 = vmax.f32 %v2755, %v2797
  %v2812 = vmax.f32 %v2756, %v2798
  %v2813 = vmax.f32 %v2757, %v2799
  %v2814 = vmax.f32 %v2758, %v2800
  %v2815 = vmax.f32 %v2759, %v2801
  %v2816 = vmax.f32 %v2760, %v2802
  %v2817 = vmax.f32 %v2761, %v2803
  %v2818 = vmax.f32 %v2762, %v2804
  %v2819 = vmax.f32 %v2763, %v2805
  %v2820 = vmax.f32 %v2764, %v2806
  %v2821 = vmax.f32 %v2765, %v2807
  %v2822 = vmax.f32 %v2766, %v2808
  %v2823 = vmax.f32 %v2767, %v2809
  %v2824 = vmul.f32 %v1212, %v2597
  %v2825 = vmul.f32 %v1214, %v2597
  %v2826 = vmul.f32 %v1255, %v2597
  %v2827 = vmul.f32 %v1257, %v2597
  %v2828 = vmul.f32 %v1298, %v2597
  %v2829 = vmul.f32 %v1300, %v2597
  %v2830 = vmul.f32 %v1341, %v2597
  %v2831 = vmul.f32 %v1216, %v2602
  %v2832 = vmul.f32 %v1218, %v2602
  %v2833 = vmul.f32 %v1259, %v2602
  %v2834 = vmul.f32 %v1261, %v2602
  %v2835 = vmul.f32 %v1302, %v2602
  %v2836 = vmul.f32 %v1304, %v2602
  %v2837 = vmul.f32 %v1345, %v2602
  %v2838 = vadd.f32 %v2824, %v2621
  %v2839 = vadd.f32 %v2825, %v2621
  %v2840 = vadd.f32 %v2826, %v2621
  %v2841 = vadd.f32 %v2827, %v2621
  %v2842 = vadd.f32 %v2828, %v2621
  %v2843 = vadd.f32 %v2829, %v2621
  %v2844 = vadd.f32 %v2830, %v2621
  %v2845 = vadd.f32 %v2831, %v2626
  %v2846 = vadd.f32 %v2832, %v2626
  %v2847 = vadd.f32 %v2833, %v2626
  %v2848 = vadd.f32 %v2834, %v2626
  %v2849 = vadd.f32 %v2835, %v2626
  %v2850 = vadd.f32 %v2836, %v2626
  %v2851 = vadd.f32 %v2837, %v2626
  %v2852 = vmax.f32 %v2838, 0.0
  %v2853 = vmax.f32 %v2839, 0.0
  %v2854 = vmax.f32 %v2840, 0.0
  %v2855 = vmax.f32 %v2841, 0.0
  %v2856 = vmax.f32 %v2842, 0.0
  %v2857 = vmax.f32 %v2843, 0.0
  %v2858 = vmax.f32 %v2844, 0.0
  %v2859 = vmax.f32 %v2845, 0.0
  %v2860 = vmax.f32 %v2846, 0.0
  %v2861 = vmax.f32 %v2847, 0.0
  %v2862 = vmax.f32 %v2848, 0.0
  %v2863 = vmax.f32 %v2849, 0.0
  %v2864 = vmax.f32 %v2850, 0.0
  %v2865 = vmax.f32 %v2851, 0.0
  %v2866 = vmax.f32 %v2810, %v2852
  %v2867 = vmax.f32 %v2811, %v2853
  %v2868 = vmax.f32 %v2812, %v2854
  %v2869 = vmax.f32 %v2813, %v2855
  %v2870 = vmax.f32 %v2814, %v2856
  %v2871 = vmax.f32 %v2815, %v2857
  %v2872 = vmax.f32 %v2816, %v2858
  %v2873 = vmax.f32 %v2817, %v2859
  %v2874 = vmax.f32 %v2818, %v2860
  %v2875 = vmax.f32 %v2819, %v2861
  %v2876 = vmax.f32 %v2820, %v2862
  %v2877 = vmax.f32 %v2821, %v2863
  %v2878 = vmax.f32 %v2822, %v2864
  %v2879 = vmax.f32 %v2823, %v2865
  %v2880 = vmul.f32 %v1343, %v2597
  %v2881 = vmul.f32 %v1384, %v2597
  %v2882 = vmul.f32 %v1386, %v2597
  %v2883 = vmul.f32 %v1427, %v2597
  %v2884 = vmul.f32 %v1429, %v2597
  %v2885 = vmul.f32 %v1470, %v2597
  %v2886 = vmul.f32 %v1472, %v2597
  %v2887 = vmul.f32 %v1347, %v2602
  %v2888 = vmul.f32 %v1388, %v2602
  %v2889 = vmul.f32 %v1390, %v2602
  %v2890 = vmul.f32 %v1431, %v2602
  %v2891 = vmul.f32 %v1433, %v2602
  %v2892 = vmul.f32 %v1474, %v2602
  %v2893 = vmul.f32 %v1476, %v2602
  %v2894 = vadd.f32 %v2880, %v2621
  %v2895 = vadd.f32 %v2881, %v2621
  %v2896 = vadd.f32 %v2882, %v2621
  %v2897 = vadd.f32 %v2883, %v2621
  %v2898 = vadd.f32 %v2884, %v2621
  %v2899 = vadd.f32 %v2885, %v2621
  %v2900 = vadd.f32 %v2886, %v2621
  %v2901 = vadd.f32 %v2887, %v2626
  %v2902 = vadd.f32 %v2888, %v2626
  %v2903 = vadd.f32 %v2889, %v2626
  %v2904 = vadd.f32 %v2890, %v2626
  %v2905 = vadd.f32 %v2891, %v2626
  %v2906 = vadd.f32 %v2892, %v2626
  %v2907 = vadd.f32 %v2893, %v2626
  %v2908 = vmax.f32 %v2894, 0.0
  %v2909 = vmax.f32 %v2895, 0.0
  %v2910 = vmax.f32 %v2896, 0.0
  %v2911 = vmax.f32 %v2897, 0.0
  %v2912 = vmax.f32 %v2898, 0.0
  %v2913 = vmax.f32 %v2899, 0.0
  %v2914 = vmax.f32 %v2900, 0.0
  %v2915 = vmax.f32 %v2901, 0.0
  %v2916 = vmax.f32 %v2902, 0.0
  %v2917 = vmax.f32 %v2903, 0.0
  %v2918 = vmax.f32 %v2904, 0.0
  %v2919 = vmax.f32 %v2905, 0.0
  %v2920 = vmax.f32 %v2906, 0.0
  %v2921 = vmax.f32 %v2907, 0.0
  %v2922 = vmax.f32 %v2866, %v2908
  %v2923 = vmax.f32 %v2867, %v2909
  %v2924 = vmax.f32 %v2868, %v2910
  %v2925 = vmax.f32 %v2869, %v2911
  %v2926 = vmax.f32 %v2870, %v2912
  %v2927 = vmax.f32 %v2871, %v2913
  %v2928 = vmax.f32 %v2872, %v2914
  %v2929 = vmax.f32 %v2873, %v2915
  %v2930 = vmax.f32 %v2874, %v2916
  %v2931 = vmax.f32 %v2875, %v2917
  %v2932 = vmax.f32 %v2876, %v2918
  %v2933 = vmax.f32 %v2877, %v2919
  %v2934 = vmax.f32 %v2878, %v2920
  %v2935 = vmax.f32 %v2879, %v2921
  %v2936 = vmul.f32 %v1513, %v2597
  %v2937 = vmul.f32 %v1515, %v2597
  %v2938 = vmul.f32 %v1556, %v2597
  %v2939 = vmul.f32 %v1558, %v2597
  %v2940 = vmul.f32 %v1599, %v2597
  %v2941 = vmul.f32 %v1601, %v2597
  %v2942 = vmul.f32 %v1642, %v2597
  %v2943 = vmul.f32 %v1517, %v2602
  %v2944 = vmul.f32 %v1519, %v2602
  %v2945 = vmul.f32 %v1560, %v2602
  %v2946 = vmul.f32 %v1562, %v2602
  %v2947 = vmul.f32 %v1603, %v2602
  %v2948 = vmul.f32 %v1605, %v2602
  %v2949 = vmul.f32 %v1646, %v2602
  %v2950 = vadd.f32 %v2936, %v2621
  %v2951 = vadd.f32 %v2937, %v2621
  %v2952 = vadd.f32 %v2938, %v2621
  %v2953 = vadd.f32 %v2939, %v2621
  %v2954 = vadd.f32 %v2940, %v2621
  %v2955 = vadd.f32 %v2941, %v2621
  %v2956 = vadd.f32 %v2942, %v2621
  %v2957 = vadd.f32 %v2943, %v2626
  %v2958 = vadd.f32 %v2944, %v2626
  %v2959 = vadd.f32 %v2945, %v2626
  %v2960 = vadd.f32 %v2946, %v2626
  %v2961 = vadd.f32 %v2947, %v2626
  %v2962 = vadd.f32 %v2948, %v2626
  %v2963 = vadd.f32 %v2949, %v2626
  %v2964 = vmax.f32 %v2950, 0.0
  %v2965 = vmax.f32 %v2951, 0.0
  %v2966 = vmax.f32 %v2952, 0.0
  %v2967 = vmax.f32 %v2953, 0.0
  %v2968 = vmax.f32 %v2954, 0.0
  %v2969 = vmax.f32 %v2955, 0.0
  %v2970 = vmax.f32 %v2956, 0.0
  %v2971 = vmax.f32 %v2957, 0.0
  %v2972 = vmax.f32 %v2958, 0.0
  %v2973 = vmax.f32 %v2959, 0.0
  %v2974 = vmax.f32 %v2960, 0.0
  %v2975 = vmax.f32 %v2961, 0.0
  %v2976 = vmax.f32 %v2962, 0.0
  %v2977 = vmax.f32 %v2963, 0.0
  %v2978 = vmax.f32 %v2922, %v2964
  %v2979 = vmax.f32 %v2923, %v2965
  %v2980 = vmax.f32 %v2924, %v2966
  %v2981 = vmax.f32 %v2925, %v2967
  %v2982 = vmax.f32 %v2926, %v2968
  %v2983 = vmax.f32 %v2927, %v2969
  %v2984 = vmax.f32 %v2928, %v2970
  %v2985 = vmax.f32 %v2929, %v2971
  %v2986 = vmax.f32 %v2930, %v2972
  %v2987 = vmax.f32 %v2931, %v2973
  %v2988 = vmax.f32 %v2932, %v2974
  %v2989 = vmax.f32 %v2933, %v2975
  %v2990 = vmax.f32 %v2934, %v2976
  %v2991 = vmax.f32 %v2935, %v2977
  %v2992 = vmul.f32 %v1644, %v2597
  %v2993 = vmul.f32 %v1685, %v2597
  %v2994 = vmul.f32 %v1687, %v2597
  %v2995 = vmul.f32 %v1728, %v2597
  %v2996 = vmul.f32 %v1730, %v2597
  %v2997 = vmul.f32 %v1771, %v2597
  %v2998 = vmul.f32 %v1773, %v2597
  %v2999 = vmul.f32 %v1648, %v2602
  %v3000 = vmul.f32 %v1689, %v2602
  %v3001 = vmul.f32 %v1691, %v2602
  %v3002 = vmul.f32 %v1732, %v2602
  %v3003 = vmul.f32 %v1734, %v2602
  %v3004 = vmul.f32 %v1775, %v2602
  %v3005 = vmul.f32 %v1777, %v2602
  %v3006 = vadd.f32 %v2992, %v2621
  %v3007 = vadd.f32 %v2993, %v2621
  %v3008 = vadd.f32 %v2994, %v2621
  %v3009 = vadd.f32 %v2995, %v2621
  %v3010 = vadd.f32 %v2996, %v2621
  %v3011 = vadd.f32 %v2997, %v2621
  %v3012 = vadd.f32 %v2998, %v2621
  %v3013 = vadd.f32 %v2999, %v2626
  %v3014 = vadd.f32 %v3000, %v2626
  %v3015 = vadd.f32 %v3001, %v2626
  %v3016 = vadd.f32 %v3002, %v2626
  %v3017 = vadd.f32 %v3003, %v2626
  %v3018 = vadd.f32 %v3004, %v2626
  %v3019 = vadd.f32 %v3005, %v2626
  %v3020 = vmax.f32 %v3006, 0.0
  %v3021 = vmax.f32 %v3007, 0.0
  %v3022 = vmax.f32 %v3008, 0.0
  %v3023 = vmax.f32 %v3009, 0.0
  %v3024 = vmax.f32 %v3010, 0.0
  %v3025 = vmax.f32 %v3011, 0.0
  %v3026 = vmax.f32 %v3012, 0.0
  %v3027 = vmax.f32 %v3013, 0.0
  %v3028 = vmax.f32 %v3014, 0.0
  %v3029 = vmax.f32 %v3015, 0.0
  %v3030 = vmax.f32 %v3016, 0.0
  %v3031 = vmax.f32 %v3017, 0.0
  %v3032 = vmax.f32 %v3018, 0.0
  %v3033 = vmax.f32 %v3019, 0.0
  %v3034 = vmax.f32 %v2978, %v3020
  %v3035 = vmax.f32 %v2979, %v3021
  %v3036 = vmax.f32 %v2980, %v3022
  %v3037 = vmax.f32 %v2981, %v3023
  %v3038 = vmax.f32 %v2982, %v3024
  %v3039 = vmax.f32 %v2983, %v3025
  %v3040 = vmax.f32 %v2984, %v3026
  %v3041 = vmax.f32 %v2985, %v3027
  %v3042 = vmax.f32 %v2986, %v3028
  %v3043 = vmax.f32 %v2987, %v3029
  %v3044 = vmax.f32 %v2988, %v3030
  %v3045 = vmax.f32 %v2989, %v3031
  %v3046 = vmax.f32 %v2990, %v3032
  %v3047 = vmax.f32 %v2991, %v3033
  %v3048 = vmul.f32 %v1814, %v2597
  %v3049 = vmul.f32 %v1816, %v2597
  %v3050 = vmul.f32 %v1857, %v2597
  %v3051 = vmul.f32 %v1859, %v2597
  %v3052 = vmul.f32 %v1900, %v2597
  %v3053 = vmul.f32 %v1902, %v2597
  %v3054 = vmul.f32 %v1943, %v2597
  %v3055 = vmul.f32 %v1818, %v2602
  %v3056 = vmul.f32 %v1820, %v2602
  %v3057 = vmul.f32 %v1861, %v2602
  %v3058 = vmul.f32 %v1863, %v2602
  %v3059 = vmul.f32 %v1904, %v2602
  %v3060 = vmul.f32 %v1906, %v2602
  %v3061 = vmul.f32 %v1947, %v2602
  %v3062 = vadd.f32 %v3048, %v2621
  %v3063 = vadd.f32 %v3049, %v2621
  %v3064 = vadd.f32 %v3050, %v2621
  %v3065 = vadd.f32 %v3051, %v2621
  %v3066 = vadd.f32 %v3052, %v2621
  %v3067 = vadd.f32 %v3053, %v2621
  %v3068 = vadd.f32 %v3054, %v2621
  %v3069 = vadd.f32 %v3055, %v2626
  %v3070 = vadd.f32 %v3056, %v2626
  %v3071 = vadd.f32 %v3057, %v2626
  %v3072 = vadd.f32 %v3058, %v2626
  %v3073 = vadd.f32 %v3059, %v2626
  %v3074 = vadd.f32 %v3060, %v2626
  %v3075 = vadd.f32 %v3061, %v2626
  %v3076 = vmax.f32 %v3062, 0.0
  %v3077 = vmax.f32 %v3063, 0.0
  %v3078 = vmax.f32 %v3064, 0.0
  %v3079 = vmax.f32 %v3065, 0.0
  %v3080 = vmax.f32 %v3066, 0.0
  %v3081 = vmax.f32 %v3067, 0.0
  %v3082 = vmax.f32 %v3068, 0.0
  %v3083 = vmax.f32 %v3069, 0.0
  %v3084 = vmax.f32 %v3070, 0.0
  %v3085 = vmax.f32 %v3071, 0.0
  %v3086 = vmax.f32 %v3072, 0.0
  %v3087 = vmax.f32 %v3073, 0.0
  %v3088 = vmax.f32 %v3074, 0.0
  %v3089 = vmax.f32 %v3075, 0.0
  %v3090 = vmax.f32 %v3034, %v3076
  %v3091 = vmax.f32 %v3035, %v3077
  %v3092 = vmax.f32 %v3036, %v3078
  %v3093 = vmax.f32 %v3037, %v3079
  %v3094 = vmax.f32 %v3038, %v3080
  %v3095 = vmax.f32 %v3039, %v3081
  %v3096 = vmax.f32 %v3040, %v3082
  %v3097 = vmax.f32 %v3041, %v3083
  %v3098 = vmax.f32 %v3042, %v3084
  %v3099 = vmax.f32 %v3043, %v3085
  %v3100 = vmax.f32 %v3044, %v3086
  %v3101 = vmax.f32 %v3045, %v3087
  %v3102 = vmax.f32 %v3046, %v3088
  %v3103 = vmax.f32 %v3047, %v3089
  %v3104 = vlaneseq
  %v3105 = vand.u32 %v3104, 127
  %v3106 = vadd.s32 %v3105, 128
  %v3107 = vadd.s32 %v3105, 256
  %v3108 = vadd.s32 %v3105, 384
  %v3109 = vadd.s32 %v3105, 512
  %v3110 = vadd.s32 %v3105, 640
  %v3111 = vadd.s32 %v3105, 768
  %vm3112 = vcmp.lt.s32.totalorder %v3105, 800
  %vm3113 = vcmp.lt.s32.totalorder %v3106, 800
  %vm3114 = vcmp.lt.s32.totalorder %v3107, 800
  %vm3115 = vcmp.lt.s32.totalorder %v3108, 800
  %vm3116 = vcmp.lt.s32.totalorder %v3109, 800
  %vm3117 = vcmp.lt.s32.totalorder %v3110, 800
  %vm3118 = vcmp.lt.s32.totalorder %v3111, 800
  %v3119 = vsel %vm3112, %v3090, 0.0
  %v3120 = vsel %vm3113, %v3091, 0.0
  %v3121 = vsel %vm3114, %v3092, 0.0
  %v3122 = vsel %vm3115, %v3093, 0.0
  %v3123 = vsel %vm3116, %v3094, 0.0
  %v3124 = vsel %vm3117, %v3095, 0.0
  %v3125 = vsel %vm3118, %v3096, 0.0
  %v3126 = vsel %vm3112, %v3097, 0.0
  %v3127 = vsel %vm3113, %v3098, 0.0
  %v3128 = vsel %vm3114, %v3099, 0.0
  %v3129 = vsel %vm3115, %v3100, 0.0
  %v3130 = vsel %vm3116, %v3101, 0.0
  %v3131 = vsel %vm3117, %v3102, 0.0
  %v3132 = vsel %vm3118, %v3103, 0.0
  %3133 = vst [vmem:[%s4] sm:$0xff] %v3119
  %3134 = vst [vmem:[%s4 + $0x8] sm:$0xff] %v3120
  %3135 = vst [vmem:[%s4 + $0x10] sm:$0xff] %v3121
  %3136 = vst [vmem:[%s4 + $0x18] sm:$0xff] %v3122
  %3137 = vst [vmem:[%s4 + $0x20] sm:$0xff] %v3123
  %3138 = vst [vmem:[%s4 + $0x28] sm:$0xff] %v3124
  %3139 = vst [vmem:[%s4 + $0x30] sm:$0xff] %v3125
  %3140 = vst [vmem:[%s4 + $0x38] sm:$0x3] %v3126
  %3141 = vst [vmem:[%s4 + $0x40] sm:$0x3] %v3127
  %3142 = vst [vmem:[%s4 + $0x48] sm:$0x3] %v3128
  %3143 = vst [vmem:[%s4 + $0x50] sm:$0x3] %v3129
  %3144 = vst [vmem:[%s4 + $0x58] sm:$0x3] %v3130
  %3145 = vst [vmem:[%s4 + $0x60] sm:$0x3] %v3131
  %3146 = vst [vmem:[%s4 + $0x68] sm:$0x3] %v3132
  // Predicated region
  $region18: #{simple_net_forward.2} parent=0 // pred_check
    _
  $region19: #{simple_net_forward.2} parent=0 // pred_check_branch
    %3148 = sbr.rel (0) target = $region21
  $region20: #{simple_net_forward.2} parent=0 // pred_region
    _
  $region21: #{simple_net_forward.2} parent=0 // pred_fallthru
    _
  // Predicated region
  $region22: #{simple_net_forward.2} parent=0 // pred_check
    _
  $region23: #{simple_net_forward.2} parent=0 // pred_check_branch
    %3150 = sbr.rel (0) target = $region25
  $region24: #{simple_net_forward.2} parent=0 // pred_region
    _
  $region25: #{simple_net_forward.2} parent=0 // pred_fallthru
    _

// kernel: simple_net_forward.3
$region0: #{simple_net_forward.3}
  #allocation0 [shape = 'u32[]', space=smem, size = 0x4, offset = 0x4, fixed_abs, tag = 'smem constant byte address 0x4 - core index']
  #allocation1 [shape = 'u32[144,128]{1,0:T(1,128)}', space=vmem, size = 0x12000, scoped, tag = 'internal scratch']
  %s0 = inlined_call_operand.vmem [shape: bf16[90,1152], index: 0, kind: input, shape index: {}]
  %s1 = inlined_call_operand.vmem [shape: bf16[20,90], index: 1, kind: input, shape index: {}]
  %s2 = inlined_call_operand.vmem [shape: f32[20,1], index: 2, kind: input, shape index: {}]
  %s3 = inlined_call_operand.vmem [shape: f32[20,1], index: 3, kind: input, shape index: {}]
  %s4 = inlined_call_operand.vmem [shape: bf16[20,36,100], index: 4, kind: input, shape index: {}]
  %s5 = inlined_call_operand.vmem [shape: f32[1,100], index: 5, kind: input, shape index: {}]
  %s6 = inlined_call_operand.vmem [shape: f32[100,15], index: 6, kind: input, shape index: {}]
  %s7 = inlined_call_operand.vmem [shape: f32[1,15], index: 7, kind: input, shape index: {}]
  %s8 = inlined_call_operand.hbm [shape: f32[2,15], index: 8, kind: output, shape index: {}]
  %s9 = sld [smem:[#allocation0]]
  $region42: #{simple_net_forward.3} parent=0
    _
  %s11 = ssub.s32 1, %s9
  %s12 = scalar_select 0, %s11, %s9
  $region1: #{simple_net_forward.3} parent=0
    #allocation2 [shape = 'u8[1024]{0}', space=vmem, size = 0x400, scoped, tag = 'output window, operand 0, single buffered']
    #allocation3 [shape = 's32[1]{0}', space=sflag, size = 0x4, scoped, tag = 'scoped memory for simple_net_forward.3']
    %13 = vsyncpa [#allocation3], 0
    // Predicated region
    $region2: #{simple_net_forward.3} parent=1 // pred_check
      _
    $region3: #{simple_net_forward.3} parent=1 // pred_check_branch
      %15 = sbr.rel (0) target = $region5
    $region4: #{simple_net_forward.3} parent=1 // pred_region
      _
    $region5: #{simple_net_forward.3} parent=1 // pred_fallthru
      _
    // Predicated region
    $region6: #{simple_net_forward.3} parent=1 // pred_check
      _
    $region7: #{simple_net_forward.3} parent=1 // pred_check_branch
      %17 = sbr.rel (0) target = $region9
    $region8: #{simple_net_forward.3} parent=1 // pred_region
      _
    $region9: #{simple_net_forward.3} parent=1 // pred_fallthru
      _
    // Predicated region
    $region10: #{simple_net_forward.3} parent=1 // pred_check
      _
    $region11: #{simple_net_forward.3} parent=1 // pred_check_branch
      %19 = sbr.rel (0) target = $region13
    $region12: #{simple_net_forward.3} parent=1 // pred_region
      _
    $region13: #{simple_net_forward.3} parent=1 // pred_fallthru
      _
    // Predicated region
    $region14: #{simple_net_forward.3} parent=1 // pred_check
      _
    $region15: #{simple_net_forward.3} parent=1 // pred_check_branch
      %21 = sbr.rel (0) target = $region17
    $region16: #{simple_net_forward.3} parent=1 // pred_region
      _
    $region17: #{simple_net_forward.3} parent=1 // pred_fallthru
      _
    // Predicated region
    $region18: #{simple_net_forward.3} parent=1 // pred_check
      _
    $region19: #{simple_net_forward.3} parent=1 // pred_check_branch
      %23 = sbr.rel (0) target = $region21
    $region20: #{simple_net_forward.3} parent=1 // pred_region
      _
    $region21: #{simple_net_forward.3} parent=1 // pred_fallthru
      _
    // Predicated region
    $region22: #{simple_net_forward.3} parent=1 // pred_check
      _
    $region23: #{simple_net_forward.3} parent=1 // pred_check_branch
      %25 = sbr.rel (0) target = $region25
    $region24: #{simple_net_forward.3} parent=1 // pred_region
      _
    $region25: #{simple_net_forward.3} parent=1 // pred_fallthru
      _
    // Predicated region
    $region26: #{simple_net_forward.3} parent=1 // pred_check
      _
    $region27: #{simple_net_forward.3} parent=1 // pred_check_branch
      %27 = sbr.rel (0) target = $region29
    $region28: #{simple_net_forward.3} parent=1 // pred_region
      _
    $region29: #{simple_net_forward.3} parent=1 // pred_fallthru
      _
    // Predicated region
    $region30: #{simple_net_forward.3} parent=1 // pred_check
      _
    $region31: #{simple_net_forward.3} parent=1 // pred_check_branch
      %29 = sbr.rel (0) target = $region33
    $region32: #{simple_net_forward.3} parent=1 // pred_region
      _
    $region33: #{simple_net_forward.3} parent=1 // pred_fallthru
      _
    %v31 = vld [vmem:[%s0] sm:$0xff]
    %v32 = vld [vmem:[%s0 + $0x8] sm:$0xff]
    %v33 = vld [vmem:[%s0 + $0x10] sm:$0xff]
    %v34 = vld [vmem:[%s0 + $0x18] sm:$0xff]
    %v35 = vld [vmem:[%s0 + $0x20] sm:$0xf]
    %v36 = vld [vmem:[%s0 + $0x24] sm:$0xff]
    %v37 = vld [vmem:[%s0 + $0x2c] sm:$0xff]
    %v38 = vld [vmem:[%s0 + $0x34] sm:$0xff]
    %v39 = vld [vmem:[%s0 + $0x3c] sm:$0xff]
    %v40 = vld [vmem:[%s0 + $0x44] sm:$0xf]
    %v41 = vld [vmem:[%s0 + $0x48] sm:$0xff]
    %v42 = vld [vmem:[%s0 + $0x50] sm:$0xff]
    %v43 = vld [vmem:[%s0 + $0x58] sm:$0xff]
    %v44 = vld [vmem:[%s0 + $0x60] sm:$0xff]
    %v45 = vld [vmem:[%s0 + $0x68] sm:$0xf]
    %v46 = vld [vmem:[%s0 + $0x6c] sm:$0xff]
    %v47 = vld [vmem:[%s0 + $0x74] sm:$0xff]
    %v48 = vld [vmem:[%s0 + $0x7c] sm:$0xff]
    %v49 = vld [vmem:[%s0 + $0x84] sm:$0xff]
    %v50 = vld [vmem:[%s0 + $0x8c] sm:$0xf]
    %v51 = vld [vmem:[%s0 + $0x90] sm:$0xff]
    %v52 = vld [vmem:[%s0 + $0x98] sm:$0xff]
    %v53 = vld [vmem:[%s0 + $0xa0] sm:$0xff]
    %v54 = vld [vmem:[%s0 + $0xa8] sm:$0xff]
    %v55 = vld [vmem:[%s0 + $0xb0] sm:$0xf]
    %v56 = vld [vmem:[%s0 + $0xb4] sm:$0xff]
    %v57 = vld [vmem:[%s0 + $0xbc] sm:$0xff]
    %v58 = vld [vmem:[%s0 + $0xc4] sm:$0xff]
    %v59 = vld [vmem:[%s0 + $0xcc] sm:$0xff]
    %v60 = vld [vmem:[%s0 + $0xd4] sm:$0xf]
    %v61 = vld [vmem:[%s0 + $0xd8] sm:$0xff]
    %v62 = vld [vmem:[%s0 + $0xe0] sm:$0xff]
    %v63 = vld [vmem:[%s0 + $0xe8] sm:$0xff]
    %v64 = vld [vmem:[%s0 + $0xf0] sm:$0xff]
    %v65 = vld [vmem:[%s0 + $0xf8] sm:$0xf]
    %v66 = vld [vmem:[%s0 + $0xfc] sm:$0xff]
    %v67 = vld [vmem:[%s0 + $0x104] sm:$0xff]
    %v68 = vld [vmem:[%s0 + $0x10c] sm:$0xff]
    %v69 = vld [vmem:[%s0 + $0x114] sm:$0xff]
    %v70 = vld [vmem:[%s0 + $0x11c] sm:$0xf]
    %v71 = vld [vmem:[%s0 + $0x120] sm:$0xff]
    %v72 = vld [vmem:[%s0 + $0x128] sm:$0xff]
    %v73 = vld [vmem:[%s0 + $0x130] sm:$0xff]
    %v74 = vld [vmem:[%s0 + $0x138] sm:$0xff]
    %v75 = vld [vmem:[%s0 + $0x140] sm:$0xf]
    %v76 = vld [vmem:[%s0 + $0x144] sm:$0xff]
    %v77 = vld [vmem:[%s0 + $0x14c] sm:$0xff]
    %v78 = vld [vmem:[%s0 + $0x154] sm:$0xff]
    %v79 = vld [vmem:[%s0 + $0x15c] sm:$0xff]
    %v80 = vld [vmem:[%s0 + $0x164] sm:$0xf]
    %v81 = vld [vmem:[%s0 + $0x168] sm:$0xff]
    %v82 = vld [vmem:[%s0 + $0x170] sm:$0xff]
    %v83 = vld [vmem:[%s0 + $0x178] sm:$0xff]
    %v84 = vld [vmem:[%s0 + $0x180] sm:$0xff]
    %v85 = vld [vmem:[%s0 + $0x188] sm:$0xf]
    %v86 = vld [vmem:[%s0 + $0x18c] sm:$0x11]
    %v87 = vld [vmem:[%s0 + $0x194] sm:$0x11]
    %v88 = vld [vmem:[%s0 + $0x19c] sm:$0x11]
    %v89 = vld [vmem:[%s0 + $0x1a4] sm:$0x11]
    %v90 = vld [vmem:[%s0 + $0x1ac] sm:$0x1]
    %v91 = vld [vmem:[%s1] sm:$0xf]
    %v92 = vld [vmem:[%s1 + $0x4] sm:$0xf]
    %v93 = vld [vmem:[%s1 + $0x8] sm:$0x3]
    %v94 = vld [vmem:[%s2] sm:$0xff]
    %v95 = vld [vmem:[%s2 + $0x8] sm:$0xff]
    %v96 = vld [vmem:[%s2 + $0x10] sm:$0xf]
    %v97 = vld [vmem:[%s3] sm:$0xff]
    %v98 = vld [vmem:[%s3 + $0x8] sm:$0xff]
    %v99 = vld [vmem:[%s3 + $0x10] sm:$0xf]
    %v103 = vunpack.c.l.b16 %v91
    %v104 = vunpack.c.l.b16 %v92
    %v105 = vunpack.c.l.b16 %v93
    %v106 = vpack.c.b16 %v104, %v103
    %v107 = vpack.c.b16 %v105, %v105
    %v168 = vunpack.c.l.b16 %v31
    %v169 = vunpack.c.h.b16 %v31
    %v170 = vunpack.c.l.b16 %v32
    %v171 = vunpack.c.h.b16 %v32
    %v172 = vunpack.c.l.b16 %v33
    %v173 = vunpack.c.h.b16 %v33
    %v174 = vunpack.c.l.b16 %v34
    %v175 = vunpack.c.h.b16 %v34
    %v176 = vunpack.c.l.b16 %v35
    %v177 = vunpack.c.l.b16 %v36
    %v178 = vunpack.c.h.b16 %v36
    %v179 = vunpack.c.l.b16 %v37
    %v180 = vunpack.c.h.b16 %v37
    %v181 = vunpack.c.l.b16 %v38
    %v182 = vunpack.c.h.b16 %v38
    %v183 = vunpack.c.l.b16 %v39
    %v184 = vunpack.c.h.b16 %v39
    %v185 = vunpack.c.l.b16 %v40
    %v186 = vunpack.c.l.b16 %v41
    %v187 = vunpack.c.h.b16 %v41
    %v188 = vunpack.c.l.b16 %v42
    %v189 = vunpack.c.h.b16 %v42
    %v190 = vunpack.c.l.b16 %v43
    %v191 = vunpack.c.h.b16 %v43
    %v192 = vunpack.c.l.b16 %v44
    %v193 = vunpack.c.h.b16 %v44
    %v194 = vunpack.c.l.b16 %v45
    %v195 = vunpack.c.l.b16 %v46
    %v196 = vunpack.c.h.b16 %v46
    %v197 = vunpack.c.l.b16 %v47
    %v198 = vunpack.c.h.b16 %v47
    %v199 = vunpack.c.l.b16 %v48
    %v200 = vunpack.c.h.b16 %v48
    %v201 = vunpack.c.l.b16 %v49
    %v202 = vunpack.c.h.b16 %v49
    %v203 = vunpack.c.l.b16 %v50
    %v204 = vunpack.c.l.b16 %v51
    %v205 = vunpack.c.h.b16 %v51
    %v206 = vunpack.c.l.b16 %v52
    %v207 = vunpack.c.h.b16 %v52
    %v208 = vunpack.c.l.b16 %v53
    %v209 = vunpack.c.h.b16 %v53
    %v210 = vunpack.c.l.b16 %v54
    %v211 = vunpack.c.h.b16 %v54
    %v212 = vunpack.c.l.b16 %v55
    %v213 = vunpack.c.l.b16 %v56
    %v214 = vunpack.c.h.b16 %v56
    %v215 = vunpack.c.l.b16 %v57
    %v216 = vunpack.c.h.b16 %v57
    %v217 = vunpack.c.l.b16 %v58
    %v218 = vunpack.c.h.b16 %v58
    %v219 = vunpack.c.l.b16 %v59
    %v220 = vunpack.c.h.b16 %v59
    %v221 = vunpack.c.l.b16 %v60
    %v222 = vunpack.c.l.b16 %v61
    %v223 = vunpack.c.h.b16 %v61
    %v224 = vunpack.c.l.b16 %v62
    %v225 = vunpack.c.h.b16 %v62
    %v226 = vunpack.c.l.b16 %v63
    %v227 = vunpack.c.h.b16 %v63
    %v228 = vunpack.c.l.b16 %v64
    %v229 = vunpack.c.h.b16 %v64
    %v230 = vunpack.c.l.b16 %v65
    %v231 = vunpack.c.l.b16 %v66
    %v232 = vunpack.c.h.b16 %v66
    %v233 = vunpack.c.l.b16 %v67
    %v234 = vunpack.c.h.b16 %v67
    %v235 = vunpack.c.l.b16 %v68
    %v236 = vunpack.c.h.b16 %v68
    %v237 = vunpack.c.l.b16 %v69
    %v238 = vunpack.c.h.b16 %v69
    %v239 = vunpack.c.l.b16 %v70
    %v240 = vunpack.c.l.b16 %v71
    %v241 = vunpack.c.h.b16 %v71
    %v242 = vunpack.c.l.b16 %v72
    %v243 = vunpack.c.h.b16 %v72
    %v244 = vunpack.c.l.b16 %v73
    %v245 = vunpack.c.h.b16 %v73
    %v246 = vunpack.c.l.b16 %v74
    %v247 = vunpack.c.h.b16 %v74
    %v248 = vunpack.c.l.b16 %v75
    %v249 = vunpack.c.l.b16 %v76
    %v250 = vunpack.c.h.b16 %v76
    %v251 = vunpack.c.l.b16 %v77
    %v252 = vunpack.c.h.b16 %v77
    %v253 = vunpack.c.l.b16 %v78
    %v254 = vunpack.c.h.b16 %v78
    %v255 = vunpack.c.l.b16 %v79
    %v256 = vunpack.c.h.b16 %v79
    %v257 = vunpack.c.l.b16 %v80
    %v258 = vunpack.c.l.b16 %v81
    %v259 = vunpack.c.h.b16 %v81
    %v260 = vunpack.c.l.b16 %v82
    %v261 = vunpack.c.h.b16 %v82
    %v262 = vunpack.c.l.b16 %v83
    %v263 = vunpack.c.h.b16 %v83
    %v264 = vunpack.c.l.b16 %v84
    %v265 = vunpack.c.h.b16 %v84
    %v266 = vunpack.c.l.b16 %v85
    %v267 = vunpack.c.l.b16 %v86
    %v268 = vunpack.c.h.b16 %v86
    %v269 = vunpack.c.l.b16 %v87
    %v270 = vunpack.c.h.b16 %v87
    %v271 = vunpack.c.l.b16 %v88
    %v272 = vunpack.c.h.b16 %v88
    %v273 = vunpack.c.l.b16 %v89
    %v274 = vunpack.c.h.b16 %v89
    %v275 = vunpack.c.l.b16 %v90
    %v276 = vpack.c.b16 %v177, %v168
    %v277 = vpack.c.b16 %v178, %v169
    %v278 = vpack.c.b16 %v179, %v170
    %v279 = vpack.c.b16 %v180, %v171
    %v280 = vpack.c.b16 %v181, %v172
    %v281 = vpack.c.b16 %v182, %v173
    %v282 = vpack.c.b16 %v183, %v174
    %v283 = vpack.c.b16 %v184, %v175
    %v284 = vpack.c.b16 %v185, %v176
    %v285 = vpack.c.b16 %v195, %v186
    %v286 = vpack.c.b16 %v196, %v187
    %v287 = vpack.c.b16 %v197, %v188
    %v288 = vpack.c.b16 %v198, %v189
    %v289 = vpack.c.b16 %v199, %v190
    %v290 = vpack.c.b16 %v200, %v191
    %v291 = vpack.c.b16 %v201, %v192
    %v292 = vpack.c.b16 %v202, %v193
    %v293 = vpack.c.b16 %v203, %v194
    %v294 = vpack.c.b16 %v213, %v204
    %v295 = vpack.c.b16 %v214, %v205
    %v296 = vpack.c.b16 %v215, %v206
    %v297 = vpack.c.b16 %v216, %v207
    %v298 = vpack.c.b16 %v217, %v208
    %v299 = vpack.c.b16 %v218, %v209
    %v300 = vpack.c.b16 %v219, %v210
    %v301 = vpack.c.b16 %v220, %v211
    %v302 = vpack.c.b16 %v221, %v212
    %v303 = vpack.c.b16 %v231, %v222
    %v304 = vpack.c.b16 %v232, %v223
    %v305 = vpack.c.b16 %v233, %v224
    %v306 = vpack.c.b16 %v234, %v225
    %v307 = vpack.c.b16 %v235, %v226
    %v308 = vpack.c.b16 %v236, %v227
    %v309 = vpack.c.b16 %v237, %v228
    %v310 = vpack.c.b16 %v238, %v229
    %v311 = vpack.c.b16 %v239, %v230
    %v312 = vpack.c.b16 %v249, %v240
    %v313 = vpack.c.b16 %v250, %v241
    %v314 = vpack.c.b16 %v251, %v242
    %v315 = vpack.c.b16 %v252, %v243
    %v316 = vpack.c.b16 %v253, %v244
    %v317 = vpack.c.b16 %v254, %v245
    %v318 = vpack.c.b16 %v255, %v246
    %v319 = vpack.c.b16 %v256, %v247
    %v320 = vpack.c.b16 %v257, %v248
    %v321 = vpack.c.b16 %v267, %v258
    %v322 = vpack.c.b16 %v268, %v259
    %v323 = vpack.c.b16 %v269, %v260
    %v324 = vpack.c.b16 %v270, %v261
    %v325 = vpack.c.b16 %v271, %v262
    %v326 = vpack.c.b16 %v272, %v263
    %v327 = vpack.c.b16 %v273, %v264
    %v328 = vpack.c.b16 %v274, %v265
    %v329 = vpack.c.b16 %v275, %v266
    %vm375 = vcmask 736256
    %v377 = vsel %vm375, %v106, 0
    %v380 = vsel %vm375, %v107, 0
    %vm382 = vcmask 1044480
    %v384 = vsel %vm382, %v321, 0
    %v387 = vsel %vm382, %v322, 0
    %v390 = vsel %vm382, %v323, 0
    %v393 = vsel %vm382, %v324, 0
    %v396 = vsel %vm382, %v325, 0
    %v399 = vsel %vm382, %v326, 0
    %v402 = vsel %vm382, %v327, 0
    %v405 = vsel %vm382, %v328, 0
    %v408 = vsel %vm382, %v329, 0
    %410 = vmatprep.subr.bf16.mxu0 0
    %411 = vmatpush1.bf16.msra.mxu0 0
    %412 = vmatprep.subr.bf16.mxu0 0
    %413 = vmatpush1.bf16.msra.mxu0 0
    %414 = vmatprep.subr.bf16.mxu0 %v387
    %415 = vmatpush1.bf16.msra.mxu0 %v384
    %416 = vmatprep.subr.bf16.mxu0 %v313
    %417 = vmatpush1.bf16.msra.mxu0 %v312
    %418 = vmatprep.subr.bf16.mxu0 %v304
    %419 = vmatpush1.bf16.msra.mxu0 %v303
    %420 = vmatprep.subr.bf16.mxu0 %v295
    %421 = vmatpush1.bf16.msra.mxu0 %v294
    %422 = vmatprep.subr.bf16.mxu0 %v286
    %423 = vmatpush1.bf16.msra.mxu0 %v285
    %424 = vmatprep.subr.bf16.mxu0 %v277
    %425 = vmatpush1.bf16.msra.mxu0 %v276
    %426 = vmatprep.subr.bf16.mxu0 0
    %427 = vmatpush2.bf16.msra.mxu0 0
    %428 = vmatprep.subr.bf16.mxu0 0
    %429 = vmatpush2.bf16.msra.mxu0 0
    %430 = vmatprep.subr.bf16.mxu0 0
    %431 = vmatpush2.bf16.msra.mxu0 0
    %432 = vmatprep.subr.bf16.mxu0 0
    %433 = vmatpush2.bf16.msra.mxu0 0
    %434 = vmatprep.subr.bf16.mxu0 0
    %435 = vmatpush2.bf16.msra.mxu0 0
    %436 = vmatprep.subr.bf16.mxu0 0
    %437 = vmatpush2.bf16.msra.mxu0 0
    %438 = vmatprep.subr.bf16.mxu0 0
    %439 = vmatpush2.bf16.msra.mxu0 0
    %440 = vmatprep.subr.bf16.mxu0 0
    %441 = vmatpush2.bf16.msra.mxu0 0
    %442 = vmatprep.mubr.bf16.mxu0 0
    %443 = vmatmul.mubr.bf16.gmra.mxu0 %v377
    %v444 = vpop.f32.mrf.mxu0
    %v445 = vadd.f32 0.0, %v444
    %v446 = vpop.f32.mrf.mxu0
    %v447 = vadd.f32 0.0, %v446
    %v448 = vpop.f32.mrf.mxu0
    %v449 = vadd.f32 0.0, %v448
    %v450 = vpop.f32.mrf.mxu0
    %v451 = vadd.f32 0.0, %v450
    %452 = vmatprep.mubr.bf16.mxu0 0
    %453 = vmatmul.mubr.bf16.gmra.mxu0 %v380
    %v454 = vpop.f32.mrf.mxu0
    %v455 = vadd.f32 0.0, %v454
    %v456 = vpop.f32.mrf.mxu0
    %v457 = vadd.f32 0.0, %v456
    %v458 = vpop.f32.mrf.mxu0
    %v459 = vpop.f32.mrf.mxu0
    %460 = vdwg.mxu0
    %461 = vmatprep.subr.bf16.mxu0 0
    %462 = vmatpush1.bf16.msra.mxu0 0
    %463 = vmatprep.subr.bf16.mxu0 0
    %464 = vmatpush1.bf16.msra.mxu0 0
    %465 = vmatprep.subr.bf16.mxu0 %v393
    %466 = vmatpush1.bf16.msra.mxu0 %v390
    %467 = vmatprep.subr.bf16.mxu0 %v315
    %468 = vmatpush1.bf16.msra.mxu0 %v314
    %469 = vmatprep.subr.bf16.mxu0 %v306
    %470 = vmatpush1.bf16.msra.mxu0 %v305
    %471 = vmatprep.subr.bf16.mxu0 %v297
    %472 = vmatpush1.bf16.msra.mxu0 %v296
    %473 = vmatprep.subr.bf16.mxu0 %v288
    %474 = vmatpush1.bf16.msra.mxu0 %v287
    %475 = vmatprep.subr.bf16.mxu0 %v279
    %476 = vmatpush1.bf16.msra.mxu0 %v278
    %477 = vmatprep.subr.bf16.mxu0 0
    %478 = vmatpush2.bf16.msra.mxu0 0
    %479 = vmatprep.subr.bf16.mxu0 0
    %480 = vmatpush2.bf16.msra.mxu0 0
    %481 = vmatprep.subr.bf16.mxu0 0
    %482 = vmatpush2.bf16.msra.mxu0 0
    %483 = vmatprep.subr.bf16.mxu0 0
    %484 = vmatpush2.bf16.msra.mxu0 0
    %485 = vmatprep.subr.bf16.mxu0 0
    %486 = vmatpush2.bf16.msra.mxu0 0
    %487 = vmatprep.subr.bf16.mxu0 0
    %488 = vmatpush2.bf16.msra.mxu0 0
    %489 = vmatprep.subr.bf16.mxu0 0
    %490 = vmatpush2.bf16.msra.mxu0 0
    %491 = vmatprep.subr.bf16.mxu0 0
    %492 = vmatpush2.bf16.msra.mxu0 0
    %493 = vmatprep.mubr.bf16.mxu0 0
    %494 = vmatmul.mubr.bf16.gmra.mxu0 %v377
    %v495 = vpop.f32.mrf.mxu0
    %v496 = vadd.f32 0.0, %v495
    %v497 = vpop.f32.mrf.mxu0
    %v498 = vadd.f32 0.0, %v497
    %v499 = vpop.f32.mrf.mxu0
    %v500 = vadd.f32 0.0, %v499
    %v501 = vpop.f32.mrf.mxu0
    %v502 = vadd.f32 0.0, %v501
    %503 = vmatprep.mubr.bf16.mxu0 0
    %504 = vmatmul.mubr.bf16.gmra.mxu0 %v380
    %v505 = vpop.f32.mrf.mxu0
    %v506 = vadd.f32 0.0, %v505
    %v507 = vpop.f32.mrf.mxu0
    %v508 = vadd.f32 0.0, %v507
    %v509 = vpop.f32.mrf.mxu0
    %v510 = vpop.f32.mrf.mxu0
    %511 = vdwg.mxu0
    %512 = vmatprep.subr.bf16.mxu0 0
    %513 = vmatpush1.bf16.msra.mxu0 0
    %514 = vmatprep.subr.bf16.mxu0 0
    %515 = vmatpush1.bf16.msra.mxu0 0
    %516 = vmatprep.subr.bf16.mxu0 %v399
    %517 = vmatpush1.bf16.msra.mxu0 %v396
    %518 = vmatprep.subr.bf16.mxu0 %v317
    %519 = vmatpush1.bf16.msra.mxu0 %v316
    %520 = vmatprep.subr.bf16.mxu0 %v308
    %521 = vmatpush1.bf16.msra.mxu0 %v307
    %522 = vmatprep.subr.bf16.mxu0 %v299
    %523 = vmatpush1.bf16.msra.mxu0 %v298
    %524 = vmatprep.subr.bf16.mxu0 %v290
    %525 = vmatpush1.bf16.msra.mxu0 %v289
    %526 = vmatprep.subr.bf16.mxu0 %v281
    %527 = vmatpush1.bf16.msra.mxu0 %v280
    %528 = vmatprep.subr.bf16.mxu0 0
    %529 = vmatpush2.bf16.msra.mxu0 0
    %530 = vmatprep.subr.bf16.mxu0 0
    %531 = vmatpush2.bf16.msra.mxu0 0
    %532 = vmatprep.subr.bf16.mxu0 0
    %533 = vmatpush2.bf16.msra.mxu0 0
    %534 = vmatprep.subr.bf16.mxu0 0
    %535 = vmatpush2.bf16.msra.mxu0 0
    %536 = vmatprep.subr.bf16.mxu0 0
    %537 = vmatpush2.bf16.msra.mxu0 0
    %538 = vmatprep.subr.bf16.mxu0 0
    %539 = vmatpush2.bf16.msra.mxu0 0
    %540 = vmatprep.subr.bf16.mxu0 0
    %541 = vmatpush2.bf16.msra.mxu0 0
    %542 = vmatprep.subr.bf16.mxu0 0
    %543 = vmatpush2.bf16.msra.mxu0 0
    %544 = vmatprep.mubr.bf16.mxu0 0
    %545 = vmatmul.mubr.bf16.gmra.mxu0 %v377
    %v546 = vpop.f32.mrf.mxu0
    %v547 = vadd.f32 0.0, %v546
    %v548 = vpop.f32.mrf.mxu0
    %v549 = vadd.f32 0.0, %v548
    %v550 = vpop.f32.mrf.mxu0
    %v551 = vadd.f32 0.0, %v550
    %v552 = vpop.f32.mrf.mxu0
    %v553 = vadd.f32 0.0, %v552
    %554 = vmatprep.mubr.bf16.mxu0 0
    %555 = vmatmul.mubr.bf16.gmra.mxu0 %v380
    %v556 = vpop.f32.mrf.mxu0
    %v557 = vadd.f32 0.0, %v556
    %v558 = vpop.f32.mrf.mxu0
    %v559 = vadd.f32 0.0, %v558
    %v560 = vpop.f32.mrf.mxu0
    %v561 = vpop.f32.mrf.mxu0
    %562 = vdwg.mxu0
    %563 = vmatprep.subr.bf16.mxu0 0
    %564 = vmatpush1.bf16.msra.mxu0 0
    %565 = vmatprep.subr.bf16.mxu0 0
    %566 = vmatpush1.bf16.msra.mxu0 0
    %567 = vmatprep.subr.bf16.mxu0 %v405
    %568 = vmatpush1.bf16.msra.mxu0 %v402
    %569 = vmatprep.subr.bf16.mxu0 %v319
    %570 = vmatpush1.bf16.msra.mxu0 %v318
    %571 = vmatprep.subr.bf16.mxu0 %v310
    %572 = vmatpush1.bf16.msra.mxu0 %v309
    %573 = vmatprep.subr.bf16.mxu0 %v301
    %574 = vmatpush1.bf16.msra.mxu0 %v300
    %575 = vmatprep.subr.bf16.mxu0 %v292
    %576 = vmatpush1.bf16.msra.mxu0 %v291
    %577 = vmatprep.subr.bf16.mxu0 %v283
    %578 = vmatpush1.bf16.msra.mxu0 %v282
    %579 = vmatprep.subr.bf16.mxu0 0
    %580 = vmatpush2.bf16.msra.mxu0 0
    %581 = vmatprep.subr.bf16.mxu0 0
    %582 = vmatpush2.bf16.msra.mxu0 0
    %583 = vmatprep.subr.bf16.mxu0 0
    %584 = vmatpush2.bf16.msra.mxu0 0
    %585 = vmatprep.subr.bf16.mxu0 0
    %586 = vmatpush2.bf16.msra.mxu0 0
    %587 = vmatprep.subr.bf16.mxu0 0
    %588 = vmatpush2.bf16.msra.mxu0 0
    %589 = vmatprep.subr.bf16.mxu0 0
    %590 = vmatpush2.bf16.msra.mxu0 0
    %591 = vmatprep.subr.bf16.mxu0 0
    %592 = vmatpush2.bf16.msra.mxu0 0
    %593 = vmatprep.subr.bf16.mxu0 0
    %594 = vmatpush2.bf16.msra.mxu0 0
    %595 = vmatprep.mubr.bf16.mxu0 0
    %596 = vmatmul.mubr.bf16.gmra.mxu0 %v377
    %v597 = vpop.f32.mrf.mxu0
    %v598 = vadd.f32 0.0, %v597
    %v599 = vpop.f32.mrf.mxu0
    %v600 = vadd.f32 0.0, %v599
    %v601 = vpop.f32.mrf.mxu0
    %v602 = vadd.f32 0.0, %v601
    %v603 = vpop.f32.mrf.mxu0
    %v604 = vadd.f32 0.0, %v603
    %605 = vmatprep.mubr.bf16.mxu0 0
    %606 = vmatmul.mubr.bf16.gmra.mxu0 %v380
    %v607 = vpop.f32.mrf.mxu0
    %v608 = vadd.f32 0.0, %v607
    %v609 = vpop.f32.mrf.mxu0
    %v610 = vadd.f32 0.0, %v609
    %v611 = vpop.f32.mrf.mxu0
    %v612 = vpop.f32.mrf.mxu0
    %613 = vdwg.mxu0
    %614 = vmatprep.subr.bf16.mxu0 0
    %615 = vmatpush1.bf16.msra.mxu0 0
    %616 = vmatprep.subr.bf16.mxu0 0
    %617 = vmatpush1.bf16.msra.mxu0 0
    %618 = vmatprep.subr.bf16.mxu0 0
    %619 = vmatpush1.bf16.msra.mxu0 %v408
    %620 = vmatprep.subr.bf16.mxu0 0
    %621 = vmatpush1.bf16.msra.mxu0 %v320
    %622 = vmatprep.subr.bf16.mxu0 0
    %623 = vmatpush1.bf16.msra.mxu0 %v311
    %624 = vmatprep.subr.bf16.mxu0 0
    %625 = vmatpush1.bf16.msra.mxu0 %v302
    %626 = vmatprep.subr.bf16.mxu0 0
    %627 = vmatpush1.bf16.msra.mxu0 %v293
    %628 = vmatprep.subr.bf16.mxu0 0
    %629 = vmatpush1.bf16.msra.mxu0 %v284
    %630 = vmatprep.subr.bf16.mxu0 0
    %631 = vmatpush2.bf16.msra.mxu0 0
    %632 = vmatprep.subr.bf16.mxu0 0
    %633 = vmatpush2.bf16.msra.mxu0 0
    %634 = vmatprep.subr.bf16.mxu0 0
    %635 = vmatpush2.bf16.msra.mxu0 0
    %636 = vmatprep.subr.bf16.mxu0 0
    %637 = vmatpush2.bf16.msra.mxu0 0
    %638 = vmatprep.subr.bf16.mxu0 0
    %639 = vmatpush2.bf16.msra.mxu0 0
    %640 = vmatprep.subr.bf16.mxu0 0
    %641 = vmatpush2.bf16.msra.mxu0 0
    %642 = vmatprep.subr.bf16.mxu0 0
    %643 = vmatpush2.bf16.msra.mxu0 0
    %644 = vmatprep.subr.bf16.mxu0 0
    %645 = vmatpush2.bf16.msra.mxu0 0
    %646 = vmatprep.mubr.bf16.mxu0 0
    %647 = vmatmul.mubr.bf16.gmra.mxu0 %v377
    %v648 = vpop.f32.mrf.mxu0
    %v649 = vadd.f32 0.0, %v648
    %v650 = vpop.f32.mrf.mxu0
    %v651 = vpop.f32.mrf.mxu0
    %v652 = vadd.f32 0.0, %v651
    %v653 = vpop.f32.mrf.mxu0
    %654 = vmatprep.mubr.bf16.mxu0 0
    %655 = vmatmul.mubr.bf16.gmra.mxu0 %v380
    %v656 = vpop.f32.mrf.mxu0
    %v657 = vadd.f32 0.0, %v656
    %v658 = vpop.f32.mrf.mxu0
    %v659 = vpop.f32.mrf.mxu0
    %v660 = vpop.f32.mrf.mxu0
    %661 = vdwg.mxu0
    %v662 = vadd.f32 %v445, %v447
    %v663 = vadd.f32 %v662, %v496
    %v664 = vadd.f32 %v663, %v498
    %v665 = vadd.f32 %v664, %v547
    %v666 = vadd.f32 %v665, %v549
    %v667 = vadd.f32 %v666, %v598
    %v668 = vadd.f32 %v667, %v600
    %v669 = vadd.f32 %v668, %v649
    %670 = vadd.xlane.f32.xlu0 %v669
    %v671 = vpop.xlane.xlu0 %670
    %v672 = vadd.f32 %v449, %v451
    %v673 = vadd.f32 %v672, %v500
    %v674 = vadd.f32 %v673, %v502
    %v675 = vadd.f32 %v674, %v551
    %v676 = vadd.f32 %v675, %v553
    %v677 = vadd.f32 %v676, %v602
    %v678 = vadd.f32 %v677, %v604
    %v679 = vadd.f32 %v678, %v652
    %680 = vadd.xlane.f32.xlu0 %v679
    %v681 = vpop.xlane.xlu0 %680
    %vm682 = vcmask 1043456
    %v683 = vsel %vm682, %v455, 0.0
    %v684 = vsel %vm682, %v457, 0.0
    %v685 = vadd.f32 %v683, %v684
    %v686 = vsel %vm682, %v506, 0.0
    %v687 = vadd.f32 %v685, %v686
    %v688 = vsel %vm682, %v508, 0.0
    %v689 = vadd.f32 %v687, %v688
    %v690 = vsel %vm682, %v557, 0.0
    %v691 = vadd.f32 %v689, %v690
    %v692 = vsel %vm682, %v559, 0.0
    %v693 = vadd.f32 %v691, %v692
    %v694 = vsel %vm682, %v608, 0.0
    %v695 = vadd.f32 %v693, %v694
    %v696 = vsel %vm682, %v610, 0.0
    %v697 = vadd.f32 %v695, %v696
    %v698 = vsel %vm682, %v657, 0.0
    %v699 = vadd.f32 %v697, %v698
    %700 = vadd.xlane.f32.xlu0 %v699
    %v701 = vpop.xlane.xlu0 %700
    %v702 = vmul.f32 %v445, %v445
    %v703 = vmul.f32 %v447, %v447
    %v704 = vmul.f32 %v496, %v496
    %v705 = vmul.f32 %v498, %v498
    %v706 = vmul.f32 %v547, %v547
    %v707 = vmul.f32 %v549, %v549
    %v708 = vmul.f32 %v598, %v598
    %v709 = vmul.f32 %v600, %v600
    %v710 = vmul.f32 %v649, %v649
    %v711 = vmul.f32 %v449, %v449
    %v712 = vmul.f32 %v451, %v451
    %v713 = vmul.f32 %v500, %v500
    %v714 = vmul.f32 %v502, %v502
    %v715 = vmul.f32 %v551, %v551
    %v716 = vmul.f32 %v553, %v553
    %v717 = vmul.f32 %v602, %v602
    %v718 = vmul.f32 %v604, %v604
    %v719 = vmul.f32 %v652, %v652
    %v720 = vmul.f32 %v455, %v455
    %v721 = vmul.f32 %v457, %v457
    %v722 = vmul.f32 %v506, %v506
    %v723 = vmul.f32 %v508, %v508
    %v724 = vmul.f32 %v557, %v557
    %v725 = vmul.f32 %v559, %v559
    %v726 = vmul.f32 %v608, %v608
    %v727 = vmul.f32 %v610, %v610
    %v728 = vmul.f32 %v657, %v657
    %v729 = vadd.f32 %v702, %v703
    %v730 = vadd.f32 %v729, %v704
    %v731 = vadd.f32 %v730, %v705
    %v732 = vadd.f32 %v731, %v706
    %v733 = vadd.f32 %v732, %v707
    %v734 = vadd.f32 %v733, %v708
    %v735 = vadd.f32 %v734, %v709
    %v736 = vadd.f32 %v735, %v710
    %737 = vadd.xlane.f32.xlu0 %v736
    %v738 = vpop.xlane.xlu0 %737
    %v739 = vadd.f32 %v711, %v712
    %v740 = vadd.f32 %v739, %v713
    %v741 = vadd.f32 %v740, %v714
    %v742 = vadd.f32 %v741, %v715
    %v743 = vadd.f32 %v742, %v716
    %v744 = vadd.f32 %v743, %v717
    %v745 = vadd.f32 %v744, %v718
    %v746 = vadd.f32 %v745, %v719
    %747 = vadd.xlane.f32.xlu0 %v746
    %v748 = vpop.xlane.xlu0 %747
    %v749 = vsel %vm682, %v720, 0.0
    %v750 = vsel %vm682, %v721, 0.0
    %v751 = vadd.f32 %v749, %v750
    %v752 = vsel %vm682, %v722, 0.0
    %v753 = vadd.f32 %v751, %v752
    %v754 = vsel %vm682, %v723, 0.0
    %v755 = vadd.f32 %v753, %v754
    %v756 = vsel %vm682, %v724, 0.0
    %v757 = vadd.f32 %v755, %v756
    %v758 = vsel %vm682, %v725, 0.0
    %v759 = vadd.f32 %v757, %v758
    %v760 = vsel %vm682, %v726, 0.0
    %v761 = vadd.f32 %v759, %v760
    %v762 = vsel %vm682, %v727, 0.0
    %v763 = vadd.f32 %v761, %v762
    %v764 = vsel %vm682, %v728, 0.0
    %v765 = vadd.f32 %v763, %v764
    %766 = vadd.xlane.f32.xlu0 %v765
    %v767 = vpop.xlane.xlu0 %766
    %v768 = vmul.f32 %v671, 0.0015432099
    %v769 = vmul.f32 %v681, 0.0015432099
    %v770 = vmul.f32 %v701, 0.0015432099
    %v771 = vmul.f32 %v738, 0.0015432099
    %v772 = vmul.f32 %v748, 0.0015432099
    %v773 = vmul.f32 %v767, 0.0015432099
    %v774 = vmul.f32 %v768, %v768
    %v775 = vmul.f32 %v769, %v769
    %v776 = vmul.f32 %v770, %v770
    %v777 = vsub.f32 %v771, %v774
    %v778 = vsub.f32 %v772, %v775
    %v779 = vsub.f32 %v773, %v776
    %v780 = vadd.f32 %v777, 1e-05
    %v781 = vadd.f32 %v778, 1e-05
    %v782 = vadd.f32 %v779, 1e-05
    %v783 = vrsqrt.pop %v780
    %v784 = vrsqrt.pop %v781
    %v785 = vrsqrt.pop %v782
    %v786 = vmul.f32 %v94, %v783
    %v787 = vmul.f32 %v95, %v784
    %v788 = vmul.f32 %v96, %v785
    %v789 = vmul.f32 %v768, %v786
    %v790 = vmul.f32 %v769, %v787
    %v791 = vmul.f32 %v770, %v788
    %v792 = vsub.f32 %v97, %v789
    %v793 = vsub.f32 %v98, %v790
    %v794 = vsub.f32 %v99, %v791
    %796 = vset.pattern.permute.xlu0 0
    %797 = vperm.xlu0 %796, %v786
    %v798 = vpop.permute.xlu0 %797
    %801 = vset.pattern.permute.xlu0 0
    %802 = vperm.xlu0 %801, %v787
    %v803 = vpop.permute.xlu0 %802
    %806 = vset.pattern.permute.xlu0 0
    %807 = vperm.xlu0 %806, %v788
    %v808 = vpop.permute.xlu0 %807
    %v810 = vmul.f32 %v445, %v798
    %v811 = vmul.f32 %v449, %v803
    %v812 = vmul.f32 %v455, %v808
    %814 = vset.pattern.permute.xlu0 0
    %815 = vperm.xlu0 %814, %v792
    %v816 = vpop.permute.xlu0 %815
    %819 = vset.pattern.permute.xlu0 0
    %820 = vperm.xlu0 %819, %v793
    %v821 = vpop.permute.xlu0 %820
    %824 = vset.pattern.permute.xlu0 0
    %825 = vperm.xlu0 %824, %v794
    %v826 = vpop.permute.xlu0 %825
    %v828 = vadd.f32 %v810, %v816
    %v829 = vadd.f32 %v811, %v821
    %v830 = vadd.f32 %v812, %v826
    %v831 = vmax.f32 %v828, 0.0
    %v832 = vmax.f32 %v829, 0.0
    %v833 = vmax.f32 %v830, 0.0
    %v834 = vmul.f32 %v447, %v798
    %v835 = vmul.f32 %v451, %v803
    %v836 = vmul.f32 %v457, %v808
    %v837 = vadd.f32 %v834, %v816
    %v838 = vadd.f32 %v835, %v821
    %v839 = vadd.f32 %v836, %v826
    %v840 = vmax.f32 %v837, 0.0
    %v841 = vmax.f32 %v838, 0.0
    %v842 = vmax.f32 %v839, 0.0
    %v843 = vmax.f32 %v831, %v840
    %v844 = vmax.f32 %v832, %v841
    %v845 = vmax.f32 %v833, %v842
    %v846 = vmul.f32 %v496, %v798
    %v847 = vmul.f32 %v500, %v803
    %v848 = vmul.f32 %v506, %v808
    %v849 = vadd.f32 %v846, %v816
    %v850 = vadd.f32 %v847, %v821
    %v851 = vadd.f32 %v848, %v826
    %v852 = vmax.f32 %v849, 0.0
    %v853 = vmax.f32 %v850, 0.0
    %v854 = vmax.f32 %v851, 0.0
    %v855 = vmax.f32 %v843, %v852
    %v856 = vmax.f32 %v844, %v853
    %v857 = vmax.f32 %v845, %v854
    %v858 = vmul.f32 %v498, %v798
    %v859 = vmul.f32 %v502, %v803
    %v860 = vmul.f32 %v508, %v808
    %v861 = vadd.f32 %v858, %v816
    %v862 = vadd.f32 %v859, %v821
    %v863 = vadd.f32 %v860, %v826
    %v864 = vmax.f32 %v861, 0.0
    %v865 = vmax.f32 %v862, 0.0
    %v866 = vmax.f32 %v863, 0.0
    %v867 = vmax.f32 %v855, %v864
    %v868 = vmax.f32 %v856, %v865
    %v869 = vmax.f32 %v857, %v866
    %v870 = vmul.f32 %v547, %v798
    %v871 = vmul.f32 %v551, %v803
    %v872 = vmul.f32 %v557, %v808
    %v873 = vadd.f32 %v870, %v816
    %v874 = vadd.f32 %v871, %v821
    %v875 = vadd.f32 %v872, %v826
    %v876 = vmax.f32 %v873, 0.0
    %v877 = vmax.f32 %v874, 0.0
    %v878 = vmax.f32 %v875, 0.0
    %v879 = vmax.f32 %v867, %v876
    %v880 = vmax.f32 %v868, %v877
    %v881 = vmax.f32 %v869, %v878
    %v882 = vmul.f32 %v549, %v798
    %v883 = vmul.f32 %v553, %v803
    %v884 = vmul.f32 %v559, %v808
    %v885 = vadd.f32 %v882, %v816
    %v886 = vadd.f32 %v883, %v821
    %v887 = vadd.f32 %v884, %v826
    %v888 = vmax.f32 %v885, 0.0
    %v889 = vmax.f32 %v886, 0.0
    %v890 = vmax.f32 %v887, 0.0
    %v891 = vmax.f32 %v879, %v888
    %v892 = vmax.f32 %v880, %v889
    %v893 = vmax.f32 %v881, %v890
    %v894 = vmul.f32 %v598, %v798
    %v895 = vmul.f32 %v602, %v803
    %v896 = vmul.f32 %v608, %v808
    %v897 = vadd.f32 %v894, %v816
    %v898 = vadd.f32 %v895, %v821
    %v899 = vadd.f32 %v896, %v826
    %v900 = vmax.f32 %v897, 0.0
    %v901 = vmax.f32 %v898, 0.0
    %v902 = vmax.f32 %v899, 0.0
    %v903 = vmax.f32 %v891, %v900
    %v904 = vmax.f32 %v892, %v901
    %v905 = vmax.f32 %v893, %v902
    %v906 = vmul.f32 %v600, %v798
    %v907 = vmul.f32 %v604, %v803
    %v908 = vmul.f32 %v610, %v808
    %v909 = vadd.f32 %v906, %v816
    %v910 = vadd.f32 %v907, %v821
    %v911 = vadd.f32 %v908, %v826
    %v912 = vmax.f32 %v909, 0.0
    %v913 = vmax.f32 %v910, 0.0
    %v914 = vmax.f32 %v911, 0.0
    %v915 = vmax.f32 %v903, %v912
    %v916 = vmax.f32 %v904, %v913
    %v917 = vmax.f32 %v905, %v914
    %v918 = vmul.f32 %v649, %v798
    %v919 = vmul.f32 %v652, %v803
    %v920 = vmul.f32 %v657, %v808
    %v921 = vadd.f32 %v918, %v816
    %v922 = vadd.f32 %v919, %v821
    %v923 = vadd.f32 %v920, %v826
    %v924 = vmax.f32 %v921, 0.0
    %v925 = vmax.f32 %v922, 0.0
    %v926 = vmax.f32 %v923, 0.0
    %v927 = vmax.f32 %v915, %v924
    %v928 = vmax.f32 %v916, %v925
    %v929 = vmax.f32 %v917, %v926
    %v930 = vld [vmem:[%s5] sm:$0x1]
    %v931 = vpack.c.bf16 %v927, %v927
    %v932 = vld [vmem:[%s4] sm:$0xf]
    %v933 = vld [vmem:[%s4 + $0x4] sm:$0xf]
    %v934 = vld [vmem:[%s4 + $0x8] sm:$0xf]
    %v935 = vld [vmem:[%s4 + $0xc] sm:$0xf]
    %v936 = vld [vmem:[%s4 + $0x10] sm:$0x3]
    %v942 = vunpack.c.l.b16 %v932
    %v943 = vunpack.c.l.b16 %v933
    %v944 = vunpack.c.l.b16 %v934
    %v945 = vunpack.c.l.b16 %v935
    %v946 = vunpack.c.l.b16 %v936
    %v947 = vpack.c.b16 %v943, %v942
    %v948 = vpack.c.b16 %v945, %v944
    %v949 = vpack.c.b16 %v946, %v946
    %vm952 = vcmask 293888
    %v954 = vsel %vm952, %v931, 0
    %vm956 = vcmask 1041408
    %v958 = vsel %vm956, %v949, 0
    %960 = vmatprep.subr.bf16.mxu0 0
    %961 = vmatpush1.bf16.msra.mxu0 0
    %962 = vmatprep.subr.bf16.mxu0 0
    %963 = vmatpush1.bf16.msra.mxu0 0
    %964 = vmatprep.subr.bf16.mxu0 0
    %965 = vmatpush1.bf16.msra.mxu0 0
    %966 = vmatprep.subr.bf16.mxu0 0
    %967 = vmatpush1.bf16.msra.mxu0 0
    %968 = vmatprep.subr.bf16.mxu0 0
    %969 = vmatpush1.bf16.msra.mxu0 0
    %970 = vmatprep.subr.bf16.mxu0 0
    %971 = vmatpush1.bf16.msra.mxu0 %v958
    %972 = vmatprep.subr.bf16.mxu0 0
    %973 = vmatpush1.bf16.msra.mxu0 %v948
    %974 = vmatprep.subr.bf16.mxu0 0
    %975 = vmatpush1.bf16.msra.mxu0 %v947
    %976 = vmatprep.subr.bf16.mxu0 0
    %977 = vmatpush2.bf16.msra.mxu0 0
    %978 = vmatprep.subr.bf16.mxu0 0
    %979 = vmatpush2.bf16.msra.mxu0 0
    %980 = vmatprep.subr.bf16.mxu0 0
    %981 = vmatpush2.bf16.msra.mxu0 0
    %982 = vmatprep.subr.bf16.mxu0 0
    %983 = vmatpush2.bf16.msra.mxu0 0
    %984 = vmatprep.subr.bf16.mxu0 0
    %985 = vmatpush2.bf16.msra.mxu0 0
    %986 = vmatprep.subr.bf16.mxu0 0
    %987 = vmatpush2.bf16.msra.mxu0 0
    %988 = vmatprep.subr.bf16.mxu0 0
    %989 = vmatpush2.bf16.msra.mxu0 0
    %990 = vmatprep.subr.bf16.mxu0 0
    %991 = vmatpush2.bf16.msra.mxu0 0
    %992 = vmatprep.mubr.bf16.mxu0 0
    %993 = vmatmul.mubr.bf16.gmra.mxu0 %v954
    %v994 = vpop.f32.mrf.mxu0
    %v995 = vadd.f32 0.0, %v994
    %v996 = vpop.f32.mrf.mxu0
    %v997 = vpop.f32.mrf.mxu0
    %v998 = vpop.f32.mrf.mxu0
    %999 = vdwg.mxu0
    %v1000 = vadd.f32 %v930, %v995
    %s1001 = scalar_lea.vmem %s4, 20
    %v1002 = vld [vmem:[%s1001] sm:$0xf]
    %v1003 = vld [vmem:[%s1001 + $0x4] sm:$0xf]
    %v1004 = vld [vmem:[%s1001 + $0x8] sm:$0xf]
    %v1005 = vld [vmem:[%s1001 + $0xc] sm:$0xf]
    %v1006 = vld [vmem:[%s1001 + $0x10] sm:$0x3]
    %v1007 = vshrl.u32 %v931, 16
    %v1014 = vunpack.c.l.b16 %v1002
    %v1015 = vunpack.c.l.b16 %v1003
    %v1016 = vunpack.c.l.b16 %v1004
    %v1017 = vunpack.c.l.b16 %v1005
    %v1018 = vunpack.c.l.b16 %v1006
    %v1019 = vpack.c.b16 %v1015, %v1014
    %v1020 = vpack.c.b16 %v1017, %v1016
    %v1021 = vpack.c.b16 %v1018, %v1018
    %v1025 = vsel %vm952, %v1007, 0
    %v1028 = vsel %vm956, %v1021, 0
    %1030 = vmatprep.subr.bf16.mxu0 0
    %1031 = vmatpush1.bf16.msra.mxu0 0
    %1032 = vmatprep.subr.bf16.mxu0 0
    %1033 = vmatpush1.bf16.msra.mxu0 0
    %1034 = vmatprep.subr.bf16.mxu0 0
    %1035 = vmatpush1.bf16.msra.mxu0 0
    %1036 = vmatprep.subr.bf16.mxu0 0
    %1037 = vmatpush1.bf16.msra.mxu0 0
    %1038 = vmatprep.subr.bf16.mxu0 0
    %1039 = vmatpush1.bf16.msra.mxu0 0
    %1040 = vmatprep.subr.bf16.mxu0 0
    %1041 = vmatpush1.bf16.msra.mxu0 %v1028
    %1042 = vmatprep.subr.bf16.mxu0 0
    %1043 = vmatpush1.bf16.msra.mxu0 %v1020
    %1044 = vmatprep.subr.bf16.mxu0 0
    %1045 = vmatpush1.bf16.msra.mxu0 %v1019
    %1046 = vmatprep.subr.bf16.mxu0 0
    %1047 = vmatpush2.bf16.msra.mxu0 0
    %1048 = vmatprep.subr.bf16.mxu0 0
    %1049 = vmatpush2.bf16.msra.mxu0 0
    %1050 = vmatprep.subr.bf16.mxu0 0
    %1051 = vmatpush2.bf16.msra.mxu0 0
    %1052 = vmatprep.subr.bf16.mxu0 0
    %1053 = vmatpush2.bf16.msra.mxu0 0
    %1054 = vmatprep.subr.bf16.mxu0 0
    %1055 = vmatpush2.bf16.msra.mxu0 0
    %1056 = vmatprep.subr.bf16.mxu0 0
    %1057 = vmatpush2.bf16.msra.mxu0 0
    %1058 = vmatprep.subr.bf16.mxu0 0
    %1059 = vmatpush2.bf16.msra.mxu0 0
    %1060 = vmatprep.subr.bf16.mxu0 0
    %1061 = vmatpush2.bf16.msra.mxu0 0
    %1062 = vmatprep.mubr.bf16.mxu0 0
    %1063 = vmatmul.mubr.bf16.gmra.mxu0 %v1025
    %v1064 = vpop.f32.mrf.mxu0
    %v1065 = vadd.f32 0.0, %v1064
    %v1066 = vpop.f32.mrf.mxu0
    %v1067 = vpop.f32.mrf.mxu0
    %v1068 = vpop.f32.mrf.mxu0
    %1069 = vdwg.mxu0
    %v1070 = vadd.f32 %v1000, %v1065
    %s1071 = scalar_lea.vmem %s4, 40
    %v1072 = vld [vmem:[%s1071] sm:$0xf]
    %v1073 = vld [vmem:[%s1071 + $0x4] sm:$0xf]
    %v1074 = vld [vmem:[%s1071 + $0x8] sm:$0xf]
    %v1075 = vld [vmem:[%s1071 + $0xc] sm:$0xf]
    %v1076 = vld [vmem:[%s1071 + $0x10] sm:$0x3]
    %v1078 = vrot.slane %v931, 1
    %v1084 = vunpack.c.l.b16 %v1072
    %v1085 = vunpack.c.l.b16 %v1073
    %v1086 = vunpack.c.l.b16 %v1074
    %v1087 = vunpack.c.l.b16 %v1075
    %v1088 = vunpack.c.l.b16 %v1076
    %v1089 = vpack.c.b16 %v1085, %v1084
    %v1090 = vpack.c.b16 %v1087, %v1086
    %v1091 = vpack.c.b16 %v1088, %v1088
    %v1095 = vsel %vm952, %v1078, 0
    %v1098 = vsel %vm956, %v1091, 0
    %1100 = vmatprep.subr.bf16.mxu0 0
    %1101 = vmatpush1.bf16.msra.mxu0 0
    %1102 = vmatprep.subr.bf16.mxu0 0
    %1103 = vmatpush1.bf16.msra.mxu0 0
    %1104 = vmatprep.subr.bf16.mxu0 0
    %1105 = vmatpush1.bf16.msra.mxu0 0
    %1106 = vmatprep.subr.bf16.mxu0 0
    %1107 = vmatpush1.bf16.msra.mxu0 0
    %1108 = vmatprep.subr.bf16.mxu0 0
    %1109 = vmatpush1.bf16.msra.mxu0 0
    %1110 = vmatprep.subr.bf16.mxu0 0
    %1111 = vmatpush1.bf16.msra.mxu0 %v1098
    %1112 = vmatprep.subr.bf16.mxu0 0
    %1113 = vmatpush1.bf16.msra.mxu0 %v1090
    %1114 = vmatprep.subr.bf16.mxu0 0
    %1115 = vmatpush1.bf16.msra.mxu0 %v1089
    %1116 = vmatprep.subr.bf16.mxu0 0
    %1117 = vmatpush2.bf16.msra.mxu0 0
    %1118 = vmatprep.subr.bf16.mxu0 0
    %1119 = vmatpush2.bf16.msra.mxu0 0
    %1120 = vmatprep.subr.bf16.mxu0 0
    %1121 = vmatpush2.bf16.msra.mxu0 0
    %1122 = vmatprep.subr.bf16.mxu0 0
    %1123 = vmatpush2.bf16.msra.mxu0 0
    %1124 = vmatprep.subr.bf16.mxu0 0
    %1125 = vmatpush2.bf16.msra.mxu0 0
    %1126 = vmatprep.subr.bf16.mxu0 0
    %1127 = vmatpush2.bf16.msra.mxu0 0
    %1128 = vmatprep.subr.bf16.mxu0 0
    %1129 = vmatpush2.bf16.msra.mxu0 0
    %1130 = vmatprep.subr.bf16.mxu0 0
    %1131 = vmatpush2.bf16.msra.mxu0 0
    %1132 = vmatprep.mubr.bf16.mxu0 0
    %1133 = vmatmul.mubr.bf16.gmra.mxu0 %v1095
    %v1134 = vpop.f32.mrf.mxu0
    %v1135 = vadd.f32 0.0, %v1134
    %v1136 = vpop.f32.mrf.mxu0
    %v1137 = vpop.f32.mrf.mxu0
    %v1138 = vpop.f32.mrf.mxu0
    %1139 = vdwg.mxu0
    %v1140 = vadd.f32 %v1070, %v1135
    %s1141 = scalar_lea.vmem %s4, 60
    %v1142 = vld [vmem:[%s1141] sm:$0xf]
    %v1143 = vld [vmem:[%s1141 + $0x4] sm:$0xf]
    %v1144 = vld [vmem:[%s1141 + $0x8] sm:$0xf]
    %v1145 = vld [vmem:[%s1141 + $0xc] sm:$0xf]
    %v1146 = vld [vmem:[%s1141 + $0x10] sm:$0x3]
    %v1147 = vrot.slane %v1007, 1
    %v1153 = vunpack.c.l.b16 %v1142
    %v1154 = vunpack.c.l.b16 %v1143
    %v1155 = vunpack.c.l.b16 %v1144
    %v1156 = vunpack.c.l.b16 %v1145
    %v1157 = vunpack.c.l.b16 %v1146
    %v1158 = vpack.c.b16 %v1154, %v1153
    %v1159 = vpack.c.b16 %v1156, %v1155
    %v1160 = vpack.c.b16 %v1157, %v1157
    %v1164 = vsel %vm952, %v1147, 0
    %v1167 = vsel %vm956, %v1160, 0
    %1169 = vmatprep.subr.bf16.mxu0 0
    %1170 = vmatpush1.bf16.msra.mxu0 0
    %1171 = vmatprep.subr.bf16.mxu0 0
    %1172 = vmatpush1.bf16.msra.mxu0 0
    %1173 = vmatprep.subr.bf16.mxu0 0
    %1174 = vmatpush1.bf16.msra.mxu0 0
    %1175 = vmatprep.subr.bf16.mxu0 0
    %1176 = vmatpush1.bf16.msra.mxu0 0
    %1177 = vmatprep.subr.bf16.mxu0 0
    %1178 = vmatpush1.bf16.msra.mxu0 0
    %1179 = vmatprep.subr.bf16.mxu0 0
    %1180 = vmatpush1.bf16.msra.mxu0 %v1167
    %1181 = vmatprep.subr.bf16.mxu0 0
    %1182 = vmatpush1.bf16.msra.mxu0 %v1159
    %1183 = vmatprep.subr.bf16.mxu0 0
    %1184 = vmatpush1.bf16.msra.mxu0 %v1158
    %1185 = vmatprep.subr.bf16.mxu0 0
    %1186 = vmatpush2.bf16.msra.mxu0 0
    %1187 = vmatprep.subr.bf16.mxu0 0
    %1188 = vmatpush2.bf16.msra.mxu0 0
    %1189 = vmatprep.subr.bf16.mxu0 0
    %1190 = vmatpush2.bf16.msra.mxu0 0
    %1191 = vmatprep.subr.bf16.mxu0 0
    %1192 = vmatpush2.bf16.msra.mxu0 0
    %1193 = vmatprep.subr.bf16.mxu0 0
    %1194 = vmatpush2.bf16.msra.mxu0 0
    %1195 = vmatprep.subr.bf16.mxu0 0
    %1196 = vmatpush2.bf16.msra.mxu0 0
    %1197 = vmatprep.subr.bf16.mxu0 0
    %1198 = vmatpush2.bf16.msra.mxu0 0
    %1199 = vmatprep.subr.bf16.mxu0 0
    %1200 = vmatpush2.bf16.msra.mxu0 0
    %1201 = vmatprep.mubr.bf16.mxu0 0
    %1202 = vmatmul.mubr.bf16.gmra.mxu0 %v1164
    %v1203 = vpop.f32.mrf.mxu0
    %v1204 = vadd.f32 0.0, %v1203
    %v1205 = vpop.f32.mrf.mxu0
    %v1206 = vpop.f32.mrf.mxu0
    %v1207 = vpop.f32.mrf.mxu0
    %1208 = vdwg.mxu0
    %v1209 = vadd.f32 %v1140, %v1204
    %s1210 = scalar_lea.vmem %s4, 80
    %v1211 = vld [vmem:[%s1210] sm:$0xf]
    %v1212 = vld [vmem:[%s1210 + $0x4] sm:$0xf]
    %v1213 = vld [vmem:[%s1210 + $0x8] sm:$0xf]
    %v1214 = vld [vmem:[%s1210 + $0xc] sm:$0xf]
    %v1215 = vld [vmem:[%s1210 + $0x10] sm:$0x3]
    %v1216 = vrot.slane %v931, 2
    %v1222 = vunpack.c.l.b16 %v1211
    %v1223 = vunpack.c.l.b16 %v1212
    %v1224 = vunpack.c.l.b16 %v1213
    %v1225 = vunpack.c.l.b16 %v1214
    %v1226 = vunpack.c.l.b16 %v1215
    %v1227 = vpack.c.b16 %v1223, %v1222
    %v1228 = vpack.c.b16 %v1225, %v1224
    %v1229 = vpack.c.b16 %v1226, %v1226
    %v1233 = vsel %vm952, %v1216, 0
    %v1236 = vsel %vm956, %v1229, 0
    %1238 = vmatprep.subr.bf16.mxu0 0
    %1239 = vmatpush1.bf16.msra.mxu0 0
    %1240 = vmatprep.subr.bf16.mxu0 0
    %1241 = vmatpush1.bf16.msra.mxu0 0
    %1242 = vmatprep.subr.bf16.mxu0 0
    %1243 = vmatpush1.bf16.msra.mxu0 0
    %1244 = vmatprep.subr.bf16.mxu0 0
    %1245 = vmatpush1.bf16.msra.mxu0 0
    %1246 = vmatprep.subr.bf16.mxu0 0
    %1247 = vmatpush1.bf16.msra.mxu0 0
    %1248 = vmatprep.subr.bf16.mxu0 0
    %1249 = vmatpush1.bf16.msra.mxu0 %v1236
    %1250 = vmatprep.subr.bf16.mxu0 0
    %1251 = vmatpush1.bf16.msra.mxu0 %v1228
    %1252 = vmatprep.subr.bf16.mxu0 0
    %1253 = vmatpush1.bf16.msra.mxu0 %v1227
    %1254 = vmatprep.subr.bf16.mxu0 0
    %1255 = vmatpush2.bf16.msra.mxu0 0
    %1256 = vmatprep.subr.bf16.mxu0 0
    %1257 = vmatpush2.bf16.msra.mxu0 0
    %1258 = vmatprep.subr.bf16.mxu0 0
    %1259 = vmatpush2.bf16.msra.mxu0 0
    %1260 = vmatprep.subr.bf16.mxu0 0
    %1261 = vmatpush2.bf16.msra.mxu0 0
    %1262 = vmatprep.subr.bf16.mxu0 0
    %1263 = vmatpush2.bf16.msra.mxu0 0
    %1264 = vmatprep.subr.bf16.mxu0 0
    %1265 = vmatpush2.bf16.msra.mxu0 0
    %1266 = vmatprep.subr.bf16.mxu0 0
    %1267 = vmatpush2.bf16.msra.mxu0 0
    %1268 = vmatprep.subr.bf16.mxu0 0
    %1269 = vmatpush2.bf16.msra.mxu0 0
    %1270 = vmatprep.mubr.bf16.mxu0 0
    %1271 = vmatmul.mubr.bf16.gmra.mxu0 %v1233
    %v1272 = vpop.f32.mrf.mxu0
    %v1273 = vadd.f32 0.0, %v1272
    %v1274 = vpop.f32.mrf.mxu0
    %v1275 = vpop.f32.mrf.mxu0
    %v1276 = vpop.f32.mrf.mxu0
    %1277 = vdwg.mxu0
    %v1278 = vadd.f32 %v1209, %v1273
    %s1279 = scalar_lea.vmem %s4, 100
    %v1280 = vld [vmem:[%s1279] sm:$0xf]
    %v1281 = vld [vmem:[%s1279 + $0x4] sm:$0xf]
    %v1282 = vld [vmem:[%s1279 + $0x8] sm:$0xf]
    %v1283 = vld [vmem:[%s1279 + $0xc] sm:$0xf]
    %v1284 = vld [vmem:[%s1279 + $0x10] sm:$0x3]
    %v1285 = vrot.slane %v1007, 2
    %v1291 = vunpack.c.l.b16 %v1280
    %v1292 = vunpack.c.l.b16 %v1281
    %v1293 = vunpack.c.l.b16 %v1282
    %v1294 = vunpack.c.l.b16 %v1283
    %v1295 = vunpack.c.l.b16 %v1284
    %v1296 = vpack.c.b16 %v1292, %v1291
    %v1297 = vpack.c.b16 %v1294, %v1293
    %v1298 = vpack.c.b16 %v1295, %v1295
    %v1302 = vsel %vm952, %v1285, 0
    %v1305 = vsel %vm956, %v1298, 0
    %1307 = vmatprep.subr.bf16.mxu0 0
    %1308 = vmatpush1.bf16.msra.mxu0 0
    %1309 = vmatprep.subr.bf16.mxu0 0
    %1310 = vmatpush1.bf16.msra.mxu0 0
    %1311 = vmatprep.subr.bf16.mxu0 0
    %1312 = vmatpush1.bf16.msra.mxu0 0
    %1313 = vmatprep.subr.bf16.mxu0 0
    %1314 = vmatpush1.bf16.msra.mxu0 0
    %1315 = vmatprep.subr.bf16.mxu0 0
    %1316 = vmatpush1.bf16.msra.mxu0 0
    %1317 = vmatprep.subr.bf16.mxu0 0
    %1318 = vmatpush1.bf16.msra.mxu0 %v1305
    %1319 = vmatprep.subr.bf16.mxu0 0
    %1320 = vmatpush1.bf16.msra.mxu0 %v1297
    %1321 = vmatprep.subr.bf16.mxu0 0
    %1322 = vmatpush1.bf16.msra.mxu0 %v1296
    %1323 = vmatprep.subr.bf16.mxu0 0
    %1324 = vmatpush2.bf16.msra.mxu0 0
    %1325 = vmatprep.subr.bf16.mxu0 0
    %1326 = vmatpush2.bf16.msra.mxu0 0
    %1327 = vmatprep.subr.bf16.mxu0 0
    %1328 = vmatpush2.bf16.msra.mxu0 0
    %1329 = vmatprep.subr.bf16.mxu0 0
    %1330 = vmatpush2.bf16.msra.mxu0 0
    %1331 = vmatprep.subr.bf16.mxu0 0
    %1332 = vmatpush2.bf16.msra.mxu0 0
    %1333 = vmatprep.subr.bf16.mxu0 0
    %1334 = vmatpush2.bf16.msra.mxu0 0
    %1335 = vmatprep.subr.bf16.mxu0 0
    %1336 = vmatpush2.bf16.msra.mxu0 0
    %1337 = vmatprep.subr.bf16.mxu0 0
    %1338 = vmatpush2.bf16.msra.mxu0 0
    %1339 = vmatprep.mubr.bf16.mxu0 0
    %1340 = vmatmul.mubr.bf16.gmra.mxu0 %v1302
    %v1341 = vpop.f32.mrf.mxu0
    %v1342 = vadd.f32 0.0, %v1341
    %v1343 = vpop.f32.mrf.mxu0
    %v1344 = vpop.f32.mrf.mxu0
    %v1345 = vpop.f32.mrf.mxu0
    %1346 = vdwg.mxu0
    %v1347 = vadd.f32 %v1278, %v1342
    %s1348 = scalar_lea.vmem %s4, 120
    %v1349 = vld [vmem:[%s1348] sm:$0xf]
    %v1350 = vld [vmem:[%s1348 + $0x4] sm:$0xf]
    %v1351 = vld [vmem:[%s1348 + $0x8] sm:$0xf]
    %v1352 = vld [vmem:[%s1348 + $0xc] sm:$0xf]
    %v1353 = vld [vmem:[%s1348 + $0x10] sm:$0x3]
    %v1354 = vrot.slane %v931, 3
    %v1360 = vunpack.c.l.b16 %v1349
    %v1361 = vunpack.c.l.b16 %v1350
    %v1362 = vunpack.c.l.b16 %v1351
    %v1363 = vunpack.c.l.b16 %v1352
    %v1364 = vunpack.c.l.b16 %v1353
    %v1365 = vpack.c.b16 %v1361, %v1360
    %v1366 = vpack.c.b16 %v1363, %v1362
    %v1367 = vpack.c.b16 %v1364, %v1364
    %v1371 = vsel %vm952, %v1354, 0
    %v1374 = vsel %vm956, %v1367, 0
    %1376 = vmatprep.subr.bf16.mxu0 0
    %1377 = vmatpush1.bf16.msra.mxu0 0
    %1378 = vmatprep.subr.bf16.mxu0 0
    %1379 = vmatpush1.bf16.msra.mxu0 0
    %1380 = vmatprep.subr.bf16.mxu0 0
    %1381 = vmatpush1.bf16.msra.mxu0 0
    %1382 = vmatprep.subr.bf16.mxu0 0
    %1383 = vmatpush1.bf16.msra.mxu0 0
    %1384 = vmatprep.subr.bf16.mxu0 0
    %1385 = vmatpush1.bf16.msra.mxu0 0
    %1386 = vmatprep.subr.bf16.mxu0 0
    %1387 = vmatpush1.bf16.msra.mxu0 %v1374
    %1388 = vmatprep.subr.bf16.mxu0 0
    %1389 = vmatpush1.bf16.msra.mxu0 %v1366
    %1390 = vmatprep.subr.bf16.mxu0 0
    %1391 = vmatpush1.bf16.msra.mxu0 %v1365
    %1392 = vmatprep.subr.bf16.mxu0 0
    %1393 = vmatpush2.bf16.msra.mxu0 0
    %1394 = vmatprep.subr.bf16.mxu0 0
    %1395 = vmatpush2.bf16.msra.mxu0 0
    %1396 = vmatprep.subr.bf16.mxu0 0
    %1397 = vmatpush2.bf16.msra.mxu0 0
    %1398 = vmatprep.subr.bf16.mxu0 0
    %1399 = vmatpush2.bf16.msra.mxu0 0
    %1400 = vmatprep.subr.bf16.mxu0 0
    %1401 = vmatpush2.bf16.msra.mxu0 0
    %1402 = vmatprep.subr.bf16.mxu0 0
    %1403 = vmatpush2.bf16.msra.mxu0 0
    %1404 = vmatprep.subr.bf16.mxu0 0
    %1405 = vmatpush2.bf16.msra.mxu0 0
    %1406 = vmatprep.subr.bf16.mxu0 0
    %1407 = vmatpush2.bf16.msra.mxu0 0
    %1408 = vmatprep.mubr.bf16.mxu0 0
    %1409 = vmatmul.mubr.bf16.gmra.mxu0 %v1371
    %v1410 = vpop.f32.mrf.mxu0
    %v1411 = vadd.f32 0.0, %v1410
    %v1412 = vpop.f32.mrf.mxu0
    %v1413 = vpop.f32.mrf.mxu0
    %v1414 = vpop.f32.mrf.mxu0
    %1415 = vdwg.mxu0
    %v1416 = vadd.f32 %v1347, %v1411
    %s1417 = scalar_lea.vmem %s4, 140
    %v1418 = vld [vmem:[%s1417] sm:$0xf]
    %v1419 = vld [vmem:[%s1417 + $0x4] sm:$0xf]
    %v1420 = vld [vmem:[%s1417 + $0x8] sm:$0xf]
    %v1421 = vld [vmem:[%s1417 + $0xc] sm:$0xf]
    %v1422 = vld [vmem:[%s1417 + $0x10] sm:$0x3]
    %v1423 = vrot.slane %v1007, 3
    %v1429 = vunpack.c.l.b16 %v1418
    %v1430 = vunpack.c.l.b16 %v1419
    %v1431 = vunpack.c.l.b16 %v1420
    %v1432 = vunpack.c.l.b16 %v1421
    %v1433 = vunpack.c.l.b16 %v1422
    %v1434 = vpack.c.b16 %v1430, %v1429
    %v1435 = vpack.c.b16 %v1432, %v1431
    %v1436 = vpack.c.b16 %v1433, %v1433
    %v1440 = vsel %vm952, %v1423, 0
    %v1443 = vsel %vm956, %v1436, 0
    %1445 = vmatprep.subr.bf16.mxu0 0
    %1446 = vmatpush1.bf16.msra.mxu0 0
    %1447 = vmatprep.subr.bf16.mxu0 0
    %1448 = vmatpush1.bf16.msra.mxu0 0
    %1449 = vmatprep.subr.bf16.mxu0 0
    %1450 = vmatpush1.bf16.msra.mxu0 0
    %1451 = vmatprep.subr.bf16.mxu0 0
    %1452 = vmatpush1.bf16.msra.mxu0 0
    %1453 = vmatprep.subr.bf16.mxu0 0
    %1454 = vmatpush1.bf16.msra.mxu0 0
    %1455 = vmatprep.subr.bf16.mxu0 0
    %1456 = vmatpush1.bf16.msra.mxu0 %v1443
    %1457 = vmatprep.subr.bf16.mxu0 0
    %1458 = vmatpush1.bf16.msra.mxu0 %v1435
    %1459 = vmatprep.subr.bf16.mxu0 0
    %1460 = vmatpush1.bf16.msra.mxu0 %v1434
    %1461 = vmatprep.subr.bf16.mxu0 0
    %1462 = vmatpush2.bf16.msra.mxu0 0
    %1463 = vmatprep.subr.bf16.mxu0 0
    %1464 = vmatpush2.bf16.msra.mxu0 0
    %1465 = vmatprep.subr.bf16.mxu0 0
    %1466 = vmatpush2.bf16.msra.mxu0 0
    %1467 = vmatprep.subr.bf16.mxu0 0
    %1468 = vmatpush2.bf16.msra.mxu0 0
    %1469 = vmatprep.subr.bf16.mxu0 0
    %1470 = vmatpush2.bf16.msra.mxu0 0
    %1471 = vmatprep.subr.bf16.mxu0 0
    %1472 = vmatpush2.bf16.msra.mxu0 0
    %1473 = vmatprep.subr.bf16.mxu0 0
    %1474 = vmatpush2.bf16.msra.mxu0 0
    %1475 = vmatprep.subr.bf16.mxu0 0
    %1476 = vmatpush2.bf16.msra.mxu0 0
    %1477 = vmatprep.mubr.bf16.mxu0 0
    %1478 = vmatmul.mubr.bf16.gmra.mxu0 %v1440
    %v1479 = vpop.f32.mrf.mxu0
    %v1480 = vadd.f32 0.0, %v1479
    %v1481 = vpop.f32.mrf.mxu0
    %v1482 = vpop.f32.mrf.mxu0
    %v1483 = vpop.f32.mrf.mxu0
    %1484 = vdwg.mxu0
    %v1485 = vadd.f32 %v1416, %v1480
    %v1486 = vpack.c.bf16 %v928, %v928
    %s1487 = scalar_lea.vmem %s4, 160
    %v1488 = vld [vmem:[%s1487] sm:$0xf]
    %v1489 = vld [vmem:[%s1487 + $0x4] sm:$0xf]
    %v1490 = vld [vmem:[%s1487 + $0x8] sm:$0xf]
    %v1491 = vld [vmem:[%s1487 + $0xc] sm:$0xf]
    %v1492 = vld [vmem:[%s1487 + $0x10] sm:$0x3]
    %v1498 = vunpack.c.l.b16 %v1488
    %v1499 = vunpack.c.l.b16 %v1489
    %v1500 = vunpack.c.l.b16 %v1490
    %v1501 = vunpack.c.l.b16 %v1491
    %v1502 = vunpack.c.l.b16 %v1492
    %v1503 = vpack.c.b16 %v1499, %v1498
    %v1504 = vpack.c.b16 %v1501, %v1500
    %v1505 = vpack.c.b16 %v1502, %v1502
    %v1509 = vsel %vm952, %v1486, 0
    %v1512 = vsel %vm956, %v1505, 0
    %1514 = vmatprep.subr.bf16.mxu0 0
    %1515 = vmatpush1.bf16.msra.mxu0 0
    %1516 = vmatprep.subr.bf16.mxu0 0
    %1517 = vmatpush1.bf16.msra.mxu0 0
    %1518 = vmatprep.subr.bf16.mxu0 0
    %1519 = vmatpush1.bf16.msra.mxu0 0
    %1520 = vmatprep.subr.bf16.mxu0 0
    %1521 = vmatpush1.bf16.msra.mxu0 0
    %1522 = vmatprep.subr.bf16.mxu0 0
    %1523 = vmatpush1.bf16.msra.mxu0 0
    %1524 = vmatprep.subr.bf16.mxu0 0
    %1525 = vmatpush1.bf16.msra.mxu0 %v1512
    %1526 = vmatprep.subr.bf16.mxu0 0
    %1527 = vmatpush1.bf16.msra.mxu0 %v1504
    %1528 = vmatprep.subr.bf16.mxu0 0
    %1529 = vmatpush1.bf16.msra.mxu0 %v1503
    %1530 = vmatprep.subr.bf16.mxu0 0
    %1531 = vmatpush2.bf16.msra.mxu0 0
    %1532 = vmatprep.subr.bf16.mxu0 0
    %1533 = vmatpush2.bf16.msra.mxu0 0
    %1534 = vmatprep.subr.bf16.mxu0 0
    %1535 = vmatpush2.bf16.msra.mxu0 0
    %1536 = vmatprep.subr.bf16.mxu0 0
    %1537 = vmatpush2.bf16.msra.mxu0 0
    %1538 = vmatprep.subr.bf16.mxu0 0
    %1539 = vmatpush2.bf16.msra.mxu0 0
    %1540 = vmatprep.subr.bf16.mxu0 0
    %1541 = vmatpush2.bf16.msra.mxu0 0
    %1542 = vmatprep.subr.bf16.mxu0 0
    %1543 = vmatpush2.bf16.msra.mxu0 0
    %1544 = vmatprep.subr.bf16.mxu0 0
    %1545 = vmatpush2.bf16.msra.mxu0 0
    %1546 = vmatprep.mubr.bf16.mxu0 0
    %1547 = vmatmul.mubr.bf16.gmra.mxu0 %v1509
    %v1548 = vpop.f32.mrf.mxu0
    %v1549 = vadd.f32 0.0, %v1548
    %v1550 = vpop.f32.mrf.mxu0
    %v1551 = vpop.f32.mrf.mxu0
    %v1552 = vpop.f32.mrf.mxu0
    %1553 = vdwg.mxu0
    %v1554 = vadd.f32 %v1485, %v1549
    %s1555 = scalar_lea.vmem %s4, 180
    %v1556 = vld [vmem:[%s1555] sm:$0xf]
    %v1557 = vld [vmem:[%s1555 + $0x4] sm:$0xf]
    %v1558 = vld [vmem:[%s1555 + $0x8] sm:$0xf]
    %v1559 = vld [vmem:[%s1555 + $0xc] sm:$0xf]
    %v1560 = vld [vmem:[%s1555 + $0x10] sm:$0x3]
    %v1561 = vshrl.u32 %v1486, 16
    %v1568 = vunpack.c.l.b16 %v1556
    %v1569 = vunpack.c.l.b16 %v1557
    %v1570 = vunpack.c.l.b16 %v1558
    %v1571 = vunpack.c.l.b16 %v1559
    %v1572 = vunpack.c.l.b16 %v1560
    %v1573 = vpack.c.b16 %v1569, %v1568
    %v1574 = vpack.c.b16 %v1571, %v1570
    %v1575 = vpack.c.b16 %v1572, %v1572
    %v1579 = vsel %vm952, %v1561, 0
    %v1582 = vsel %vm956, %v1575, 0
    %1584 = vmatprep.subr.bf16.mxu0 0
    %1585 = vmatpush1.bf16.msra.mxu0 0
    %1586 = vmatprep.subr.bf16.mxu0 0
    %1587 = vmatpush1.bf16.msra.mxu0 0
    %1588 = vmatprep.subr.bf16.mxu0 0
    %1589 = vmatpush1.bf16.msra.mxu0 0
    %1590 = vmatprep.subr.bf16.mxu0 0
    %1591 = vmatpush1.bf16.msra.mxu0 0
    %1592 = vmatprep.subr.bf16.mxu0 0
    %1593 = vmatpush1.bf16.msra.mxu0 0
    %1594 = vmatprep.subr.bf16.mxu0 0
    %1595 = vmatpush1.bf16.msra.mxu0 %v1582
    %1596 = vmatprep.subr.bf16.mxu0 0
    %1597 = vmatpush1.bf16.msra.mxu0 %v1574
    %1598 = vmatprep.subr.bf16.mxu0 0
    %1599 = vmatpush1.bf16.msra.mxu0 %v1573
    %1600 = vmatprep.subr.bf16.mxu0 0
    %1601 = vmatpush2.bf16.msra.mxu0 0
    %1602 = vmatprep.subr.bf16.mxu0 0
    %1603 = vmatpush2.bf16.msra.mxu0 0
    %1604 = vmatprep.subr.bf16.mxu0 0
    %1605 = vmatpush2.bf16.msra.mxu0 0
    %1606 = vmatprep.subr.bf16.mxu0 0
    %1607 = vmatpush2.bf16.msra.mxu0 0
    %1608 = vmatprep.subr.bf16.mxu0 0
    %1609 = vmatpush2.bf16.msra.mxu0 0
    %1610 = vmatprep.subr.bf16.mxu0 0
    %1611 = vmatpush2.bf16.msra.mxu0 0
    %1612 = vmatprep.subr.bf16.mxu0 0
    %1613 = vmatpush2.bf16.msra.mxu0 0
    %1614 = vmatprep.subr.bf16.mxu0 0
    %1615 = vmatpush2.bf16.msra.mxu0 0
    %1616 = vmatprep.mubr.bf16.mxu0 0
    %1617 = vmatmul.mubr.bf16.gmra.mxu0 %v1579
    %v1618 = vpop.f32.mrf.mxu0
    %v1619 = vadd.f32 0.0, %v1618
    %v1620 = vpop.f32.mrf.mxu0
    %v1621 = vpop.f32.mrf.mxu0
    %v1622 = vpop.f32.mrf.mxu0
    %1623 = vdwg.mxu0
    %v1624 = vadd.f32 %v1554, %v1619
    %s1625 = scalar_lea.vmem %s4, 200
    %v1626 = vld [vmem:[%s1625] sm:$0xf]
    %v1627 = vld [vmem:[%s1625 + $0x4] sm:$0xf]
    %v1628 = vld [vmem:[%s1625 + $0x8] sm:$0xf]
    %v1629 = vld [vmem:[%s1625 + $0xc] sm:$0xf]
    %v1630 = vld [vmem:[%s1625 + $0x10] sm:$0x3]
    %v1632 = vrot.slane %v1486, 1
    %v1638 = vunpack.c.l.b16 %v1626
    %v1639 = vunpack.c.l.b16 %v1627
    %v1640 = vunpack.c.l.b16 %v1628
    %v1641 = vunpack.c.l.b16 %v1629
    %v1642 = vunpack.c.l.b16 %v1630
    %v1643 = vpack.c.b16 %v1639, %v1638
    %v1644 = vpack.c.b16 %v1641, %v1640
    %v1645 = vpack.c.b16 %v1642, %v1642
    %v1649 = vsel %vm952, %v1632, 0
    %v1652 = vsel %vm956, %v1645, 0
    %1654 = vmatprep.subr.bf16.mxu0 0
    %1655 = vmatpush1.bf16.msra.mxu0 0
    %1656 = vmatprep.subr.bf16.mxu0 0
    %1657 = vmatpush1.bf16.msra.mxu0 0
    %1658 = vmatprep.subr.bf16.mxu0 0
    %1659 = vmatpush1.bf16.msra.mxu0 0
    %1660 = vmatprep.subr.bf16.mxu0 0
    %1661 = vmatpush1.bf16.msra.mxu0 0
    %1662 = vmatprep.subr.bf16.mxu0 0
    %1663 = vmatpush1.bf16.msra.mxu0 0
    %1664 = vmatprep.subr.bf16.mxu0 0
    %1665 = vmatpush1.bf16.msra.mxu0 %v1652
    %1666 = vmatprep.subr.bf16.mxu0 0
    %1667 = vmatpush1.bf16.msra.mxu0 %v1644
    %1668 = vmatprep.subr.bf16.mxu0 0
    %1669 = vmatpush1.bf16.msra.mxu0 %v1643
    %1670 = vmatprep.subr.bf16.mxu0 0
    %1671 = vmatpush2.bf16.msra.mxu0 0
    %1672 = vmatprep.subr.bf16.mxu0 0
    %1673 = vmatpush2.bf16.msra.mxu0 0
    %1674 = vmatprep.subr.bf16.mxu0 0
    %1675 = vmatpush2.bf16.msra.mxu0 0
    %1676 = vmatprep.subr.bf16.mxu0 0
    %1677 = vmatpush2.bf16.msra.mxu0 0
    %1678 = vmatprep.subr.bf16.mxu0 0
    %1679 = vmatpush2.bf16.msra.mxu0 0
    %1680 = vmatprep.subr.bf16.mxu0 0
    %1681 = vmatpush2.bf16.msra.mxu0 0
    %1682 = vmatprep.subr.bf16.mxu0 0
    %1683 = vmatpush2.bf16.msra.mxu0 0
    %1684 = vmatprep.subr.bf16.mxu0 0
    %1685 = vmatpush2.bf16.msra.mxu0 0
    %1686 = vmatprep.mubr.bf16.mxu0 0
    %1687 = vmatmul.mubr.bf16.gmra.mxu0 %v1649
    %v1688 = vpop.f32.mrf.mxu0
    %v1689 = vadd.f32 0.0, %v1688
    %v1690 = vpop.f32.mrf.mxu0
    %v1691 = vpop.f32.mrf.mxu0
    %v1692 = vpop.f32.mrf.mxu0
    %1693 = vdwg.mxu0
    %v1694 = vadd.f32 %v1624, %v1689
    %s1695 = scalar_lea.vmem %s4, 220
    %v1696 = vld [vmem:[%s1695] sm:$0xf]
    %v1697 = vld [vmem:[%s1695 + $0x4] sm:$0xf]
    %v1698 = vld [vmem:[%s1695 + $0x8] sm:$0xf]
    %v1699 = vld [vmem:[%s1695 + $0xc] sm:$0xf]
    %v1700 = vld [vmem:[%s1695 + $0x10] sm:$0x3]
    %v1701 = vrot.slane %v1561, 1
    %v1707 = vunpack.c.l.b16 %v1696
    %v1708 = vunpack.c.l.b16 %v1697
    %v1709 = vunpack.c.l.b16 %v1698
    %v1710 = vunpack.c.l.b16 %v1699
    %v1711 = vunpack.c.l.b16 %v1700
    %v1712 = vpack.c.b16 %v1708, %v1707
    %v1713 = vpack.c.b16 %v1710, %v1709
    %v1714 = vpack.c.b16 %v1711, %v1711
    %v1718 = vsel %vm952, %v1701, 0
    %v1721 = vsel %vm956, %v1714, 0
    %1723 = vmatprep.subr.bf16.mxu0 0
    %1724 = vmatpush1.bf16.msra.mxu0 0
    %1725 = vmatprep.subr.bf16.mxu0 0
    %1726 = vmatpush1.bf16.msra.mxu0 0
    %1727 = vmatprep.subr.bf16.mxu0 0
    %1728 = vmatpush1.bf16.msra.mxu0 0
    %1729 = vmatprep.subr.bf16.mxu0 0
    %1730 = vmatpush1.bf16.msra.mxu0 0
    %1731 = vmatprep.subr.bf16.mxu0 0
    %1732 = vmatpush1.bf16.msra.mxu0 0
    %1733 = vmatprep.subr.bf16.mxu0 0
    %1734 = vmatpush1.bf16.msra.mxu0 %v1721
    %1735 = vmatprep.subr.bf16.mxu0 0
    %1736 = vmatpush1.bf16.msra.mxu0 %v1713
    %1737 = vmatprep.subr.bf16.mxu0 0
    %1738 = vmatpush1.bf16.msra.mxu0 %v1712
    %1739 = vmatprep.subr.bf16.mxu0 0
    %1740 = vmatpush2.bf16.msra.mxu0 0
    %1741 = vmatprep.subr.bf16.mxu0 0
    %1742 = vmatpush2.bf16.msra.mxu0 0
    %1743 = vmatprep.subr.bf16.mxu0 0
    %1744 = vmatpush2.bf16.msra.mxu0 0
    %1745 = vmatprep.subr.bf16.mxu0 0
    %1746 = vmatpush2.bf16.msra.mxu0 0
    %1747 = vmatprep.subr.bf16.mxu0 0
    %1748 = vmatpush2.bf16.msra.mxu0 0
    %1749 = vmatprep.subr.bf16.mxu0 0
    %1750 = vmatpush2.bf16.msra.mxu0 0
    %1751 = vmatprep.subr.bf16.mxu0 0
    %1752 = vmatpush2.bf16.msra.mxu0 0
    %1753 = vmatprep.subr.bf16.mxu0 0
    %1754 = vmatpush2.bf16.msra.mxu0 0
    %1755 = vmatprep.mubr.bf16.mxu0 0
    %1756 = vmatmul.mubr.bf16.gmra.mxu0 %v1718
    %v1757 = vpop.f32.mrf.mxu0
    %v1758 = vadd.f32 0.0, %v1757
    %v1759 = vpop.f32.mrf.mxu0
    %v1760 = vpop.f32.mrf.mxu0
    %v1761 = vpop.f32.mrf.mxu0
    %1762 = vdwg.mxu0
    %v1763 = vadd.f32 %v1694, %v1758
    %s1764 = scalar_lea.vmem %s4, 240
    %v1765 = vld [vmem:[%s1764] sm:$0xf]
    %v1766 = vld [vmem:[%s1764 + $0x4] sm:$0xf]
    %v1767 = vld [vmem:[%s1764 + $0x8] sm:$0xf]
    %v1768 = vld [vmem:[%s1764 + $0xc] sm:$0xf]
    %v1769 = vld [vmem:[%s1764 + $0x10] sm:$0x3]
    %v1770 = vrot.slane %v1486, 2
    %v1776 = vunpack.c.l.b16 %v1765
    %v1777 = vunpack.c.l.b16 %v1766
    %v1778 = vunpack.c.l.b16 %v1767
    %v1779 = vunpack.c.l.b16 %v1768
    %v1780 = vunpack.c.l.b16 %v1769
    %v1781 = vpack.c.b16 %v1777, %v1776
    %v1782 = vpack.c.b16 %v1779, %v1778
    %v1783 = vpack.c.b16 %v1780, %v1780
    %v1787 = vsel %vm952, %v1770, 0
    %v1790 = vsel %vm956, %v1783, 0
    %1792 = vmatprep.subr.bf16.mxu0 0
    %1793 = vmatpush1.bf16.msra.mxu0 0
    %1794 = vmatprep.subr.bf16.mxu0 0
    %1795 = vmatpush1.bf16.msra.mxu0 0
    %1796 = vmatprep.subr.bf16.mxu0 0
    %1797 = vmatpush1.bf16.msra.mxu0 0
    %1798 = vmatprep.subr.bf16.mxu0 0
    %1799 = vmatpush1.bf16.msra.mxu0 0
    %1800 = vmatprep.subr.bf16.mxu0 0
    %1801 = vmatpush1.bf16.msra.mxu0 0
    %1802 = vmatprep.subr.bf16.mxu0 0
    %1803 = vmatpush1.bf16.msra.mxu0 %v1790
    %1804 = vmatprep.subr.bf16.mxu0 0
    %1805 = vmatpush1.bf16.msra.mxu0 %v1782
    %1806 = vmatprep.subr.bf16.mxu0 0
    %1807 = vmatpush1.bf16.msra.mxu0 %v1781
    %1808 = vmatprep.subr.bf16.mxu0 0
    %1809 = vmatpush2.bf16.msra.mxu0 0
    %1810 = vmatprep.subr.bf16.mxu0 0
    %1811 = vmatpush2.bf16.msra.mxu0 0
    %1812 = vmatprep.subr.bf16.mxu0 0
    %1813 = vmatpush2.bf16.msra.mxu0 0
    %1814 = vmatprep.subr.bf16.mxu0 0
    %1815 = vmatpush2.bf16.msra.mxu0 0
    %1816 = vmatprep.subr.bf16.mxu0 0
    %1817 = vmatpush2.bf16.msra.mxu0 0
    %1818 = vmatprep.subr.bf16.mxu0 0
    %1819 = vmatpush2.bf16.msra.mxu0 0
    %1820 = vmatprep.subr.bf16.mxu0 0
    %1821 = vmatpush2.bf16.msra.mxu0 0
    %1822 = vmatprep.subr.bf16.mxu0 0
    %1823 = vmatpush2.bf16.msra.mxu0 0
    %1824 = vmatprep.mubr.bf16.mxu0 0
    %1825 = vmatmul.mubr.bf16.gmra.mxu0 %v1787
    %v1826 = vpop.f32.mrf.mxu0
    %v1827 = vadd.f32 0.0, %v1826
    %v1828 = vpop.f32.mrf.mxu0
    %v1829 = vpop.f32.mrf.mxu0
    %v1830 = vpop.f32.mrf.mxu0
    %1831 = vdwg.mxu0
    %v1832 = vadd.f32 %v1763, %v1827
    %s1833 = scalar_lea.vmem %s4, 260
    %v1834 = vld [vmem:[%s1833] sm:$0xf]
    %v1835 = vld [vmem:[%s1833 + $0x4] sm:$0xf]
    %v1836 = vld [vmem:[%s1833 + $0x8] sm:$0xf]
    %v1837 = vld [vmem:[%s1833 + $0xc] sm:$0xf]
    %v1838 = vld [vmem:[%s1833 + $0x10] sm:$0x3]
    %v1839 = vrot.slane %v1561, 2
    %v1845 = vunpack.c.l.b16 %v1834
    %v1846 = vunpack.c.l.b16 %v1835
    %v1847 = vunpack.c.l.b16 %v1836
    %v1848 = vunpack.c.l.b16 %v1837
    %v1849 = vunpack.c.l.b16 %v1838
    %v1850 = vpack.c.b16 %v1846, %v1845
    %v1851 = vpack.c.b16 %v1848, %v1847
    %v1852 = vpack.c.b16 %v1849, %v1849
    %v1856 = vsel %vm952, %v1839, 0
    %v1859 = vsel %vm956, %v1852, 0
    %1861 = vmatprep.subr.bf16.mxu0 0
    %1862 = vmatpush1.bf16.msra.mxu0 0
    %1863 = vmatprep.subr.bf16.mxu0 0
    %1864 = vmatpush1.bf16.msra.mxu0 0
    %1865 = vmatprep.subr.bf16.mxu0 0
    %1866 = vmatpush1.bf16.msra.mxu0 0
    %1867 = vmatprep.subr.bf16.mxu0 0
    %1868 = vmatpush1.bf16.msra.mxu0 0
    %1869 = vmatprep.subr.bf16.mxu0 0
    %1870 = vmatpush1.bf16.msra.mxu0 0
    %1871 = vmatprep.subr.bf16.mxu0 0
    %1872 = vmatpush1.bf16.msra.mxu0 %v1859
    %1873 = vmatprep.subr.bf16.mxu0 0
    %1874 = vmatpush1.bf16.msra.mxu0 %v1851
    %1875 = vmatprep.subr.bf16.mxu0 0
    %1876 = vmatpush1.bf16.msra.mxu0 %v1850
    %1877 = vmatprep.subr.bf16.mxu0 0
    %1878 = vmatpush2.bf16.msra.mxu0 0
    %1879 = vmatprep.subr.bf16.mxu0 0
    %1880 = vmatpush2.bf16.msra.mxu0 0
    %1881 = vmatprep.subr.bf16.mxu0 0
    %1882 = vmatpush2.bf16.msra.mxu0 0
    %1883 = vmatprep.subr.bf16.mxu0 0
    %1884 = vmatpush2.bf16.msra.mxu0 0
    %1885 = vmatprep.subr.bf16.mxu0 0
    %1886 = vmatpush2.bf16.msra.mxu0 0
    %1887 = vmatprep.subr.bf16.mxu0 0
    %1888 = vmatpush2.bf16.msra.mxu0 0
    %1889 = vmatprep.subr.bf16.mxu0 0
    %1890 = vmatpush2.bf16.msra.mxu0 0
    %1891 = vmatprep.subr.bf16.mxu0 0
    %1892 = vmatpush2.bf16.msra.mxu0 0
    %1893 = vmatprep.mubr.bf16.mxu0 0
    %1894 = vmatmul.mubr.bf16.gmra.mxu0 %v1856
    %v1895 = vpop.f32.mrf.mxu0
    %v1896 = vadd.f32 0.0, %v1895
    %v1897 = vpop.f32.mrf.mxu0
    %v1898 = vpop.f32.mrf.mxu0
    %v1899 = vpop.f32.mrf.mxu0
    %1900 = vdwg.mxu0
    %v1901 = vadd.f32 %v1832, %v1896
    %s1902 = scalar_lea.vmem %s4, 280
    %v1903 = vld [vmem:[%s1902] sm:$0xf]
    %v1904 = vld [vmem:[%s1902 + $0x4] sm:$0xf]
    %v1905 = vld [vmem:[%s1902 + $0x8] sm:$0xf]
    %v1906 = vld [vmem:[%s1902 + $0xc] sm:$0xf]
    %v1907 = vld [vmem:[%s1902 + $0x10] sm:$0x3]
    %v1908 = vrot.slane %v1486, 3
    %v1914 = vunpack.c.l.b16 %v1903
    %v1915 = vunpack.c.l.b16 %v1904
    %v1916 = vunpack.c.l.b16 %v1905
    %v1917 = vunpack.c.l.b16 %v1906
    %v1918 = vunpack.c.l.b16 %v1907
    %v1919 = vpack.c.b16 %v1915, %v1914
    %v1920 = vpack.c.b16 %v1917, %v1916
    %v1921 = vpack.c.b16 %v1918, %v1918
    %v1925 = vsel %vm952, %v1908, 0
    %v1928 = vsel %vm956, %v1921, 0
    %1930 = vmatprep.subr.bf16.mxu0 0
    %1931 = vmatpush1.bf16.msra.mxu0 0
    %1932 = vmatprep.subr.bf16.mxu0 0
    %1933 = vmatpush1.bf16.msra.mxu0 0
    %1934 = vmatprep.subr.bf16.mxu0 0
    %1935 = vmatpush1.bf16.msra.mxu0 0
    %1936 = vmatprep.subr.bf16.mxu0 0
    %1937 = vmatpush1.bf16.msra.mxu0 0
    %1938 = vmatprep.subr.bf16.mxu0 0
    %1939 = vmatpush1.bf16.msra.mxu0 0
    %1940 = vmatprep.subr.bf16.mxu0 0
    %1941 = vmatpush1.bf16.msra.mxu0 %v1928
    %1942 = vmatprep.subr.bf16.mxu0 0
    %1943 = vmatpush1.bf16.msra.mxu0 %v1920
    %1944 = vmatprep.subr.bf16.mxu0 0
    %1945 = vmatpush1.bf16.msra.mxu0 %v1919
    %1946 = vmatprep.subr.bf16.mxu0 0
    %1947 = vmatpush2.bf16.msra.mxu0 0
    %1948 = vmatprep.subr.bf16.mxu0 0
    %1949 = vmatpush2.bf16.msra.mxu0 0
    %1950 = vmatprep.subr.bf16.mxu0 0
    %1951 = vmatpush2.bf16.msra.mxu0 0
    %1952 = vmatprep.subr.bf16.mxu0 0
    %1953 = vmatpush2.bf16.msra.mxu0 0
    %1954 = vmatprep.subr.bf16.mxu0 0
    %1955 = vmatpush2.bf16.msra.mxu0 0
    %1956 = vmatprep.subr.bf16.mxu0 0
    %1957 = vmatpush2.bf16.msra.mxu0 0
    %1958 = vmatprep.subr.bf16.mxu0 0
    %1959 = vmatpush2.bf16.msra.mxu0 0
    %1960 = vmatprep.subr.bf16.mxu0 0
    %1961 = vmatpush2.bf16.msra.mxu0 0
    %1962 = vmatprep.mubr.bf16.mxu0 0
    %1963 = vmatmul.mubr.bf16.gmra.mxu0 %v1925
    %v1964 = vpop.f32.mrf.mxu0
    %v1965 = vadd.f32 0.0, %v1964
    %v1966 = vpop.f32.mrf.mxu0
    %v1967 = vpop.f32.mrf.mxu0
    %v1968 = vpop.f32.mrf.mxu0
    %1969 = vdwg.mxu0
    %v1970 = vadd.f32 %v1901, %v1965
    %s1971 = scalar_lea.vmem %s4, 300
    %v1972 = vld [vmem:[%s1971] sm:$0xf]
    %v1973 = vld [vmem:[%s1971 + $0x4] sm:$0xf]
    %v1974 = vld [vmem:[%s1971 + $0x8] sm:$0xf]
    %v1975 = vld [vmem:[%s1971 + $0xc] sm:$0xf]
    %v1976 = vld [vmem:[%s1971 + $0x10] sm:$0x3]
    %v1977 = vrot.slane %v1561, 3
    %v1983 = vunpack.c.l.b16 %v1972
    %v1984 = vunpack.c.l.b16 %v1973
    %v1985 = vunpack.c.l.b16 %v1974
    %v1986 = vunpack.c.l.b16 %v1975
    %v1987 = vunpack.c.l.b16 %v1976
    %v1988 = vpack.c.b16 %v1984, %v1983
    %v1989 = vpack.c.b16 %v1986, %v1985
    %v1990 = vpack.c.b16 %v1987, %v1987
    %v1994 = vsel %vm952, %v1977, 0
    %v1997 = vsel %vm956, %v1990, 0
    %1999 = vmatprep.subr.bf16.mxu0 0
    %2000 = vmatpush1.bf16.msra.mxu0 0
    %2001 = vmatprep.subr.bf16.mxu0 0
    %2002 = vmatpush1.bf16.msra.mxu0 0
    %2003 = vmatprep.subr.bf16.mxu0 0
    %2004 = vmatpush1.bf16.msra.mxu0 0
    %2005 = vmatprep.subr.bf16.mxu0 0
    %2006 = vmatpush1.bf16.msra.mxu0 0
    %2007 = vmatprep.subr.bf16.mxu0 0
    %2008 = vmatpush1.bf16.msra.mxu0 0
    %2009 = vmatprep.subr.bf16.mxu0 0
    %2010 = vmatpush1.bf16.msra.mxu0 %v1997
    %2011 = vmatprep.subr.bf16.mxu0 0
    %2012 = vmatpush1.bf16.msra.mxu0 %v1989
    %2013 = vmatprep.subr.bf16.mxu0 0
    %2014 = vmatpush1.bf16.msra.mxu0 %v1988
    %2015 = vmatprep.subr.bf16.mxu0 0
    %2016 = vmatpush2.bf16.msra.mxu0 0
    %2017 = vmatprep.subr.bf16.mxu0 0
    %2018 = vmatpush2.bf16.msra.mxu0 0
    %2019 = vmatprep.subr.bf16.mxu0 0
    %2020 = vmatpush2.bf16.msra.mxu0 0
    %2021 = vmatprep.subr.bf16.mxu0 0
    %2022 = vmatpush2.bf16.msra.mxu0 0
    %2023 = vmatprep.subr.bf16.mxu0 0
    %2024 = vmatpush2.bf16.msra.mxu0 0
    %2025 = vmatprep.subr.bf16.mxu0 0
    %2026 = vmatpush2.bf16.msra.mxu0 0
    %2027 = vmatprep.subr.bf16.mxu0 0
    %2028 = vmatpush2.bf16.msra.mxu0 0
    %2029 = vmatprep.subr.bf16.mxu0 0
    %2030 = vmatpush2.bf16.msra.mxu0 0
    %2031 = vmatprep.mubr.bf16.mxu0 0
    %2032 = vmatmul.mubr.bf16.gmra.mxu0 %v1994
    %v2033 = vpop.f32.mrf.mxu0
    %v2034 = vadd.f32 0.0, %v2033
    %v2035 = vpop.f32.mrf.mxu0
    %v2036 = vpop.f32.mrf.mxu0
    %v2037 = vpop.f32.mrf.mxu0
    %2038 = vdwg.mxu0
    %v2039 = vadd.f32 %v1970, %v2034
    %v2040 = vpack.c.bf16 %v929, %v929
    %s2041 = scalar_lea.vmem %s4, 320
    %v2042 = vld [vmem:[%s2041] sm:$0xf]
    %v2043 = vld [vmem:[%s2041 + $0x4] sm:$0xf]
    %v2044 = vld [vmem:[%s2041 + $0x8] sm:$0xf]
    %v2045 = vld [vmem:[%s2041 + $0xc] sm:$0xf]
    %v2046 = vld [vmem:[%s2041 + $0x10] sm:$0x3]
    %v2052 = vunpack.c.l.b16 %v2042
    %v2053 = vunpack.c.l.b16 %v2043
    %v2054 = vunpack.c.l.b16 %v2044
    %v2055 = vunpack.c.l.b16 %v2045
    %v2056 = vunpack.c.l.b16 %v2046
    %v2057 = vpack.c.b16 %v2053, %v2052
    %v2058 = vpack.c.b16 %v2055, %v2054
    %v2059 = vpack.c.b16 %v2056, %v2056
    %v2063 = vsel %vm952, %v2040, 0
    %v2066 = vsel %vm956, %v2059, 0
    %2068 = vmatprep.subr.bf16.mxu0 0
    %2069 = vmatpush1.bf16.msra.mxu0 0
    %2070 = vmatprep.subr.bf16.mxu0 0
    %2071 = vmatpush1.bf16.msra.mxu0 0
    %2072 = vmatprep.subr.bf16.mxu0 0
    %2073 = vmatpush1.bf16.msra.mxu0 0
    %2074 = vmatprep.subr.bf16.mxu0 0
    %2075 = vmatpush1.bf16.msra.mxu0 0
    %2076 = vmatprep.subr.bf16.mxu0 0
    %2077 = vmatpush1.bf16.msra.mxu0 0
    %2078 = vmatprep.subr.bf16.mxu0 0
    %2079 = vmatpush1.bf16.msra.mxu0 %v2066
    %2080 = vmatprep.subr.bf16.mxu0 0
    %2081 = vmatpush1.bf16.msra.mxu0 %v2058
    %2082 = vmatprep.subr.bf16.mxu0 0
    %2083 = vmatpush1.bf16.msra.mxu0 %v2057
    %2084 = vmatprep.subr.bf16.mxu0 0
    %2085 = vmatpush2.bf16.msra.mxu0 0
    %2086 = vmatprep.subr.bf16.mxu0 0
    %2087 = vmatpush2.bf16.msra.mxu0 0
    %2088 = vmatprep.subr.bf16.mxu0 0
    %2089 = vmatpush2.bf16.msra.mxu0 0
    %2090 = vmatprep.subr.bf16.mxu0 0
    %2091 = vmatpush2.bf16.msra.mxu0 0
    %2092 = vmatprep.subr.bf16.mxu0 0
    %2093 = vmatpush2.bf16.msra.mxu0 0
    %2094 = vmatprep.subr.bf16.mxu0 0
    %2095 = vmatpush2.bf16.msra.mxu0 0
    %2096 = vmatprep.subr.bf16.mxu0 0
    %2097 = vmatpush2.bf16.msra.mxu0 0
    %2098 = vmatprep.subr.bf16.mxu0 0
    %2099 = vmatpush2.bf16.msra.mxu0 0
    %2100 = vmatprep.mubr.bf16.mxu0 0
    %2101 = vmatmul.mubr.bf16.gmra.mxu0 %v2063
    %v2102 = vpop.f32.mrf.mxu0
    %v2103 = vadd.f32 0.0, %v2102
    %v2104 = vpop.f32.mrf.mxu0
    %v2105 = vpop.f32.mrf.mxu0
    %v2106 = vpop.f32.mrf.mxu0
    %2107 = vdwg.mxu0
    %v2108 = vadd.f32 %v2039, %v2103
    %s2109 = scalar_lea.vmem %s4, 340
    %v2110 = vld [vmem:[%s2109] sm:$0xf]
    %v2111 = vld [vmem:[%s2109 + $0x4] sm:$0xf]
    %v2112 = vld [vmem:[%s2109 + $0x8] sm:$0xf]
    %v2113 = vld [vmem:[%s2109 + $0xc] sm:$0xf]
    %v2114 = vld [vmem:[%s2109 + $0x10] sm:$0x3]
    %v2115 = vshrl.u32 %v2040, 16
    %v2122 = vunpack.c.l.b16 %v2110
    %v2123 = vunpack.c.l.b16 %v2111
    %v2124 = vunpack.c.l.b16 %v2112
    %v2125 = vunpack.c.l.b16 %v2113
    %v2126 = vunpack.c.l.b16 %v2114
    %v2127 = vpack.c.b16 %v2123, %v2122
    %v2128 = vpack.c.b16 %v2125, %v2124
    %v2129 = vpack.c.b16 %v2126, %v2126
    %v2133 = vsel %vm952, %v2115, 0
    %v2136 = vsel %vm956, %v2129, 0
    %2138 = vmatprep.subr.bf16.mxu0 0
    %2139 = vmatpush1.bf16.msra.mxu0 0
    %2140 = vmatprep.subr.bf16.mxu0 0
    %2141 = vmatpush1.bf16.msra.mxu0 0
    %2142 = vmatprep.subr.bf16.mxu0 0
    %2143 = vmatpush1.bf16.msra.mxu0 0
    %2144 = vmatprep.subr.bf16.mxu0 0
    %2145 = vmatpush1.bf16.msra.mxu0 0
    %2146 = vmatprep.subr.bf16.mxu0 0
    %2147 = vmatpush1.bf16.msra.mxu0 0
    %2148 = vmatprep.subr.bf16.mxu0 0
    %2149 = vmatpush1.bf16.msra.mxu0 %v2136
    %2150 = vmatprep.subr.bf16.mxu0 0
    %2151 = vmatpush1.bf16.msra.mxu0 %v2128
    %2152 = vmatprep.subr.bf16.mxu0 0
    %2153 = vmatpush1.bf16.msra.mxu0 %v2127
    %2154 = vmatprep.subr.bf16.mxu0 0
    %2155 = vmatpush2.bf16.msra.mxu0 0
    %2156 = vmatprep.subr.bf16.mxu0 0
    %2157 = vmatpush2.bf16.msra.mxu0 0
    %2158 = vmatprep.subr.bf16.mxu0 0
    %2159 = vmatpush2.bf16.msra.mxu0 0
    %2160 = vmatprep.subr.bf16.mxu0 0
    %2161 = vmatpush2.bf16.msra.mxu0 0
    %2162 = vmatprep.subr.bf16.mxu0 0
    %2163 = vmatpush2.bf16.msra.mxu0 0
    %2164 = vmatprep.subr.bf16.mxu0 0
    %2165 = vmatpush2.bf16.msra.mxu0 0
    %2166 = vmatprep.subr.bf16.mxu0 0
    %2167 = vmatpush2.bf16.msra.mxu0 0
    %2168 = vmatprep.subr.bf16.mxu0 0
    %2169 = vmatpush2.bf16.msra.mxu0 0
    %2170 = vmatprep.mubr.bf16.mxu0 0
    %2171 = vmatmul.mubr.bf16.gmra.mxu0 %v2133
    %v2172 = vpop.f32.mrf.mxu0
    %v2173 = vadd.f32 0.0, %v2172
    %v2174 = vpop.f32.mrf.mxu0
    %v2175 = vpop.f32.mrf.mxu0
    %v2176 = vpop.f32.mrf.mxu0
    %2177 = vdwg.mxu0
    %v2178 = vadd.f32 %v2108, %v2173
    %s2179 = scalar_lea.vmem %s4, 360
    %v2180 = vld [vmem:[%s2179] sm:$0xf]
    %v2181 = vld [vmem:[%s2179 + $0x4] sm:$0xf]
    %v2182 = vld [vmem:[%s2179 + $0x8] sm:$0xf]
    %v2183 = vld [vmem:[%s2179 + $0xc] sm:$0xf]
    %v2184 = vld [vmem:[%s2179 + $0x10] sm:$0x3]
    %v2186 = vrot.slane %v2040, 1
    %v2192 = vunpack.c.l.b16 %v2180
    %v2193 = vunpack.c.l.b16 %v2181
    %v2194 = vunpack.c.l.b16 %v2182
    %v2195 = vunpack.c.l.b16 %v2183
    %v2196 = vunpack.c.l.b16 %v2184
    %v2197 = vpack.c.b16 %v2193, %v2192
    %v2198 = vpack.c.b16 %v2195, %v2194
    %v2199 = vpack.c.b16 %v2196, %v2196
    %v2203 = vsel %vm952, %v2186, 0
    %v2206 = vsel %vm956, %v2199, 0
    %2208 = vmatprep.subr.bf16.mxu0 0
    %2209 = vmatpush1.bf16.msra.mxu0 0
    %2210 = vmatprep.subr.bf16.mxu0 0
    %2211 = vmatpush1.bf16.msra.mxu0 0
    %2212 = vmatprep.subr.bf16.mxu0 0
    %2213 = vmatpush1.bf16.msra.mxu0 0
    %2214 = vmatprep.subr.bf16.mxu0 0
    %2215 = vmatpush1.bf16.msra.mxu0 0
    %2216 = vmatprep.subr.bf16.mxu0 0
    %2217 = vmatpush1.bf16.msra.mxu0 0
    %2218 = vmatprep.subr.bf16.mxu0 0
    %2219 = vmatpush1.bf16.msra.mxu0 %v2206
    %2220 = vmatprep.subr.bf16.mxu0 0
    %2221 = vmatpush1.bf16.msra.mxu0 %v2198
    %2222 = vmatprep.subr.bf16.mxu0 0
    %2223 = vmatpush1.bf16.msra.mxu0 %v2197
    %2224 = vmatprep.subr.bf16.mxu0 0
    %2225 = vmatpush2.bf16.msra.mxu0 0
    %2226 = vmatprep.subr.bf16.mxu0 0
    %2227 = vmatpush2.bf16.msra.mxu0 0
    %2228 = vmatprep.subr.bf16.mxu0 0
    %2229 = vmatpush2.bf16.msra.mxu0 0
    %2230 = vmatprep.subr.bf16.mxu0 0
    %2231 = vmatpush2.bf16.msra.mxu0 0
    %2232 = vmatprep.subr.bf16.mxu0 0
    %2233 = vmatpush2.bf16.msra.mxu0 0
    %2234 = vmatprep.subr.bf16.mxu0 0
    %2235 = vmatpush2.bf16.msra.mxu0 0
    %2236 = vmatprep.subr.bf16.mxu0 0
    %2237 = vmatpush2.bf16.msra.mxu0 0
    %2238 = vmatprep.subr.bf16.mxu0 0
    %2239 = vmatpush2.bf16.msra.mxu0 0
    %2240 = vmatprep.mubr.bf16.mxu0 0
    %2241 = vmatmul.mubr.bf16.gmra.mxu0 %v2203
    %v2242 = vpop.f32.mrf.mxu0
    %v2243 = vadd.f32 0.0, %v2242
    %v2244 = vpop.f32.mrf.mxu0
    %v2245 = vpop.f32.mrf.mxu0
    %v2246 = vpop.f32.mrf.mxu0
    %2247 = vdwg.mxu0
    %v2248 = vadd.f32 %v2178, %v2243
    %s2249 = scalar_lea.vmem %s4, 380
    %v2250 = vld [vmem:[%s2249] sm:$0xf]
    %v2251 = vld [vmem:[%s2249 + $0x4] sm:$0xf]
    %v2252 = vld [vmem:[%s2249 + $0x8] sm:$0xf]
    %v2253 = vld [vmem:[%s2249 + $0xc] sm:$0xf]
    %v2254 = vld [vmem:[%s2249 + $0x10] sm:$0x3]
    %v2255 = vrot.slane %v2115, 1
    %v2261 = vunpack.c.l.b16 %v2250
    %v2262 = vunpack.c.l.b16 %v2251
    %v2263 = vunpack.c.l.b16 %v2252
    %v2264 = vunpack.c.l.b16 %v2253
    %v2265 = vunpack.c.l.b16 %v2254
    %v2266 = vpack.c.b16 %v2262, %v2261
    %v2267 = vpack.c.b16 %v2264, %v2263
    %v2268 = vpack.c.b16 %v2265, %v2265
    %v2272 = vsel %vm952, %v2255, 0
    %v2275 = vsel %vm956, %v2268, 0
    %2277 = vmatprep.subr.bf16.mxu0 0
    %2278 = vmatpush1.bf16.msra.mxu0 0
    %2279 = vmatprep.subr.bf16.mxu0 0
    %2280 = vmatpush1.bf16.msra.mxu0 0
    %2281 = vmatprep.subr.bf16.mxu0 0
    %2282 = vmatpush1.bf16.msra.mxu0 0
    %2283 = vmatprep.subr.bf16.mxu0 0
    %2284 = vmatpush1.bf16.msra.mxu0 0
    %2285 = vmatprep.subr.bf16.mxu0 0
    %2286 = vmatpush1.bf16.msra.mxu0 0
    %2287 = vmatprep.subr.bf16.mxu0 0
    %2288 = vmatpush1.bf16.msra.mxu0 %v2275
    %2289 = vmatprep.subr.bf16.mxu0 0
    %2290 = vmatpush1.bf16.msra.mxu0 %v2267
    %2291 = vmatprep.subr.bf16.mxu0 0
    %2292 = vmatpush1.bf16.msra.mxu0 %v2266
    %2293 = vmatprep.subr.bf16.mxu0 0
    %2294 = vmatpush2.bf16.msra.mxu0 0
    %2295 = vmatprep.subr.bf16.mxu0 0
    %2296 = vmatpush2.bf16.msra.mxu0 0
    %2297 = vmatprep.subr.bf16.mxu0 0
    %2298 = vmatpush2.bf16.msra.mxu0 0
    %2299 = vmatprep.subr.bf16.mxu0 0
    %2300 = vmatpush2.bf16.msra.mxu0 0
    %2301 = vmatprep.subr.bf16.mxu0 0
    %2302 = vmatpush2.bf16.msra.mxu0 0
    %2303 = vmatprep.subr.bf16.mxu0 0
    %2304 = vmatpush2.bf16.msra.mxu0 0
    %2305 = vmatprep.subr.bf16.mxu0 0
    %2306 = vmatpush2.bf16.msra.mxu0 0
    %2307 = vmatprep.subr.bf16.mxu0 0
    %2308 = vmatpush2.bf16.msra.mxu0 0
    %2309 = vmatprep.mubr.bf16.mxu0 0
    %2310 = vmatmul.mubr.bf16.gmra.mxu0 %v2272
    %v2311 = vpop.f32.mrf.mxu0
    %v2312 = vadd.f32 0.0, %v2311
    %v2313 = vpop.f32.mrf.mxu0
    %v2314 = vpop.f32.mrf.mxu0
    %v2315 = vpop.f32.mrf.mxu0
    %2316 = vdwg.mxu0
    %v2317 = vadd.f32 %v2248, %v2312
    %v2318 = vmax.f32 %v2317, 0.0
    %v2319 = vld [vmem:[%s6] sm:$0xff]
    %v2320 = vld [vmem:[%s6 + $0x8] sm:$0xff]
    %v2321 = vld [vmem:[%s6 + $0x10] sm:$0xff]
    %v2322 = vld [vmem:[%s6 + $0x18] sm:$0xff]
    %v2323 = vld [vmem:[%s6 + $0x20] sm:$0xff]
    %v2324 = vld [vmem:[%s6 + $0x28] sm:$0xff]
    %v2325 = vld [vmem:[%s6 + $0x30] sm:$0xff]
    %v2326 = vld [vmem:[%s6 + $0x38] sm:$0xff]
    %v2327 = vld [vmem:[%s6 + $0x40] sm:$0xff]
    %v2328 = vld [vmem:[%s6 + $0x48] sm:$0xff]
    %v2329 = vld [vmem:[%s6 + $0x50] sm:$0xff]
    %v2330 = vld [vmem:[%s6 + $0x58] sm:$0xff]
    %v2331 = vld [vmem:[%s6 + $0x60] sm:$0xf]
    %v2332 = vld [vmem:[%s7] sm:$0x1]
    %vm2333 = vcmask 818176
    %v2335 = vsel %vm2333, %v2318, 0
    %v2338 = vsel %vm682, %v2331, 0
    %2340 = vmatprep.subr.mxu0 0.0
    %2341 = vmatpush1.msra.mxu0 0.0
    %2342 = vmatprep.subr.mxu0 0.0
    %2343 = vmatpush1.msra.mxu0 0.0
    %2344 = vmatprep.subr.mxu0 0.0
    %2345 = vmatpush1.msra.mxu0 0.0
    %2346 = vmatprep.subr.mxu0 0.0
    %2347 = vmatpush1.msra.mxu0 %v2338
    %2348 = vmatprep.subr.mxu0 0.0
    %2349 = vmatpush1.msra.mxu0 %v2330
    %2350 = vmatprep.subr.mxu0 0.0
    %2351 = vmatpush1.msra.mxu0 %v2329
    %2352 = vmatprep.subr.mxu0 0.0
    %2353 = vmatpush1.msra.mxu0 %v2328
    %2354 = vmatprep.subr.mxu0 0.0
    %2355 = vmatpush1.msra.mxu0 %v2327
    %2356 = vmatprep.subr.mxu0 0.0
    %2357 = vmatpush1.msra.mxu0 %v2326
    %2358 = vmatprep.subr.mxu0 0.0
    %2359 = vmatpush1.msra.mxu0 %v2325
    %2360 = vmatprep.subr.mxu0 0.0
    %2361 = vmatpush1.msra.mxu0 %v2324
    %2362 = vmatprep.subr.mxu0 0.0
    %2363 = vmatpush1.msra.mxu0 %v2323
    %2364 = vmatprep.subr.mxu0 0.0
    %2365 = vmatpush1.msra.mxu0 %v2322
    %2366 = vmatprep.subr.mxu0 0.0
    %2367 = vmatpush1.msra.mxu0 %v2321
    %2368 = vmatprep.subr.mxu0 0.0
    %2369 = vmatpush1.msra.mxu0 %v2320
    %2370 = vmatprep.subr.mxu0 0.0
    %2371 = vmatpush1.msra.mxu0 %v2319
    %2372 = vmatprep.subr.mxu0 0.0
    %2373 = vmatpush2.msra.mxu0 0.0
    %2374 = vmatprep.subr.mxu0 0.0
    %2375 = vmatpush2.msra.mxu0 0.0
    %2376 = vmatprep.subr.mxu0 0.0
    %2377 = vmatpush2.msra.mxu0 0.0
    %2378 = vmatprep.subr.mxu0 0.0
    %2379 = vmatpush2.msra.mxu0 0.0
    %2380 = vmatprep.subr.mxu0 0.0
    %2381 = vmatpush2.msra.mxu0 0.0
    %2382 = vmatprep.subr.mxu0 0.0
    %2383 = vmatpush2.msra.mxu0 0.0
    %2384 = vmatprep.subr.mxu0 0.0
    %2385 = vmatpush2.msra.mxu0 0.0
    %2386 = vmatprep.subr.mxu0 0.0
    %2387 = vmatpush2.msra.mxu0 0.0
    %2388 = vmatprep.subr.mxu0 0.0
    %2389 = vmatpush2.msra.mxu0 0.0
    %2390 = vmatprep.subr.mxu0 0.0
    %2391 = vmatpush2.msra.mxu0 0.0
    %2392 = vmatprep.subr.mxu0 0.0
    %2393 = vmatpush2.msra.mxu0 0.0
    %2394 = vmatprep.subr.mxu0 0.0
    %2395 = vmatpush2.msra.mxu0 0.0
    %2396 = vmatprep.subr.mxu0 0.0
    %2397 = vmatpush2.msra.mxu0 0.0
    %2398 = vmatprep.subr.mxu0 0.0
    %2399 = vmatpush2.msra.mxu0 0.0
    %2400 = vmatprep.subr.mxu0 0.0
    %2401 = vmatpush2.msra.mxu0 0.0
    %2402 = vmatprep.subr.mxu0 0.0
    %2403 = vmatpush2.msra.mxu0 0.0
    %2404 = vmatprep.mubr.f32.mxu0 0.0
    %2405 = vmatmul.mubr.f32.gmra.mxu0 %v2335
    %v2406 = vpop.f32.mrf.mxu0
    %v2407 = vadd.f32 %v2332, %v2406
    %v2408 = vpop.f32.mrf.mxu0
    %2409 = vdwg.mxu0
    %vm2410 = vcmask 114688
    %2411 = vst.msk [vmem:[#allocation2] sm:$0x1] %vm2410, %v2407
    %v2412 = vld [vmem:[%s5] sm:$0x1]
    %v2413 = vld [vmem:[%s4] sm:$0xf]
    %v2414 = vld [vmem:[%s4 + $0x4] sm:$0xf]
    %v2415 = vld [vmem:[%s4 + $0x8] sm:$0xf]
    %v2416 = vld [vmem:[%s4 + $0xc] sm:$0xf]
    %v2417 = vld [vmem:[%s4 + $0x10] sm:$0x3]
    %2418 = vrot.lane.b32.xlu0 %v931, 92
    %v2419 = vpop.permute.xlu0 %2418
    %v2425 = vunpack.c.l.b16 %v2413
    %v2426 = vunpack.c.l.b16 %v2414
    %v2427 = vunpack.c.l.b16 %v2415
    %v2428 = vunpack.c.l.b16 %v2416
    %v2429 = vunpack.c.l.b16 %v2417
    %v2430 = vpack.c.b16 %v2426, %v2425
    %v2431 = vpack.c.b16 %v2428, %v2427
    %v2432 = vpack.c.b16 %v2429, %v2429
    %v2436 = vsel %vm952, %v2419, 0
    %v2439 = vsel %vm956, %v2432, 0
    %2441 = vmatprep.subr.bf16.mxu0 0
    %2442 = vmatpush1.bf16.msra.mxu0 0
    %2443 = vmatprep.subr.bf16.mxu0 0
    %2444 = vmatpush1.bf16.msra.mxu0 0
    %2445 = vmatprep.subr.bf16.mxu0 0
    %2446 = vmatpush1.bf16.msra.mxu0 0
    %2447 = vmatprep.subr.bf16.mxu0 0
    %2448 = vmatpush1.bf16.msra.mxu0 0
    %2449 = vmatprep.subr.bf16.mxu0 0
    %2450 = vmatpush1.bf16.msra.mxu0 0
    %2451 = vmatprep.subr.bf16.mxu0 0
    %2452 = vmatpush1.bf16.msra.mxu0 %v2439
    %2453 = vmatprep.subr.bf16.mxu0 0
    %2454 = vmatpush1.bf16.msra.mxu0 %v2431
    %2455 = vmatprep.subr.bf16.mxu0 0
    %2456 = vmatpush1.bf16.msra.mxu0 %v2430
    %2457 = vmatprep.subr.bf16.mxu0 0
    %2458 = vmatpush2.bf16.msra.mxu0 0
    %2459 = vmatprep.subr.bf16.mxu0 0
    %2460 = vmatpush2.bf16.msra.mxu0 0
    %2461 = vmatprep.subr.bf16.mxu0 0
    %2462 = vmatpush2.bf16.msra.mxu0 0
    %2463 = vmatprep.subr.bf16.mxu0 0
    %2464 = vmatpush2.bf16.msra.mxu0 0
    %2465 = vmatprep.subr.bf16.mxu0 0
    %2466 = vmatpush2.bf16.msra.mxu0 0
    %2467 = vmatprep.subr.bf16.mxu0 0
    %2468 = vmatpush2.bf16.msra.mxu0 0
    %2469 = vmatprep.subr.bf16.mxu0 0
    %2470 = vmatpush2.bf16.msra.mxu0 0
    %2471 = vmatprep.subr.bf16.mxu0 0
    %2472 = vmatpush2.bf16.msra.mxu0 0
    %2473 = vmatprep.mubr.bf16.mxu0 0
    %2474 = vmatmul.mubr.bf16.gmra.mxu0 %v2436
    %v2475 = vpop.f32.mrf.mxu0
    %v2476 = vadd.f32 0.0, %v2475
    %v2477 = vpop.f32.mrf.mxu0
    %v2478 = vpop.f32.mrf.mxu0
    %v2479 = vpop.f32.mrf.mxu0
    %2480 = vdwg.mxu0
    %v2481 = vadd.f32 %v2412, %v2476
    %v2482 = vld [vmem:[%s1001] sm:$0xf]
    %v2483 = vld [vmem:[%s1001 + $0x4] sm:$0xf]
    %v2484 = vld [vmem:[%s1001 + $0x8] sm:$0xf]
    %v2485 = vld [vmem:[%s1001 + $0xc] sm:$0xf]
    %v2486 = vld [vmem:[%s1001 + $0x10] sm:$0x3]
    %2487 = vrot.lane.b32.xlu0 %v1007, 92
    %v2488 = vpop.permute.xlu0 %2487
    %v2494 = vunpack.c.l.b16 %v2482
    %v2495 = vunpack.c.l.b16 %v2483
    %v2496 = vunpack.c.l.b16 %v2484
    %v2497 = vunpack.c.l.b16 %v2485
    %v2498 = vunpack.c.l.b16 %v2486
    %v2499 = vpack.c.b16 %v2495, %v2494
    %v2500 = vpack.c.b16 %v2497, %v2496
    %v2501 = vpack.c.b16 %v2498, %v2498
    %v2505 = vsel %vm952, %v2488, 0
    %v2508 = vsel %vm956, %v2501, 0
    %2510 = vmatprep.subr.bf16.mxu0 0
    %2511 = vmatpush1.bf16.msra.mxu0 0
    %2512 = vmatprep.subr.bf16.mxu0 0
    %2513 = vmatpush1.bf16.msra.mxu0 0
    %2514 = vmatprep.subr.bf16.mxu0 0
    %2515 = vmatpush1.bf16.msra.mxu0 0
    %2516 = vmatprep.subr.bf16.mxu0 0
    %2517 = vmatpush1.bf16.msra.mxu0 0
    %2518 = vmatprep.subr.bf16.mxu0 0
    %2519 = vmatpush1.bf16.msra.mxu0 0
    %2520 = vmatprep.subr.bf16.mxu0 0
    %2521 = vmatpush1.bf16.msra.mxu0 %v2508
    %2522 = vmatprep.subr.bf16.mxu0 0
    %2523 = vmatpush1.bf16.msra.mxu0 %v2500
    %2524 = vmatprep.subr.bf16.mxu0 0
    %2525 = vmatpush1.bf16.msra.mxu0 %v2499
    %2526 = vmatprep.subr.bf16.mxu0 0
    %2527 = vmatpush2.bf16.msra.mxu0 0
    %2528 = vmatprep.subr.bf16.mxu0 0
    %2529 = vmatpush2.bf16.msra.mxu0 0
    %2530 = vmatprep.subr.bf16.mxu0 0
    %2531 = vmatpush2.bf16.msra.mxu0 0
    %2532 = vmatprep.subr.bf16.mxu0 0
    %2533 = vmatpush2.bf16.msra.mxu0 0
    %2534 = vmatprep.subr.bf16.mxu0 0
    %2535 = vmatpush2.bf16.msra.mxu0 0
    %2536 = vmatprep.subr.bf16.mxu0 0
    %2537 = vmatpush2.bf16.msra.mxu0 0
    %2538 = vmatprep.subr.bf16.mxu0 0
    %2539 = vmatpush2.bf16.msra.mxu0 0
    %2540 = vmatprep.subr.bf16.mxu0 0
    %2541 = vmatpush2.bf16.msra.mxu0 0
    %2542 = vmatprep.mubr.bf16.mxu0 0
    %2543 = vmatmul.mubr.bf16.gmra.mxu0 %v2505
    %v2544 = vpop.f32.mrf.mxu0
    %v2545 = vadd.f32 0.0, %v2544
    %v2546 = vpop.f32.mrf.mxu0
    %v2547 = vpop.f32.mrf.mxu0
    %v2548 = vpop.f32.mrf.mxu0
    %2549 = vdwg.mxu0
    %v2550 = vadd.f32 %v2481, %v2545
    %v2551 = vld [vmem:[%s1071] sm:$0xf]
    %v2552 = vld [vmem:[%s1071 + $0x4] sm:$0xf]
    %v2553 = vld [vmem:[%s1071 + $0x8] sm:$0xf]
    %v2554 = vld [vmem:[%s1071 + $0xc] sm:$0xf]
    %v2555 = vld [vmem:[%s1071 + $0x10] sm:$0x3]
    %2556 = vrot.lane.b32.xlu0 %v1078, 92
    %v2557 = vpop.permute.xlu0 %2556
    %v2563 = vunpack.c.l.b16 %v2551
    %v2564 = vunpack.c.l.b16 %v2552
    %v2565 = vunpack.c.l.b16 %v2553
    %v2566 = vunpack.c.l.b16 %v2554
    %v2567 = vunpack.c.l.b16 %v2555
    %v2568 = vpack.c.b16 %v2564, %v2563
    %v2569 = vpack.c.b16 %v2566, %v2565
    %v2570 = vpack.c.b16 %v2567, %v2567
    %v2574 = vsel %vm952, %v2557, 0
    %v2577 = vsel %vm956, %v2570, 0
    %2579 = vmatprep.subr.bf16.mxu0 0
    %2580 = vmatpush1.bf16.msra.mxu0 0
    %2581 = vmatprep.subr.bf16.mxu0 0
    %2582 = vmatpush1.bf16.msra.mxu0 0
    %2583 = vmatprep.subr.bf16.mxu0 0
    %2584 = vmatpush1.bf16.msra.mxu0 0
    %2585 = vmatprep.subr.bf16.mxu0 0
    %2586 = vmatpush1.bf16.msra.mxu0 0
    %2587 = vmatprep.subr.bf16.mxu0 0
    %2588 = vmatpush1.bf16.msra.mxu0 0
    %2589 = vmatprep.subr.bf16.mxu0 0
    %2590 = vmatpush1.bf16.msra.mxu0 %v2577
    %2591 = vmatprep.subr.bf16.mxu0 0
    %2592 = vmatpush1.bf16.msra.mxu0 %v2569
    %2593 = vmatprep.subr.bf16.mxu0 0
    %2594 = vmatpush1.bf16.msra.mxu0 %v2568
    %2595 = vmatprep.subr.bf16.mxu0 0
    %2596 = vmatpush2.bf16.msra.mxu0 0
    %2597 = vmatprep.subr.bf16.mxu0 0
    %2598 = vmatpush2.bf16.msra.mxu0 0
    %2599 = vmatprep.subr.bf16.mxu0 0
    %2600 = vmatpush2.bf16.msra.mxu0 0
    %2601 = vmatprep.subr.bf16.mxu0 0
    %2602 = vmatpush2.bf16.msra.mxu0 0
    %2603 = vmatprep.subr.bf16.mxu0 0
    %2604 = vmatpush2.bf16.msra.mxu0 0
    %2605 = vmatprep.subr.bf16.mxu0 0
    %2606 = vmatpush2.bf16.msra.mxu0 0
    %2607 = vmatprep.subr.bf16.mxu0 0
    %2608 = vmatpush2.bf16.msra.mxu0 0
    %2609 = vmatprep.subr.bf16.mxu0 0
    %2610 = vmatpush2.bf16.msra.mxu0 0
    %2611 = vmatprep.mubr.bf16.mxu0 0
    %2612 = vmatmul.mubr.bf16.gmra.mxu0 %v2574
    %v2613 = vpop.f32.mrf.mxu0
    %v2614 = vadd.f32 0.0, %v2613
    %v2615 = vpop.f32.mrf.mxu0
    %v2616 = vpop.f32.mrf.mxu0
    %v2617 = vpop.f32.mrf.mxu0
    %2618 = vdwg.mxu0
    %v2619 = vadd.f32 %v2550, %v2614
    %v2620 = vld [vmem:[%s1141] sm:$0xf]
    %v2621 = vld [vmem:[%s1141 + $0x4] sm:$0xf]
    %v2622 = vld [vmem:[%s1141 + $0x8] sm:$0xf]
    %v2623 = vld [vmem:[%s1141 + $0xc] sm:$0xf]
    %v2624 = vld [vmem:[%s1141 + $0x10] sm:$0x3]
    %2625 = vrot.lane.b32.xlu0 %v1147, 92
    %v2626 = vpop.permute.xlu0 %2625
    %v2632 = vunpack.c.l.b16 %v2620
    %v2633 = vunpack.c.l.b16 %v2621
    %v2634 = vunpack.c.l.b16 %v2622
    %v2635 = vunpack.c.l.b16 %v2623
    %v2636 = vunpack.c.l.b16 %v2624
    %v2637 = vpack.c.b16 %v2633, %v2632
    %v2638 = vpack.c.b16 %v2635, %v2634
    %v2639 = vpack.c.b16 %v2636, %v2636
    %v2643 = vsel %vm952, %v2626, 0
    %v2646 = vsel %vm956, %v2639, 0
    %2648 = vmatprep.subr.bf16.mxu0 0
    %2649 = vmatpush1.bf16.msra.mxu0 0
    %2650 = vmatprep.subr.bf16.mxu0 0
    %2651 = vmatpush1.bf16.msra.mxu0 0
    %2652 = vmatprep.subr.bf16.mxu0 0
    %2653 = vmatpush1.bf16.msra.mxu0 0
    %2654 = vmatprep.subr.bf16.mxu0 0
    %2655 = vmatpush1.bf16.msra.mxu0 0
    %2656 = vmatprep.subr.bf16.mxu0 0
    %2657 = vmatpush1.bf16.msra.mxu0 0
    %2658 = vmatprep.subr.bf16.mxu0 0
    %2659 = vmatpush1.bf16.msra.mxu0 %v2646
    %2660 = vmatprep.subr.bf16.mxu0 0
    %2661 = vmatpush1.bf16.msra.mxu0 %v2638
    %2662 = vmatprep.subr.bf16.mxu0 0
    %2663 = vmatpush1.bf16.msra.mxu0 %v2637
    %2664 = vmatprep.subr.bf16.mxu0 0
    %2665 = vmatpush2.bf16.msra.mxu0 0
    %2666 = vmatprep.subr.bf16.mxu0 0
    %2667 = vmatpush2.bf16.msra.mxu0 0
    %2668 = vmatprep.subr.bf16.mxu0 0
    %2669 = vmatpush2.bf16.msra.mxu0 0
    %2670 = vmatprep.subr.bf16.mxu0 0
    %2671 = vmatpush2.bf16.msra.mxu0 0
    %2672 = vmatprep.subr.bf16.mxu0 0
    %2673 = vmatpush2.bf16.msra.mxu0 0
    %2674 = vmatprep.subr.bf16.mxu0 0
    %2675 = vmatpush2.bf16.msra.mxu0 0
    %2676 = vmatprep.subr.bf16.mxu0 0
    %2677 = vmatpush2.bf16.msra.mxu0 0
    %2678 = vmatprep.subr.bf16.mxu0 0
    %2679 = vmatpush2.bf16.msra.mxu0 0
    %2680 = vmatprep.mubr.bf16.mxu0 0
    %2681 = vmatmul.mubr.bf16.gmra.mxu0 %v2643
    %v2682 = vpop.f32.mrf.mxu0
    %v2683 = vadd.f32 0.0, %v2682
    %v2684 = vpop.f32.mrf.mxu0
    %v2685 = vpop.f32.mrf.mxu0
    %v2686 = vpop.f32.mrf.mxu0
    %2687 = vdwg.mxu0
    %v2688 = vadd.f32 %v2619, %v2683
    %v2689 = vld [vmem:[%s1210] sm:$0xf]
    %v2690 = vld [vmem:[%s1210 + $0x4] sm:$0xf]
    %v2691 = vld [vmem:[%s1210 + $0x8] sm:$0xf]
    %v2692 = vld [vmem:[%s1210 + $0xc] sm:$0xf]
    %v2693 = vld [vmem:[%s1210 + $0x10] sm:$0x3]
    %2694 = vrot.lane.b32.xlu0 %v1216, 92
    %v2695 = vpop.permute.xlu0 %2694
    %v2701 = vunpack.c.l.b16 %v2689
    %v2702 = vunpack.c.l.b16 %v2690
    %v2703 = vunpack.c.l.b16 %v2691
    %v2704 = vunpack.c.l.b16 %v2692
    %v2705 = vunpack.c.l.b16 %v2693
    %v2706 = vpack.c.b16 %v2702, %v2701
    %v2707 = vpack.c.b16 %v2704, %v2703
    %v2708 = vpack.c.b16 %v2705, %v2705
    %v2712 = vsel %vm952, %v2695, 0
    %v2715 = vsel %vm956, %v2708, 0
    %2717 = vmatprep.subr.bf16.mxu0 0
    %2718 = vmatpush1.bf16.msra.mxu0 0
    %2719 = vmatprep.subr.bf16.mxu0 0
    %2720 = vmatpush1.bf16.msra.mxu0 0
    %2721 = vmatprep.subr.bf16.mxu0 0
    %2722 = vmatpush1.bf16.msra.mxu0 0
    %2723 = vmatprep.subr.bf16.mxu0 0
    %2724 = vmatpush1.bf16.msra.mxu0 0
    %2725 = vmatprep.subr.bf16.mxu0 0
    %2726 = vmatpush1.bf16.msra.mxu0 0
    %2727 = vmatprep.subr.bf16.mxu0 0
    %2728 = vmatpush1.bf16.msra.mxu0 %v2715
    %2729 = vmatprep.subr.bf16.mxu0 0
    %2730 = vmatpush1.bf16.msra.mxu0 %v2707
    %2731 = vmatprep.subr.bf16.mxu0 0
    %2732 = vmatpush1.bf16.msra.mxu0 %v2706
    %2733 = vmatprep.subr.bf16.mxu0 0
    %2734 = vmatpush2.bf16.msra.mxu0 0
    %2735 = vmatprep.subr.bf16.mxu0 0
    %2736 = vmatpush2.bf16.msra.mxu0 0
    %2737 = vmatprep.subr.bf16.mxu0 0
    %2738 = vmatpush2.bf16.msra.mxu0 0
    %2739 = vmatprep.subr.bf16.mxu0 0
    %2740 = vmatpush2.bf16.msra.mxu0 0
    %2741 = vmatprep.subr.bf16.mxu0 0
    %2742 = vmatpush2.bf16.msra.mxu0 0
    %2743 = vmatprep.subr.bf16.mxu0 0
    %2744 = vmatpush2.bf16.msra.mxu0 0
    %2745 = vmatprep.subr.bf16.mxu0 0
    %2746 = vmatpush2.bf16.msra.mxu0 0
    %2747 = vmatprep.subr.bf16.mxu0 0
    %2748 = vmatpush2.bf16.msra.mxu0 0
    %2749 = vmatprep.mubr.bf16.mxu0 0
    %2750 = vmatmul.mubr.bf16.gmra.mxu0 %v2712
    %v2751 = vpop.f32.mrf.mxu0
    %v2752 = vadd.f32 0.0, %v2751
    %v2753 = vpop.f32.mrf.mxu0
    %v2754 = vpop.f32.mrf.mxu0
    %v2755 = vpop.f32.mrf.mxu0
    %2756 = vdwg.mxu0
    %v2757 = vadd.f32 %v2688, %v2752
    %v2758 = vld [vmem:[%s1279] sm:$0xf]
    %v2759 = vld [vmem:[%s1279 + $0x4] sm:$0xf]
    %v2760 = vld [vmem:[%s1279 + $0x8] sm:$0xf]
    %v2761 = vld [vmem:[%s1279 + $0xc] sm:$0xf]
    %v2762 = vld [vmem:[%s1279 + $0x10] sm:$0x3]
    %2763 = vrot.lane.b32.xlu0 %v1285, 92
    %v2764 = vpop.permute.xlu0 %2763
    %v2770 = vunpack.c.l.b16 %v2758
    %v2771 = vunpack.c.l.b16 %v2759
    %v2772 = vunpack.c.l.b16 %v2760
    %v2773 = vunpack.c.l.b16 %v2761
    %v2774 = vunpack.c.l.b16 %v2762
    %v2775 = vpack.c.b16 %v2771, %v2770
    %v2776 = vpack.c.b16 %v2773, %v2772
    %v2777 = vpack.c.b16 %v2774, %v2774
    %v2781 = vsel %vm952, %v2764, 0
    %v2784 = vsel %vm956, %v2777, 0
    %2786 = vmatprep.subr.bf16.mxu0 0
    %2787 = vmatpush1.bf16.msra.mxu0 0
    %2788 = vmatprep.subr.bf16.mxu0 0
    %2789 = vmatpush1.bf16.msra.mxu0 0
    %2790 = vmatprep.subr.bf16.mxu0 0
    %2791 = vmatpush1.bf16.msra.mxu0 0
    %2792 = vmatprep.subr.bf16.mxu0 0
    %2793 = vmatpush1.bf16.msra.mxu0 0
    %2794 = vmatprep.subr.bf16.mxu0 0
    %2795 = vmatpush1.bf16.msra.mxu0 0
    %2796 = vmatprep.subr.bf16.mxu0 0
    %2797 = vmatpush1.bf16.msra.mxu0 %v2784
    %2798 = vmatprep.subr.bf16.mxu0 0
    %2799 = vmatpush1.bf16.msra.mxu0 %v2776
    %2800 = vmatprep.subr.bf16.mxu0 0
    %2801 = vmatpush1.bf16.msra.mxu0 %v2775
    %2802 = vmatprep.subr.bf16.mxu0 0
    %2803 = vmatpush2.bf16.msra.mxu0 0
    %2804 = vmatprep.subr.bf16.mxu0 0
    %2805 = vmatpush2.bf16.msra.mxu0 0
    %2806 = vmatprep.subr.bf16.mxu0 0
    %2807 = vmatpush2.bf16.msra.mxu0 0
    %2808 = vmatprep.subr.bf16.mxu0 0
    %2809 = vmatpush2.bf16.msra.mxu0 0
    %2810 = vmatprep.subr.bf16.mxu0 0
    %2811 = vmatpush2.bf16.msra.mxu0 0
    %2812 = vmatprep.subr.bf16.mxu0 0
    %2813 = vmatpush2.bf16.msra.mxu0 0
    %2814 = vmatprep.subr.bf16.mxu0 0
    %2815 = vmatpush2.bf16.msra.mxu0 0
    %2816 = vmatprep.subr.bf16.mxu0 0
    %2817 = vmatpush2.bf16.msra.mxu0 0
    %2818 = vmatprep.mubr.bf16.mxu0 0
    %2819 = vmatmul.mubr.bf16.gmra.mxu0 %v2781
    %v2820 = vpop.f32.mrf.mxu0
    %v2821 = vadd.f32 0.0, %v2820
    %v2822 = vpop.f32.mrf.mxu0
    %v2823 = vpop.f32.mrf.mxu0
    %v2824 = vpop.f32.mrf.mxu0
    %2825 = vdwg.mxu0
    %v2826 = vadd.f32 %v2757, %v2821
    %v2827 = vld [vmem:[%s1348] sm:$0xf]
    %v2828 = vld [vmem:[%s1348 + $0x4] sm:$0xf]
    %v2829 = vld [vmem:[%s1348 + $0x8] sm:$0xf]
    %v2830 = vld [vmem:[%s1348 + $0xc] sm:$0xf]
    %v2831 = vld [vmem:[%s1348 + $0x10] sm:$0x3]
    %2832 = vrot.lane.b32.xlu0 %v1354, 92
    %v2833 = vpop.permute.xlu0 %2832
    %v2839 = vunpack.c.l.b16 %v2827
    %v2840 = vunpack.c.l.b16 %v2828
    %v2841 = vunpack.c.l.b16 %v2829
    %v2842 = vunpack.c.l.b16 %v2830
    %v2843 = vunpack.c.l.b16 %v2831
    %v2844 = vpack.c.b16 %v2840, %v2839
    %v2845 = vpack.c.b16 %v2842, %v2841
    %v2846 = vpack.c.b16 %v2843, %v2843
    %v2850 = vsel %vm952, %v2833, 0
    %v2853 = vsel %vm956, %v2846, 0
    %2855 = vmatprep.subr.bf16.mxu0 0
    %2856 = vmatpush1.bf16.msra.mxu0 0
    %2857 = vmatprep.subr.bf16.mxu0 0
    %2858 = vmatpush1.bf16.msra.mxu0 0
    %2859 = vmatprep.subr.bf16.mxu0 0
    %2860 = vmatpush1.bf16.msra.mxu0 0
    %2861 = vmatprep.subr.bf16.mxu0 0
    %2862 = vmatpush1.bf16.msra.mxu0 0
    %2863 = vmatprep.subr.bf16.mxu0 0
    %2864 = vmatpush1.bf16.msra.mxu0 0
    %2865 = vmatprep.subr.bf16.mxu0 0
    %2866 = vmatpush1.bf16.msra.mxu0 %v2853
    %2867 = vmatprep.subr.bf16.mxu0 0
    %2868 = vmatpush1.bf16.msra.mxu0 %v2845
    %2869 = vmatprep.subr.bf16.mxu0 0
    %2870 = vmatpush1.bf16.msra.mxu0 %v2844
    %2871 = vmatprep.subr.bf16.mxu0 0
    %2872 = vmatpush2.bf16.msra.mxu0 0
    %2873 = vmatprep.subr.bf16.mxu0 0
    %2874 = vmatpush2.bf16.msra.mxu0 0
    %2875 = vmatprep.subr.bf16.mxu0 0
    %2876 = vmatpush2.bf16.msra.mxu0 0
    %2877 = vmatprep.subr.bf16.mxu0 0
    %2878 = vmatpush2.bf16.msra.mxu0 0
    %2879 = vmatprep.subr.bf16.mxu0 0
    %2880 = vmatpush2.bf16.msra.mxu0 0
    %2881 = vmatprep.subr.bf16.mxu0 0
    %2882 = vmatpush2.bf16.msra.mxu0 0
    %2883 = vmatprep.subr.bf16.mxu0 0
    %2884 = vmatpush2.bf16.msra.mxu0 0
    %2885 = vmatprep.subr.bf16.mxu0 0
    %2886 = vmatpush2.bf16.msra.mxu0 0
    %2887 = vmatprep.mubr.bf16.mxu0 0
    %2888 = vmatmul.mubr.bf16.gmra.mxu0 %v2850
    %v2889 = vpop.f32.mrf.mxu0
    %v2890 = vadd.f32 0.0, %v2889
    %v2891 = vpop.f32.mrf.mxu0
    %v2892 = vpop.f32.mrf.mxu0
    %v2893 = vpop.f32.mrf.mxu0
    %2894 = vdwg.mxu0
    %v2895 = vadd.f32 %v2826, %v2890
    %v2896 = vld [vmem:[%s1417] sm:$0xf]
    %v2897 = vld [vmem:[%s1417 + $0x4] sm:$0xf]
    %v2898 = vld [vmem:[%s1417 + $0x8] sm:$0xf]
    %v2899 = vld [vmem:[%s1417 + $0xc] sm:$0xf]
    %v2900 = vld [vmem:[%s1417 + $0x10] sm:$0x3]
    %2901 = vrot.lane.b32.xlu0 %v1423, 92
    %v2902 = vpop.permute.xlu0 %2901
    %v2908 = vunpack.c.l.b16 %v2896
    %v2909 = vunpack.c.l.b16 %v2897
    %v2910 = vunpack.c.l.b16 %v2898
    %v2911 = vunpack.c.l.b16 %v2899
    %v2912 = vunpack.c.l.b16 %v2900
    %v2913 = vpack.c.b16 %v2909, %v2908
    %v2914 = vpack.c.b16 %v2911, %v2910
    %v2915 = vpack.c.b16 %v2912, %v2912
    %v2919 = vsel %vm952, %v2902, 0
    %v2922 = vsel %vm956, %v2915, 0
    %2924 = vmatprep.subr.bf16.mxu0 0
    %2925 = vmatpush1.bf16.msra.mxu0 0
    %2926 = vmatprep.subr.bf16.mxu0 0
    %2927 = vmatpush1.bf16.msra.mxu0 0
    %2928 = vmatprep.subr.bf16.mxu0 0
    %2929 = vmatpush1.bf16.msra.mxu0 0
    %2930 = vmatprep.subr.bf16.mxu0 0
    %2931 = vmatpush1.bf16.msra.mxu0 0
    %2932 = vmatprep.subr.bf16.mxu0 0
    %2933 = vmatpush1.bf16.msra.mxu0 0
    %2934 = vmatprep.subr.bf16.mxu0 0
    %2935 = vmatpush1.bf16.msra.mxu0 %v2922
    %2936 = vmatprep.subr.bf16.mxu0 0
    %2937 = vmatpush1.bf16.msra.mxu0 %v2914
    %2938 = vmatprep.subr.bf16.mxu0 0
    %2939 = vmatpush1.bf16.msra.mxu0 %v2913
    %2940 = vmatprep.subr.bf16.mxu0 0
    %2941 = vmatpush2.bf16.msra.mxu0 0
    %2942 = vmatprep.subr.bf16.mxu0 0
    %2943 = vmatpush2.bf16.msra.mxu0 0
    %2944 = vmatprep.subr.bf16.mxu0 0
    %2945 = vmatpush2.bf16.msra.mxu0 0
    %2946 = vmatprep.subr.bf16.mxu0 0
    %2947 = vmatpush2.bf16.msra.mxu0 0
    %2948 = vmatprep.subr.bf16.mxu0 0
    %2949 = vmatpush2.bf16.msra.mxu0 0
    %2950 = vmatprep.subr.bf16.mxu0 0
    %2951 = vmatpush2.bf16.msra.mxu0 0
    %2952 = vmatprep.subr.bf16.mxu0 0
    %2953 = vmatpush2.bf16.msra.mxu0 0
    %2954 = vmatprep.subr.bf16.mxu0 0
    %2955 = vmatpush2.bf16.msra.mxu0 0
    %2956 = vmatprep.mubr.bf16.mxu0 0
    %2957 = vmatmul.mubr.bf16.gmra.mxu0 %v2919
    %v2958 = vpop.f32.mrf.mxu0
    %v2959 = vadd.f32 0.0, %v2958
    %v2960 = vpop.f32.mrf.mxu0
    %v2961 = vpop.f32.mrf.mxu0
    %v2962 = vpop.f32.mrf.mxu0
    %2963 = vdwg.mxu0
    %v2964 = vadd.f32 %v2895, %v2959
    %v2965 = vld [vmem:[%s1487] sm:$0xf]
    %v2966 = vld [vmem:[%s1487 + $0x4] sm:$0xf]
    %v2967 = vld [vmem:[%s1487 + $0x8] sm:$0xf]
    %v2968 = vld [vmem:[%s1487 + $0xc] sm:$0xf]
    %v2969 = vld [vmem:[%s1487 + $0x10] sm:$0x3]
    %2970 = vrot.lane.b32.xlu0 %v1486, 92
    %v2971 = vpop.permute.xlu0 %2970
    %v2977 = vunpack.c.l.b16 %v2965
    %v2978 = vunpack.c.l.b16 %v2966
    %v2979 = vunpack.c.l.b16 %v2967
    %v2980 = vunpack.c.l.b16 %v2968
    %v2981 = vunpack.c.l.b16 %v2969
    %v2982 = vpack.c.b16 %v2978, %v2977
    %v2983 = vpack.c.b16 %v2980, %v2979
    %v2984 = vpack.c.b16 %v2981, %v2981
    %v2988 = vsel %vm952, %v2971, 0
    %v2991 = vsel %vm956, %v2984, 0
    %2993 = vmatprep.subr.bf16.mxu0 0
    %2994 = vmatpush1.bf16.msra.mxu0 0
    %2995 = vmatprep.subr.bf16.mxu0 0
    %2996 = vmatpush1.bf16.msra.mxu0 0
    %2997 = vmatprep.subr.bf16.mxu0 0
    %2998 = vmatpush1.bf16.msra.mxu0 0
    %2999 = vmatprep.subr.bf16.mxu0 0
    %3000 = vmatpush1.bf16.msra.mxu0 0
    %3001 = vmatprep.subr.bf16.mxu0 0
    %3002 = vmatpush1.bf16.msra.mxu0 0
    %3003 = vmatprep.subr.bf16.mxu0 0
    %3004 = vmatpush1.bf16.msra.mxu0 %v2991
    %3005 = vmatprep.subr.bf16.mxu0 0
    %3006 = vmatpush1.bf16.msra.mxu0 %v2983
    %3007 = vmatprep.subr.bf16.mxu0 0
    %3008 = vmatpush1.bf16.msra.mxu0 %v2982
    %3009 = vmatprep.subr.bf16.mxu0 0
    %3010 = vmatpush2.bf16.msra.mxu0 0
    %3011 = vmatprep.subr.bf16.mxu0 0
    %3012 = vmatpush2.bf16.msra.mxu0 0
    %3013 = vmatprep.subr.bf16.mxu0 0
    %3014 = vmatpush2.bf16.msra.mxu0 0
    %3015 = vmatprep.subr.bf16.mxu0 0
    %3016 = vmatpush2.bf16.msra.mxu0 0
    %3017 = vmatprep.subr.bf16.mxu0 0
    %3018 = vmatpush2.bf16.msra.mxu0 0
    %3019 = vmatprep.subr.bf16.mxu0 0
    %3020 = vmatpush2.bf16.msra.mxu0 0
    %3021 = vmatprep.subr.bf16.mxu0 0
    %3022 = vmatpush2.bf16.msra.mxu0 0
    %3023 = vmatprep.subr.bf16.mxu0 0
    %3024 = vmatpush2.bf16.msra.mxu0 0
    %3025 = vmatprep.mubr.bf16.mxu0 0
    %3026 = vmatmul.mubr.bf16.gmra.mxu0 %v2988
    %v3027 = vpop.f32.mrf.mxu0
    %v3028 = vadd.f32 0.0, %v3027
    %v3029 = vpop.f32.mrf.mxu0
    %v3030 = vpop.f32.mrf.mxu0
    %v3031 = vpop.f32.mrf.mxu0
    %3032 = vdwg.mxu0
    %v3033 = vadd.f32 %v2964, %v3028
    %v3034 = vld [vmem:[%s1555] sm:$0xf]
    %v3035 = vld [vmem:[%s1555 + $0x4] sm:$0xf]
    %v3036 = vld [vmem:[%s1555 + $0x8] sm:$0xf]
    %v3037 = vld [vmem:[%s1555 + $0xc] sm:$0xf]
    %v3038 = vld [vmem:[%s1555 + $0x10] sm:$0x3]
    %3039 = vrot.lane.b32.xlu0 %v1561, 92
    %v3040 = vpop.permute.xlu0 %3039
    %v3046 = vunpack.c.l.b16 %v3034
    %v3047 = vunpack.c.l.b16 %v3035
    %v3048 = vunpack.c.l.b16 %v3036
    %v3049 = vunpack.c.l.b16 %v3037
    %v3050 = vunpack.c.l.b16 %v3038
    %v3051 = vpack.c.b16 %v3047, %v3046
    %v3052 = vpack.c.b16 %v3049, %v3048
    %v3053 = vpack.c.b16 %v3050, %v3050
    %v3057 = vsel %vm952, %v3040, 0
    %v3060 = vsel %vm956, %v3053, 0
    %3062 = vmatprep.subr.bf16.mxu0 0
    %3063 = vmatpush1.bf16.msra.mxu0 0
    %3064 = vmatprep.subr.bf16.mxu0 0
    %3065 = vmatpush1.bf16.msra.mxu0 0
    %3066 = vmatprep.subr.bf16.mxu0 0
    %3067 = vmatpush1.bf16.msra.mxu0 0
    %3068 = vmatprep.subr.bf16.mxu0 0
    %3069 = vmatpush1.bf16.msra.mxu0 0
    %3070 = vmatprep.subr.bf16.mxu0 0
    %3071 = vmatpush1.bf16.msra.mxu0 0
    %3072 = vmatprep.subr.bf16.mxu0 0
    %3073 = vmatpush1.bf16.msra.mxu0 %v3060
    %3074 = vmatprep.subr.bf16.mxu0 0
    %3075 = vmatpush1.bf16.msra.mxu0 %v3052
    %3076 = vmatprep.subr.bf16.mxu0 0
    %3077 = vmatpush1.bf16.msra.mxu0 %v3051
    %3078 = vmatprep.subr.bf16.mxu0 0
    %3079 = vmatpush2.bf16.msra.mxu0 0
    %3080 = vmatprep.subr.bf16.mxu0 0
    %3081 = vmatpush2.bf16.msra.mxu0 0
    %3082 = vmatprep.subr.bf16.mxu0 0
    %3083 = vmatpush2.bf16.msra.mxu0 0
    %3084 = vmatprep.subr.bf16.mxu0 0
    %3085 = vmatpush2.bf16.msra.mxu0 0
    %3086 = vmatprep.subr.bf16.mxu0 0
    %3087 = vmatpush2.bf16.msra.mxu0 0
    %3088 = vmatprep.subr.bf16.mxu0 0
    %3089 = vmatpush2.bf16.msra.mxu0 0
    %3090 = vmatprep.subr.bf16.mxu0 0
    %3091 = vmatpush2.bf16.msra.mxu0 0
    %3092 = vmatprep.subr.bf16.mxu0 0
    %3093 = vmatpush2.bf16.msra.mxu0 0
    %3094 = vmatprep.mubr.bf16.mxu0 0
    %3095 = vmatmul.mubr.bf16.gmra.mxu0 %v3057
    %v3096 = vpop.f32.mrf.mxu0
    %v3097 = vadd.f32 0.0, %v3096
    %v3098 = vpop.f32.mrf.mxu0
    %v3099 = vpop.f32.mrf.mxu0
    %v3100 = vpop.f32.mrf.mxu0
    %3101 = vdwg.mxu0
    %v3102 = vadd.f32 %v3033, %v3097
    %v3103 = vld [vmem:[%s1625] sm:$0xf]
    %v3104 = vld [vmem:[%s1625 + $0x4] sm:$0xf]
    %v3105 = vld [vmem:[%s1625 + $0x8] sm:$0xf]
    %v3106 = vld [vmem:[%s1625 + $0xc] sm:$0xf]
    %v3107 = vld [vmem:[%s1625 + $0x10] sm:$0x3]
    %3108 = vrot.lane.b32.xlu0 %v1632, 92
    %v3109 = vpop.permute.xlu0 %3108
    %v3115 = vunpack.c.l.b16 %v3103
    %v3116 = vunpack.c.l.b16 %v3104
    %v3117 = vunpack.c.l.b16 %v3105
    %v3118 = vunpack.c.l.b16 %v3106
    %v3119 = vunpack.c.l.b16 %v3107
    %v3120 = vpack.c.b16 %v3116, %v3115
    %v3121 = vpack.c.b16 %v3118, %v3117
    %v3122 = vpack.c.b16 %v3119, %v3119
    %v3126 = vsel %vm952, %v3109, 0
    %v3129 = vsel %vm956, %v3122, 0
    %3131 = vmatprep.subr.bf16.mxu0 0
    %3132 = vmatpush1.bf16.msra.mxu0 0
    %3133 = vmatprep.subr.bf16.mxu0 0
    %3134 = vmatpush1.bf16.msra.mxu0 0
    %3135 = vmatprep.subr.bf16.mxu0 0
    %3136 = vmatpush1.bf16.msra.mxu0 0
    %3137 = vmatprep.subr.bf16.mxu0 0
    %3138 = vmatpush1.bf16.msra.mxu0 0
    %3139 = vmatprep.subr.bf16.mxu0 0
    %3140 = vmatpush1.bf16.msra.mxu0 0
    %3141 = vmatprep.subr.bf16.mxu0 0
    %3142 = vmatpush1.bf16.msra.mxu0 %v3129
    %3143 = vmatprep.subr.bf16.mxu0 0
    %3144 = vmatpush1.bf16.msra.mxu0 %v3121
    %3145 = vmatprep.subr.bf16.mxu0 0
    %3146 = vmatpush1.bf16.msra.mxu0 %v3120
    %3147 = vmatprep.subr.bf16.mxu0 0
    %3148 = vmatpush2.bf16.msra.mxu0 0
    %3149 = vmatprep.subr.bf16.mxu0 0
    %3150 = vmatpush2.bf16.msra.mxu0 0
    %3151 = vmatprep.subr.bf16.mxu0 0
    %3152 = vmatpush2.bf16.msra.mxu0 0
    %3153 = vmatprep.subr.bf16.mxu0 0
    %3154 = vmatpush2.bf16.msra.mxu0 0
    %3155 = vmatprep.subr.bf16.mxu0 0
    %3156 = vmatpush2.bf16.msra.mxu0 0
    %3157 = vmatprep.subr.bf16.mxu0 0
    %3158 = vmatpush2.bf16.msra.mxu0 0
    %3159 = vmatprep.subr.bf16.mxu0 0
    %3160 = vmatpush2.bf16.msra.mxu0 0
    %3161 = vmatprep.subr.bf16.mxu0 0
    %3162 = vmatpush2.bf16.msra.mxu0 0
    %3163 = vmatprep.mubr.bf16.mxu0 0
    %3164 = vmatmul.mubr.bf16.gmra.mxu0 %v3126
    %v3165 = vpop.f32.mrf.mxu0
    %v3166 = vadd.f32 0.0, %v3165
    %v3167 = vpop.f32.mrf.mxu0
    %v3168 = vpop.f32.mrf.mxu0
    %v3169 = vpop.f32.mrf.mxu0
    %3170 = vdwg.mxu0
    %v3171 = vadd.f32 %v3102, %v3166
    %v3172 = vld [vmem:[%s1695] sm:$0xf]
    %v3173 = vld [vmem:[%s1695 + $0x4] sm:$0xf]
    %v3174 = vld [vmem:[%s1695 + $0x8] sm:$0xf]
    %v3175 = vld [vmem:[%s1695 + $0xc] sm:$0xf]
    %v3176 = vld [vmem:[%s1695 + $0x10] sm:$0x3]
    %3177 = vrot.lane.b32.xlu0 %v1701, 92
    %v3178 = vpop.permute.xlu0 %3177
    %v3184 = vunpack.c.l.b16 %v3172
    %v3185 = vunpack.c.l.b16 %v3173
    %v3186 = vunpack.c.l.b16 %v3174
    %v3187 = vunpack.c.l.b16 %v3175
    %v3188 = vunpack.c.l.b16 %v3176
    %v3189 = vpack.c.b16 %v3185, %v3184
    %v3190 = vpack.c.b16 %v3187, %v3186
    %v3191 = vpack.c.b16 %v3188, %v3188
    %v3195 = vsel %vm952, %v3178, 0
    %v3198 = vsel %vm956, %v3191, 0
    %3200 = vmatprep.subr.bf16.mxu0 0
    %3201 = vmatpush1.bf16.msra.mxu0 0
    %3202 = vmatprep.subr.bf16.mxu0 0
    %3203 = vmatpush1.bf16.msra.mxu0 0
    %3204 = vmatprep.subr.bf16.mxu0 0
    %3205 = vmatpush1.bf16.msra.mxu0 0
    %3206 = vmatprep.subr.bf16.mxu0 0
    %3207 = vmatpush1.bf16.msra.mxu0 0
    %3208 = vmatprep.subr.bf16.mxu0 0
    %3209 = vmatpush1.bf16.msra.mxu0 0
    %3210 = vmatprep.subr.bf16.mxu0 0
    %3211 = vmatpush1.bf16.msra.mxu0 %v3198
    %3212 = vmatprep.subr.bf16.mxu0 0
    %3213 = vmatpush1.bf16.msra.mxu0 %v3190
    %3214 = vmatprep.subr.bf16.mxu0 0
    %3215 = vmatpush1.bf16.msra.mxu0 %v3189
    %3216 = vmatprep.subr.bf16.mxu0 0
    %3217 = vmatpush2.bf16.msra.mxu0 0
    %3218 = vmatprep.subr.bf16.mxu0 0
    %3219 = vmatpush2.bf16.msra.mxu0 0
    %3220 = vmatprep.subr.bf16.mxu0 0
    %3221 = vmatpush2.bf16.msra.mxu0 0
    %3222 = vmatprep.subr.bf16.mxu0 0
    %3223 = vmatpush2.bf16.msra.mxu0 0
    %3224 = vmatprep.subr.bf16.mxu0 0
    %3225 = vmatpush2.bf16.msra.mxu0 0
    %3226 = vmatprep.subr.bf16.mxu0 0
    %3227 = vmatpush2.bf16.msra.mxu0 0
    %3228 = vmatprep.subr.bf16.mxu0 0
    %3229 = vmatpush2.bf16.msra.mxu0 0
    %3230 = vmatprep.subr.bf16.mxu0 0
    %3231 = vmatpush2.bf16.msra.mxu0 0
    %3232 = vmatprep.mubr.bf16.mxu0 0
    %3233 = vmatmul.mubr.bf16.gmra.mxu0 %v3195
    %v3234 = vpop.f32.mrf.mxu0
    %v3235 = vadd.f32 0.0, %v3234
    %v3236 = vpop.f32.mrf.mxu0
    %v3237 = vpop.f32.mrf.mxu0
    %v3238 = vpop.f32.mrf.mxu0
    %3239 = vdwg.mxu0
    %v3240 = vadd.f32 %v3171, %v3235
    %v3241 = vld [vmem:[%s1764] sm:$0xf]
    %v3242 = vld [vmem:[%s1764 + $0x4] sm:$0xf]
    %v3243 = vld [vmem:[%s1764 + $0x8] sm:$0xf]
    %v3244 = vld [vmem:[%s1764 + $0xc] sm:$0xf]
    %v3245 = vld [vmem:[%s1764 + $0x10] sm:$0x3]
    %3246 = vrot.lane.b32.xlu0 %v1770, 92
    %v3247 = vpop.permute.xlu0 %3246
    %v3253 = vunpack.c.l.b16 %v3241
    %v3254 = vunpack.c.l.b16 %v3242
    %v3255 = vunpack.c.l.b16 %v3243
    %v3256 = vunpack.c.l.b16 %v3244
    %v3257 = vunpack.c.l.b16 %v3245
    %v3258 = vpack.c.b16 %v3254, %v3253
    %v3259 = vpack.c.b16 %v3256, %v3255
    %v3260 = vpack.c.b16 %v3257, %v3257
    %v3264 = vsel %vm952, %v3247, 0
    %v3267 = vsel %vm956, %v3260, 0
    %3269 = vmatprep.subr.bf16.mxu0 0
    %3270 = vmatpush1.bf16.msra.mxu0 0
    %3271 = vmatprep.subr.bf16.mxu0 0
    %3272 = vmatpush1.bf16.msra.mxu0 0
    %3273 = vmatprep.subr.bf16.mxu0 0
    %3274 = vmatpush1.bf16.msra.mxu0 0
    %3275 = vmatprep.subr.bf16.mxu0 0
    %3276 = vmatpush1.bf16.msra.mxu0 0
    %3277 = vmatprep.subr.bf16.mxu0 0
    %3278 = vmatpush1.bf16.msra.mxu0 0
    %3279 = vmatprep.subr.bf16.mxu0 0
    %3280 = vmatpush1.bf16.msra.mxu0 %v3267
    %3281 = vmatprep.subr.bf16.mxu0 0
    %3282 = vmatpush1.bf16.msra.mxu0 %v3259
    %3283 = vmatprep.subr.bf16.mxu0 0
    %3284 = vmatpush1.bf16.msra.mxu0 %v3258
    %3285 = vmatprep.subr.bf16.mxu0 0
    %3286 = vmatpush2.bf16.msra.mxu0 0
    %3287 = vmatprep.subr.bf16.mxu0 0
    %3288 = vmatpush2.bf16.msra.mxu0 0
    %3289 = vmatprep.subr.bf16.mxu0 0
    %3290 = vmatpush2.bf16.msra.mxu0 0
    %3291 = vmatprep.subr.bf16.mxu0 0
    %3292 = vmatpush2.bf16.msra.mxu0 0
    %3293 = vmatprep.subr.bf16.mxu0 0
    %3294 = vmatpush2.bf16.msra.mxu0 0
    %3295 = vmatprep.subr.bf16.mxu0 0
    %3296 = vmatpush2.bf16.msra.mxu0 0
    %3297 = vmatprep.subr.bf16.mxu0 0
    %3298 = vmatpush2.bf16.msra.mxu0 0
    %3299 = vmatprep.subr.bf16.mxu0 0
    %3300 = vmatpush2.bf16.msra.mxu0 0
    %3301 = vmatprep.mubr.bf16.mxu0 0
    %3302 = vmatmul.mubr.bf16.gmra.mxu0 %v3264
    %v3303 = vpop.f32.mrf.mxu0
    %v3304 = vadd.f32 0.0, %v3303
    %v3305 = vpop.f32.mrf.mxu0
    %v3306 = vpop.f32.mrf.mxu0
    %v3307 = vpop.f32.mrf.mxu0
    %3308 = vdwg.mxu0
    %v3309 = vadd.f32 %v3240, %v3304
    %v3310 = vld [vmem:[%s1833] sm:$0xf]
    %v3311 = vld [vmem:[%s1833 + $0x4] sm:$0xf]
    %v3312 = vld [vmem:[%s1833 + $0x8] sm:$0xf]
    %v3313 = vld [vmem:[%s1833 + $0xc] sm:$0xf]
    %v3314 = vld [vmem:[%s1833 + $0x10] sm:$0x3]
    %3315 = vrot.lane.b32.xlu0 %v1839, 92
    %v3316 = vpop.permute.xlu0 %3315
    %v3322 = vunpack.c.l.b16 %v3310
    %v3323 = vunpack.c.l.b16 %v3311
    %v3324 = vunpack.c.l.b16 %v3312
    %v3325 = vunpack.c.l.b16 %v3313
    %v3326 = vunpack.c.l.b16 %v3314
    %v3327 = vpack.c.b16 %v3323, %v3322
    %v3328 = vpack.c.b16 %v3325, %v3324
    %v3329 = vpack.c.b16 %v3326, %v3326
    %v3333 = vsel %vm952, %v3316, 0
    %v3336 = vsel %vm956, %v3329, 0
    %3338 = vmatprep.subr.bf16.mxu0 0
    %3339 = vmatpush1.bf16.msra.mxu0 0
    %3340 = vmatprep.subr.bf16.mxu0 0
    %3341 = vmatpush1.bf16.msra.mxu0 0
    %3342 = vmatprep.subr.bf16.mxu0 0
    %3343 = vmatpush1.bf16.msra.mxu0 0
    %3344 = vmatprep.subr.bf16.mxu0 0
    %3345 = vmatpush1.bf16.msra.mxu0 0
    %3346 = vmatprep.subr.bf16.mxu0 0
    %3347 = vmatpush1.bf16.msra.mxu0 0
    %3348 = vmatprep.subr.bf16.mxu0 0
    %3349 = vmatpush1.bf16.msra.mxu0 %v3336
    %3350 = vmatprep.subr.bf16.mxu0 0
    %3351 = vmatpush1.bf16.msra.mxu0 %v3328
    %3352 = vmatprep.subr.bf16.mxu0 0
    %3353 = vmatpush1.bf16.msra.mxu0 %v3327
    %3354 = vmatprep.subr.bf16.mxu0 0
    %3355 = vmatpush2.bf16.msra.mxu0 0
    %3356 = vmatprep.subr.bf16.mxu0 0
    %3357 = vmatpush2.bf16.msra.mxu0 0
    %3358 = vmatprep.subr.bf16.mxu0 0
    %3359 = vmatpush2.bf16.msra.mxu0 0
    %3360 = vmatprep.subr.bf16.mxu0 0
    %3361 = vmatpush2.bf16.msra.mxu0 0
    %3362 = vmatprep.subr.bf16.mxu0 0
    %3363 = vmatpush2.bf16.msra.mxu0 0
    %3364 = vmatprep.subr.bf16.mxu0 0
    %3365 = vmatpush2.bf16.msra.mxu0 0
    %3366 = vmatprep.subr.bf16.mxu0 0
    %3367 = vmatpush2.bf16.msra.mxu0 0
    %3368 = vmatprep.subr.bf16.mxu0 0
    %3369 = vmatpush2.bf16.msra.mxu0 0
    %3370 = vmatprep.mubr.bf16.mxu0 0
    %3371 = vmatmul.mubr.bf16.gmra.mxu0 %v3333
    %v3372 = vpop.f32.mrf.mxu0
    %v3373 = vadd.f32 0.0, %v3372
    %v3374 = vpop.f32.mrf.mxu0
    %v3375 = vpop.f32.mrf.mxu0
    %v3376 = vpop.f32.mrf.mxu0
    %3377 = vdwg.mxu0
    %v3378 = vadd.f32 %v3309, %v3373
    %v3379 = vld [vmem:[%s1902] sm:$0xf]
    %v3380 = vld [vmem:[%s1902 + $0x4] sm:$0xf]
    %v3381 = vld [vmem:[%s1902 + $0x8] sm:$0xf]
    %v3382 = vld [vmem:[%s1902 + $0xc] sm:$0xf]
    %v3383 = vld [vmem:[%s1902 + $0x10] sm:$0x3]
    %3384 = vrot.lane.b32.xlu0 %v1908, 92
    %v3385 = vpop.permute.xlu0 %3384
    %v3391 = vunpack.c.l.b16 %v3379
    %v3392 = vunpack.c.l.b16 %v3380
    %v3393 = vunpack.c.l.b16 %v3381
    %v3394 = vunpack.c.l.b16 %v3382
    %v3395 = vunpack.c.l.b16 %v3383
    %v3396 = vpack.c.b16 %v3392, %v3391
    %v3397 = vpack.c.b16 %v3394, %v3393
    %v3398 = vpack.c.b16 %v3395, %v3395
    %v3402 = vsel %vm952, %v3385, 0
    %v3405 = vsel %vm956, %v3398, 0
    %3407 = vmatprep.subr.bf16.mxu0 0
    %3408 = vmatpush1.bf16.msra.mxu0 0
    %3409 = vmatprep.subr.bf16.mxu0 0
    %3410 = vmatpush1.bf16.msra.mxu0 0
    %3411 = vmatprep.subr.bf16.mxu0 0
    %3412 = vmatpush1.bf16.msra.mxu0 0
    %3413 = vmatprep.subr.bf16.mxu0 0
    %3414 = vmatpush1.bf16.msra.mxu0 0
    %3415 = vmatprep.subr.bf16.mxu0 0
    %3416 = vmatpush1.bf16.msra.mxu0 0
    %3417 = vmatprep.subr.bf16.mxu0 0
    %3418 = vmatpush1.bf16.msra.mxu0 %v3405
    %3419 = vmatprep.subr.bf16.mxu0 0
    %3420 = vmatpush1.bf16.msra.mxu0 %v3397
    %3421 = vmatprep.subr.bf16.mxu0 0
    %3422 = vmatpush1.bf16.msra.mxu0 %v3396
    %3423 = vmatprep.subr.bf16.mxu0 0
    %3424 = vmatpush2.bf16.msra.mxu0 0
    %3425 = vmatprep.subr.bf16.mxu0 0
    %3426 = vmatpush2.bf16.msra.mxu0 0
    %3427 = vmatprep.subr.bf16.mxu0 0
    %3428 = vmatpush2.bf16.msra.mxu0 0
    %3429 = vmatprep.subr.bf16.mxu0 0
    %3430 = vmatpush2.bf16.msra.mxu0 0
    %3431 = vmatprep.subr.bf16.mxu0 0
    %3432 = vmatpush2.bf16.msra.mxu0 0
    %3433 = vmatprep.subr.bf16.mxu0 0
    %3434 = vmatpush2.bf16.msra.mxu0 0
    %3435 = vmatprep.subr.bf16.mxu0 0
    %3436 = vmatpush2.bf16.msra.mxu0 0
    %3437 = vmatprep.subr.bf16.mxu0 0
    %3438 = vmatpush2.bf16.msra.mxu0 0
    %3439 = vmatprep.mubr.bf16.mxu0 0
    %3440 = vmatmul.mubr.bf16.gmra.mxu0 %v3402
    %v3441 = vpop.f32.mrf.mxu0
    %v3442 = vadd.f32 0.0, %v3441
    %v3443 = vpop.f32.mrf.mxu0
    %v3444 = vpop.f32.mrf.mxu0
    %v3445 = vpop.f32.mrf.mxu0
    %3446 = vdwg.mxu0
    %v3447 = vadd.f32 %v3378, %v3442
    %v3448 = vld [vmem:[%s1971] sm:$0xf]
    %v3449 = vld [vmem:[%s1971 + $0x4] sm:$0xf]
    %v3450 = vld [vmem:[%s1971 + $0x8] sm:$0xf]
    %v3451 = vld [vmem:[%s1971 + $0xc] sm:$0xf]
    %v3452 = vld [vmem:[%s1971 + $0x10] sm:$0x3]
    %3453 = vrot.lane.b32.xlu0 %v1977, 92
    %v3454 = vpop.permute.xlu0 %3453
    %v3460 = vunpack.c.l.b16 %v3448
    %v3461 = vunpack.c.l.b16 %v3449
    %v3462 = vunpack.c.l.b16 %v3450
    %v3463 = vunpack.c.l.b16 %v3451
    %v3464 = vunpack.c.l.b16 %v3452
    %v3465 = vpack.c.b16 %v3461, %v3460
    %v3466 = vpack.c.b16 %v3463, %v3462
    %v3467 = vpack.c.b16 %v3464, %v3464
    %v3471 = vsel %vm952, %v3454, 0
    %v3474 = vsel %vm956, %v3467, 0
    %3476 = vmatprep.subr.bf16.mxu0 0
    %3477 = vmatpush1.bf16.msra.mxu0 0
    %3478 = vmatprep.subr.bf16.mxu0 0
    %3479 = vmatpush1.bf16.msra.mxu0 0
    %3480 = vmatprep.subr.bf16.mxu0 0
    %3481 = vmatpush1.bf16.msra.mxu0 0
    %3482 = vmatprep.subr.bf16.mxu0 0
    %3483 = vmatpush1.bf16.msra.mxu0 0
    %3484 = vmatprep.subr.bf16.mxu0 0
    %3485 = vmatpush1.bf16.msra.mxu0 0
    %3486 = vmatprep.subr.bf16.mxu0 0
    %3487 = vmatpush1.bf16.msra.mxu0 %v3474
    %3488 = vmatprep.subr.bf16.mxu0 0
    %3489 = vmatpush1.bf16.msra.mxu0 %v3466
    %3490 = vmatprep.subr.bf16.mxu0 0
    %3491 = vmatpush1.bf16.msra.mxu0 %v3465
    %3492 = vmatprep.subr.bf16.mxu0 0
    %3493 = vmatpush2.bf16.msra.mxu0 0
    %3494 = vmatprep.subr.bf16.mxu0 0
    %3495 = vmatpush2.bf16.msra.mxu0 0
    %3496 = vmatprep.subr.bf16.mxu0 0
    %3497 = vmatpush2.bf16.msra.mxu0 0
    %3498 = vmatprep.subr.bf16.mxu0 0
    %3499 = vmatpush2.bf16.msra.mxu0 0
    %3500 = vmatprep.subr.bf16.mxu0 0
    %3501 = vmatpush2.bf16.msra.mxu0 0
    %3502 = vmatprep.subr.bf16.mxu0 0
    %3503 = vmatpush2.bf16.msra.mxu0 0
    %3504 = vmatprep.subr.bf16.mxu0 0
    %3505 = vmatpush2.bf16.msra.mxu0 0
    %3506 = vmatprep.subr.bf16.mxu0 0
    %3507 = vmatpush2.bf16.msra.mxu0 0
    %3508 = vmatprep.mubr.bf16.mxu0 0
    %3509 = vmatmul.mubr.bf16.gmra.mxu0 %v3471
    %v3510 = vpop.f32.mrf.mxu0
    %v3511 = vadd.f32 0.0, %v3510
    %v3512 = vpop.f32.mrf.mxu0
    %v3513 = vpop.f32.mrf.mxu0
    %v3514 = vpop.f32.mrf.mxu0
    %3515 = vdwg.mxu0
    %v3516 = vadd.f32 %v3447, %v3511
    %v3517 = vld [vmem:[%s2041] sm:$0xf]
    %v3518 = vld [vmem:[%s2041 + $0x4] sm:$0xf]
    %v3519 = vld [vmem:[%s2041 + $0x8] sm:$0xf]
    %v3520 = vld [vmem:[%s2041 + $0xc] sm:$0xf]
    %v3521 = vld [vmem:[%s2041 + $0x10] sm:$0x3]
    %3522 = vrot.lane.b32.xlu0 %v2040, 92
    %v3523 = vpop.permute.xlu0 %3522
    %v3529 = vunpack.c.l.b16 %v3517
    %v3530 = vunpack.c.l.b16 %v3518
    %v3531 = vunpack.c.l.b16 %v3519
    %v3532 = vunpack.c.l.b16 %v3520
    %v3533 = vunpack.c.l.b16 %v3521
    %v3534 = vpack.c.b16 %v3530, %v3529
    %v3535 = vpack.c.b16 %v3532, %v3531
    %v3536 = vpack.c.b16 %v3533, %v3533
    %v3540 = vsel %vm952, %v3523, 0
    %v3543 = vsel %vm956, %v3536, 0
    %3545 = vmatprep.subr.bf16.mxu0 0
    %3546 = vmatpush1.bf16.msra.mxu0 0
    %3547 = vmatprep.subr.bf16.mxu0 0
    %3548 = vmatpush1.bf16.msra.mxu0 0
    %3549 = vmatprep.subr.bf16.mxu0 0
    %3550 = vmatpush1.bf16.msra.mxu0 0
    %3551 = vmatprep.subr.bf16.mxu0 0
    %3552 = vmatpush1.bf16.msra.mxu0 0
    %3553 = vmatprep.subr.bf16.mxu0 0
    %3554 = vmatpush1.bf16.msra.mxu0 0
    %3555 = vmatprep.subr.bf16.mxu0 0
    %3556 = vmatpush1.bf16.msra.mxu0 %v3543
    %3557 = vmatprep.subr.bf16.mxu0 0
    %3558 = vmatpush1.bf16.msra.mxu0 %v3535
    %3559 = vmatprep.subr.bf16.mxu0 0
    %3560 = vmatpush1.bf16.msra.mxu0 %v3534
    %3561 = vmatprep.subr.bf16.mxu0 0
    %3562 = vmatpush2.bf16.msra.mxu0 0
    %3563 = vmatprep.subr.bf16.mxu0 0
    %3564 = vmatpush2.bf16.msra.mxu0 0
    %3565 = vmatprep.subr.bf16.mxu0 0
    %3566 = vmatpush2.bf16.msra.mxu0 0
    %3567 = vmatprep.subr.bf16.mxu0 0
    %3568 = vmatpush2.bf16.msra.mxu0 0
    %3569 = vmatprep.subr.bf16.mxu0 0
    %3570 = vmatpush2.bf16.msra.mxu0 0
    %3571 = vmatprep.subr.bf16.mxu0 0
    %3572 = vmatpush2.bf16.msra.mxu0 0
    %3573 = vmatprep.subr.bf16.mxu0 0
    %3574 = vmatpush2.bf16.msra.mxu0 0
    %3575 = vmatprep.subr.bf16.mxu0 0
    %3576 = vmatpush2.bf16.msra.mxu0 0
    %3577 = vmatprep.mubr.bf16.mxu0 0
    %3578 = vmatmul.mubr.bf16.gmra.mxu0 %v3540
    %v3579 = vpop.f32.mrf.mxu0
    %v3580 = vadd.f32 0.0, %v3579
    %v3581 = vpop.f32.mrf.mxu0
    %v3582 = vpop.f32.mrf.mxu0
    %v3583 = vpop.f32.mrf.mxu0
    %3584 = vdwg.mxu0
    %v3585 = vadd.f32 %v3516, %v3580
    %v3586 = vld [vmem:[%s2109] sm:$0xf]
    %v3587 = vld [vmem:[%s2109 + $0x4] sm:$0xf]
    %v3588 = vld [vmem:[%s2109 + $0x8] sm:$0xf]
    %v3589 = vld [vmem:[%s2109 + $0xc] sm:$0xf]
    %v3590 = vld [vmem:[%s2109 + $0x10] sm:$0x3]
    %3591 = vrot.lane.b32.xlu0 %v2115, 92
    %v3592 = vpop.permute.xlu0 %3591
    %v3598 = vunpack.c.l.b16 %v3586
    %v3599 = vunpack.c.l.b16 %v3587
    %v3600 = vunpack.c.l.b16 %v3588
    %v3601 = vunpack.c.l.b16 %v3589
    %v3602 = vunpack.c.l.b16 %v3590
    %v3603 = vpack.c.b16 %v3599, %v3598
    %v3604 = vpack.c.b16 %v3601, %v3600
    %v3605 = vpack.c.b16 %v3602, %v3602
    %v3609 = vsel %vm952, %v3592, 0
    %v3612 = vsel %vm956, %v3605, 0
    %3614 = vmatprep.subr.bf16.mxu0 0
    %3615 = vmatpush1.bf16.msra.mxu0 0
    %3616 = vmatprep.subr.bf16.mxu0 0
    %3617 = vmatpush1.bf16.msra.mxu0 0
    %3618 = vmatprep.subr.bf16.mxu0 0
    %3619 = vmatpush1.bf16.msra.mxu0 0
    %3620 = vmatprep.subr.bf16.mxu0 0
    %3621 = vmatpush1.bf16.msra.mxu0 0
    %3622 = vmatprep.subr.bf16.mxu0 0
    %3623 = vmatpush1.bf16.msra.mxu0 0
    %3624 = vmatprep.subr.bf16.mxu0 0
    %3625 = vmatpush1.bf16.msra.mxu0 %v3612
    %3626 = vmatprep.subr.bf16.mxu0 0
    %3627 = vmatpush1.bf16.msra.mxu0 %v3604
    %3628 = vmatprep.subr.bf16.mxu0 0
    %3629 = vmatpush1.bf16.msra.mxu0 %v3603
    %3630 = vmatprep.subr.bf16.mxu0 0
    %3631 = vmatpush2.bf16.msra.mxu0 0
    %3632 = vmatprep.subr.bf16.mxu0 0
    %3633 = vmatpush2.bf16.msra.mxu0 0
    %3634 = vmatprep.subr.bf16.mxu0 0
    %3635 = vmatpush2.bf16.msra.mxu0 0
    %3636 = vmatprep.subr.bf16.mxu0 0
    %3637 = vmatpush2.bf16.msra.mxu0 0
    %3638 = vmatprep.subr.bf16.mxu0 0
    %3639 = vmatpush2.bf16.msra.mxu0 0
    %3640 = vmatprep.subr.bf16.mxu0 0
    %3641 = vmatpush2.bf16.msra.mxu0 0
    %3642 = vmatprep.subr.bf16.mxu0 0
    %3643 = vmatpush2.bf16.msra.mxu0 0
    %3644 = vmatprep.subr.bf16.mxu0 0
    %3645 = vmatpush2.bf16.msra.mxu0 0
    %3646 = vmatprep.mubr.bf16.mxu0 0
    %3647 = vmatmul.mubr.bf16.gmra.mxu0 %v3609
    %v3648 = vpop.f32.mrf.mxu0
    %v3649 = vadd.f32 0.0, %v3648
    %v3650 = vpop.f32.mrf.mxu0
    %v3651 = vpop.f32.mrf.mxu0
    %v3652 = vpop.f32.mrf.mxu0
    %3653 = vdwg.mxu0
    %v3654 = vadd.f32 %v3585, %v3649
    %v3655 = vld [vmem:[%s2179] sm:$0xf]
    %v3656 = vld [vmem:[%s2179 + $0x4] sm:$0xf]
    %v3657 = vld [vmem:[%s2179 + $0x8] sm:$0xf]
    %v3658 = vld [vmem:[%s2179 + $0xc] sm:$0xf]
    %v3659 = vld [vmem:[%s2179 + $0x10] sm:$0x3]
    %3660 = vrot.lane.b32.xlu0 %v2186, 92
    %v3661 = vpop.permute.xlu0 %3660
    %v3667 = vunpack.c.l.b16 %v3655
    %v3668 = vunpack.c.l.b16 %v3656
    %v3669 = vunpack.c.l.b16 %v3657
    %v3670 = vunpack.c.l.b16 %v3658
    %v3671 = vunpack.c.l.b16 %v3659
    %v3672 = vpack.c.b16 %v3668, %v3667
    %v3673 = vpack.c.b16 %v3670, %v3669
    %v3674 = vpack.c.b16 %v3671, %v3671
    %v3678 = vsel %vm952, %v3661, 0
    %v3681 = vsel %vm956, %v3674, 0
    %3683 = vmatprep.subr.bf16.mxu0 0
    %3684 = vmatpush1.bf16.msra.mxu0 0
    %3685 = vmatprep.subr.bf16.mxu0 0
    %3686 = vmatpush1.bf16.msra.mxu0 0
    %3687 = vmatprep.subr.bf16.mxu0 0
    %3688 = vmatpush1.bf16.msra.mxu0 0
    %3689 = vmatprep.subr.bf16.mxu0 0
    %3690 = vmatpush1.bf16.msra.mxu0 0
    %3691 = vmatprep.subr.bf16.mxu0 0
    %3692 = vmatpush1.bf16.msra.mxu0 0
    %3693 = vmatprep.subr.bf16.mxu0 0
    %3694 = vmatpush1.bf16.msra.mxu0 %v3681
    %3695 = vmatprep.subr.bf16.mxu0 0
    %3696 = vmatpush1.bf16.msra.mxu0 %v3673
    %3697 = vmatprep.subr.bf16.mxu0 0
    %3698 = vmatpush1.bf16.msra.mxu0 %v3672
    %3699 = vmatprep.subr.bf16.mxu0 0
    %3700 = vmatpush2.bf16.msra.mxu0 0
    %3701 = vmatprep.subr.bf16.mxu0 0
    %3702 = vmatpush2.bf16.msra.mxu0 0
    %3703 = vmatprep.subr.bf16.mxu0 0
    %3704 = vmatpush2.bf16.msra.mxu0 0
    %3705 = vmatprep.subr.bf16.mxu0 0
    %3706 = vmatpush2.bf16.msra.mxu0 0
    %3707 = vmatprep.subr.bf16.mxu0 0
    %3708 = vmatpush2.bf16.msra.mxu0 0
    %3709 = vmatprep.subr.bf16.mxu0 0
    %3710 = vmatpush2.bf16.msra.mxu0 0
    %3711 = vmatprep.subr.bf16.mxu0 0
    %3712 = vmatpush2.bf16.msra.mxu0 0
    %3713 = vmatprep.subr.bf16.mxu0 0
    %3714 = vmatpush2.bf16.msra.mxu0 0
    %3715 = vmatprep.mubr.bf16.mxu0 0
    %3716 = vmatmul.mubr.bf16.gmra.mxu0 %v3678
    %v3717 = vpop.f32.mrf.mxu0
    %v3718 = vadd.f32 0.0, %v3717
    %v3719 = vpop.f32.mrf.mxu0
    %v3720 = vpop.f32.mrf.mxu0
    %v3721 = vpop.f32.mrf.mxu0
    %3722 = vdwg.mxu0
    %v3723 = vadd.f32 %v3654, %v3718
    %v3724 = vld [vmem:[%s2249] sm:$0xf]
    %v3725 = vld [vmem:[%s2249 + $0x4] sm:$0xf]
    %v3726 = vld [vmem:[%s2249 + $0x8] sm:$0xf]
    %v3727 = vld [vmem:[%s2249 + $0xc] sm:$0xf]
    %v3728 = vld [vmem:[%s2249 + $0x10] sm:$0x3]
    %3729 = vrot.lane.b32.xlu0 %v2255, 92
    %v3730 = vpop.permute.xlu0 %3729
    %v3736 = vunpack.c.l.b16 %v3724
    %v3737 = vunpack.c.l.b16 %v3725
    %v3738 = vunpack.c.l.b16 %v3726
    %v3739 = vunpack.c.l.b16 %v3727
    %v3740 = vunpack.c.l.b16 %v3728
    %v3741 = vpack.c.b16 %v3737, %v3736
    %v3742 = vpack.c.b16 %v3739, %v3738
    %v3743 = vpack.c.b16 %v3740, %v3740
    %v3747 = vsel %vm952, %v3730, 0
    %v3750 = vsel %vm956, %v3743, 0
    %3752 = vmatprep.subr.bf16.mxu0 0
    %3753 = vmatpush1.bf16.msra.mxu0 0
    %3754 = vmatprep.subr.bf16.mxu0 0
    %3755 = vmatpush1.bf16.msra.mxu0 0
    %3756 = vmatprep.subr.bf16.mxu0 0
    %3757 = vmatpush1.bf16.msra.mxu0 0
    %3758 = vmatprep.subr.bf16.mxu0 0
    %3759 = vmatpush1.bf16.msra.mxu0 0
    %3760 = vmatprep.subr.bf16.mxu0 0
    %3761 = vmatpush1.bf16.msra.mxu0 0
    %3762 = vmatprep.subr.bf16.mxu0 0
    %3763 = vmatpush1.bf16.msra.mxu0 %v3750
    %3764 = vmatprep.subr.bf16.mxu0 0
    %3765 = vmatpush1.bf16.msra.mxu0 %v3742
    %3766 = vmatprep.subr.bf16.mxu0 0
    %3767 = vmatpush1.bf16.msra.mxu0 %v3741
    %3768 = vmatprep.subr.bf16.mxu0 0
    %3769 = vmatpush2.bf16.msra.mxu0 0
    %3770 = vmatprep.subr.bf16.mxu0 0
    %3771 = vmatpush2.bf16.msra.mxu0 0
    %3772 = vmatprep.subr.bf16.mxu0 0
    %3773 = vmatpush2.bf16.msra.mxu0 0
    %3774 = vmatprep.subr.bf16.mxu0 0
    %3775 = vmatpush2.bf16.msra.mxu0 0
    %3776 = vmatprep.subr.bf16.mxu0 0
    %3777 = vmatpush2.bf16.msra.mxu0 0
    %3778 = vmatprep.subr.bf16.mxu0 0
    %3779 = vmatpush2.bf16.msra.mxu0 0
    %3780 = vmatprep.subr.bf16.mxu0 0
    %3781 = vmatpush2.bf16.msra.mxu0 0
    %3782 = vmatprep.subr.bf16.mxu0 0
    %3783 = vmatpush2.bf16.msra.mxu0 0
    %3784 = vmatprep.mubr.bf16.mxu0 0
    %3785 = vmatmul.mubr.bf16.gmra.mxu0 %v3747
    %v3786 = vpop.f32.mrf.mxu0
    %v3787 = vadd.f32 0.0, %v3786
    %v3788 = vpop.f32.mrf.mxu0
    %v3789 = vpop.f32.mrf.mxu0
    %v3790 = vpop.f32.mrf.mxu0
    %3791 = vdwg.mxu0
    %v3792 = vadd.f32 %v3723, %v3787
    %v3793 = vmax.f32 %v3792, 0.0
    %v3794 = vld [vmem:[%s6] sm:$0xff]
    %v3795 = vld [vmem:[%s6 + $0x8] sm:$0xff]
    %v3796 = vld [vmem:[%s6 + $0x10] sm:$0xff]
    %v3797 = vld [vmem:[%s6 + $0x18] sm:$0xff]
    %v3798 = vld [vmem:[%s6 + $0x20] sm:$0xff]
    %v3799 = vld [vmem:[%s6 + $0x28] sm:$0xff]
    %v3800 = vld [vmem:[%s6 + $0x30] sm:$0xff]
    %v3801 = vld [vmem:[%s6 + $0x38] sm:$0xff]
    %v3802 = vld [vmem:[%s6 + $0x40] sm:$0xff]
    %v3803 = vld [vmem:[%s6 + $0x48] sm:$0xff]
    %v3804 = vld [vmem:[%s6 + $0x50] sm:$0xff]
    %v3805 = vld [vmem:[%s6 + $0x58] sm:$0xff]
    %v3806 = vld [vmem:[%s6 + $0x60] sm:$0xf]
    %v3807 = vld [vmem:[%s7] sm:$0x1]
    %v3809 = vsel %vm2333, %v3793, 0
    %v3812 = vsel %vm682, %v3806, 0
    %3814 = vmatprep.subr.mxu0 0.0
    %3815 = vmatpush1.msra.mxu0 0.0
    %3816 = vmatprep.subr.mxu0 0.0
    %3817 = vmatpush1.msra.mxu0 0.0
    %3818 = vmatprep.subr.mxu0 0.0
    %3819 = vmatpush1.msra.mxu0 0.0
    %3820 = vmatprep.subr.mxu0 0.0
    %3821 = vmatpush1.msra.mxu0 %v3812
    %3822 = vmatprep.subr.mxu0 0.0
    %3823 = vmatpush1.msra.mxu0 %v3805
    %3824 = vmatprep.subr.mxu0 0.0
    %3825 = vmatpush1.msra.mxu0 %v3804
    %3826 = vmatprep.subr.mxu0 0.0
    %3827 = vmatpush1.msra.mxu0 %v3803
    %3828 = vmatprep.subr.mxu0 0.0
    %3829 = vmatpush1.msra.mxu0 %v3802
    %3830 = vmatprep.subr.mxu0 0.0
    %3831 = vmatpush1.msra.mxu0 %v3801
    %3832 = vmatprep.subr.mxu0 0.0
    %3833 = vmatpush1.msra.mxu0 %v3800
    %3834 = vmatprep.subr.mxu0 0.0
    %3835 = vmatpush1.msra.mxu0 %v3799
    %3836 = vmatprep.subr.mxu0 0.0
    %3837 = vmatpush1.msra.mxu0 %v3798
    %3838 = vmatprep.subr.mxu0 0.0
    %3839 = vmatpush1.msra.mxu0 %v3797
    %3840 = vmatprep.subr.mxu0 0.0
    %3841 = vmatpush1.msra.mxu0 %v3796
    %3842 = vmatprep.subr.mxu0 0.0
    %3843 = vmatpush1.msra.mxu0 %v3795
    %3844 = vmatprep.subr.mxu0 0.0
    %3845 = vmatpush1.msra.mxu0 %v3794
    %3846 = vmatprep.subr.mxu0 0.0
    %3847 = vmatpush2.msra.mxu0 0.0
    %3848 = vmatprep.subr.mxu0 0.0
    %3849 = vmatpush2.msra.mxu0 0.0
    %3850 = vmatprep.subr.mxu0 0.0
    %3851 = vmatpush2.msra.mxu0 0.0
    %3852 = vmatprep.subr.mxu0 0.0
    %3853 = vmatpush2.msra.mxu0 0.0
    %3854 = vmatprep.subr.mxu0 0.0
    %3855 = vmatpush2.msra.mxu0 0.0
    %3856 = vmatprep.subr.mxu0 0.0
    %3857 = vmatpush2.msra.mxu0 0.0
    %3858 = vmatprep.subr.mxu0 0.0
    %3859 = vmatpush2.msra.mxu0 0.0
    %3860 = vmatprep.subr.mxu0 0.0
    %3861 = vmatpush2.msra.mxu0 0.0
    %3862 = vmatprep.subr.mxu0 0.0
    %3863 = vmatpush2.msra.mxu0 0.0
    %3864 = vmatprep.subr.mxu0 0.0
    %3865 = vmatpush2.msra.mxu0 0.0
    %3866 = vmatprep.subr.mxu0 0.0
    %3867 = vmatpush2.msra.mxu0 0.0
    %3868 = vmatprep.subr.mxu0 0.0
    %3869 = vmatpush2.msra.mxu0 0.0
    %3870 = vmatprep.subr.mxu0 0.0
    %3871 = vmatpush2.msra.mxu0 0.0
    %3872 = vmatprep.subr.mxu0 0.0
    %3873 = vmatpush2.msra.mxu0 0.0
    %3874 = vmatprep.subr.mxu0 0.0
    %3875 = vmatpush2.msra.mxu0 0.0
    %3876 = vmatprep.subr.mxu0 0.0
    %3877 = vmatpush2.msra.mxu0 0.0
    %3878 = vmatprep.mubr.f32.mxu0 0.0
    %3879 = vmatmul.mubr.f32.gmra.mxu0 %v3809
    %v3880 = vpop.f32.mrf.mxu0
    %v3881 = vadd.f32 %v3807, %v3880
    %v3882 = vpop.f32.mrf.mxu0
    %3883 = vdwg.mxu0
    %3884 = vst.msk [vmem:[#allocation2 + $0x1] sm:$0x1] %vm2410, %v3881
    // Predicated region
    $region34: #{simple_net_forward.3} parent=1 // pred_check
      _
    $region35: #{simple_net_forward.3} parent=1 // pred_check_branch
      %3886 = sbr.rel (0) target = $region37
    $region36: #{simple_net_forward.3} parent=1 // pred_region
      %s3888 = ssub.s32 32, 32
      %3889 = vsyncadd [#allocation3], %s3888
      %s3891 = sshll.u32 [#allocation2], 4
      %s3892 = int_to_ptr.vmem [resolvable:$true] %s3891
      %3894 = dma.vmem_to_hbm [thread:$0]  %s3892, 32, %s8, [#allocation3]
    $region37: #{simple_net_forward.3} parent=1 // pred_fallthru
      _
    // Predicated region
    $region38: #{simple_net_forward.3} parent=1 // pred_check
      _
    $region39: #{simple_net_forward.3} parent=1 // pred_check_branch
      %3896 = sbr.rel (0) target = $region41
    $region40: #{simple_net_forward.3} parent=1 // pred_region
      %3897 = dma.done [#allocation3], 32
    $region41: #{simple_net_forward.3} parent=1 // pred_fallthru
      _
    %3898 = vsyncpa [#allocation3], 1

</llo_original>
